<compile_context>
chip_gen: v6e
topology: v6e:2x2x1
jax: 0.10.0
libtpu: 0.0.40
codegen_flags: <defaults>
</compile_context>

<pallas_src>
import math
import jax
import jax.numpy as jnp
from jax.experimental import pallas as pl
from jax.experimental.pallas import tpu as pltpu

# ----------------------------- hyperparameters ------------------------------
DIM = 32            # transformer dim
HEADS = 4
D_K = DIM // HEADS
D_FF = 64
DIM_GNN = 10
LAYER_GNN = 2
N_ENCODER = 1
N_DECODER = 1
N_CNN = 3
WINDOW = 11
KSIZE = 2 * WINDOW + 1            # 23 (nn.Conv2d(1,1,23,padding=11))
KPAD = 768                        # KSIZE*DIM = 736 padded up to 6*128 lanes
N_FINGERPRINT = 20
N_WORD = 30
N_ATOMS = 8
N_WORDS = 16
EPS = 1e-6

# ------------------------- in-kernel math helpers ---------------------------

def _lin(x, w, b):
    return jnp.dot(x, w, preferred_element_type=jnp.float32) + b


def _qkT(q, k):
    # q @ k^T (contract last dims) without materializing a transpose.
    return jax.lax.dot_general(q, k, (((1,), (1,)), ((), ())),
                               preferred_element_type=jnp.float32)


def _softmax_last(x):
    m = jnp.max(x, axis=-1, keepdims=True)
    e = jnp.exp(x - m)
    return e * pl.reciprocal(jnp.sum(e, axis=-1, keepdims=True), approx=True)


def _softmax_axis0(x):
    m = jnp.max(x, axis=0, keepdims=True)
    e = jnp.exp(x - m)
    return e * pl.reciprocal(jnp.sum(e, axis=0, keepdims=True), approx=True)


def _layer_norm(x, a, b):
    # torch-style custom LayerNorm: a * (x - mean) / (std_unbiased + eps) + b
    mean = jnp.mean(x, axis=-1, keepdims=True)
    var = jnp.sum((x - mean) ** 2, axis=-1, keepdims=True) / (x.shape[-1] - 1)
    inv = pl.reciprocal(jnp.sqrt(var) + EPS, approx=True)
    return a * (x - mean) * inv + b


def _self_attn(x, qkv_w, qkv_b, ow, ob):
    # fused QKV projection, per-head attention, single output projection
    qkv = _lin(x, qkv_w, qkv_b)                       # [N, 3*DIM]
    q, k, v = qkv[:, :DIM], qkv[:, DIM:2 * DIM], qkv[:, 2 * DIM:3 * DIM]
    heads = []
    for h in range(HEADS):
        sl = slice(h * D_K, (h + 1) * D_K)
        s = _qkT(q[:, sl], k[:, sl])                  # [N, N], no 1/sqrt(dk) (as in source)
        p = _softmax_last(s)
        heads.append(jnp.dot(p, v[:, sl], preferred_element_type=jnp.float32))
    o = jnp.concatenate(heads, axis=1)                # [N, DIM]
    return _lin(o, ow, ob)


def _tgt_attn(tgt, x, tw, tb, qw, qb, kvw, kvb, ow, ob):
    # query = tgt [1, DIM_GNN]; key = value = x [N, DIM]; output is [N, DIM]
    q = _lin(_lin(tgt, tw, tb), qw, qb)               # [1, DIM]
    kv = _lin(x, kvw, kvb)                            # [N, 2*DIM]
    k, v = kv[:, :DIM], kv[:, DIM:]
    heads = []
    for h in range(HEADS):
        sl = slice(h * D_K, (h + 1) * D_K)
        s_col = _qkT(k[:, sl], q[:, sl])              # [N, 1] == scores^T
        p_col = _softmax_axis0(s_col)                 # softmax over words
        heads.append(p_col * v[:, sl])                # torch: p_attn * value (broadcast)
    o = jnp.concatenate(heads, axis=1)                # [N, DIM]
    return _lin(o, ow, ob)


def _tgt_out(tgt, x, tw, tb, qw, qb, kvw, kvb, ow, ob):
    # query = tgt; key = value = x; output is [1, DIM]
    q = _lin(_lin(tgt, tw, tb), qw, qb)               # [1, DIM]
    kv = _lin(x, kvw, kvb)                            # [N, 2*DIM]
    k, v = kv[:, :DIM], kv[:, DIM:]
    heads = []
    for h in range(HEADS):
        sl = slice(h * D_K, (h + 1) * D_K)
        s = _qkT(q[:, sl], k[:, sl])                  # [1, N]
        p = _softmax_last(s)
        heads.append(jnp.dot(p, v[:, sl], preferred_element_type=jnp.float32))
    o = jnp.concatenate(heads, axis=1)                # [1, DIM]
    return _lin(o, ow, ob)


# ------------------------------ fused kernel ---------------------------------

def cpi_fused_kernel(
    fvec_ref, adj_ref, xw_ref,
    wg_ref, bg_ref,
    eqkvw_ref, eqkvb_ref, eow_ref, eob_ref,
    ew1_ref, eb1_ref, ew2_ref, eb2_ref,
    elna_ref, elnb_ref,
    convM_ref, convb_ref,
    dtw_ref, dtb_ref,
    dtaqw_ref, dtaqb_ref, dtakvw_ref, dtakvb_ref, dtaow_ref, dtaob_ref,
    dsaqkvw_ref, dsaqkvb_ref, dsaow_ref, dsaob_ref,
    dw1_ref, db1_ref, dw2_ref, db2_ref,
    dlna_ref, dlnb_ref,
    totw_ref, totb_ref, toqw_ref, toqb_ref,
    tokvw_ref, tokvb_ref, toow_ref, toob_ref,
    fna_ref, fnb_ref, wi_ref, bi_ref,
    o_ref,
):
    # ---------------- GNN (compound vector) ----------------
    xs = fvec_ref[...]                                # [Na, G]
    A = adj_ref[...]                                  # [Na, Na]
    for i in range(LAYER_GNN):
        hs = jnp.maximum(_lin(xs, wg_ref[i], bg_ref[i]), 0.0)
        xs = xs + jnp.dot(A, hs, preferred_element_type=jnp.float32)
    comp = jnp.mean(xs, axis=0, keepdims=True)        # [1, G]

    # ---------------- encoder ----------------
    x = xw_ref[...]                                   # [N, DIM] (embeddings + pos enc)
    for i in range(N_ENCODER):
        lna, lnb = elna_ref[i], elnb_ref[i]
        attn = _self_attn(x, eqkvw_ref[i], eqkvb_ref[i], eow_ref[i], eob_ref[i])
        x = _layer_norm(x + attn, lna[0:1, :], lnb[0:1, :])
        ff = _lin(jnp.maximum(_lin(x, ew1_ref[i], eb1_ref[i]), 0.0),
                  ew2_ref[i], eb2_ref[i])
        x = _layer_norm(x + ff, lna[1:2, :], lnb[1:2, :])

    # ---------------- 3 x Conv2d(1,1,23,pad=11) + relu via im2col ----------------
    zrows = jnp.zeros((WINDOW, DIM), jnp.float32)
    ztail = jnp.zeros((N_WORDS, KPAD - KSIZE * DIM), jnp.float32)
    for layer in range(N_CNN):
        xp = jnp.concatenate([zrows, x, zrows], axis=0)                 # [N+2W, DIM]
        U = jnp.concatenate(
            [xp[p:p + N_WORDS, :] for p in range(KSIZE)] + [ztail],
            axis=1)                                                     # [N, KPAD]
        x = jnp.maximum(
            jnp.dot(U, convM_ref[layer], preferred_element_type=jnp.float32)
            + convb_ref[layer], 0.0)

    # ---------------- decoder ----------------
    for i in range(N_DECODER):
        lna, lnb = dlna_ref[i], dlnb_ref[i]
        ta = _tgt_attn(comp, x, dtw_ref[i], dtb_ref[i],
                       dtaqw_ref[i], dtaqb_ref[i],
                       dtakvw_ref[i], dtakvb_ref[i],
                       dtaow_ref[i], dtaob_ref[i])
        x = _layer_norm(x + ta, lna[0:1, :], lnb[0:1, :])
        sa = _self_attn(x, dsaqkvw_ref[i], dsaqkvb_ref[i], dsaow_ref[i], dsaob_ref[i])
        x = _layer_norm(x + sa, lna[1:2, :], lnb[1:2, :])
        ff = _lin(jnp.maximum(_lin(x, dw1_ref[i], db1_ref[i]), 0.0),
                  dw2_ref[i], db2_ref[i])
        x = _layer_norm(x + ff, lna[2:3, :], lnb[2:3, :])

    # ---------------- tgt_out + final norm + interaction head ----------------
    prot = _tgt_out(comp, x, totw_ref[...], totb_ref[...],
                    toqw_ref[...], toqb_ref[...],
                    tokvw_ref[...], tokvb_ref[...],
                    toow_ref[...], toob_ref[...])                       # [1, DIM]
    prot = _layer_norm(prot, fna_ref[...], fnb_ref[...])
    wi = wi_ref[...]                                                    # [G+DIM, 2]
    # concat(comp, prot) @ Wi == comp @ Wi[:G] + prot @ Wi[G:]
    o_ref[...] = (jnp.dot(comp, wi[:DIM_GNN, :], preferred_element_type=jnp.float32)
                  + jnp.dot(prot, wi[DIM_GNN:, :], preferred_element_type=jnp.float32)
                  + bi_ref[...])


# ------------------------------ JAX-side glue --------------------------------

def positional_encoding(n, d):
    pos = jnp.arange(n, dtype=jnp.float32)[:, None]
    div = jnp.exp(jnp.arange(0, d, 2, dtype=jnp.float32) * (-math.log(10000.0) / d))
    pe = jnp.zeros((n, d), jnp.float32)
    pe = pe.at[:, 0::2].set(jnp.sin(pos * div))
    pe = pe.at[:, 1::2].set(jnp.cos(pos * div))
    return pe


def build_im2col_weights(conv_w, width, pad):
    # M[layer, p*width + c, j] = w[layer, p, c + pad - j] (0 where the tap is OOB),
    # so  U @ M  with U[:, p*width + c] = rowpad(x)[p + r, c]  implements the
    # full 23x23 conv including the implicit zero padding on both axes.
    K = conv_w.shape[-1]
    c = jnp.arange(width)[:, None]
    j = jnp.arange(width)[None, :]
    dj = c + pad - j
    valid = (dj >= 0) & (dj < K)
    M = conv_w[:, :, jnp.clip(dj, 0, K - 1)]                  # [3, K, width, width]
    M = jnp.where(valid[None, None, :, :], M, 0.0)
    M = M.reshape(conv_w.shape[0], K * width, width)          # [3, K*width, width]
    M = jnp.pad(M, ((0, 0), (0, KPAD - K * width), (0, 0)))   # pad contraction to 768
    return M.astype(jnp.float32)


def cpi_forward(fingerprints, adjacency, words, p):
    # embedding gathers + positional encoding stay in XLA (cheap gathers); the
    # rest of the forward runs as ONE fused pallas_call.
    fvec = jnp.take(p["embed_fp"], fingerprints, axis=0)              # [Na, G]
    xw = (jnp.take(p["embed_word"], words, axis=0)
          + positional_encoding(words.shape[0], DIM))                 # [N, DIM]
    conv_M = build_im2col_weights(p["conv_w"], DIM, WINDOW)           # [3, 768, 32]

    vm = pl.BlockSpec(memory_space=pltpu.MemorySpace.VMEM)
    sm = pl.BlockSpec(memory_space=pltpu.MemorySpace.SMEM)

    args = [
        (fvec, vm), (adjacency, vm), (xw, vm),
        (p["wg"], vm), (p["bg"], vm),
        (p["enc_qkvw"], vm), (p["enc_qkvb"], vm), (p["enc_ow"], vm), (p["enc_ob"], vm),
        (p["enc_w1"], vm), (p["enc_b1"], vm), (p["enc_w2"], vm), (p["enc_b2"], vm),
        (p["enc_lna"], vm), (p["enc_lnb"], vm),
        (conv_M, vm), (p["conv_b"], sm),
        (p["dec_tw"], vm), (p["dec_tb"], vm),
        (p["dec_ta_qw"], vm), (p["dec_ta_qb"], vm),
        (p["dec_ta_kvw"], vm), (p["dec_ta_kvb"], vm),
        (p["dec_ta_ow"], vm), (p["dec_ta_ob"], vm),
        (p["dec_sa_qkvw"], vm), (p["dec_sa_qkvb"], vm),
        (p["dec_sa_ow"], vm), (p["dec_sa_ob"], vm),
        (p["dec_w1"], vm), (p["dec_b1"], vm), (p["dec_w2"], vm), (p["dec_b2"], vm),
        (p["dec_lna"], vm), (p["dec_lnb"], vm),
        (p["to_tw"], vm), (p["to_tb"], vm), (p["to_qw"], vm), (p["to_qb"], vm),
        (p["to_kvw"], vm), (p["to_kvb"], vm), (p["to_ow"], vm), (p["to_ob"], vm),
        (p["fna"], vm), (p["fnb"], vm), (p["wi"], vm), (p["bi"], vm),
    ]
    arrays = [a for a, _ in args]
    specs = [s for _, s in args]

    # TODO(synk): single-sample forward (as in the PyTorch module); to exploit
    # multiple TensorCores (v7x) a batch grid axis marked "parallel" would be needed.
    return pl.pallas_call(
        cpi_fused_kernel,
        out_shape=jax.ShapeDtypeStruct((1, 2), jnp.float32),
        in_specs=specs,
        out_specs=vm,
    )(*arrays)


def init_params(key):
    ks = iter(jax.random.split(key, 64))

    def w(shape, scale=0.1):
        return scale * jax.random.normal(next(ks), shape, dtype=jnp.float32)

    p = {
        "embed_fp": w((N_FINGERPRINT, DIM_GNN)),
        "embed_word": w((N_WORD, DIM)),
        "wg": w((LAYER_GNN, DIM_GNN, DIM_GNN)),
        "bg": w((LAYER_GNN, 1, DIM_GNN), 0.01),
        "conv_w": w((N_CNN, KSIZE, KSIZE)),
        "conv_b": w((N_CNN,), 0.01),
        # encoder layers (QKV fused along the output axis)
        "enc_qkvw": w((N_ENCODER, DIM, 3 * DIM)),
        "enc_qkvb": w((N_ENCODER, 1, 3 * DIM), 0.01),
        "enc_w1": w((N_ENCODER, DIM, D_FF)),
        "enc_b1": w((N_ENCODER, 1, D_FF), 0.01),
        "enc_w2": w((N_ENCODER, D_FF, DIM)),
        "enc_b2": w((N_ENCODER, 1, DIM), 0.01),
        "enc_lna": jnp.ones((N_ENCODER, 2, DIM), jnp.float32),
        "enc_lnb": jnp.zeros((N_ENCODER, 2, DIM), jnp.float32),
        # decoder layers
        "dec_tw": w((N_DECODER, DIM_GNN, DIM)),
        "dec_tb": w((N_DECODER, 1, DIM), 0.01),
        "dec_ta_qw": w((N_DECODER, DIM, DIM)),
        "dec_ta_qb": w((N_DECODER, 1, DIM), 0.01),
        "dec_ta_kvw": w((N_DECODER, DIM, 2 * DIM)),
        "dec_ta_kvb": w((N_DECODER, 1, 2 * DIM), 0.01),
        "dec_ta_ow": w((N_DECODER, DIM, DIM)),
        "dec_ta_ob": w((N_DECODER, 1, DIM), 0.01),
        "dec_sa_qkvw": w((N_DECODER, DIM, 3 * DIM)),
        "dec_sa_qkvb": w((N_DECODER, 1, 3 * DIM), 0.01),
        "dec_w1": w((N_DECODER, DIM, D_FF)),
        "dec_b1": w((N_DECODER, 1, D_FF), 0.01),
        "dec_w2": w((N_DECODER, D_FF, DIM)),
        "dec_b2": w((N_DECODER, 1, DIM), 0.01),
        "dec_lna": jnp.ones((N_DECODER, 3, DIM), jnp.float32),
        "dec_lnb": jnp.zeros((N_DECODER, 3, DIM), jnp.float32),
        # tgt_out + final norm + interaction head
        "to_tw": w((DIM_GNN, DIM)), "to_tb": w((1, DIM), 0.01),
        "to_qw": w((DIM, DIM)), "to_qb": w((1, DIM), 0.01),
        "to_kvw": w((DIM, 2 * DIM)), "to_kvb": w((1, 2 * DIM), 0.01),
        "to_ow": w((DIM, DIM)), "to_ob": w((1, DIM), 0.01),
        "fna": jnp.ones((1, DIM), jnp.float32),
        "fnb": jnp.zeros((1, DIM), jnp.float32),
        "wi": w((DIM_GNN + DIM, 2)), "bi": w((1, 2), 0.01),
    }
    # In the source self_attn, linears[-1] IS linears[2]: the value projection and
    # the output projection share the same nn.Linear -> tie them here.
    p["enc_ow"] = p["enc_qkvw"][:, :, 2 * DIM:3 * DIM]
    p["enc_ob"] = p["enc_qkvb"][:, :, 2 * DIM:3 * DIM]
    p["dec_sa_ow"] = p["dec_sa_qkvw"][:, :, 2 * DIM:3 * DIM]
    p["dec_sa_ob"] = p["dec_sa_qkvb"][:, :, 2 * DIM:3 * DIM]
    return p


if __name__ == "__main__":
    key = jax.random.PRNGKey(0)
    kp, kf, ka, kw = jax.random.split(key, 4)
    params = init_params(kp)

    fingerprints = jax.random.randint(kf, (N_ATOMS,), 0, N_FINGERPRINT,
                                      dtype=jnp.int32)
    adjacency = (jax.random.bernoulli(ka, 0.4, (N_ATOMS, N_ATOMS))
                 .astype(jnp.float32) + jnp.eye(N_ATOMS, dtype=jnp.float32))
    words = jax.random.randint(kw, (N_WORDS,), 0, N_WORD, dtype=jnp.int32)

    out = jax.jit(cpi_forward)(fingerprints, adjacency, words, params)
    out = jax.block_until_ready(out)
    assert out.shape == (1, 2) and out.dtype == jnp.float32
    # TODO(synk): dropout layers are identity (p=0 / eval mode); the unused
    # W_out ModuleList from __init__ is intentionally omitted (not in forward).
    print("KERNEL_OK")
</pallas_src>

<mosaic_0001>
module attributes {stable_mosaic.version = 11 : i64} {
  func.func @cpi_fused_kernel(%arg0: memref<8x10xf32, #tpu.memory_space<vmem>>, %arg1: memref<8x8xf32, #tpu.memory_space<vmem>>, %arg2: memref<16x32xf32, #tpu.memory_space<vmem>>, %arg3: memref<2x10x10xf32, #tpu.memory_space<vmem>>, %arg4: memref<2x1x10xf32, #tpu.memory_space<vmem>>, %arg5: memref<1x32x96xf32, #tpu.memory_space<vmem>>, %arg6: memref<1x1x96xf32, #tpu.memory_space<vmem>>, %arg7: memref<1x32x32xf32, #tpu.memory_space<vmem>>, %arg8: memref<1x1x32xf32, #tpu.memory_space<vmem>>, %arg9: memref<1x32x64xf32, #tpu.memory_space<vmem>>, %arg10: memref<1x1x64xf32, #tpu.memory_space<vmem>>, %arg11: memref<1x64x32xf32, #tpu.memory_space<vmem>>, %arg12: memref<1x1x32xf32, #tpu.memory_space<vmem>>, %arg13: memref<1x2x32xf32, #tpu.memory_space<vmem>>, %arg14: memref<1x2x32xf32, #tpu.memory_space<vmem>>, %arg15: memref<3x768x32xf32, #tpu.memory_space<vmem>>, %arg16: memref<3xf32, #tpu.memory_space<smem>>, %arg17: memref<1x10x32xf32, #tpu.memory_space<vmem>>, %arg18: memref<1x1x32xf32, #tpu.memory_space<vmem>>, %arg19: memref<1x32x32xf32, #tpu.memory_space<vmem>>, %arg20: memref<1x1x32xf32, #tpu.memory_space<vmem>>, %arg21: memref<1x32x64xf32, #tpu.memory_space<vmem>>, %arg22: memref<1x1x64xf32, #tpu.memory_space<vmem>>, %arg23: memref<1x32x32xf32, #tpu.memory_space<vmem>>, %arg24: memref<1x1x32xf32, #tpu.memory_space<vmem>>, %arg25: memref<1x32x96xf32, #tpu.memory_space<vmem>>, %arg26: memref<1x1x96xf32, #tpu.memory_space<vmem>>, %arg27: memref<1x32x32xf32, #tpu.memory_space<vmem>>, %arg28: memref<1x1x32xf32, #tpu.memory_space<vmem>>, %arg29: memref<1x32x64xf32, #tpu.memory_space<vmem>>, %arg30: memref<1x1x64xf32, #tpu.memory_space<vmem>>, %arg31: memref<1x64x32xf32, #tpu.memory_space<vmem>>, %arg32: memref<1x1x32xf32, #tpu.memory_space<vmem>>, %arg33: memref<1x3x32xf32, #tpu.memory_space<vmem>>, %arg34: memref<1x3x32xf32, #tpu.memory_space<vmem>>, %arg35: memref<10x32xf32, #tpu.memory_space<vmem>>, %arg36: memref<1x32xf32, #tpu.memory_space<vmem>>, %arg37: memref<32x32xf32, #tpu.memory_space<vmem>>, %arg38: memref<1x32xf32, #tpu.memory_space<vmem>>, %arg39: memref<32x64xf32, #tpu.memory_space<vmem>>, %arg40: memref<1x64xf32, #tpu.memory_space<vmem>>, %arg41: memref<32x32xf32, #tpu.memory_space<vmem>>, %arg42: memref<1x32xf32, #tpu.memory_space<vmem>>, %arg43: memref<1x32xf32, #tpu.memory_space<vmem>>, %arg44: memref<1x32xf32, #tpu.memory_space<vmem>>, %arg45: memref<42x2xf32, #tpu.memory_space<vmem>>, %arg46: memref<1x2xf32, #tpu.memory_space<vmem>>, %arg47: memref<1x2xf32, #tpu.memory_space<vmem>>) attributes {dimension_semantics = [], scalar_prefetch = 0 : i64, scratch_operands = 0 : i64, tpu.core_type = #tpu.core_type<tc>} {
    %c0 = arith.constant 0 : index
    %c0_0 = arith.constant 0 : index
    %0 = vector.load %arg0[%c0, %c0_0] : memref<8x10xf32, #tpu.memory_space<vmem>>, vector<8x10xf32>
    %c0_1 = arith.constant 0 : index
    %c0_2 = arith.constant 0 : index
    %1 = vector.load %arg1[%c0_1, %c0_2] : memref<8x8xf32, #tpu.memory_space<vmem>>, vector<8x8xf32>
    %c0_3 = arith.constant 0 : index
    %c0_4 = arith.constant 0 : index
    %c0_5 = arith.constant 0 : index
    %2 = vector.load %arg3[%c0_3, %c0_4, %c0_5] : memref<2x10x10xf32, #tpu.memory_space<vmem>>, vector<1x10x10xf32>
    %3 = vector.shape_cast %2 : vector<1x10x10xf32> to vector<10x10xf32>
    %c0_6 = arith.constant 0 : index
    %c0_7 = arith.constant 0 : index
    %c0_8 = arith.constant 0 : index
    %4 = vector.load %arg4[%c0_6, %c0_7, %c0_8] : memref<2x1x10xf32, #tpu.memory_space<vmem>>, vector<1x1x10xf32>
    %5 = vector.shape_cast %4 : vector<1x1x10xf32> to vector<1x10xf32>
    %cst = arith.constant dense<0.000000e+00> : vector<8x10xf32>
    %6 = tpu.matmul %0, %3, %cst {dimension_numbers = #tpu.dot_dimension_numbers<[1], [0], [0], [1], [0, 0, 1, 1], [], []>} : vector<8x10xf32>, vector<10x10xf32>, vector<8x10xf32> -> vector<8x10xf32>
    %7 = vector.broadcast %5 : vector<1x10xf32> to vector<8x10xf32>
    %8 = arith.addf %6, %7 : vector<8x10xf32>
    %cst_9 = arith.constant 0.000000e+00 : f32
    %9 = vector.broadcast %cst_9 : f32 to vector<8x10xf32>
    %10 = arith.maximumf %8, %9 : vector<8x10xf32>
    %cst_10 = arith.constant dense<0.000000e+00> : vector<8x10xf32>
    %11 = tpu.matmul %1, %10, %cst_10 {dimension_numbers = #tpu.dot_dimension_numbers<[1], [0], [0], [1], [0, 0, 1, 1], [], []>} : vector<8x8xf32>, vector<8x10xf32>, vector<8x10xf32> -> vector<8x10xf32>
    %12 = arith.addf %0, %11 : vector<8x10xf32>
    %c1 = arith.constant 1 : index
    %c0_11 = arith.constant 0 : index
    %c0_12 = arith.constant 0 : index
    %13 = vector.load %arg3[%c1, %c0_11, %c0_12] : memref<2x10x10xf32, #tpu.memory_space<vmem>>, vector<1x10x10xf32>
    %14 = vector.shape_cast %13 : vector<1x10x10xf32> to vector<10x10xf32>
    %c1_13 = arith.constant 1 : index
    %c0_14 = arith.constant 0 : index
    %c0_15 = arith.constant 0 : index
    %15 = vector.load %arg4[%c1_13, %c0_14, %c0_15] : memref<2x1x10xf32, #tpu.memory_space<vmem>>, vector<1x1x10xf32>
    %16 = vector.shape_cast %15 : vector<1x1x10xf32> to vector<1x10xf32>
    %cst_16 = arith.constant dense<0.000000e+00> : vector<8x10xf32>
    %17 = tpu.matmul %12, %14, %cst_16 {dimension_numbers = #tpu.dot_dimension_numbers<[1], [0], [0], [1], [0, 0, 1, 1], [], []>} : vector<8x10xf32>, vector<10x10xf32>, vector<8x10xf32> -> vector<8x10xf32>
    %18 = vector.broadcast %16 : vector<1x10xf32> to vector<8x10xf32>
    %19 = arith.addf %17, %18 : vector<8x10xf32>
    %cst_17 = arith.constant 0.000000e+00 : f32
    %20 = vector.broadcast %cst_17 : f32 to vector<8x10xf32>
    %21 = arith.maximumf %19, %20 : vector<8x10xf32>
    %cst_18 = arith.constant dense<0.000000e+00> : vector<8x10xf32>
    %22 = tpu.matmul %1, %21, %cst_18 {dimension_numbers = #tpu.dot_dimension_numbers<[1], [0], [0], [1], [0, 0, 1, 1], [], []>} : vector<8x8xf32>, vector<8x10xf32>, vector<8x10xf32> -> vector<8x10xf32>
    %23 = arith.addf %12, %22 : vector<8x10xf32>
    %cst_19 = arith.constant dense<0.000000e+00> : vector<10xf32>
    %24 = vector.multi_reduction <add>, %23, %cst_19 [0] : vector<8x10xf32> to vector<10xf32>
    %25 = vector.shape_cast %24 : vector<10xf32> to vector<1x10xf32>
    %cst_20 = arith.constant 8.000000e+00 : f32
    %26 = vector.broadcast %cst_20 : f32 to vector<1x10xf32>
    %27 = arith.divf %25, %26 : vector<1x10xf32>
    %c0_21 = arith.constant 0 : index
    %c0_22 = arith.constant 0 : index
    %28 = vector.load %arg2[%c0_21, %c0_22] : memref<16x32xf32, #tpu.memory_space<vmem>>, vector<16x32xf32>
    %c0_23 = arith.constant 0 : index
    %c0_24 = arith.constant 0 : index
    %c0_25 = arith.constant 0 : index
    %29 = vector.load %arg13[%c0_23, %c0_24, %c0_25] : memref<1x2x32xf32, #tpu.memory_space<vmem>>, vector<1x2x32xf32>
    %30 = vector.shape_cast %29 : vector<1x2x32xf32> to vector<2x32xf32>
    %c0_26 = arith.constant 0 : index
    %c0_27 = arith.constant 0 : index
    %c0_28 = arith.constant 0 : index
    %31 = vector.load %arg14[%c0_26, %c0_27, %c0_28] : memref<1x2x32xf32, #tpu.memory_space<vmem>>, vector<1x2x32xf32>
    %32 = vector.shape_cast %31 : vector<1x2x32xf32> to vector<2x32xf32>
    %c0_29 = arith.constant 0 : index
    %c0_30 = arith.constant 0 : index
    %c0_31 = arith.constant 0 : index
    %33 = vector.load %arg5[%c0_29, %c0_30, %c0_31] : memref<1x32x96xf32, #tpu.memory_space<vmem>>, vector<1x32x96xf32>
    %34 = vector.shape_cast %33 : vector<1x32x96xf32> to vector<32x96xf32>
    %c0_32 = arith.constant 0 : index
    %c0_33 = arith.constant 0 : index
    %c0_34 = arith.constant 0 : index
    %35 = vector.load %arg6[%c0_32, %c0_33, %c0_34] : memref<1x1x96xf32, #tpu.memory_space<vmem>>, vector<1x1x96xf32>
    %36 = vector.shape_cast %35 : vector<1x1x96xf32> to vector<1x96xf32>
    %c0_35 = arith.constant 0 : index
    %c0_36 = arith.constant 0 : index
    %c0_37 = arith.constant 0 : index
    %37 = vector.load %arg7[%c0_35, %c0_36, %c0_37] : memref<1x32x32xf32, #tpu.memory_space<vmem>>, vector<1x32x32xf32>
    %38 = vector.shape_cast %37 : vector<1x32x32xf32> to vector<32x32xf32>
    %c0_38 = arith.constant 0 : index
    %c0_39 = arith.constant 0 : index
    %c0_40 = arith.constant 0 : index
    %39 = vector.load %arg8[%c0_38, %c0_39, %c0_40] : memref<1x1x32xf32, #tpu.memory_space<vmem>>, vector<1x1x32xf32>
    %40 = vector.shape_cast %39 : vector<1x1x32xf32> to vector<1x32xf32>
    %cst_41 = arith.constant dense<0.000000e+00> : vector<16x96xf32>
    %41 = tpu.matmul %28, %34, %cst_41 {dimension_numbers = #tpu.dot_dimension_numbers<[1], [0], [0], [1], [0, 0, 1, 1], [], []>} : vector<16x32xf32>, vector<32x96xf32>, vector<16x96xf32> -> vector<16x96xf32>
    %42 = vector.broadcast %36 : vector<1x96xf32> to vector<16x96xf32>
    %43 = arith.addf %41, %42 : vector<16x96xf32>
    %44 = vector.extract_strided_slice %43 {offsets = [0, 0], sizes = [16, 32], strides = [1, 1]} : vector<16x96xf32> to vector<16x32xf32>
    %45 = vector.extract_strided_slice %43 {offsets = [0, 32], sizes = [16, 32], strides = [1, 1]} : vector<16x96xf32> to vector<16x32xf32>
    %46 = vector.extract_strided_slice %43 {offsets = [0, 64], sizes = [16, 32], strides = [1, 1]} : vector<16x96xf32> to vector<16x32xf32>
    %47 = vector.extract_strided_slice %44 {offsets = [0, 0], sizes = [16, 8], strides = [1, 1]} : vector<16x32xf32> to vector<16x8xf32>
    %48 = vector.extract_strided_slice %45 {offsets = [0, 0], sizes = [16, 8], strides = [1, 1]} : vector<16x32xf32> to vector<16x8xf32>
    %cst_42 = arith.constant dense<0.000000e+00> : vector<16x16xf32>
    %49 = tpu.matmul %47, %48, %cst_42 {dimension_numbers = #tpu.dot_dimension_numbers<[1], [1], [0], [0], [0, 0, 1, 0], [], []>} : vector<16x8xf32>, vector<16x8xf32>, vector<16x16xf32> -> vector<16x16xf32>
    %cst_43 = arith.constant dense<0xFF800000> : vector<16xf32>
    %50 = vector.multi_reduction <maximumf>, %49, %cst_43 [1] : vector<16x16xf32> to vector<16xf32>
    %51 = vector.shape_cast %50 : vector<16xf32> to vector<16x1xf32>
    %52 = vector.broadcast %51 : vector<16x1xf32> to vector<16x16xf32>
    %53 = arith.subf %49, %52 : vector<16x16xf32>
    %54 = math.exp %53 : vector<16x16xf32>
    %cst_44 = arith.constant dense<0.000000e+00> : vector<16xf32>
    %55 = vector.multi_reduction <add>, %54, %cst_44 [1] : vector<16x16xf32> to vector<16xf32>
    %56 = vector.shape_cast %55 : vector<16xf32> to vector<16x1xf32>
    %57 = tpu.reciprocal %56 {approx = true} : vector<16x1xf32> -> vector<16x1xf32>
    %58 = vector.broadcast %57 : vector<16x1xf32> to vector<16x16xf32>
    %59 = arith.mulf %54, %58 : vector<16x16xf32>
    %60 = vector.extract_strided_slice %46 {offsets = [0, 0], sizes = [16, 8], strides = [1, 1]} : vector<16x32xf32> to vector<16x8xf32>
    %cst_45 = arith.constant dense<0.000000e+00> : vector<16x8xf32>
    %61 = tpu.matmul %59, %60, %cst_45 {dimension_numbers = #tpu.dot_dimension_numbers<[1], [0], [0], [1], [0, 0, 1, 1], [], []>} : vector<16x16xf32>, vector<16x8xf32>, vector<16x8xf32> -> vector<16x8xf32>
    %62 = vector.extract_strided_slice %44 {offsets = [0, 8], sizes = [16, 8], strides = [1, 1]} : vector<16x32xf32> to vector<16x8xf32>
    %63 = vector.extract_strided_slice %45 {offsets = [0, 8], sizes = [16, 8], strides = [1, 1]} : vector<16x32xf32> to vector<16x8xf32>
    %cst_46 = arith.constant dense<0.000000e+00> : vector<16x16xf32>
    %64 = tpu.matmul %62, %63, %cst_46 {dimension_numbers = #tpu.dot_dimension_numbers<[1], [1], [0], [0], [0, 0, 1, 0], [], []>} : vector<16x8xf32>, vector<16x8xf32>, vector<16x16xf32> -> vector<16x16xf32>
    %cst_47 = arith.constant dense<0xFF800000> : vector<16xf32>
    %65 = vector.multi_reduction <maximumf>, %64, %cst_47 [1] : vector<16x16xf32> to vector<16xf32>
    %66 = vector.shape_cast %65 : vector<16xf32> to vector<16x1xf32>
    %67 = vector.broadcast %66 : vector<16x1xf32> to vector<16x16xf32>
    %68 = arith.subf %64, %67 : vector<16x16xf32>
    %69 = math.exp %68 : vector<16x16xf32>
    %cst_48 = arith.constant dense<0.000000e+00> : vector<16xf32>
    %70 = vector.multi_reduction <add>, %69, %cst_48 [1] : vector<16x16xf32> to vector<16xf32>
    %71 = vector.shape_cast %70 : vector<16xf32> to vector<16x1xf32>
    %72 = tpu.reciprocal %71 {approx = true} : vector<16x1xf32> -> vector<16x1xf32>
    %73 = vector.broadcast %72 : vector<16x1xf32> to vector<16x16xf32>
    %74 = arith.mulf %69, %73 : vector<16x16xf32>
    %75 = vector.extract_strided_slice %46 {offsets = [0, 8], sizes = [16, 8], strides = [1, 1]} : vector<16x32xf32> to vector<16x8xf32>
    %cst_49 = arith.constant dense<0.000000e+00> : vector<16x8xf32>
    %76 = tpu.matmul %74, %75, %cst_49 {dimension_numbers = #tpu.dot_dimension_numbers<[1], [0], [0], [1], [0, 0, 1, 1], [], []>} : vector<16x16xf32>, vector<16x8xf32>, vector<16x8xf32> -> vector<16x8xf32>
    %77 = vector.extract_strided_slice %44 {offsets = [0, 16], sizes = [16, 8], strides = [1, 1]} : vector<16x32xf32> to vector<16x8xf32>
    %78 = vector.extract_strided_slice %45 {offsets = [0, 16], sizes = [16, 8], strides = [1, 1]} : vector<16x32xf32> to vector<16x8xf32>
    %cst_50 = arith.constant dense<0.000000e+00> : vector<16x16xf32>
    %79 = tpu.matmul %77, %78, %cst_50 {dimension_numbers = #tpu.dot_dimension_numbers<[1], [1], [0], [0], [0, 0, 1, 0], [], []>} : vector<16x8xf32>, vector<16x8xf32>, vector<16x16xf32> -> vector<16x16xf32>
    %cst_51 = arith.constant dense<0xFF800000> : vector<16xf32>
    %80 = vector.multi_reduction <maximumf>, %79, %cst_51 [1] : vector<16x16xf32> to vector<16xf32>
    %81 = vector.shape_cast %80 : vector<16xf32> to vector<16x1xf32>
    %82 = vector.broadcast %81 : vector<16x1xf32> to vector<16x16xf32>
    %83 = arith.subf %79, %82 : vector<16x16xf32>
    %84 = math.exp %83 : vector<16x16xf32>
    %cst_52 = arith.constant dense<0.000000e+00> : vector<16xf32>
    %85 = vector.multi_reduction <add>, %84, %cst_52 [1] : vector<16x16xf32> to vector<16xf32>
    %86 = vector.shape_cast %85 : vector<16xf32> to vector<16x1xf32>
    %87 = tpu.reciprocal %86 {approx = true} : vector<16x1xf32> -> vector<16x1xf32>
    %88 = vector.broadcast %87 : vector<16x1xf32> to vector<16x16xf32>
    %89 = arith.mulf %84, %88 : vector<16x16xf32>
    %90 = vector.extract_strided_slice %46 {offsets = [0, 16], sizes = [16, 8], strides = [1, 1]} : vector<16x32xf32> to vector<16x8xf32>
    %cst_53 = arith.constant dense<0.000000e+00> : vector<16x8xf32>
    %91 = tpu.matmul %89, %90, %cst_53 {dimension_numbers = #tpu.dot_dimension_numbers<[1], [0], [0], [1], [0, 0, 1, 1], [], []>} : vector<16x16xf32>, vector<16x8xf32>, vector<16x8xf32> -> vector<16x8xf32>
    %92 = vector.extract_strided_slice %44 {offsets = [0, 24], sizes = [16, 8], strides = [1, 1]} : vector<16x32xf32> to vector<16x8xf32>
    %93 = vector.extract_strided_slice %45 {offsets = [0, 24], sizes = [16, 8], strides = [1, 1]} : vector<16x32xf32> to vector<16x8xf32>
    %cst_54 = arith.constant dense<0.000000e+00> : vector<16x16xf32>
    %94 = tpu.matmul %92, %93, %cst_54 {dimension_numbers = #tpu.dot_dimension_numbers<[1], [1], [0], [0], [0, 0, 1, 0], [], []>} : vector<16x8xf32>, vector<16x8xf32>, vector<16x16xf32> -> vector<16x16xf32>
    %cst_55 = arith.constant dense<0xFF800000> : vector<16xf32>
    %95 = vector.multi_reduction <maximumf>, %94, %cst_55 [1] : vector<16x16xf32> to vector<16xf32>
    %96 = vector.shape_cast %95 : vector<16xf32> to vector<16x1xf32>
    %97 = vector.broadcast %96 : vector<16x1xf32> to vector<16x16xf32>
    %98 = arith.subf %94, %97 : vector<16x16xf32>
    %99 = math.exp %98 : vector<16x16xf32>
    %cst_56 = arith.constant dense<0.000000e+00> : vector<16xf32>
    %100 = vector.multi_reduction <add>, %99, %cst_56 [1] : vector<16x16xf32> to vector<16xf32>
    %101 = vector.shape_cast %100 : vector<16xf32> to vector<16x1xf32>
    %102 = tpu.reciprocal %101 {approx = true} : vector<16x1xf32> -> vector<16x1xf32>
    %103 = vector.broadcast %102 : vector<16x1xf32> to vector<16x16xf32>
    %104 = arith.mulf %99, %103 : vector<16x16xf32>
    %105 = vector.extract_strided_slice %46 {offsets = [0, 24], sizes = [16, 8], strides = [1, 1]} : vector<16x32xf32> to vector<16x8xf32>
    %cst_57 = arith.constant dense<0.000000e+00> : vector<16x8xf32>
    %106 = tpu.matmul %104, %105, %cst_57 {dimension_numbers = #tpu.dot_dimension_numbers<[1], [0], [0], [1], [0, 0, 1, 1], [], []>} : vector<16x16xf32>, vector<16x8xf32>, vector<16x8xf32> -> vector<16x8xf32>
    %107 = tpu.concatenate %61, %76, %91, %106 in 1 : vector<16x8xf32>, vector<16x8xf32>, vector<16x8xf32>, vector<16x8xf32> -> vector<16x32xf32>
    %cst_58 = arith.constant dense<0.000000e+00> : vector<16x32xf32>
    %108 = tpu.matmul %107, %38, %cst_58 {dimension_numbers = #tpu.dot_dimension_numbers<[1], [0], [0], [1], [0, 0, 1, 1], [], []>} : vector<16x32xf32>, vector<32x32xf32>, vector<16x32xf32> -> vector<16x32xf32>
    %109 = vector.broadcast %40 : vector<1x32xf32> to vector<16x32xf32>
    %110 = arith.addf %108, %109 : vector<16x32xf32>
    %111 = arith.addf %28, %110 : vector<16x32xf32>
    %112 = vector.extract_strided_slice %30 {offsets = [0, 0], sizes = [1, 32], strides = [1, 1]} : vector<2x32xf32> to vector<1x32xf32>
    %113 = vector.extract_strided_slice %32 {offsets = [0, 0], sizes = [1, 32], strides = [1, 1]} : vector<2x32xf32> to vector<1x32xf32>
    %cst_59 = arith.constant dense<0.000000e+00> : vector<16xf32>
    %114 = vector.multi_reduction <add>, %111, %cst_59 [1] : vector<16x32xf32> to vector<16xf32>
    %115 = vector.shape_cast %114 : vector<16xf32> to vector<16x1xf32>
    %cst_60 = arith.constant 3.200000e+01 : f32
    %116 = vector.broadcast %cst_60 : f32 to vector<16x1xf32>
    %117 = arith.divf %115, %116 : vector<16x1xf32>
    %118 = vector.broadcast %117 : vector<16x1xf32> to vector<16x32xf32>
    %119 = arith.subf %111, %118 : vector<16x32xf32>
    %120 = arith.mulf %119, %119 : vector<16x32xf32>
    %cst_61 = arith.constant dense<0.000000e+00> : vector<16xf32>
    %121 = vector.multi_reduction <add>, %120, %cst_61 [1] : vector<16x32xf32> to vector<16xf32>
    %122 = vector.shape_cast %121 : vector<16xf32> to vector<16x1xf32>
    %cst_62 = arith.constant 3.100000e+01 : f32
    %123 = vector.broadcast %cst_62 : f32 to vector<16x1xf32>
    %124 = arith.divf %122, %123 : vector<16x1xf32>
    %125 = math.sqrt %124 : vector<16x1xf32>
    %cst_63 = arith.constant 9.99999997E-7 : f32
    %126 = vector.broadcast %cst_63 : f32 to vector<16x1xf32>
    %127 = arith.addf %125, %126 : vector<16x1xf32>
    %128 = tpu.reciprocal %127 {approx = true} : vector<16x1xf32> -> vector<16x1xf32>
    %129 = vector.broadcast %117 : vector<16x1xf32> to vector<16x32xf32>
    %130 = arith.subf %111, %129 : vector<16x32xf32>
    %131 = vector.broadcast %112 : vector<1x32xf32> to vector<16x32xf32>
    %132 = arith.mulf %131, %130 : vector<16x32xf32>
    %133 = vector.broadcast %128 : vector<16x1xf32> to vector<16x32xf32>
    %134 = arith.mulf %132, %133 : vector<16x32xf32>
    %135 = vector.broadcast %113 : vector<1x32xf32> to vector<16x32xf32>
    %136 = arith.addf %134, %135 : vector<16x32xf32>
    %c0_64 = arith.constant 0 : index
    %c0_65 = arith.constant 0 : index
    %c0_66 = arith.constant 0 : index
    %137 = vector.load %arg9[%c0_64, %c0_65, %c0_66] : memref<1x32x64xf32, #tpu.memory_space<vmem>>, vector<1x32x64xf32>
    %138 = vector.shape_cast %137 : vector<1x32x64xf32> to vector<32x64xf32>
    %c0_67 = arith.constant 0 : index
    %c0_68 = arith.constant 0 : index
    %c0_69 = arith.constant 0 : index
    %139 = vector.load %arg10[%c0_67, %c0_68, %c0_69] : memref<1x1x64xf32, #tpu.memory_space<vmem>>, vector<1x1x64xf32>
    %140 = vector.shape_cast %139 : vector<1x1x64xf32> to vector<1x64xf32>
    %cst_70 = arith.constant dense<0.000000e+00> : vector<16x64xf32>
    %141 = tpu.matmul %136, %138, %cst_70 {dimension_numbers = #tpu.dot_dimension_numbers<[1], [0], [0], [1], [0, 0, 1, 1], [], []>} : vector<16x32xf32>, vector<32x64xf32>, vector<16x64xf32> -> vector<16x64xf32>
    %142 = vector.broadcast %140 : vector<1x64xf32> to vector<16x64xf32>
    %143 = arith.addf %141, %142 : vector<16x64xf32>
    %cst_71 = arith.constant 0.000000e+00 : f32
    %144 = vector.broadcast %cst_71 : f32 to vector<16x64xf32>
    %145 = arith.maximumf %143, %144 : vector<16x64xf32>
    %c0_72 = arith.constant 0 : index
    %c0_73 = arith.constant 0 : index
    %c0_74 = arith.constant 0 : index
    %146 = vector.load %arg11[%c0_72, %c0_73, %c0_74] : memref<1x64x32xf32, #tpu.memory_space<vmem>>, vector<1x64x32xf32>
    %147 = vector.shape_cast %146 : vector<1x64x32xf32> to vector<64x32xf32>
    %c0_75 = arith.constant 0 : index
    %c0_76 = arith.constant 0 : index
    %c0_77 = arith.constant 0 : index
    %148 = vector.load %arg12[%c0_75, %c0_76, %c0_77] : memref<1x1x32xf32, #tpu.memory_space<vmem>>, vector<1x1x32xf32>
    %149 = vector.shape_cast %148 : vector<1x1x32xf32> to vector<1x32xf32>
    %cst_78 = arith.constant dense<0.000000e+00> : vector<16x32xf32>
    %150 = tpu.matmul %145, %147, %cst_78 {dimension_numbers = #tpu.dot_dimension_numbers<[1], [0], [0], [1], [0, 0, 1, 1], [], []>} : vector<16x64xf32>, vector<64x32xf32>, vector<16x32xf32> -> vector<16x32xf32>
    %151 = vector.broadcast %149 : vector<1x32xf32> to vector<16x32xf32>
    %152 = arith.addf %150, %151 : vector<16x32xf32>
    %153 = arith.addf %136, %152 : vector<16x32xf32>
    %154 = vector.extract_strided_slice %30 {offsets = [1, 0], sizes = [1, 32], strides = [1, 1]} : vector<2x32xf32> to vector<1x32xf32>
    %155 = vector.extract_strided_slice %32 {offsets = [1, 0], sizes = [1, 32], strides = [1, 1]} : vector<2x32xf32> to vector<1x32xf32>
    %cst_79 = arith.constant dense<0.000000e+00> : vector<16xf32>
    %156 = vector.multi_reduction <add>, %153, %cst_79 [1] : vector<16x32xf32> to vector<16xf32>
    %157 = vector.shape_cast %156 : vector<16xf32> to vector<16x1xf32>
    %cst_80 = arith.constant 3.200000e+01 : f32
    %158 = vector.broadcast %cst_80 : f32 to vector<16x1xf32>
    %159 = arith.divf %157, %158 : vector<16x1xf32>
    %160 = vector.broadcast %159 : vector<16x1xf32> to vector<16x32xf32>
    %161 = arith.subf %153, %160 : vector<16x32xf32>
    %162 = arith.mulf %161, %161 : vector<16x32xf32>
    %cst_81 = arith.constant dense<0.000000e+00> : vector<16xf32>
    %163 = vector.multi_reduction <add>, %162, %cst_81 [1] : vector<16x32xf32> to vector<16xf32>
    %164 = vector.shape_cast %163 : vector<16xf32> to vector<16x1xf32>
    %cst_82 = arith.constant 3.100000e+01 : f32
    %165 = vector.broadcast %cst_82 : f32 to vector<16x1xf32>
    %166 = arith.divf %164, %165 : vector<16x1xf32>
    %167 = math.sqrt %166 : vector<16x1xf32>
    %cst_83 = arith.constant 9.99999997E-7 : f32
    %168 = vector.broadcast %cst_83 : f32 to vector<16x1xf32>
    %169 = arith.addf %167, %168 : vector<16x1xf32>
    %170 = tpu.reciprocal %169 {approx = true} : vector<16x1xf32> -> vector<16x1xf32>
    %171 = vector.broadcast %159 : vector<16x1xf32> to vector<16x32xf32>
    %172 = arith.subf %153, %171 : vector<16x32xf32>
    %173 = vector.broadcast %154 : vector<1x32xf32> to vector<16x32xf32>
    %174 = arith.mulf %173, %172 : vector<16x32xf32>
    %175 = vector.broadcast %170 : vector<16x1xf32> to vector<16x32xf32>
    %176 = arith.mulf %174, %175 : vector<16x32xf32>
    %177 = vector.broadcast %155 : vector<1x32xf32> to vector<16x32xf32>
    %178 = arith.addf %176, %177 : vector<16x32xf32>
    %cst_84 = arith.constant 0.000000e+00 : f32
    %179 = vector.broadcast %cst_84 : f32 to vector<11x32xf32>
    %cst_85 = arith.constant 0.000000e+00 : f32
    %180 = vector.broadcast %cst_85 : f32 to vector<16x32xf32>
    %181 = tpu.concatenate %179, %178, %179 in 0 : vector<11x32xf32>, vector<16x32xf32>, vector<11x32xf32> -> vector<38x32xf32>
    %182 = vector.extract_strided_slice %181 {offsets = [0, 0], sizes = [16, 32], strides = [1, 1]} : vector<38x32xf32> to vector<16x32xf32>
    %183 = vector.extract_strided_slice %181 {offsets = [1, 0], sizes = [16, 32], strides = [1, 1]} : vector<38x32xf32> to vector<16x32xf32>
    %184 = vector.extract_strided_slice %181 {offsets = [2, 0], sizes = [16, 32], strides = [1, 1]} : vector<38x32xf32> to vector<16x32xf32>
    %185 = vector.extract_strided_slice %181 {offsets = [3, 0], sizes = [16, 32], strides = [1, 1]} : vector<38x32xf32> to vector<16x32xf32>
    %186 = vector.extract_strided_slice %181 {offsets = [4, 0], sizes = [16, 32], strides = [1, 1]} : vector<38x32xf32> to vector<16x32xf32>
    %187 = vector.extract_strided_slice %181 {offsets = [5, 0], sizes = [16, 32], strides = [1, 1]} : vector<38x32xf32> to vector<16x32xf32>
    %188 = vector.extract_strided_slice %181 {offsets = [6, 0], sizes = [16, 32], strides = [1, 1]} : vector<38x32xf32> to vector<16x32xf32>
    %189 = vector.extract_strided_slice %181 {offsets = [7, 0], sizes = [16, 32], strides = [1, 1]} : vector<38x32xf32> to vector<16x32xf32>
    %190 = vector.extract_strided_slice %181 {offsets = [8, 0], sizes = [16, 32], strides = [1, 1]} : vector<38x32xf32> to vector<16x32xf32>
    %191 = vector.extract_strided_slice %181 {offsets = [9, 0], sizes = [16, 32], strides = [1, 1]} : vector<38x32xf32> to vector<16x32xf32>
    %192 = vector.extract_strided_slice %181 {offsets = [10, 0], sizes = [16, 32], strides = [1, 1]} : vector<38x32xf32> to vector<16x32xf32>
    %193 = vector.extract_strided_slice %181 {offsets = [11, 0], sizes = [16, 32], strides = [1, 1]} : vector<38x32xf32> to vector<16x32xf32>
    %194 = vector.extract_strided_slice %181 {offsets = [12, 0], sizes = [16, 32], strides = [1, 1]} : vector<38x32xf32> to vector<16x32xf32>
    %195 = vector.extract_strided_slice %181 {offsets = [13, 0], sizes = [16, 32], strides = [1, 1]} : vector<38x32xf32> to vector<16x32xf32>
    %196 = vector.extract_strided_slice %181 {offsets = [14, 0], sizes = [16, 32], strides = [1, 1]} : vector<38x32xf32> to vector<16x32xf32>
    %197 = vector.extract_strided_slice %181 {offsets = [15, 0], sizes = [16, 32], strides = [1, 1]} : vector<38x32xf32> to vector<16x32xf32>
    %198 = vector.extract_strided_slice %181 {offsets = [16, 0], sizes = [16, 32], strides = [1, 1]} : vector<38x32xf32> to vector<16x32xf32>
    %199 = vector.extract_strided_slice %181 {offsets = [17, 0], sizes = [16, 32], strides = [1, 1]} : vector<38x32xf32> to vector<16x32xf32>
    %200 = vector.extract_strided_slice %181 {offsets = [18, 0], sizes = [16, 32], strides = [1, 1]} : vector<38x32xf32> to vector<16x32xf32>
    %201 = vector.extract_strided_slice %181 {offsets = [19, 0], sizes = [16, 32], strides = [1, 1]} : vector<38x32xf32> to vector<16x32xf32>
    %202 = vector.extract_strided_slice %181 {offsets = [20, 0], sizes = [16, 32], strides = [1, 1]} : vector<38x32xf32> to vector<16x32xf32>
    %203 = vector.extract_strided_slice %181 {offsets = [21, 0], sizes = [16, 32], strides = [1, 1]} : vector<38x32xf32> to vector<16x32xf32>
    %204 = vector.extract_strided_slice %181 {offsets = [22, 0], sizes = [16, 32], strides = [1, 1]} : vector<38x32xf32> to vector<16x32xf32>
    %205 = tpu.concatenate %182, %183, %184, %185, %186, %187, %188, %189, %190, %191, %192, %193, %194, %195, %196, %197 in 1 : vector<16x32xf32>, vector<16x32xf32>, vector<16x32xf32>, vector<16x32xf32>, vector<16x32xf32>, vector<16x32xf32>, vector<16x32xf32>, vector<16x32xf32>, vector<16x32xf32>, vector<16x32xf32>, vector<16x32xf32>, vector<16x32xf32>, vector<16x32xf32>, vector<16x32xf32>, vector<16x32xf32>, vector<16x32xf32> -> vector<16x512xf32>
    %206 = tpu.concatenate %198, %199, %200, %201, %202, %203, %204, %180 in 1 : vector<16x32xf32>, vector<16x32xf32>, vector<16x32xf32>, vector<16x32xf32>, vector<16x32xf32>, vector<16x32xf32>, vector<16x32xf32>, vector<16x32xf32> -> vector<16x256xf32>
    %207 = tpu.concatenate %205, %206 in 1 : vector<16x512xf32>, vector<16x256xf32> -> vector<16x768xf32>
    %c0_86 = arith.constant 0 : index
    %c0_87 = arith.constant 0 : index
    %c0_88 = arith.constant 0 : index
    %208 = vector.load %arg15[%c0_86, %c0_87, %c0_88] : memref<3x768x32xf32, #tpu.memory_space<vmem>>, vector<1x768x32xf32>
    %209 = vector.shape_cast %208 : vector<1x768x32xf32> to vector<768x32xf32>
    %cst_89 = arith.constant dense<0.000000e+00> : vector<16x32xf32>
    %210 = tpu.matmul %207, %209, %cst_89 {dimension_numbers = #tpu.dot_dimension_numbers<[1], [0], [0], [1], [0, 0, 1, 1], [], []>} : vector<16x768xf32>, vector<768x32xf32>, vector<16x32xf32> -> vector<16x32xf32>
    %c0_90 = arith.constant 0 : index
    %211 = memref.load %arg16[%c0_90] : memref<3xf32, #tpu.memory_space<smem>>
    %212 = vector.broadcast %211 : f32 to vector<16x32xf32>
    %213 = arith.addf %210, %212 : vector<16x32xf32>
    %cst_91 = arith.constant 0.000000e+00 : f32
    %214 = vector.broadcast %cst_91 : f32 to vector<16x32xf32>
    %215 = arith.maximumf %213, %214 : vector<16x32xf32>
    %216 = tpu.concatenate %179, %215, %179 in 0 : vector<11x32xf32>, vector<16x32xf32>, vector<11x32xf32> -> vector<38x32xf32>
    %217 = vector.extract_strided_slice %216 {offsets = [0, 0], sizes = [16, 32], strides = [1, 1]} : vector<38x32xf32> to vector<16x32xf32>
    %218 = vector.extract_strided_slice %216 {offsets = [1, 0], sizes = [16, 32], strides = [1, 1]} : vector<38x32xf32> to vector<16x32xf32>
    %219 = vector.extract_strided_slice %216 {offsets = [2, 0], sizes = [16, 32], strides = [1, 1]} : vector<38x32xf32> to vector<16x32xf32>
    %220 = vector.extract_strided_slice %216 {offsets = [3, 0], sizes = [16, 32], strides = [1, 1]} : vector<38x32xf32> to vector<16x32xf32>
    %221 = vector.extract_strided_slice %216 {offsets = [4, 0], sizes = [16, 32], strides = [1, 1]} : vector<38x32xf32> to vector<16x32xf32>
    %222 = vector.extract_strided_slice %216 {offsets = [5, 0], sizes = [16, 32], strides = [1, 1]} : vector<38x32xf32> to vector<16x32xf32>
    %223 = vector.extract_strided_slice %216 {offsets = [6, 0], sizes = [16, 32], strides = [1, 1]} : vector<38x32xf32> to vector<16x32xf32>
    %224 = vector.extract_strided_slice %216 {offsets = [7, 0], sizes = [16, 32], strides = [1, 1]} : vector<38x32xf32> to vector<16x32xf32>
    %225 = vector.extract_strided_slice %216 {offsets = [8, 0], sizes = [16, 32], strides = [1, 1]} : vector<38x32xf32> to vector<16x32xf32>
    %226 = vector.extract_strided_slice %216 {offsets = [9, 0], sizes = [16, 32], strides = [1, 1]} : vector<38x32xf32> to vector<16x32xf32>
    %227 = vector.extract_strided_slice %216 {offsets = [10, 0], sizes = [16, 32], strides = [1, 1]} : vector<38x32xf32> to vector<16x32xf32>
    %228 = vector.extract_strided_slice %216 {offsets = [11, 0], sizes = [16, 32], strides = [1, 1]} : vector<38x32xf32> to vector<16x32xf32>
    %229 = vector.extract_strided_slice %216 {offsets = [12, 0], sizes = [16, 32], strides = [1, 1]} : vector<38x32xf32> to vector<16x32xf32>
    %230 = vector.extract_strided_slice %216 {offsets = [13, 0], sizes = [16, 32], strides = [1, 1]} : vector<38x32xf32> to vector<16x32xf32>
    %231 = vector.extract_strided_slice %216 {offsets = [14, 0], sizes = [16, 32], strides = [1, 1]} : vector<38x32xf32> to vector<16x32xf32>
    %232 = vector.extract_strided_slice %216 {offsets = [15, 0], sizes = [16, 32], strides = [1, 1]} : vector<38x32xf32> to vector<16x32xf32>
    %233 = vector.extract_strided_slice %216 {offsets = [16, 0], sizes = [16, 32], strides = [1, 1]} : vector<38x32xf32> to vector<16x32xf32>
    %234 = vector.extract_strided_slice %216 {offsets = [17, 0], sizes = [16, 32], strides = [1, 1]} : vector<38x32xf32> to vector<16x32xf32>
    %235 = vector.extract_strided_slice %216 {offsets = [18, 0], sizes = [16, 32], strides = [1, 1]} : vector<38x32xf32> to vector<16x32xf32>
    %236 = vector.extract_strided_slice %216 {offsets = [19, 0], sizes = [16, 32], strides = [1, 1]} : vector<38x32xf32> to vector<16x32xf32>
    %237 = vector.extract_strided_slice %216 {offsets = [20, 0], sizes = [16, 32], strides = [1, 1]} : vector<38x32xf32> to vector<16x32xf32>
    %238 = vector.extract_strided_slice %216 {offsets = [21, 0], sizes = [16, 32], strides = [1, 1]} : vector<38x32xf32> to vector<16x32xf32>
    %239 = vector.extract_strided_slice %216 {offsets = [22, 0], sizes = [16, 32], strides = [1, 1]} : vector<38x32xf32> to vector<16x32xf32>
    %240 = tpu.concatenate %217, %218, %219, %220, %221, %222, %223, %224, %225, %226, %227, %228, %229, %230, %231, %232 in 1 : vector<16x32xf32>, vector<16x32xf32>, vector<16x32xf32>, vector<16x32xf32>, vector<16x32xf32>, vector<16x32xf32>, vector<16x32xf32>, vector<16x32xf32>, vector<16x32xf32>, vector<16x32xf32>, vector<16x32xf32>, vector<16x32xf32>, vector<16x32xf32>, vector<16x32xf32>, vector<16x32xf32>, vector<16x32xf32> -> vector<16x512xf32>
    %241 = tpu.concatenate %233, %234, %235, %236, %237, %238, %239, %180 in 1 : vector<16x32xf32>, vector<16x32xf32>, vector<16x32xf32>, vector<16x32xf32>, vector<16x32xf32>, vector<16x32xf32>, vector<16x32xf32>, vector<16x32xf32> -> vector<16x256xf32>
    %242 = tpu.concatenate %240, %241 in 1 : vector<16x512xf32>, vector<16x256xf32> -> vector<16x768xf32>
    %c1_92 = arith.constant 1 : index
    %c0_93 = arith.constant 0 : index
    %c0_94 = arith.constant 0 : index
    %243 = vector.load %arg15[%c1_92, %c0_93, %c0_94] : memref<3x768x32xf32, #tpu.memory_space<vmem>>, vector<1x768x32xf32>
    %244 = vector.shape_cast %243 : vector<1x768x32xf32> to vector<768x32xf32>
    %cst_95 = arith.constant dense<0.000000e+00> : vector<16x32xf32>
    %245 = tpu.matmul %242, %244, %cst_95 {dimension_numbers = #tpu.dot_dimension_numbers<[1], [0], [0], [1], [0, 0, 1, 1], [], []>} : vector<16x768xf32>, vector<768x32xf32>, vector<16x32xf32> -> vector<16x32xf32>
    %c1_96 = arith.constant 1 : index
    %246 = memref.load %arg16[%c1_96] : memref<3xf32, #tpu.memory_space<smem>>
    %247 = vector.broadcast %246 : f32 to vector<16x32xf32>
    %248 = arith.addf %245, %247 : vector<16x32xf32>
    %cst_97 = arith.constant 0.000000e+00 : f32
    %249 = vector.broadcast %cst_97 : f32 to vector<16x32xf32>
    %250 = arith.maximumf %248, %249 : vector<16x32xf32>
    %251 = tpu.concatenate %179, %250, %179 in 0 : vector<11x32xf32>, vector<16x32xf32>, vector<11x32xf32> -> vector<38x32xf32>
    %252 = vector.extract_strided_slice %251 {offsets = [0, 0], sizes = [16, 32], strides = [1, 1]} : vector<38x32xf32> to vector<16x32xf32>
    %253 = vector.extract_strided_slice %251 {offsets = [1, 0], sizes = [16, 32], strides = [1, 1]} : vector<38x32xf32> to vector<16x32xf32>
    %254 = vector.extract_strided_slice %251 {offsets = [2, 0], sizes = [16, 32], strides = [1, 1]} : vector<38x32xf32> to vector<16x32xf32>
    %255 = vector.extract_strided_slice %251 {offsets = [3, 0], sizes = [16, 32], strides = [1, 1]} : vector<38x32xf32> to vector<16x32xf32>
    %256 = vector.extract_strided_slice %251 {offsets = [4, 0], sizes = [16, 32], strides = [1, 1]} : vector<38x32xf32> to vector<16x32xf32>
    %257 = vector.extract_strided_slice %251 {offsets = [5, 0], sizes = [16, 32], strides = [1, 1]} : vector<38x32xf32> to vector<16x32xf32>
    %258 = vector.extract_strided_slice %251 {offsets = [6, 0], sizes = [16, 32], strides = [1, 1]} : vector<38x32xf32> to vector<16x32xf32>
    %259 = vector.extract_strided_slice %251 {offsets = [7, 0], sizes = [16, 32], strides = [1, 1]} : vector<38x32xf32> to vector<16x32xf32>
    %260 = vector.extract_strided_slice %251 {offsets = [8, 0], sizes = [16, 32], strides = [1, 1]} : vector<38x32xf32> to vector<16x32xf32>
    %261 = vector.extract_strided_slice %251 {offsets = [9, 0], sizes = [16, 32], strides = [1, 1]} : vector<38x32xf32> to vector<16x32xf32>
    %262 = vector.extract_strided_slice %251 {offsets = [10, 0], sizes = [16, 32], strides = [1, 1]} : vector<38x32xf32> to vector<16x32xf32>
    %263 = vector.extract_strided_slice %251 {offsets = [11, 0], sizes = [16, 32], strides = [1, 1]} : vector<38x32xf32> to vector<16x32xf32>
    %264 = vector.extract_strided_slice %251 {offsets = [12, 0], sizes = [16, 32], strides = [1, 1]} : vector<38x32xf32> to vector<16x32xf32>
    %265 = vector.extract_strided_slice %251 {offsets = [13, 0], sizes = [16, 32], strides = [1, 1]} : vector<38x32xf32> to vector<16x32xf32>
    %266 = vector.extract_strided_slice %251 {offsets = [14, 0], sizes = [16, 32], strides = [1, 1]} : vector<38x32xf32> to vector<16x32xf32>
    %267 = vector.extract_strided_slice %251 {offsets = [15, 0], sizes = [16, 32], strides = [1, 1]} : vector<38x32xf32> to vector<16x32xf32>
    %268 = vector.extract_strided_slice %251 {offsets = [16, 0], sizes = [16, 32], strides = [1, 1]} : vector<38x32xf32> to vector<16x32xf32>
    %269 = vector.extract_strided_slice %251 {offsets = [17, 0], sizes = [16, 32], strides = [1, 1]} : vector<38x32xf32> to vector<16x32xf32>
    %270 = vector.extract_strided_slice %251 {offsets = [18, 0], sizes = [16, 32], strides = [1, 1]} : vector<38x32xf32> to vector<16x32xf32>
    %271 = vector.extract_strided_slice %251 {offsets = [19, 0], sizes = [16, 32], strides = [1, 1]} : vector<38x32xf32> to vector<16x32xf32>
    %272 = vector.extract_strided_slice %251 {offsets = [20, 0], sizes = [16, 32], strides = [1, 1]} : vector<38x32xf32> to vector<16x32xf32>
    %273 = vector.extract_strided_slice %251 {offsets = [21, 0], sizes = [16, 32], strides = [1, 1]} : vector<38x32xf32> to vector<16x32xf32>
    %274 = vector.extract_strided_slice %251 {offsets = [22, 0], sizes = [16, 32], strides = [1, 1]} : vector<38x32xf32> to vector<16x32xf32>
    %275 = tpu.concatenate %252, %253, %254, %255, %256, %257, %258, %259, %260, %261, %262, %263, %264, %265, %266, %267 in 1 : vector<16x32xf32>, vector<16x32xf32>, vector<16x32xf32>, vector<16x32xf32>, vector<16x32xf32>, vector<16x32xf32>, vector<16x32xf32>, vector<16x32xf32>, vector<16x32xf32>, vector<16x32xf32>, vector<16x32xf32>, vector<16x32xf32>, vector<16x32xf32>, vector<16x32xf32>, vector<16x32xf32>, vector<16x32xf32> -> vector<16x512xf32>
    %276 = tpu.concatenate %268, %269, %270, %271, %272, %273, %274, %180 in 1 : vector<16x32xf32>, vector<16x32xf32>, vector<16x32xf32>, vector<16x32xf32>, vector<16x32xf32>, vector<16x32xf32>, vector<16x32xf32>, vector<16x32xf32> -> vector<16x256xf32>
    %277 = tpu.concatenate %275, %276 in 1 : vector<16x512xf32>, vector<16x256xf32> -> vector<16x768xf32>
    %c2 = arith.constant 2 : index
    %c0_98 = arith.constant 0 : index
    %c0_99 = arith.constant 0 : index
    %278 = vector.load %arg15[%c2, %c0_98, %c0_99] : memref<3x768x32xf32, #tpu.memory_space<vmem>>, vector<1x768x32xf32>
    %279 = vector.shape_cast %278 : vector<1x768x32xf32> to vector<768x32xf32>
    %cst_100 = arith.constant dense<0.000000e+00> : vector<16x32xf32>
    %280 = tpu.matmul %277, %279, %cst_100 {dimension_numbers = #tpu.dot_dimension_numbers<[1], [0], [0], [1], [0, 0, 1, 1], [], []>} : vector<16x768xf32>, vector<768x32xf32>, vector<16x32xf32> -> vector<16x32xf32>
    %c2_101 = arith.constant 2 : index
    %281 = memref.load %arg16[%c2_101] : memref<3xf32, #tpu.memory_space<smem>>
    %282 = vector.broadcast %281 : f32 to vector<16x32xf32>
    %283 = arith.addf %280, %282 : vector<16x32xf32>
    %cst_102 = arith.constant 0.000000e+00 : f32
    %284 = vector.broadcast %cst_102 : f32 to vector<16x32xf32>
    %285 = arith.maximumf %283, %284 : vector<16x32xf32>
    %c0_103 = arith.constant 0 : index
    %c0_104 = arith.constant 0 : index
    %c0_105 = arith.constant 0 : index
    %286 = vector.load %arg33[%c0_103, %c0_104, %c0_105] : memref<1x3x32xf32, #tpu.memory_space<vmem>>, vector<1x3x32xf32>
    %287 = vector.shape_cast %286 : vector<1x3x32xf32> to vector<3x32xf32>
    %c0_106 = arith.constant 0 : index
    %c0_107 = arith.constant 0 : index
    %c0_108 = arith.constant 0 : index
    %288 = vector.load %arg34[%c0_106, %c0_107, %c0_108] : memref<1x3x32xf32, #tpu.memory_space<vmem>>, vector<1x3x32xf32>
    %289 = vector.shape_cast %288 : vector<1x3x32xf32> to vector<3x32xf32>
    %c0_109 = arith.constant 0 : index
    %c0_110 = arith.constant 0 : index
    %c0_111 = arith.constant 0 : index
    %290 = vector.load %arg17[%c0_109, %c0_110, %c0_111] : memref<1x10x32xf32, #tpu.memory_space<vmem>>, vector<1x10x32xf32>
    %291 = vector.shape_cast %290 : vector<1x10x32xf32> to vector<10x32xf32>
    %c0_112 = arith.constant 0 : index
    %c0_113 = arith.constant 0 : index
    %c0_114 = arith.constant 0 : index
    %292 = vector.load %arg18[%c0_112, %c0_113, %c0_114] : memref<1x1x32xf32, #tpu.memory_space<vmem>>, vector<1x1x32xf32>
    %293 = vector.shape_cast %292 : vector<1x1x32xf32> to vector<1x32xf32>
    %c0_115 = arith.constant 0 : index
    %c0_116 = arith.constant 0 : index
    %c0_117 = arith.constant 0 : index
    %294 = vector.load %arg19[%c0_115, %c0_116, %c0_117] : memref<1x32x32xf32, #tpu.memory_space<vmem>>, vector<1x32x32xf32>
    %295 = vector.shape_cast %294 : vector<1x32x32xf32> to vector<32x32xf32>
    %c0_118 = arith.constant 0 : index
    %c0_119 = arith.constant 0 : index
    %c0_120 = arith.constant 0 : index
    %296 = vector.load %arg20[%c0_118, %c0_119, %c0_120] : memref<1x1x32xf32, #tpu.memory_space<vmem>>, vector<1x1x32xf32>
    %297 = vector.shape_cast %296 : vector<1x1x32xf32> to vector<1x32xf32>
    %c0_121 = arith.constant 0 : index
    %c0_122 = arith.constant 0 : index
    %c0_123 = arith.constant 0 : index
    %298 = vector.load %arg21[%c0_121, %c0_122, %c0_123] : memref<1x32x64xf32, #tpu.memory_space<vmem>>, vector<1x32x64xf32>
    %299 = vector.shape_cast %298 : vector<1x32x64xf32> to vector<32x64xf32>
    %c0_124 = arith.constant 0 : index
    %c0_125 = arith.constant 0 : index
    %c0_126 = arith.constant 0 : index
    %300 = vector.load %arg22[%c0_124, %c0_125, %c0_126] : memref<1x1x64xf32, #tpu.memory_space<vmem>>, vector<1x1x64xf32>
    %301 = vector.shape_cast %300 : vector<1x1x64xf32> to vector<1x64xf32>
    %c0_127 = arith.constant 0 : index
    %c0_128 = arith.constant 0 : index
    %c0_129 = arith.constant 0 : index
    %302 = vector.load %arg23[%c0_127, %c0_128, %c0_129] : memref<1x32x32xf32, #tpu.memory_space<vmem>>, vector<1x32x32xf32>
    %303 = vector.shape_cast %302 : vector<1x32x32xf32> to vector<32x32xf32>
    %c0_130 = arith.constant 0 : index
    %c0_131 = arith.constant 0 : index
    %c0_132 = arith.constant 0 : index
    %304 = vector.load %arg24[%c0_130, %c0_131, %c0_132] : memref<1x1x32xf32, #tpu.memory_space<vmem>>, vector<1x1x32xf32>
    %305 = vector.shape_cast %304 : vector<1x1x32xf32> to vector<1x32xf32>
    %cst_133 = arith.constant dense<0.000000e+00> : vector<1x32xf32>
    %306 = tpu.matmul %27, %291, %cst_133 {dimension_numbers = #tpu.dot_dimension_numbers<[1], [0], [0], [1], [0, 0, 1, 1], [], []>} : vector<1x10xf32>, vector<10x32xf32>, vector<1x32xf32> -> vector<1x32xf32>
    %307 = arith.addf %306, %293 : vector<1x32xf32>
    %cst_134 = arith.constant dense<0.000000e+00> : vector<1x32xf32>
    %308 = tpu.matmul %307, %295, %cst_134 {dimension_numbers = #tpu.dot_dimension_numbers<[1], [0], [0], [1], [0, 0, 1, 1], [], []>} : vector<1x32xf32>, vector<32x32xf32>, vector<1x32xf32> -> vector<1x32xf32>
    %309 = arith.addf %308, %297 : vector<1x32xf32>
    %cst_135 = arith.constant dense<0.000000e+00> : vector<16x64xf32>
    %310 = tpu.matmul %285, %299, %cst_135 {dimension_numbers = #tpu.dot_dimension_numbers<[1], [0], [0], [1], [0, 0, 1, 1], [], []>} : vector<16x32xf32>, vector<32x64xf32>, vector<16x64xf32> -> vector<16x64xf32>
    %311 = vector.broadcast %301 : vector<1x64xf32> to vector<16x64xf32>
    %312 = arith.addf %310, %311 : vector<16x64xf32>
    %313 = vector.extract_strided_slice %312 {offsets = [0, 0], sizes = [16, 32], strides = [1, 1]} : vector<16x64xf32> to vector<16x32xf32>
    %314 = vector.extract_strided_slice %312 {offsets = [0, 32], sizes = [16, 32], strides = [1, 1]} : vector<16x64xf32> to vector<16x32xf32>
    %315 = vector.extract_strided_slice %313 {offsets = [0, 0], sizes = [16, 8], strides = [1, 1]} : vector<16x32xf32> to vector<16x8xf32>
    %316 = vector.extract_strided_slice %309 {offsets = [0, 0], sizes = [1, 8], strides = [1, 1]} : vector<1x32xf32> to vector<1x8xf32>
    %cst_136 = arith.constant dense<0.000000e+00> : vector<16x1xf32>
    %317 = tpu.matmul %315, %316, %cst_136 {dimension_numbers = #tpu.dot_dimension_numbers<[1], [1], [0], [0], [0, 0, 1, 0], [], []>} : vector<16x8xf32>, vector<1x8xf32>, vector<16x1xf32> -> vector<16x1xf32>
    %cst_137 = arith.constant dense<0xFF800000> : vector<1xf32>
    %318 = vector.multi_reduction <maximumf>, %317, %cst_137 [0] : vector<16x1xf32> to vector<1xf32>
    %319 = vector.shape_cast %318 : vector<1xf32> to vector<1x1xf32>
    %320 = vector.broadcast %319 : vector<1x1xf32> to vector<16x1xf32>
    %321 = arith.subf %317, %320 : vector<16x1xf32>
    %322 = math.exp %321 : vector<16x1xf32>
    %cst_138 = arith.constant dense<0.000000e+00> : vector<1xf32>
    %323 = vector.multi_reduction <add>, %322, %cst_138 [0] : vector<16x1xf32> to vector<1xf32>
    %324 = vector.shape_cast %323 : vector<1xf32> to vector<1x1xf32>
    %325 = tpu.reciprocal %324 {approx = true} : vector<1x1xf32> -> vector<1x1xf32>
    %326 = vector.broadcast %325 : vector<1x1xf32> to vector<16x1xf32>
    %327 = arith.mulf %322, %326 : vector<16x1xf32>
    %328 = vector.extract_strided_slice %314 {offsets = [0, 0], sizes = [16, 8], strides = [1, 1]} : vector<16x32xf32> to vector<16x8xf32>
    %329 = vector.broadcast %327 : vector<16x1xf32> to vector<16x8xf32>
    %330 = arith.mulf %329, %328 : vector<16x8xf32>
    %331 = vector.extract_strided_slice %313 {offsets = [0, 8], sizes = [16, 8], strides = [1, 1]} : vector<16x32xf32> to vector<16x8xf32>
    %332 = vector.extract_strided_slice %309 {offsets = [0, 8], sizes = [1, 8], strides = [1, 1]} : vector<1x32xf32> to vector<1x8xf32>
    %cst_139 = arith.constant dense<0.000000e+00> : vector<16x1xf32>
    %333 = tpu.matmul %331, %332, %cst_139 {dimension_numbers = #tpu.dot_dimension_numbers<[1], [1], [0], [0], [0, 0, 1, 0], [], []>} : vector<16x8xf32>, vector<1x8xf32>, vector<16x1xf32> -> vector<16x1xf32>
    %cst_140 = arith.constant dense<0xFF800000> : vector<1xf32>
    %334 = vector.multi_reduction <maximumf>, %333, %cst_140 [0] : vector<16x1xf32> to vector<1xf32>
    %335 = vector.shape_cast %334 : vector<1xf32> to vector<1x1xf32>
    %336 = vector.broadcast %335 : vector<1x1xf32> to vector<16x1xf32>
    %337 = arith.subf %333, %336 : vector<16x1xf32>
    %338 = math.exp %337 : vector<16x1xf32>
    %cst_141 = arith.constant dense<0.000000e+00> : vector<1xf32>
    %339 = vector.multi_reduction <add>, %338, %cst_141 [0] : vector<16x1xf32> to vector<1xf32>
    %340 = vector.shape_cast %339 : vector<1xf32> to vector<1x1xf32>
    %341 = tpu.reciprocal %340 {approx = true} : vector<1x1xf32> -> vector<1x1xf32>
    %342 = vector.broadcast %341 : vector<1x1xf32> to vector<16x1xf32>
    %343 = arith.mulf %338, %342 : vector<16x1xf32>
    %344 = vector.extract_strided_slice %314 {offsets = [0, 8], sizes = [16, 8], strides = [1, 1]} : vector<16x32xf32> to vector<16x8xf32>
    %345 = vector.broadcast %343 : vector<16x1xf32> to vector<16x8xf32>
    %346 = arith.mulf %345, %344 : vector<16x8xf32>
    %347 = vector.extract_strided_slice %313 {offsets = [0, 16], sizes = [16, 8], strides = [1, 1]} : vector<16x32xf32> to vector<16x8xf32>
    %348 = vector.extract_strided_slice %309 {offsets = [0, 16], sizes = [1, 8], strides = [1, 1]} : vector<1x32xf32> to vector<1x8xf32>
    %cst_142 = arith.constant dense<0.000000e+00> : vector<16x1xf32>
    %349 = tpu.matmul %347, %348, %cst_142 {dimension_numbers = #tpu.dot_dimension_numbers<[1], [1], [0], [0], [0, 0, 1, 0], [], []>} : vector<16x8xf32>, vector<1x8xf32>, vector<16x1xf32> -> vector<16x1xf32>
    %cst_143 = arith.constant dense<0xFF800000> : vector<1xf32>
    %350 = vector.multi_reduction <maximumf>, %349, %cst_143 [0] : vector<16x1xf32> to vector<1xf32>
    %351 = vector.shape_cast %350 : vector<1xf32> to vector<1x1xf32>
    %352 = vector.broadcast %351 : vector<1x1xf32> to vector<16x1xf32>
    %353 = arith.subf %349, %352 : vector<16x1xf32>
    %354 = math.exp %353 : vector<16x1xf32>
    %cst_144 = arith.constant dense<0.000000e+00> : vector<1xf32>
    %355 = vector.multi_reduction <add>, %354, %cst_144 [0] : vector<16x1xf32> to vector<1xf32>
    %356 = vector.shape_cast %355 : vector<1xf32> to vector<1x1xf32>
    %357 = tpu.reciprocal %356 {approx = true} : vector<1x1xf32> -> vector<1x1xf32>
    %358 = vector.broadcast %357 : vector<1x1xf32> to vector<16x1xf32>
    %359 = arith.mulf %354, %358 : vector<16x1xf32>
    %360 = vector.extract_strided_slice %314 {offsets = [0, 16], sizes = [16, 8], strides = [1, 1]} : vector<16x32xf32> to vector<16x8xf32>
    %361 = vector.broadcast %359 : vector<16x1xf32> to vector<16x8xf32>
    %362 = arith.mulf %361, %360 : vector<16x8xf32>
    %363 = vector.extract_strided_slice %313 {offsets = [0, 24], sizes = [16, 8], strides = [1, 1]} : vector<16x32xf32> to vector<16x8xf32>
    %364 = vector.extract_strided_slice %309 {offsets = [0, 24], sizes = [1, 8], strides = [1, 1]} : vector<1x32xf32> to vector<1x8xf32>
    %cst_145 = arith.constant dense<0.000000e+00> : vector<16x1xf32>
    %365 = tpu.matmul %363, %364, %cst_145 {dimension_numbers = #tpu.dot_dimension_numbers<[1], [1], [0], [0], [0, 0, 1, 0], [], []>} : vector<16x8xf32>, vector<1x8xf32>, vector<16x1xf32> -> vector<16x1xf32>
    %cst_146 = arith.constant dense<0xFF800000> : vector<1xf32>
    %366 = vector.multi_reduction <maximumf>, %365, %cst_146 [0] : vector<16x1xf32> to vector<1xf32>
    %367 = vector.shape_cast %366 : vector<1xf32> to vector<1x1xf32>
    %368 = vector.broadcast %367 : vector<1x1xf32> to vector<16x1xf32>
    %369 = arith.subf %365, %368 : vector<16x1xf32>
    %370 = math.exp %369 : vector<16x1xf32>
    %cst_147 = arith.constant dense<0.000000e+00> : vector<1xf32>
    %371 = vector.multi_reduction <add>, %370, %cst_147 [0] : vector<16x1xf32> to vector<1xf32>
    %372 = vector.shape_cast %371 : vector<1xf32> to vector<1x1xf32>
    %373 = tpu.reciprocal %372 {approx = true} : vector<1x1xf32> -> vector<1x1xf32>
    %374 = vector.broadcast %373 : vector<1x1xf32> to vector<16x1xf32>
    %375 = arith.mulf %370, %374 : vector<16x1xf32>
    %376 = vector.extract_strided_slice %314 {offsets = [0, 24], sizes = [16, 8], strides = [1, 1]} : vector<16x32xf32> to vector<16x8xf32>
    %377 = vector.broadcast %375 : vector<16x1xf32> to vector<16x8xf32>
    %378 = arith.mulf %377, %376 : vector<16x8xf32>
    %379 = tpu.concatenate %330, %346, %362, %378 in 1 : vector<16x8xf32>, vector<16x8xf32>, vector<16x8xf32>, vector<16x8xf32> -> vector<16x32xf32>
    %cst_148 = arith.constant dense<0.000000e+00> : vector<16x32xf32>
    %380 = tpu.matmul %379, %303, %cst_148 {dimension_numbers = #tpu.dot_dimension_numbers<[1], [0], [0], [1], [0, 0, 1, 1], [], []>} : vector<16x32xf32>, vector<32x32xf32>, vector<16x32xf32> -> vector<16x32xf32>
    %381 = vector.broadcast %305 : vector<1x32xf32> to vector<16x32xf32>
    %382 = arith.addf %380, %381 : vector<16x32xf32>
    %383 = arith.addf %285, %382 : vector<16x32xf32>
    %384 = vector.extract_strided_slice %287 {offsets = [0, 0], sizes = [1, 32], strides = [1, 1]} : vector<3x32xf32> to vector<1x32xf32>
    %385 = vector.extract_strided_slice %289 {offsets = [0, 0], sizes = [1, 32], strides = [1, 1]} : vector<3x32xf32> to vector<1x32xf32>
    %cst_149 = arith.constant dense<0.000000e+00> : vector<16xf32>
    %386 = vector.multi_reduction <add>, %383, %cst_149 [1] : vector<16x32xf32> to vector<16xf32>
    %387 = vector.shape_cast %386 : vector<16xf32> to vector<16x1xf32>
    %cst_150 = arith.constant 3.200000e+01 : f32
    %388 = vector.broadcast %cst_150 : f32 to vector<16x1xf32>
    %389 = arith.divf %387, %388 : vector<16x1xf32>
    %390 = vector.broadcast %389 : vector<16x1xf32> to vector<16x32xf32>
    %391 = arith.subf %383, %390 : vector<16x32xf32>
    %392 = arith.mulf %391, %391 : vector<16x32xf32>
    %cst_151 = arith.constant dense<0.000000e+00> : vector<16xf32>
    %393 = vector.multi_reduction <add>, %392, %cst_151 [1] : vector<16x32xf32> to vector<16xf32>
    %394 = vector.shape_cast %393 : vector<16xf32> to vector<16x1xf32>
    %cst_152 = arith.constant 3.100000e+01 : f32
    %395 = vector.broadcast %cst_152 : f32 to vector<16x1xf32>
    %396 = arith.divf %394, %395 : vector<16x1xf32>
    %397 = math.sqrt %396 : vector<16x1xf32>
    %cst_153 = arith.constant 9.99999997E-7 : f32
    %398 = vector.broadcast %cst_153 : f32 to vector<16x1xf32>
    %399 = arith.addf %397, %398 : vector<16x1xf32>
    %400 = tpu.reciprocal %399 {approx = true} : vector<16x1xf32> -> vector<16x1xf32>
    %401 = vector.broadcast %389 : vector<16x1xf32> to vector<16x32xf32>
    %402 = arith.subf %383, %401 : vector<16x32xf32>
    %403 = vector.broadcast %384 : vector<1x32xf32> to vector<16x32xf32>
    %404 = arith.mulf %403, %402 : vector<16x32xf32>
    %405 = vector.broadcast %400 : vector<16x1xf32> to vector<16x32xf32>
    %406 = arith.mulf %404, %405 : vector<16x32xf32>
    %407 = vector.broadcast %385 : vector<1x32xf32> to vector<16x32xf32>
    %408 = arith.addf %406, %407 : vector<16x32xf32>
    %c0_154 = arith.constant 0 : index
    %c0_155 = arith.constant 0 : index
    %c0_156 = arith.constant 0 : index
    %409 = vector.load %arg25[%c0_154, %c0_155, %c0_156] : memref<1x32x96xf32, #tpu.memory_space<vmem>>, vector<1x32x96xf32>
    %410 = vector.shape_cast %409 : vector<1x32x96xf32> to vector<32x96xf32>
    %c0_157 = arith.constant 0 : index
    %c0_158 = arith.constant 0 : index
    %c0_159 = arith.constant 0 : index
    %411 = vector.load %arg26[%c0_157, %c0_158, %c0_159] : memref<1x1x96xf32, #tpu.memory_space<vmem>>, vector<1x1x96xf32>
    %412 = vector.shape_cast %411 : vector<1x1x96xf32> to vector<1x96xf32>
    %c0_160 = arith.constant 0 : index
    %c0_161 = arith.constant 0 : index
    %c0_162 = arith.constant 0 : index
    %413 = vector.load %arg27[%c0_160, %c0_161, %c0_162] : memref<1x32x32xf32, #tpu.memory_space<vmem>>, vector<1x32x32xf32>
    %414 = vector.shape_cast %413 : vector<1x32x32xf32> to vector<32x32xf32>
    %c0_163 = arith.constant 0 : index
    %c0_164 = arith.constant 0 : index
    %c0_165 = arith.constant 0 : index
    %415 = vector.load %arg28[%c0_163, %c0_164, %c0_165] : memref<1x1x32xf32, #tpu.memory_space<vmem>>, vector<1x1x32xf32>
    %416 = vector.shape_cast %415 : vector<1x1x32xf32> to vector<1x32xf32>
    %cst_166 = arith.constant dense<0.000000e+00> : vector<16x96xf32>
    %417 = tpu.matmul %408, %410, %cst_166 {dimension_numbers = #tpu.dot_dimension_numbers<[1], [0], [0], [1], [0, 0, 1, 1], [], []>} : vector<16x32xf32>, vector<32x96xf32>, vector<16x96xf32> -> vector<16x96xf32>
    %418 = vector.broadcast %412 : vector<1x96xf32> to vector<16x96xf32>
    %419 = arith.addf %417, %418 : vector<16x96xf32>
    %420 = vector.extract_strided_slice %419 {offsets = [0, 0], sizes = [16, 32], strides = [1, 1]} : vector<16x96xf32> to vector<16x32xf32>
    %421 = vector.extract_strided_slice %419 {offsets = [0, 32], sizes = [16, 32], strides = [1, 1]} : vector<16x96xf32> to vector<16x32xf32>
    %422 = vector.extract_strided_slice %419 {offsets = [0, 64], sizes = [16, 32], strides = [1, 1]} : vector<16x96xf32> to vector<16x32xf32>
    %423 = vector.extract_strided_slice %420 {offsets = [0, 0], sizes = [16, 8], strides = [1, 1]} : vector<16x32xf32> to vector<16x8xf32>
    %424 = vector.extract_strided_slice %421 {offsets = [0, 0], sizes = [16, 8], strides = [1, 1]} : vector<16x32xf32> to vector<16x8xf32>
    %cst_167 = arith.constant dense<0.000000e+00> : vector<16x16xf32>
    %425 = tpu.matmul %423, %424, %cst_167 {dimension_numbers = #tpu.dot_dimension_numbers<[1], [1], [0], [0], [0, 0, 1, 0], [], []>} : vector<16x8xf32>, vector<16x8xf32>, vector<16x16xf32> -> vector<16x16xf32>
    %cst_168 = arith.constant dense<0xFF800000> : vector<16xf32>
    %426 = vector.multi_reduction <maximumf>, %425, %cst_168 [1] : vector<16x16xf32> to vector<16xf32>
    %427 = vector.shape_cast %426 : vector<16xf32> to vector<16x1xf32>
    %428 = vector.broadcast %427 : vector<16x1xf32> to vector<16x16xf32>
    %429 = arith.subf %425, %428 : vector<16x16xf32>
    %430 = math.exp %429 : vector<16x16xf32>
    %cst_169 = arith.constant dense<0.000000e+00> : vector<16xf32>
    %431 = vector.multi_reduction <add>, %430, %cst_169 [1] : vector<16x16xf32> to vector<16xf32>
    %432 = vector.shape_cast %431 : vector<16xf32> to vector<16x1xf32>
    %433 = tpu.reciprocal %432 {approx = true} : vector<16x1xf32> -> vector<16x1xf32>
    %434 = vector.broadcast %433 : vector<16x1xf32> to vector<16x16xf32>
    %435 = arith.mulf %430, %434 : vector<16x16xf32>
    %436 = vector.extract_strided_slice %422 {offsets = [0, 0], sizes = [16, 8], strides = [1, 1]} : vector<16x32xf32> to vector<16x8xf32>
    %cst_170 = arith.constant dense<0.000000e+00> : vector<16x8xf32>
    %437 = tpu.matmul %435, %436, %cst_170 {dimension_numbers = #tpu.dot_dimension_numbers<[1], [0], [0], [1], [0, 0, 1, 1], [], []>} : vector<16x16xf32>, vector<16x8xf32>, vector<16x8xf32> -> vector<16x8xf32>
    %438 = vector.extract_strided_slice %420 {offsets = [0, 8], sizes = [16, 8], strides = [1, 1]} : vector<16x32xf32> to vector<16x8xf32>
    %439 = vector.extract_strided_slice %421 {offsets = [0, 8], sizes = [16, 8], strides = [1, 1]} : vector<16x32xf32> to vector<16x8xf32>
    %cst_171 = arith.constant dense<0.000000e+00> : vector<16x16xf32>
    %440 = tpu.matmul %438, %439, %cst_171 {dimension_numbers = #tpu.dot_dimension_numbers<[1], [1], [0], [0], [0, 0, 1, 0], [], []>} : vector<16x8xf32>, vector<16x8xf32>, vector<16x16xf32> -> vector<16x16xf32>
    %cst_172 = arith.constant dense<0xFF800000> : vector<16xf32>
    %441 = vector.multi_reduction <maximumf>, %440, %cst_172 [1] : vector<16x16xf32> to vector<16xf32>
    %442 = vector.shape_cast %441 : vector<16xf32> to vector<16x1xf32>
    %443 = vector.broadcast %442 : vector<16x1xf32> to vector<16x16xf32>
    %444 = arith.subf %440, %443 : vector<16x16xf32>
    %445 = math.exp %444 : vector<16x16xf32>
    %cst_173 = arith.constant dense<0.000000e+00> : vector<16xf32>
    %446 = vector.multi_reduction <add>, %445, %cst_173 [1] : vector<16x16xf32> to vector<16xf32>
    %447 = vector.shape_cast %446 : vector<16xf32> to vector<16x1xf32>
    %448 = tpu.reciprocal %447 {approx = true} : vector<16x1xf32> -> vector<16x1xf32>
    %449 = vector.broadcast %448 : vector<16x1xf32> to vector<16x16xf32>
    %450 = arith.mulf %445, %449 : vector<16x16xf32>
    %451 = vector.extract_strided_slice %422 {offsets = [0, 8], sizes = [16, 8], strides = [1, 1]} : vector<16x32xf32> to vector<16x8xf32>
    %cst_174 = arith.constant dense<0.000000e+00> : vector<16x8xf32>
    %452 = tpu.matmul %450, %451, %cst_174 {dimension_numbers = #tpu.dot_dimension_numbers<[1], [0], [0], [1], [0, 0, 1, 1], [], []>} : vector<16x16xf32>, vector<16x8xf32>, vector<16x8xf32> -> vector<16x8xf32>
    %453 = vector.extract_strided_slice %420 {offsets = [0, 16], sizes = [16, 8], strides = [1, 1]} : vector<16x32xf32> to vector<16x8xf32>
    %454 = vector.extract_strided_slice %421 {offsets = [0, 16], sizes = [16, 8], strides = [1, 1]} : vector<16x32xf32> to vector<16x8xf32>
    %cst_175 = arith.constant dense<0.000000e+00> : vector<16x16xf32>
    %455 = tpu.matmul %453, %454, %cst_175 {dimension_numbers = #tpu.dot_dimension_numbers<[1], [1], [0], [0], [0, 0, 1, 0], [], []>} : vector<16x8xf32>, vector<16x8xf32>, vector<16x16xf32> -> vector<16x16xf32>
    %cst_176 = arith.constant dense<0xFF800000> : vector<16xf32>
    %456 = vector.multi_reduction <maximumf>, %455, %cst_176 [1] : vector<16x16xf32> to vector<16xf32>
    %457 = vector.shape_cast %456 : vector<16xf32> to vector<16x1xf32>
    %458 = vector.broadcast %457 : vector<16x1xf32> to vector<16x16xf32>
    %459 = arith.subf %455, %458 : vector<16x16xf32>
    %460 = math.exp %459 : vector<16x16xf32>
    %cst_177 = arith.constant dense<0.000000e+00> : vector<16xf32>
    %461 = vector.multi_reduction <add>, %460, %cst_177 [1] : vector<16x16xf32> to vector<16xf32>
    %462 = vector.shape_cast %461 : vector<16xf32> to vector<16x1xf32>
    %463 = tpu.reciprocal %462 {approx = true} : vector<16x1xf32> -> vector<16x1xf32>
    %464 = vector.broadcast %463 : vector<16x1xf32> to vector<16x16xf32>
    %465 = arith.mulf %460, %464 : vector<16x16xf32>
    %466 = vector.extract_strided_slice %422 {offsets = [0, 16], sizes = [16, 8], strides = [1, 1]} : vector<16x32xf32> to vector<16x8xf32>
    %cst_178 = arith.constant dense<0.000000e+00> : vector<16x8xf32>
    %467 = tpu.matmul %465, %466, %cst_178 {dimension_numbers = #tpu.dot_dimension_numbers<[1], [0], [0], [1], [0, 0, 1, 1], [], []>} : vector<16x16xf32>, vector<16x8xf32>, vector<16x8xf32> -> vector<16x8xf32>
    %468 = vector.extract_strided_slice %420 {offsets = [0, 24], sizes = [16, 8], strides = [1, 1]} : vector<16x32xf32> to vector<16x8xf32>
    %469 = vector.extract_strided_slice %421 {offsets = [0, 24], sizes = [16, 8], strides = [1, 1]} : vector<16x32xf32> to vector<16x8xf32>
    %cst_179 = arith.constant dense<0.000000e+00> : vector<16x16xf32>
    %470 = tpu.matmul %468, %469, %cst_179 {dimension_numbers = #tpu.dot_dimension_numbers<[1], [1], [0], [0], [0, 0, 1, 0], [], []>} : vector<16x8xf32>, vector<16x8xf32>, vector<16x16xf32> -> vector<16x16xf32>
    %cst_180 = arith.constant dense<0xFF800000> : vector<16xf32>
    %471 = vector.multi_reduction <maximumf>, %470, %cst_180 [1] : vector<16x16xf32> to vector<16xf32>
    %472 = vector.shape_cast %471 : vector<16xf32> to vector<16x1xf32>
    %473 = vector.broadcast %472 : vector<16x1xf32> to vector<16x16xf32>
    %474 = arith.subf %470, %473 : vector<16x16xf32>
    %475 = math.exp %474 : vector<16x16xf32>
    %cst_181 = arith.constant dense<0.000000e+00> : vector<16xf32>
    %476 = vector.multi_reduction <add>, %475, %cst_181 [1] : vector<16x16xf32> to vector<16xf32>
    %477 = vector.shape_cast %476 : vector<16xf32> to vector<16x1xf32>
    %478 = tpu.reciprocal %477 {approx = true} : vector<16x1xf32> -> vector<16x1xf32>
    %479 = vector.broadcast %478 : vector<16x1xf32> to vector<16x16xf32>
    %480 = arith.mulf %475, %479 : vector<16x16xf32>
    %481 = vector.extract_strided_slice %422 {offsets = [0, 24], sizes = [16, 8], strides = [1, 1]} : vector<16x32xf32> to vector<16x8xf32>
    %cst_182 = arith.constant dense<0.000000e+00> : vector<16x8xf32>
    %482 = tpu.matmul %480, %481, %cst_182 {dimension_numbers = #tpu.dot_dimension_numbers<[1], [0], [0], [1], [0, 0, 1, 1], [], []>} : vector<16x16xf32>, vector<16x8xf32>, vector<16x8xf32> -> vector<16x8xf32>
    %483 = tpu.concatenate %437, %452, %467, %482 in 1 : vector<16x8xf32>, vector<16x8xf32>, vector<16x8xf32>, vector<16x8xf32> -> vector<16x32xf32>
    %cst_183 = arith.constant dense<0.000000e+00> : vector<16x32xf32>
    %484 = tpu.matmul %483, %414, %cst_183 {dimension_numbers = #tpu.dot_dimension_numbers<[1], [0], [0], [1], [0, 0, 1, 1], [], []>} : vector<16x32xf32>, vector<32x32xf32>, vector<16x32xf32> -> vector<16x32xf32>
    %485 = vector.broadcast %416 : vector<1x32xf32> to vector<16x32xf32>
    %486 = arith.addf %484, %485 : vector<16x32xf32>
    %487 = arith.addf %408, %486 : vector<16x32xf32>
    %488 = vector.extract_strided_slice %287 {offsets = [1, 0], sizes = [1, 32], strides = [1, 1]} : vector<3x32xf32> to vector<1x32xf32>
    %489 = vector.extract_strided_slice %289 {offsets = [1, 0], sizes = [1, 32], strides = [1, 1]} : vector<3x32xf32> to vector<1x32xf32>
    %cst_184 = arith.constant dense<0.000000e+00> : vector<16xf32>
    %490 = vector.multi_reduction <add>, %487, %cst_184 [1] : vector<16x32xf32> to vector<16xf32>
    %491 = vector.shape_cast %490 : vector<16xf32> to vector<16x1xf32>
    %cst_185 = arith.constant 3.200000e+01 : f32
    %492 = vector.broadcast %cst_185 : f32 to vector<16x1xf32>
    %493 = arith.divf %491, %492 : vector<16x1xf32>
    %494 = vector.broadcast %493 : vector<16x1xf32> to vector<16x32xf32>
    %495 = arith.subf %487, %494 : vector<16x32xf32>
    %496 = arith.mulf %495, %495 : vector<16x32xf32>
    %cst_186 = arith.constant dense<0.000000e+00> : vector<16xf32>
    %497 = vector.multi_reduction <add>, %496, %cst_186 [1] : vector<16x32xf32> to vector<16xf32>
    %498 = vector.shape_cast %497 : vector<16xf32> to vector<16x1xf32>
    %cst_187 = arith.constant 3.100000e+01 : f32
    %499 = vector.broadcast %cst_187 : f32 to vector<16x1xf32>
    %500 = arith.divf %498, %499 : vector<16x1xf32>
    %501 = math.sqrt %500 : vector<16x1xf32>
    %cst_188 = arith.constant 9.99999997E-7 : f32
    %502 = vector.broadcast %cst_188 : f32 to vector<16x1xf32>
    %503 = arith.addf %501, %502 : vector<16x1xf32>
    %504 = tpu.reciprocal %503 {approx = true} : vector<16x1xf32> -> vector<16x1xf32>
    %505 = vector.broadcast %493 : vector<16x1xf32> to vector<16x32xf32>
    %506 = arith.subf %487, %505 : vector<16x32xf32>
    %507 = vector.broadcast %488 : vector<1x32xf32> to vector<16x32xf32>
    %508 = arith.mulf %507, %506 : vector<16x32xf32>
    %509 = vector.broadcast %504 : vector<16x1xf32> to vector<16x32xf32>
    %510 = arith.mulf %508, %509 : vector<16x32xf32>
    %511 = vector.broadcast %489 : vector<1x32xf32> to vector<16x32xf32>
    %512 = arith.addf %510, %511 : vector<16x32xf32>
    %c0_189 = arith.constant 0 : index
    %c0_190 = arith.constant 0 : index
    %c0_191 = arith.constant 0 : index
    %513 = vector.load %arg29[%c0_189, %c0_190, %c0_191] : memref<1x32x64xf32, #tpu.memory_space<vmem>>, vector<1x32x64xf32>
    %514 = vector.shape_cast %513 : vector<1x32x64xf32> to vector<32x64xf32>
    %c0_192 = arith.constant 0 : index
    %c0_193 = arith.constant 0 : index
    %c0_194 = arith.constant 0 : index
    %515 = vector.load %arg30[%c0_192, %c0_193, %c0_194] : memref<1x1x64xf32, #tpu.memory_space<vmem>>, vector<1x1x64xf32>
    %516 = vector.shape_cast %515 : vector<1x1x64xf32> to vector<1x64xf32>
    %cst_195 = arith.constant dense<0.000000e+00> : vector<16x64xf32>
    %517 = tpu.matmul %512, %514, %cst_195 {dimension_numbers = #tpu.dot_dimension_numbers<[1], [0], [0], [1], [0, 0, 1, 1], [], []>} : vector<16x32xf32>, vector<32x64xf32>, vector<16x64xf32> -> vector<16x64xf32>
    %518 = vector.broadcast %516 : vector<1x64xf32> to vector<16x64xf32>
    %519 = arith.addf %517, %518 : vector<16x64xf32>
    %cst_196 = arith.constant 0.000000e+00 : f32
    %520 = vector.broadcast %cst_196 : f32 to vector<16x64xf32>
    %521 = arith.maximumf %519, %520 : vector<16x64xf32>
    %c0_197 = arith.constant 0 : index
    %c0_198 = arith.constant 0 : index
    %c0_199 = arith.constant 0 : index
    %522 = vector.load %arg31[%c0_197, %c0_198, %c0_199] : memref<1x64x32xf32, #tpu.memory_space<vmem>>, vector<1x64x32xf32>
    %523 = vector.shape_cast %522 : vector<1x64x32xf32> to vector<64x32xf32>
    %c0_200 = arith.constant 0 : index
    %c0_201 = arith.constant 0 : index
    %c0_202 = arith.constant 0 : index
    %524 = vector.load %arg32[%c0_200, %c0_201, %c0_202] : memref<1x1x32xf32, #tpu.memory_space<vmem>>, vector<1x1x32xf32>
    %525 = vector.shape_cast %524 : vector<1x1x32xf32> to vector<1x32xf32>
    %cst_203 = arith.constant dense<0.000000e+00> : vector<16x32xf32>
    %526 = tpu.matmul %521, %523, %cst_203 {dimension_numbers = #tpu.dot_dimension_numbers<[1], [0], [0], [1], [0, 0, 1, 1], [], []>} : vector<16x64xf32>, vector<64x32xf32>, vector<16x32xf32> -> vector<16x32xf32>
    %527 = vector.broadcast %525 : vector<1x32xf32> to vector<16x32xf32>
    %528 = arith.addf %526, %527 : vector<16x32xf32>
    %529 = arith.addf %512, %528 : vector<16x32xf32>
    %530 = vector.extract_strided_slice %287 {offsets = [2, 0], sizes = [1, 32], strides = [1, 1]} : vector<3x32xf32> to vector<1x32xf32>
    %531 = vector.extract_strided_slice %289 {offsets = [2, 0], sizes = [1, 32], strides = [1, 1]} : vector<3x32xf32> to vector<1x32xf32>
    %cst_204 = arith.constant dense<0.000000e+00> : vector<16xf32>
    %532 = vector.multi_reduction <add>, %529, %cst_204 [1] : vector<16x32xf32> to vector<16xf32>
    %533 = vector.shape_cast %532 : vector<16xf32> to vector<16x1xf32>
    %cst_205 = arith.constant 3.200000e+01 : f32
    %534 = vector.broadcast %cst_205 : f32 to vector<16x1xf32>
    %535 = arith.divf %533, %534 : vector<16x1xf32>
    %536 = vector.broadcast %535 : vector<16x1xf32> to vector<16x32xf32>
    %537 = arith.subf %529, %536 : vector<16x32xf32>
    %538 = arith.mulf %537, %537 : vector<16x32xf32>
    %cst_206 = arith.constant dense<0.000000e+00> : vector<16xf32>
    %539 = vector.multi_reduction <add>, %538, %cst_206 [1] : vector<16x32xf32> to vector<16xf32>
    %540 = vector.shape_cast %539 : vector<16xf32> to vector<16x1xf32>
    %cst_207 = arith.constant 3.100000e+01 : f32
    %541 = vector.broadcast %cst_207 : f32 to vector<16x1xf32>
    %542 = arith.divf %540, %541 : vector<16x1xf32>
    %543 = math.sqrt %542 : vector<16x1xf32>
    %cst_208 = arith.constant 9.99999997E-7 : f32
    %544 = vector.broadcast %cst_208 : f32 to vector<16x1xf32>
    %545 = arith.addf %543, %544 : vector<16x1xf32>
    %546 = tpu.reciprocal %545 {approx = true} : vector<16x1xf32> -> vector<16x1xf32>
    %547 = vector.broadcast %535 : vector<16x1xf32> to vector<16x32xf32>
    %548 = arith.subf %529, %547 : vector<16x32xf32>
    %549 = vector.broadcast %530 : vector<1x32xf32> to vector<16x32xf32>
    %550 = arith.mulf %549, %548 : vector<16x32xf32>
    %551 = vector.broadcast %546 : vector<16x1xf32> to vector<16x32xf32>
    %552 = arith.mulf %550, %551 : vector<16x32xf32>
    %553 = vector.broadcast %531 : vector<1x32xf32> to vector<16x32xf32>
    %554 = arith.addf %552, %553 : vector<16x32xf32>
    %c0_209 = arith.constant 0 : index
    %c0_210 = arith.constant 0 : index
    %555 = vector.load %arg35[%c0_209, %c0_210] : memref<10x32xf32, #tpu.memory_space<vmem>>, vector<10x32xf32>
    %c0_211 = arith.constant 0 : index
    %c0_212 = arith.constant 0 : index
    %556 = vector.load %arg36[%c0_211, %c0_212] : memref<1x32xf32, #tpu.memory_space<vmem>>, vector<1x32xf32>
    %c0_213 = arith.constant 0 : index
    %c0_214 = arith.constant 0 : index
    %557 = vector.load %arg37[%c0_213, %c0_214] : memref<32x32xf32, #tpu.memory_space<vmem>>, vector<32x32xf32>
    %c0_215 = arith.constant 0 : index
    %c0_216 = arith.constant 0 : index
    %558 = vector.load %arg38[%c0_215, %c0_216] : memref<1x32xf32, #tpu.memory_space<vmem>>, vector<1x32xf32>
    %c0_217 = arith.constant 0 : index
    %c0_218 = arith.constant 0 : index
    %559 = vector.load %arg39[%c0_217, %c0_218] : memref<32x64xf32, #tpu.memory_space<vmem>>, vector<32x64xf32>
    %c0_219 = arith.constant 0 : index
    %c0_220 = arith.constant 0 : index
    %560 = vector.load %arg40[%c0_219, %c0_220] : memref<1x64xf32, #tpu.memory_space<vmem>>, vector<1x64xf32>
    %c0_221 = arith.constant 0 : index
    %c0_222 = arith.constant 0 : index
    %561 = vector.load %arg41[%c0_221, %c0_222] : memref<32x32xf32, #tpu.memory_space<vmem>>, vector<32x32xf32>
    %c0_223 = arith.constant 0 : index
    %c0_224 = arith.constant 0 : index
    %562 = vector.load %arg42[%c0_223, %c0_224] : memref<1x32xf32, #tpu.memory_space<vmem>>, vector<1x32xf32>
    %cst_225 = arith.constant dense<0.000000e+00> : vector<1x32xf32>
    %563 = tpu.matmul %27, %555, %cst_225 {dimension_numbers = #tpu.dot_dimension_numbers<[1], [0], [0], [1], [0, 0, 1, 1], [], []>} : vector<1x10xf32>, vector<10x32xf32>, vector<1x32xf32> -> vector<1x32xf32>
    %564 = arith.addf %563, %556 : vector<1x32xf32>
    %cst_226 = arith.constant dense<0.000000e+00> : vector<1x32xf32>
    %565 = tpu.matmul %564, %557, %cst_226 {dimension_numbers = #tpu.dot_dimension_numbers<[1], [0], [0], [1], [0, 0, 1, 1], [], []>} : vector<1x32xf32>, vector<32x32xf32>, vector<1x32xf32> -> vector<1x32xf32>
    %566 = arith.addf %565, %558 : vector<1x32xf32>
    %cst_227 = arith.constant dense<0.000000e+00> : vector<16x64xf32>
    %567 = tpu.matmul %554, %559, %cst_227 {dimension_numbers = #tpu.dot_dimension_numbers<[1], [0], [0], [1], [0, 0, 1, 1], [], []>} : vector<16x32xf32>, vector<32x64xf32>, vector<16x64xf32> -> vector<16x64xf32>
    %568 = vector.broadcast %560 : vector<1x64xf32> to vector<16x64xf32>
    %569 = arith.addf %567, %568 : vector<16x64xf32>
    %570 = vector.extract_strided_slice %569 {offsets = [0, 0], sizes = [16, 32], strides = [1, 1]} : vector<16x64xf32> to vector<16x32xf32>
    %571 = vector.extract_strided_slice %569 {offsets = [0, 32], sizes = [16, 32], strides = [1, 1]} : vector<16x64xf32> to vector<16x32xf32>
    %572 = vector.extract_strided_slice %566 {offsets = [0, 0], sizes = [1, 8], strides = [1, 1]} : vector<1x32xf32> to vector<1x8xf32>
    %573 = vector.extract_strided_slice %570 {offsets = [0, 0], sizes = [16, 8], strides = [1, 1]} : vector<16x32xf32> to vector<16x8xf32>
    %cst_228 = arith.constant dense<0.000000e+00> : vector<1x16xf32>
    %574 = tpu.matmul %572, %573, %cst_228 {dimension_numbers = #tpu.dot_dimension_numbers<[1], [1], [0], [0], [0, 0, 1, 0], [], []>} : vector<1x8xf32>, vector<16x8xf32>, vector<1x16xf32> -> vector<1x16xf32>
    %cst_229 = arith.constant dense<0xFF800000> : vector<1xf32>
    %575 = vector.multi_reduction <maximumf>, %574, %cst_229 [1] : vector<1x16xf32> to vector<1xf32>
    %576 = vector.shape_cast %575 : vector<1xf32> to vector<1x1xf32>
    %577 = vector.broadcast %576 : vector<1x1xf32> to vector<1x16xf32>
    %578 = arith.subf %574, %577 : vector<1x16xf32>
    %579 = math.exp %578 : vector<1x16xf32>
    %cst_230 = arith.constant dense<0.000000e+00> : vector<1xf32>
    %580 = vector.multi_reduction <add>, %579, %cst_230 [1] : vector<1x16xf32> to vector<1xf32>
    %581 = vector.shape_cast %580 : vector<1xf32> to vector<1x1xf32>
    %582 = tpu.reciprocal %581 {approx = true} : vector<1x1xf32> -> vector<1x1xf32>
    %583 = vector.broadcast %582 : vector<1x1xf32> to vector<1x16xf32>
    %584 = arith.mulf %579, %583 : vector<1x16xf32>
    %585 = vector.extract_strided_slice %571 {offsets = [0, 0], sizes = [16, 8], strides = [1, 1]} : vector<16x32xf32> to vector<16x8xf32>
    %cst_231 = arith.constant dense<0.000000e+00> : vector<1x8xf32>
    %586 = tpu.matmul %584, %585, %cst_231 {dimension_numbers = #tpu.dot_dimension_numbers<[1], [0], [0], [1], [0, 0, 1, 1], [], []>} : vector<1x16xf32>, vector<16x8xf32>, vector<1x8xf32> -> vector<1x8xf32>
    %587 = vector.extract_strided_slice %566 {offsets = [0, 8], sizes = [1, 8], strides = [1, 1]} : vector<1x32xf32> to vector<1x8xf32>
    %588 = vector.extract_strided_slice %570 {offsets = [0, 8], sizes = [16, 8], strides = [1, 1]} : vector<16x32xf32> to vector<16x8xf32>
    %cst_232 = arith.constant dense<0.000000e+00> : vector<1x16xf32>
    %589 = tpu.matmul %587, %588, %cst_232 {dimension_numbers = #tpu.dot_dimension_numbers<[1], [1], [0], [0], [0, 0, 1, 0], [], []>} : vector<1x8xf32>, vector<16x8xf32>, vector<1x16xf32> -> vector<1x16xf32>
    %cst_233 = arith.constant dense<0xFF800000> : vector<1xf32>
    %590 = vector.multi_reduction <maximumf>, %589, %cst_233 [1] : vector<1x16xf32> to vector<1xf32>
    %591 = vector.shape_cast %590 : vector<1xf32> to vector<1x1xf32>
    %592 = vector.broadcast %591 : vector<1x1xf32> to vector<1x16xf32>
    %593 = arith.subf %589, %592 : vector<1x16xf32>
    %594 = math.exp %593 : vector<1x16xf32>
    %cst_234 = arith.constant dense<0.000000e+00> : vector<1xf32>
    %595 = vector.multi_reduction <add>, %594, %cst_234 [1] : vector<1x16xf32> to vector<1xf32>
    %596 = vector.shape_cast %595 : vector<1xf32> to vector<1x1xf32>
    %597 = tpu.reciprocal %596 {approx = true} : vector<1x1xf32> -> vector<1x1xf32>
    %598 = vector.broadcast %597 : vector<1x1xf32> to vector<1x16xf32>
    %599 = arith.mulf %594, %598 : vector<1x16xf32>
    %600 = vector.extract_strided_slice %571 {offsets = [0, 8], sizes = [16, 8], strides = [1, 1]} : vector<16x32xf32> to vector<16x8xf32>
    %cst_235 = arith.constant dense<0.000000e+00> : vector<1x8xf32>
    %601 = tpu.matmul %599, %600, %cst_235 {dimension_numbers = #tpu.dot_dimension_numbers<[1], [0], [0], [1], [0, 0, 1, 1], [], []>} : vector<1x16xf32>, vector<16x8xf32>, vector<1x8xf32> -> vector<1x8xf32>
    %602 = vector.extract_strided_slice %566 {offsets = [0, 16], sizes = [1, 8], strides = [1, 1]} : vector<1x32xf32> to vector<1x8xf32>
    %603 = vector.extract_strided_slice %570 {offsets = [0, 16], sizes = [16, 8], strides = [1, 1]} : vector<16x32xf32> to vector<16x8xf32>
    %cst_236 = arith.constant dense<0.000000e+00> : vector<1x16xf32>
    %604 = tpu.matmul %602, %603, %cst_236 {dimension_numbers = #tpu.dot_dimension_numbers<[1], [1], [0], [0], [0, 0, 1, 0], [], []>} : vector<1x8xf32>, vector<16x8xf32>, vector<1x16xf32> -> vector<1x16xf32>
    %cst_237 = arith.constant dense<0xFF800000> : vector<1xf32>
    %605 = vector.multi_reduction <maximumf>, %604, %cst_237 [1] : vector<1x16xf32> to vector<1xf32>
    %606 = vector.shape_cast %605 : vector<1xf32> to vector<1x1xf32>
    %607 = vector.broadcast %606 : vector<1x1xf32> to vector<1x16xf32>
    %608 = arith.subf %604, %607 : vector<1x16xf32>
    %609 = math.exp %608 : vector<1x16xf32>
    %cst_238 = arith.constant dense<0.000000e+00> : vector<1xf32>
    %610 = vector.multi_reduction <add>, %609, %cst_238 [1] : vector<1x16xf32> to vector<1xf32>
    %611 = vector.shape_cast %610 : vector<1xf32> to vector<1x1xf32>
    %612 = tpu.reciprocal %611 {approx = true} : vector<1x1xf32> -> vector<1x1xf32>
    %613 = vector.broadcast %612 : vector<1x1xf32> to vector<1x16xf32>
    %614 = arith.mulf %609, %613 : vector<1x16xf32>
    %615 = vector.extract_strided_slice %571 {offsets = [0, 16], sizes = [16, 8], strides = [1, 1]} : vector<16x32xf32> to vector<16x8xf32>
    %cst_239 = arith.constant dense<0.000000e+00> : vector<1x8xf32>
    %616 = tpu.matmul %614, %615, %cst_239 {dimension_numbers = #tpu.dot_dimension_numbers<[1], [0], [0], [1], [0, 0, 1, 1], [], []>} : vector<1x16xf32>, vector<16x8xf32>, vector<1x8xf32> -> vector<1x8xf32>
    %617 = vector.extract_strided_slice %566 {offsets = [0, 24], sizes = [1, 8], strides = [1, 1]} : vector<1x32xf32> to vector<1x8xf32>
    %618 = vector.extract_strided_slice %570 {offsets = [0, 24], sizes = [16, 8], strides = [1, 1]} : vector<16x32xf32> to vector<16x8xf32>
    %cst_240 = arith.constant dense<0.000000e+00> : vector<1x16xf32>
    %619 = tpu.matmul %617, %618, %cst_240 {dimension_numbers = #tpu.dot_dimension_numbers<[1], [1], [0], [0], [0, 0, 1, 0], [], []>} : vector<1x8xf32>, vector<16x8xf32>, vector<1x16xf32> -> vector<1x16xf32>
    %cst_241 = arith.constant dense<0xFF800000> : vector<1xf32>
    %620 = vector.multi_reduction <maximumf>, %619, %cst_241 [1] : vector<1x16xf32> to vector<1xf32>
    %621 = vector.shape_cast %620 : vector<1xf32> to vector<1x1xf32>
    %622 = vector.broadcast %621 : vector<1x1xf32> to vector<1x16xf32>
    %623 = arith.subf %619, %622 : vector<1x16xf32>
    %624 = math.exp %623 : vector<1x16xf32>
    %cst_242 = arith.constant dense<0.000000e+00> : vector<1xf32>
    %625 = vector.multi_reduction <add>, %624, %cst_242 [1] : vector<1x16xf32> to vector<1xf32>
    %626 = vector.shape_cast %625 : vector<1xf32> to vector<1x1xf32>
    %627 = tpu.reciprocal %626 {approx = true} : vector<1x1xf32> -> vector<1x1xf32>
    %628 = vector.broadcast %627 : vector<1x1xf32> to vector<1x16xf32>
    %629 = arith.mulf %624, %628 : vector<1x16xf32>
    %630 = vector.extract_strided_slice %571 {offsets = [0, 24], sizes = [16, 8], strides = [1, 1]} : vector<16x32xf32> to vector<16x8xf32>
    %cst_243 = arith.constant dense<0.000000e+00> : vector<1x8xf32>
    %631 = tpu.matmul %629, %630, %cst_243 {dimension_numbers = #tpu.dot_dimension_numbers<[1], [0], [0], [1], [0, 0, 1, 1], [], []>} : vector<1x16xf32>, vector<16x8xf32>, vector<1x8xf32> -> vector<1x8xf32>
    %632 = tpu.concatenate %586, %601, %616, %631 in 1 : vector<1x8xf32>, vector<1x8xf32>, vector<1x8xf32>, vector<1x8xf32> -> vector<1x32xf32>
    %cst_244 = arith.constant dense<0.000000e+00> : vector<1x32xf32>
    %633 = tpu.matmul %632, %561, %cst_244 {dimension_numbers = #tpu.dot_dimension_numbers<[1], [0], [0], [1], [0, 0, 1, 1], [], []>} : vector<1x32xf32>, vector<32x32xf32>, vector<1x32xf32> -> vector<1x32xf32>
    %634 = arith.addf %633, %562 : vector<1x32xf32>
    %c0_245 = arith.constant 0 : index
    %c0_246 = arith.constant 0 : index
    %635 = vector.load %arg43[%c0_245, %c0_246] : memref<1x32xf32, #tpu.memory_space<vmem>>, vector<1x32xf32>
    %c0_247 = arith.constant 0 : index
    %c0_248 = arith.constant 0 : index
    %636 = vector.load %arg44[%c0_247, %c0_248] : memref<1x32xf32, #tpu.memory_space<vmem>>, vector<1x32xf32>
    %cst_249 = arith.constant dense<0.000000e+00> : vector<1xf32>
    %637 = vector.multi_reduction <add>, %634, %cst_249 [1] : vector<1x32xf32> to vector<1xf32>
    %638 = vector.shape_cast %637 : vector<1xf32> to vector<1x1xf32>
    %cst_250 = arith.constant 3.200000e+01 : f32
    %639 = vector.broadcast %cst_250 : f32 to vector<1x1xf32>
    %640 = arith.divf %638, %639 : vector<1x1xf32>
    %641 = vector.broadcast %640 : vector<1x1xf32> to vector<1x32xf32>
    %642 = arith.subf %634, %641 : vector<1x32xf32>
    %643 = arith.mulf %642, %642 : vector<1x32xf32>
    %cst_251 = arith.constant dense<0.000000e+00> : vector<1xf32>
    %644 = vector.multi_reduction <add>, %643, %cst_251 [1] : vector<1x32xf32> to vector<1xf32>
    %645 = vector.shape_cast %644 : vector<1xf32> to vector<1x1xf32>
    %cst_252 = arith.constant 3.100000e+01 : f32
    %646 = vector.broadcast %cst_252 : f32 to vector<1x1xf32>
    %647 = arith.divf %645, %646 : vector<1x1xf32>
    %648 = math.sqrt %647 : vector<1x1xf32>
    %cst_253 = arith.constant 9.99999997E-7 : f32
    %649 = vector.broadcast %cst_253 : f32 to vector<1x1xf32>
    %650 = arith.addf %648, %649 : vector<1x1xf32>
    %651 = tpu.reciprocal %650 {approx = true} : vector<1x1xf32> -> vector<1x1xf32>
    %652 = vector.broadcast %640 : vector<1x1xf32> to vector<1x32xf32>
    %653 = arith.subf %634, %652 : vector<1x32xf32>
    %654 = arith.mulf %635, %653 : vector<1x32xf32>
    %655 = vector.broadcast %651 : vector<1x1xf32> to vector<1x32xf32>
    %656 = arith.mulf %654, %655 : vector<1x32xf32>
    %657 = arith.addf %656, %636 : vector<1x32xf32>
    %c0_254 = arith.constant 0 : index
    %c0_255 = arith.constant 0 : index
    %658 = vector.load %arg45[%c0_254, %c0_255] : memref<42x2xf32, #tpu.memory_space<vmem>>, vector<42x2xf32>
    %659 = vector.extract_strided_slice %658 {offsets = [0, 0], sizes = [10, 2], strides = [1, 1]} : vector<42x2xf32> to vector<10x2xf32>
    %cst_256 = arith.constant dense<0.000000e+00> : vector<1x2xf32>
    %660 = tpu.matmul %27, %659, %cst_256 {dimension_numbers = #tpu.dot_dimension_numbers<[1], [0], [0], [1], [0, 0, 1, 1], [], []>} : vector<1x10xf32>, vector<10x2xf32>, vector<1x2xf32> -> vector<1x2xf32>
    %661 = vector.extract_strided_slice %658 {offsets = [10, 0], sizes = [32, 2], strides = [1, 1]} : vector<42x2xf32> to vector<32x2xf32>
    %cst_257 = arith.constant dense<0.000000e+00> : vector<1x2xf32>
    %662 = tpu.matmul %657, %661, %cst_257 {dimension_numbers = #tpu.dot_dimension_numbers<[1], [0], [0], [1], [0, 0, 1, 1], [], []>} : vector<1x32xf32>, vector<32x2xf32>, vector<1x2xf32> -> vector<1x2xf32>
    %663 = arith.addf %660, %662 : vector<1x2xf32>
    %c0_258 = arith.constant 0 : index
    %c0_259 = arith.constant 0 : index
    %664 = vector.load %arg46[%c0_258, %c0_259] : memref<1x2xf32, #tpu.memory_space<vmem>>, vector<1x2xf32>
    %665 = arith.addf %663, %664 : vector<1x2xf32>
    %c0_260 = arith.constant 0 : index
    %c0_261 = arith.constant 0 : index
    %666 = vector.load %arg47[%c0_260, %c0_261] : memref<1x2xf32, #tpu.memory_space<vmem>>, vector<1x2xf32>
    tpu.vector_store %arg47[%c0_260, %c0_261], %665 {strides = array<i32>} : memref<1x2xf32, #tpu.memory_space<vmem>>, vector<1x2xf32>,
    return
  }
}

</mosaic_0001>

<llo_original>
// kernel: cpi_forward.1
$region0: #{cpi_forward.1}
  #allocation0 [shape = 'u32[]', space=smem, size = 0x4, offset = 0x4, fixed_abs, tag = 'smem constant byte address 0x4 - core index']
  #allocation1 [shape = 'u32[144,128]{1,0:T(1,128)}', space=vmem, size = 0x12000, scoped, tag = 'internal scratch']
  %s0 = inlined_call_operand.smem [shape: u32[48], index: -1, kind: input, shape index: {}]
  %s1 = sld [smem:[%s0]]
  %s2 = scalar_lea.smem %s0, 1
  %s3 = sld [smem:[%s2]]
  %s4 = scalar_lea.smem %s0, 2
  %s5 = sld [smem:[%s4]]
  %s6 = scalar_lea.smem %s0, 3
  %s7 = sld [smem:[%s6]]
  %s8 = scalar_lea.smem %s0, 4
  %s9 = sld [smem:[%s8]]
  %s10 = scalar_lea.smem %s0, 5
  %s11 = sld [smem:[%s10]]
  %s12 = scalar_lea.smem %s0, 6
  %s13 = sld [smem:[%s12]]
  %s14 = scalar_lea.smem %s0, 7
  %s15 = sld [smem:[%s14]]
  %s16 = scalar_lea.smem %s0, 8
  %s17 = sld [smem:[%s16]]
  %s18 = scalar_lea.smem %s0, 9
  %s19 = sld [smem:[%s18]]
  %s20 = scalar_lea.smem %s0, 10
  %s21 = sld [smem:[%s20]]
  %s22 = scalar_lea.smem %s0, 11
  %s23 = sld [smem:[%s22]]
  %s24 = scalar_lea.smem %s0, 12
  %s25 = sld [smem:[%s24]]
  %s26 = scalar_lea.smem %s0, 13
  %s27 = sld [smem:[%s26]]
  %s28 = scalar_lea.smem %s0, 14
  %s29 = sld [smem:[%s28]]
  %s30 = scalar_lea.smem %s0, 15
  %s31 = sld [smem:[%s30]]
  %s32 = scalar_lea.smem %s0, 16
  %s33 = sld [smem:[%s32]]
  %s34 = scalar_lea.smem %s0, 17
  %s35 = sld [smem:[%s34]]
  %s36 = scalar_lea.smem %s0, 18
  %s37 = sld [smem:[%s36]]
  %s38 = scalar_lea.smem %s0, 19
  %s39 = sld [smem:[%s38]]
  %s40 = scalar_lea.smem %s0, 20
  %s41 = sld [smem:[%s40]]
  %s42 = scalar_lea.smem %s0, 21
  %s43 = sld [smem:[%s42]]
  %s44 = scalar_lea.smem %s0, 22
  %s45 = sld [smem:[%s44]]
  %s46 = scalar_lea.smem %s0, 23
  %s47 = sld [smem:[%s46]]
  %s48 = scalar_lea.smem %s0, 24
  %s49 = sld [smem:[%s48]]
  %s50 = scalar_lea.smem %s0, 25
  %s51 = sld [smem:[%s50]]
  %s52 = scalar_lea.smem %s0, 26
  %s53 = sld [smem:[%s52]]
  %s54 = scalar_lea.smem %s0, 27
  %s55 = sld [smem:[%s54]]
  %s56 = scalar_lea.smem %s0, 28
  %s57 = sld [smem:[%s56]]
  %s58 = scalar_lea.smem %s0, 29
  %s59 = sld [smem:[%s58]]
  %s60 = scalar_lea.smem %s0, 30
  %s61 = sld [smem:[%s60]]
  %s62 = scalar_lea.smem %s0, 31
  %s63 = sld [smem:[%s62]]
  %s64 = scalar_lea.smem %s0, 32
  %s65 = sld [smem:[%s64]]
  %s66 = scalar_lea.smem %s0, 33
  %s67 = sld [smem:[%s66]]
  %s68 = scalar_lea.smem %s0, 34
  %s69 = sld [smem:[%s68]]
  %s70 = scalar_lea.smem %s0, 35
  %s71 = sld [smem:[%s70]]
  %s72 = scalar_lea.smem %s0, 36
  %s73 = sld [smem:[%s72]]
  %s74 = scalar_lea.smem %s0, 37
  %s75 = sld [smem:[%s74]]
  %s76 = scalar_lea.smem %s0, 38
  %s77 = sld [smem:[%s76]]
  %s78 = scalar_lea.smem %s0, 39
  %s79 = sld [smem:[%s78]]
  %s80 = scalar_lea.smem %s0, 40
  %s81 = sld [smem:[%s80]]
  %s82 = scalar_lea.smem %s0, 41
  %s83 = sld [smem:[%s82]]
  %s84 = scalar_lea.smem %s0, 42
  %s85 = sld [smem:[%s84]]
  %s86 = scalar_lea.smem %s0, 43
  %s87 = sld [smem:[%s86]]
  %s88 = scalar_lea.smem %s0, 44
  %s89 = sld [smem:[%s88]]
  %s90 = scalar_lea.smem %s0, 45
  %s91 = sld [smem:[%s90]]
  %s92 = scalar_lea.smem %s0, 46
  %s93 = sld [smem:[%s92]]
  %s94 = scalar_lea.smem %s0, 47
  %s95 = sld [smem:[%s94]]
  %s96 = sld [smem:[#allocation0]]
  $region234: #{cpi_forward.1} parent=0
    _
  %s98 = ssub.s32 1, %s96
  %s99 = scalar_select 0, %s98, %s96
  $region1: #{cpi_forward.1} parent=0
    #allocation2 [shape = 'u8[512]{0}', space=smem, size = 0x200, scoped, tag = 'input window, operand 16, single buffered']
    #allocation3 [shape = 's32[1]{0}', space=sflag, size = 0x4, scoped, tag = 'scoped memory for cpi_forward.1']
    #allocation4 [shape = 's32[1]{0}', space=sflag, size = 0x4, scoped, tag = 'scoped memory for cpi_forward.1']
    #allocation5 [shape = 's32[1]{0}', space=sflag, size = 0x4, scoped, tag = 'scoped memory for cpi_forward.1']
    #allocation6 [shape = 'u8[512]{0}', space=vmem, size = 0x400, scoped, tag = 'input window, operand 32, single buffered']
    #allocation7 [shape = 'u8[512]{0}', space=vmem, size = 0x400, scoped, tag = 'input window, operand 36, single buffered']
    #allocation8 [shape = 's32[1]{0}', space=sflag, size = 0x4, scoped, tag = 'scoped memory for cpi_forward.1']
    #allocation9 [shape = 'u8[512]{0}', space=vmem, size = 0x400, scoped, tag = 'input window, operand 38, single buffered']
    #allocation10 [shape = 'u8[512]{0}', space=vmem, size = 0x400, scoped, tag = 'input window, operand 40, single buffered']
    #allocation11 [shape = 's32[1]{0}', space=sflag, size = 0x4, scoped, tag = 'scoped memory for cpi_forward.1']
    #allocation12 [shape = 'u8[512]{0}', space=vmem, size = 0x400, scoped, tag = 'input window, operand 42, single buffered']
    #allocation13 [shape = 'u8[512]{0}', space=vmem, size = 0x400, scoped, tag = 'input window, operand 43, single buffered']
    #allocation14 [shape = 's32[1]{0}', space=sflag, size = 0x4, scoped, tag = 'scoped memory for cpi_forward.1']
    #allocation15 [shape = 'u8[512]{0}', space=vmem, size = 0x400, scoped, tag = 'input window, operand 44, single buffered']
    #allocation16 [shape = 'u8[512]{0}', space=vmem, size = 0x400, scoped, tag = 'input window, operand 46, single buffered']
    #allocation17 [shape = 's32[1]{0}', space=sflag, size = 0x4, scoped, tag = 'scoped memory for cpi_forward.1']
    #allocation18 [shape = 'u8[512]{0}', space=vmem, size = 0x400, scoped, tag = 'output window, operand 0, single buffered']
    %100 = vsyncpa [#allocation5], 0
    %101 = vsyncpa [#allocation3], 0
    %102 = vsyncpa [#allocation8], 0
    %103 = vsyncpa [#allocation11], 0
    %104 = vsyncpa [#allocation14], 0
    %105 = vsyncpa [#allocation17], 0
    %106 = vsyncpa [#allocation4], 0
    // Predicated region
    $region2: #{cpi_forward.1} parent=1 // pred_check
      _
    $region3: #{cpi_forward.1} parent=1 // pred_check_branch
      %108 = sbr.rel (0) target = $region5
    $region4: #{cpi_forward.1} parent=1 // pred_region
      _
    $region5: #{cpi_forward.1} parent=1 // pred_fallthru
      _
    // Predicated region
    $region6: #{cpi_forward.1} parent=1 // pred_check
      _
    $region7: #{cpi_forward.1} parent=1 // pred_check_branch
      %110 = sbr.rel (0) target = $region9
    $region8: #{cpi_forward.1} parent=1 // pred_region
      _
    $region9: #{cpi_forward.1} parent=1 // pred_fallthru
      _
    // Predicated region
    $region10: #{cpi_forward.1} parent=1 // pred_check
      _
    $region11: #{cpi_forward.1} parent=1 // pred_check_branch
      %112 = sbr.rel (0) target = $region13
    $region12: #{cpi_forward.1} parent=1 // pred_region
      _
    $region13: #{cpi_forward.1} parent=1 // pred_fallthru
      _
    // Predicated region
    $region14: #{cpi_forward.1} parent=1 // pred_check
      _
    $region15: #{cpi_forward.1} parent=1 // pred_check_branch
      %114 = sbr.rel (0) target = $region17
    $region16: #{cpi_forward.1} parent=1 // pred_region
      _
    $region17: #{cpi_forward.1} parent=1 // pred_fallthru
      _
    // Predicated region
    $region18: #{cpi_forward.1} parent=1 // pred_check
      _
    $region19: #{cpi_forward.1} parent=1 // pred_check_branch
      %116 = sbr.rel (0) target = $region21
    $region20: #{cpi_forward.1} parent=1 // pred_region
      _
    $region21: #{cpi_forward.1} parent=1 // pred_fallthru
      _
    // Predicated region
    $region22: #{cpi_forward.1} parent=1 // pred_check
      _
    $region23: #{cpi_forward.1} parent=1 // pred_check_branch
      %118 = sbr.rel (0) target = $region25
    $region24: #{cpi_forward.1} parent=1 // pred_region
      _
    $region25: #{cpi_forward.1} parent=1 // pred_fallthru
      _
    // Predicated region
    $region26: #{cpi_forward.1} parent=1 // pred_check
      _
    $region27: #{cpi_forward.1} parent=1 // pred_check_branch
      %120 = sbr.rel (0) target = $region29
    $region28: #{cpi_forward.1} parent=1 // pred_region
      _
    $region29: #{cpi_forward.1} parent=1 // pred_fallthru
      _
    // Predicated region
    $region30: #{cpi_forward.1} parent=1 // pred_check
      _
    $region31: #{cpi_forward.1} parent=1 // pred_check_branch
      %122 = sbr.rel (0) target = $region33
    $region32: #{cpi_forward.1} parent=1 // pred_region
      _
    $region33: #{cpi_forward.1} parent=1 // pred_fallthru
      _
    // Predicated region
    $region34: #{cpi_forward.1} parent=1 // pred_check
      _
    $region35: #{cpi_forward.1} parent=1 // pred_check_branch
      %124 = sbr.rel (0) target = $region37
    $region36: #{cpi_forward.1} parent=1 // pred_region
      _
    $region37: #{cpi_forward.1} parent=1 // pred_fallthru
      _
    // Predicated region
    $region38: #{cpi_forward.1} parent=1 // pred_check
      _
    $region39: #{cpi_forward.1} parent=1 // pred_check_branch
      %126 = sbr.rel (0) target = $region41
    $region40: #{cpi_forward.1} parent=1 // pred_region
      _
    $region41: #{cpi_forward.1} parent=1 // pred_fallthru
      _
    // Predicated region
    $region42: #{cpi_forward.1} parent=1 // pred_check
      _
    $region43: #{cpi_forward.1} parent=1 // pred_check_branch
      %128 = sbr.rel (0) target = $region45
    $region44: #{cpi_forward.1} parent=1 // pred_region
      _
    $region45: #{cpi_forward.1} parent=1 // pred_fallthru
      _
    // Predicated region
    $region46: #{cpi_forward.1} parent=1 // pred_check
      _
    $region47: #{cpi_forward.1} parent=1 // pred_check_branch
      %130 = sbr.rel (0) target = $region49
    $region48: #{cpi_forward.1} parent=1 // pred_region
      _
    $region49: #{cpi_forward.1} parent=1 // pred_fallthru
      _
    // Predicated region
    $region50: #{cpi_forward.1} parent=1 // pred_check
      _
    $region51: #{cpi_forward.1} parent=1 // pred_check_branch
      %132 = sbr.rel (0) target = $region53
    $region52: #{cpi_forward.1} parent=1 // pred_region
      _
    $region53: #{cpi_forward.1} parent=1 // pred_fallthru
      _
    // Predicated region
    $region54: #{cpi_forward.1} parent=1 // pred_check
      _
    $region55: #{cpi_forward.1} parent=1 // pred_check_branch
      %134 = sbr.rel (0) target = $region57
    $region56: #{cpi_forward.1} parent=1 // pred_region
      _
    $region57: #{cpi_forward.1} parent=1 // pred_fallthru
      _
    // Predicated region
    $region58: #{cpi_forward.1} parent=1 // pred_check
      _
    $region59: #{cpi_forward.1} parent=1 // pred_check_branch
      %136 = sbr.rel (0) target = $region61
    $region60: #{cpi_forward.1} parent=1 // pred_region
      _
    $region61: #{cpi_forward.1} parent=1 // pred_fallthru
      _
    // Predicated region
    $region62: #{cpi_forward.1} parent=1 // pred_check
      _
    $region63: #{cpi_forward.1} parent=1 // pred_check_branch
      %138 = sbr.rel (0) target = $region65
    $region64: #{cpi_forward.1} parent=1 // pred_region
      _
    $region65: #{cpi_forward.1} parent=1 // pred_fallthru
      _
    // Predicated region
    $region66: #{cpi_forward.1} parent=1 // pred_check
      _
    $region67: #{cpi_forward.1} parent=1 // pred_check_branch
      %140 = sbr.rel (0) target = $region69
    $region68: #{cpi_forward.1} parent=1 // pred_region
      %s142 = ssub.s32 16, 16
      %143 = vsyncadd [#allocation5], %s142
      %s145 = sshll.u32 %s33, 4
      %s146 = int_to_ptr.vmem [resolvable:$true] %s145
      %148 = dma.vmem_to_smem %s146, 16, [#allocation2], [#allocation5]
    $region69: #{cpi_forward.1} parent=1 // pred_fallthru
      _
    // Predicated region
    $region70: #{cpi_forward.1} parent=1 // pred_check
      _
    $region71: #{cpi_forward.1} parent=1 // pred_check_branch
      %150 = sbr.rel (0) target = $region73
    $region72: #{cpi_forward.1} parent=1 // pred_region
      _
    $region73: #{cpi_forward.1} parent=1 // pred_fallthru
      _
    // Predicated region
    $region74: #{cpi_forward.1} parent=1 // pred_check
      _
    $region75: #{cpi_forward.1} parent=1 // pred_check_branch
      %152 = sbr.rel (0) target = $region77
    $region76: #{cpi_forward.1} parent=1 // pred_region
      _
    $region77: #{cpi_forward.1} parent=1 // pred_fallthru
      _
    // Predicated region
    $region78: #{cpi_forward.1} parent=1 // pred_check
      _
    $region79: #{cpi_forward.1} parent=1 // pred_check_branch
      %154 = sbr.rel (0) target = $region81
    $region80: #{cpi_forward.1} parent=1 // pred_region
      _
    $region81: #{cpi_forward.1} parent=1 // pred_fallthru
      _
    // Predicated region
    $region82: #{cpi_forward.1} parent=1 // pred_check
      _
    $region83: #{cpi_forward.1} parent=1 // pred_check_branch
      %156 = sbr.rel (0) target = $region85
    $region84: #{cpi_forward.1} parent=1 // pred_region
      _
    $region85: #{cpi_forward.1} parent=1 // pred_fallthru
      _
    // Predicated region
    $region86: #{cpi_forward.1} parent=1 // pred_check
      _
    $region87: #{cpi_forward.1} parent=1 // pred_check_branch
      %158 = sbr.rel (0) target = $region89
    $region88: #{cpi_forward.1} parent=1 // pred_region
      _
    $region89: #{cpi_forward.1} parent=1 // pred_fallthru
      _
    // Predicated region
    $region90: #{cpi_forward.1} parent=1 // pred_check
      _
    $region91: #{cpi_forward.1} parent=1 // pred_check_branch
      %160 = sbr.rel (0) target = $region93
    $region92: #{cpi_forward.1} parent=1 // pred_region
      _
    $region93: #{cpi_forward.1} parent=1 // pred_fallthru
      _
    // Predicated region
    $region94: #{cpi_forward.1} parent=1 // pred_check
      _
    $region95: #{cpi_forward.1} parent=1 // pred_check_branch
      %162 = sbr.rel (0) target = $region97
    $region96: #{cpi_forward.1} parent=1 // pred_region
      _
    $region97: #{cpi_forward.1} parent=1 // pred_fallthru
      _
    // Predicated region
    $region98: #{cpi_forward.1} parent=1 // pred_check
      _
    $region99: #{cpi_forward.1} parent=1 // pred_check_branch
      %164 = sbr.rel (0) target = $region101
    $region100: #{cpi_forward.1} parent=1 // pred_region
      _
    $region101: #{cpi_forward.1} parent=1 // pred_fallthru
      _
    // Predicated region
    $region102: #{cpi_forward.1} parent=1 // pred_check
      _
    $region103: #{cpi_forward.1} parent=1 // pred_check_branch
      %166 = sbr.rel (0) target = $region105
    $region104: #{cpi_forward.1} parent=1 // pred_region
      _
    $region105: #{cpi_forward.1} parent=1 // pred_fallthru
      _
    // Predicated region
    $region106: #{cpi_forward.1} parent=1 // pred_check
      _
    $region107: #{cpi_forward.1} parent=1 // pred_check_branch
      %168 = sbr.rel (0) target = $region109
    $region108: #{cpi_forward.1} parent=1 // pred_region
      _
    $region109: #{cpi_forward.1} parent=1 // pred_fallthru
      _
    // Predicated region
    $region110: #{cpi_forward.1} parent=1 // pred_check
      _
    $region111: #{cpi_forward.1} parent=1 // pred_check_branch
      %170 = sbr.rel (0) target = $region113
    $region112: #{cpi_forward.1} parent=1 // pred_region
      _
    $region113: #{cpi_forward.1} parent=1 // pred_fallthru
      _
    // Predicated region
    $region114: #{cpi_forward.1} parent=1 // pred_check
      _
    $region115: #{cpi_forward.1} parent=1 // pred_check_branch
      %172 = sbr.rel (0) target = $region117
    $region116: #{cpi_forward.1} parent=1 // pred_region
      _
    $region117: #{cpi_forward.1} parent=1 // pred_fallthru
      _
    // Predicated region
    $region118: #{cpi_forward.1} parent=1 // pred_check
      _
    $region119: #{cpi_forward.1} parent=1 // pred_check_branch
      %174 = sbr.rel (0) target = $region121
    $region120: #{cpi_forward.1} parent=1 // pred_region
      _
    $region121: #{cpi_forward.1} parent=1 // pred_fallthru
      _
    // Predicated region
    $region122: #{cpi_forward.1} parent=1 // pred_check
      _
    $region123: #{cpi_forward.1} parent=1 // pred_check_branch
      %176 = sbr.rel (0) target = $region125
    $region124: #{cpi_forward.1} parent=1 // pred_region
      _
    $region125: #{cpi_forward.1} parent=1 // pred_fallthru
      _
    // Predicated region
    $region126: #{cpi_forward.1} parent=1 // pred_check
      _
    $region127: #{cpi_forward.1} parent=1 // pred_check_branch
      %178 = sbr.rel (0) target = $region129
    $region128: #{cpi_forward.1} parent=1 // pred_region
      _
    $region129: #{cpi_forward.1} parent=1 // pred_fallthru
      _
    // Predicated region
    $region130: #{cpi_forward.1} parent=1 // pred_check
      _
    $region131: #{cpi_forward.1} parent=1 // pred_check_branch
      %180 = sbr.rel (0) target = $region133
    $region132: #{cpi_forward.1} parent=1 // pred_region
      %s182 = ssub.s32 16, 16
      %183 = vsyncadd [#allocation3], %s182
      %s185 = sshll.u32 [#allocation6], 4
      %s186 = int_to_ptr.vmem [resolvable:$true] %s185
      %188 = dma.hbm_to_vmem [thread:$0]  %s65, 16, %s186, [#allocation3]
    $region133: #{cpi_forward.1} parent=1 // pred_fallthru
      _
    // Predicated region
    $region134: #{cpi_forward.1} parent=1 // pred_check
      _
    $region135: #{cpi_forward.1} parent=1 // pred_check_branch
      %190 = sbr.rel (0) target = $region137
    $region136: #{cpi_forward.1} parent=1 // pred_region
      _
    $region137: #{cpi_forward.1} parent=1 // pred_fallthru
      _
    // Predicated region
    $region138: #{cpi_forward.1} parent=1 // pred_check
      _
    $region139: #{cpi_forward.1} parent=1 // pred_check_branch
      %192 = sbr.rel (0) target = $region141
    $region140: #{cpi_forward.1} parent=1 // pred_region
      _
    $region141: #{cpi_forward.1} parent=1 // pred_fallthru
      _
    // Predicated region
    $region142: #{cpi_forward.1} parent=1 // pred_check
      _
    $region143: #{cpi_forward.1} parent=1 // pred_check_branch
      %194 = sbr.rel (0) target = $region145
    $region144: #{cpi_forward.1} parent=1 // pred_region
      _
    $region145: #{cpi_forward.1} parent=1 // pred_fallthru
      _
    // Predicated region
    $region146: #{cpi_forward.1} parent=1 // pred_check
      _
    $region147: #{cpi_forward.1} parent=1 // pred_check_branch
      %196 = sbr.rel (0) target = $region149
    $region148: #{cpi_forward.1} parent=1 // pred_region
      %s198 = ssub.s32 16, 16
      %199 = vsyncadd [#allocation8], %s198
      %s201 = sshll.u32 [#allocation7], 4
      %s202 = int_to_ptr.vmem [resolvable:$true] %s201
      %204 = dma.hbm_to_vmem [thread:$0]  %s73, 16, %s202, [#allocation8]
    $region149: #{cpi_forward.1} parent=1 // pred_fallthru
      _
    // Predicated region
    $region150: #{cpi_forward.1} parent=1 // pred_check
      _
    $region151: #{cpi_forward.1} parent=1 // pred_check_branch
      %206 = sbr.rel (0) target = $region153
    $region152: #{cpi_forward.1} parent=1 // pred_region
      _
    $region153: #{cpi_forward.1} parent=1 // pred_fallthru
      _
    // Predicated region
    $region154: #{cpi_forward.1} parent=1 // pred_check
      _
    $region155: #{cpi_forward.1} parent=1 // pred_check_branch
      %208 = sbr.rel (0) target = $region157
    $region156: #{cpi_forward.1} parent=1 // pred_region
      %s210 = ssub.s32 16, 16
      %211 = vsyncadd [#allocation8], %s210
      %s213 = sshll.u32 [#allocation9], 4
      %s214 = int_to_ptr.vmem [resolvable:$true] %s213
      %216 = dma.hbm_to_vmem [thread:$0]  %s77, 16, %s214, [#allocation8]
    $region157: #{cpi_forward.1} parent=1 // pred_fallthru
      _
    // Predicated region
    $region158: #{cpi_forward.1} parent=1 // pred_check
      _
    $region159: #{cpi_forward.1} parent=1 // pred_check_branch
      %218 = sbr.rel (0) target = $region161
    $region160: #{cpi_forward.1} parent=1 // pred_region
      _
    $region161: #{cpi_forward.1} parent=1 // pred_fallthru
      _
    // Predicated region
    $region162: #{cpi_forward.1} parent=1 // pred_check
      _
    $region163: #{cpi_forward.1} parent=1 // pred_check_branch
      %220 = sbr.rel (0) target = $region165
    $region164: #{cpi_forward.1} parent=1 // pred_region
      %s222 = ssub.s32 16, 16
      %223 = vsyncadd [#allocation11], %s222
      %s225 = sshll.u32 [#allocation10], 4
      %s226 = int_to_ptr.vmem [resolvable:$true] %s225
      %228 = dma.hbm_to_vmem [thread:$0]  %s81, 16, %s226, [#allocation11]
    $region165: #{cpi_forward.1} parent=1 // pred_fallthru
      _
    // Predicated region
    $region166: #{cpi_forward.1} parent=1 // pred_check
      _
    $region167: #{cpi_forward.1} parent=1 // pred_check_branch
      %230 = sbr.rel (0) target = $region169
    $region168: #{cpi_forward.1} parent=1 // pred_region
      _
    $region169: #{cpi_forward.1} parent=1 // pred_fallthru
      _
    // Predicated region
    $region170: #{cpi_forward.1} parent=1 // pred_check
      _
    $region171: #{cpi_forward.1} parent=1 // pred_check_branch
      %232 = sbr.rel (0) target = $region173
    $region172: #{cpi_forward.1} parent=1 // pred_region
      %s234 = ssub.s32 16, 16
      %235 = vsyncadd [#allocation11], %s234
      %s237 = sshll.u32 [#allocation12], 4
      %s238 = int_to_ptr.vmem [resolvable:$true] %s237
      %240 = dma.hbm_to_vmem [thread:$0]  %s85, 16, %s238, [#allocation11]
    $region173: #{cpi_forward.1} parent=1 // pred_fallthru
      _
    // Predicated region
    $region174: #{cpi_forward.1} parent=1 // pred_check
      _
    $region175: #{cpi_forward.1} parent=1 // pred_check_branch
      %242 = sbr.rel (0) target = $region177
    $region176: #{cpi_forward.1} parent=1 // pred_region
      %s244 = ssub.s32 16, 16
      %245 = vsyncadd [#allocation14], %s244
      %s247 = sshll.u32 [#allocation13], 4
      %s248 = int_to_ptr.vmem [resolvable:$true] %s247
      %250 = dma.hbm_to_vmem [thread:$0]  %s87, 16, %s248, [#allocation14]
    $region177: #{cpi_forward.1} parent=1 // pred_fallthru
      _
    // Predicated region
    $region178: #{cpi_forward.1} parent=1 // pred_check
      _
    $region179: #{cpi_forward.1} parent=1 // pred_check_branch
      %252 = sbr.rel (0) target = $region181
    $region180: #{cpi_forward.1} parent=1 // pred_region
      %s254 = ssub.s32 16, 16
      %255 = vsyncadd [#allocation14], %s254
      %s257 = sshll.u32 [#allocation15], 4
      %s258 = int_to_ptr.vmem [resolvable:$true] %s257
      %260 = dma.hbm_to_vmem [thread:$0]  %s89, 16, %s258, [#allocation14]
    $region181: #{cpi_forward.1} parent=1 // pred_fallthru
      _
    // Predicated region
    $region182: #{cpi_forward.1} parent=1 // pred_check
      _
    $region183: #{cpi_forward.1} parent=1 // pred_check_branch
      %262 = sbr.rel (0) target = $region185
    $region184: #{cpi_forward.1} parent=1 // pred_region
      _
    $region185: #{cpi_forward.1} parent=1 // pred_fallthru
      _
    // Predicated region
    $region186: #{cpi_forward.1} parent=1 // pred_check
      _
    $region187: #{cpi_forward.1} parent=1 // pred_check_branch
      %264 = sbr.rel (0) target = $region189
    $region188: #{cpi_forward.1} parent=1 // pred_region
      %s266 = ssub.s32 16, 16
      %267 = vsyncadd [#allocation17], %s266
      %s269 = sshll.u32 [#allocation16], 4
      %s270 = int_to_ptr.vmem [resolvable:$true] %s269
      %272 = dma.hbm_to_vmem [thread:$0]  %s93, 16, %s270, [#allocation17]
    $region189: #{cpi_forward.1} parent=1 // pred_fallthru
      _
    // Predicated region
    $region190: #{cpi_forward.1} parent=1 // pred_check
      _
    $region191: #{cpi_forward.1} parent=1 // pred_check_branch
      %274 = sbr.rel (0) target = $region193
    $region192: #{cpi_forward.1} parent=1 // pred_region
      %275 = dma.done [#allocation5], 16
    $region193: #{cpi_forward.1} parent=1 // pred_fallthru
      _
    // Predicated region
    $region194: #{cpi_forward.1} parent=1 // pred_check
      _
    $region195: #{cpi_forward.1} parent=1 // pred_check_branch
      %277 = sbr.rel (0) target = $region197
    $region196: #{cpi_forward.1} parent=1 // pred_region
      %278 = dma.done [#allocation3], 16
    $region197: #{cpi_forward.1} parent=1 // pred_fallthru
      _
    // Predicated region
    $region198: #{cpi_forward.1} parent=1 // pred_check
      _
    $region199: #{cpi_forward.1} parent=1 // pred_check_branch
      %280 = sbr.rel (0) target = $region201
    $region200: #{cpi_forward.1} parent=1 // pred_region
      %281 = dma.done [#allocation8], 16
    $region201: #{cpi_forward.1} parent=1 // pred_fallthru
      _
    // Predicated region
    $region202: #{cpi_forward.1} parent=1 // pred_check
      _
    $region203: #{cpi_forward.1} parent=1 // pred_check_branch
      %283 = sbr.rel (0) target = $region205
    $region204: #{cpi_forward.1} parent=1 // pred_region
      %284 = dma.done [#allocation8], 16
    $region205: #{cpi_forward.1} parent=1 // pred_fallthru
      _
    // Predicated region
    $region206: #{cpi_forward.1} parent=1 // pred_check
      _
    $region207: #{cpi_forward.1} parent=1 // pred_check_branch
      %286 = sbr.rel (0) target = $region209
    $region208: #{cpi_forward.1} parent=1 // pred_region
      %287 = dma.done [#allocation11], 16
    $region209: #{cpi_forward.1} parent=1 // pred_fallthru
      _
    // Predicated region
    $region210: #{cpi_forward.1} parent=1 // pred_check
      _
    $region211: #{cpi_forward.1} parent=1 // pred_check_branch
      %289 = sbr.rel (0) target = $region213
    $region212: #{cpi_forward.1} parent=1 // pred_region
      %290 = dma.done [#allocation11], 16
    $region213: #{cpi_forward.1} parent=1 // pred_fallthru
      _
    // Predicated region
    $region214: #{cpi_forward.1} parent=1 // pred_check
      _
    $region215: #{cpi_forward.1} parent=1 // pred_check_branch
      %292 = sbr.rel (0) target = $region217
    $region216: #{cpi_forward.1} parent=1 // pred_region
      %293 = dma.done [#allocation14], 16
    $region217: #{cpi_forward.1} parent=1 // pred_fallthru
      _
    // Predicated region
    $region218: #{cpi_forward.1} parent=1 // pred_check
      _
    $region219: #{cpi_forward.1} parent=1 // pred_check_branch
      %295 = sbr.rel (0) target = $region221
    $region220: #{cpi_forward.1} parent=1 // pred_region
      %296 = dma.done [#allocation14], 16
    $region221: #{cpi_forward.1} parent=1 // pred_fallthru
      _
    // Predicated region
    $region222: #{cpi_forward.1} parent=1 // pred_check
      _
    $region223: #{cpi_forward.1} parent=1 // pred_check_branch
      %298 = sbr.rel (0) target = $region225
    $region224: #{cpi_forward.1} parent=1 // pred_region
      %299 = dma.done [#allocation17], 16
    $region225: #{cpi_forward.1} parent=1 // pred_fallthru
      _
    %300 = sfence
    %v301 = vld [vmem:[%s1] sm:$0xff]
    %v302 = vld [vmem:[%s3] sm:$0xff]
    %v303 = vld [vmem:[%s7] sm:$0xff]
    %v304 = vld [vmem:[%s7 + $0x8] sm:$0x3]
    %v305 = vld [vmem:[%s9] sm:$0x1]
    %v307 = vlaneseq
    %v308 = vshrl.u32 %v307, 7
    %v309 = vsub.s32 0, %v308
    %v310 = vrot.slane %v305, %v309
    %vm312 = vcmask 80896
    %v314 = vsel %vm312, %v301, 0
    %vm316 = vcmask 1041408
    %v318 = vsel %vm316, %v304, 0
    %320 = vmatprep.subr.mxu0 0.0
    %321 = vmatpush1.msra.mxu0 0.0
    %322 = vmatprep.subr.mxu0 0.0
    %323 = vmatpush1.msra.mxu0 0.0
    %324 = vmatprep.subr.mxu0 0.0
    %325 = vmatpush1.msra.mxu0 0.0
    %326 = vmatprep.subr.mxu0 0.0
    %327 = vmatpush1.msra.mxu0 0.0
    %328 = vmatprep.subr.mxu0 0.0
    %329 = vmatpush1.msra.mxu0 0.0
    %330 = vmatprep.subr.mxu0 0.0
    %331 = vmatpush1.msra.mxu0 0.0
    %332 = vmatprep.subr.mxu0 0.0
    %333 = vmatpush1.msra.mxu0 0.0
    %334 = vmatprep.subr.mxu0 0.0
    %335 = vmatpush1.msra.mxu0 0.0
    %336 = vmatprep.subr.mxu0 0.0
    %337 = vmatpush1.msra.mxu0 0.0
    %338 = vmatprep.subr.mxu0 0.0
    %339 = vmatpush1.msra.mxu0 0.0
    %340 = vmatprep.subr.mxu0 0.0
    %341 = vmatpush1.msra.mxu0 0.0
    %342 = vmatprep.subr.mxu0 0.0
    %343 = vmatpush1.msra.mxu0 0.0
    %344 = vmatprep.subr.mxu0 0.0
    %345 = vmatpush1.msra.mxu0 0.0
    %346 = vmatprep.subr.mxu0 0.0
    %347 = vmatpush1.msra.mxu0 0.0
    %348 = vmatprep.subr.mxu0 0.0
    %349 = vmatpush1.msra.mxu0 %v318
    %350 = vmatprep.subr.mxu0 0.0
    %351 = vmatpush1.msra.mxu0 %v303
    %352 = vmatprep.subr.mxu0 0.0
    %353 = vmatpush2.msra.mxu0 0.0
    %354 = vmatprep.subr.mxu0 0.0
    %355 = vmatpush2.msra.mxu0 0.0
    %356 = vmatprep.subr.mxu0 0.0
    %357 = vmatpush2.msra.mxu0 0.0
    %358 = vmatprep.subr.mxu0 0.0
    %359 = vmatpush2.msra.mxu0 0.0
    %360 = vmatprep.subr.mxu0 0.0
    %361 = vmatpush2.msra.mxu0 0.0
    %362 = vmatprep.subr.mxu0 0.0
    %363 = vmatpush2.msra.mxu0 0.0
    %364 = vmatprep.subr.mxu0 0.0
    %365 = vmatpush2.msra.mxu0 0.0
    %366 = vmatprep.subr.mxu0 0.0
    %367 = vmatpush2.msra.mxu0 0.0
    %368 = vmatprep.subr.mxu0 0.0
    %369 = vmatpush2.msra.mxu0 0.0
    %370 = vmatprep.subr.mxu0 0.0
    %371 = vmatpush2.msra.mxu0 0.0
    %372 = vmatprep.subr.mxu0 0.0
    %373 = vmatpush2.msra.mxu0 0.0
    %374 = vmatprep.subr.mxu0 0.0
    %375 = vmatpush2.msra.mxu0 0.0
    %376 = vmatprep.subr.mxu0 0.0
    %377 = vmatpush2.msra.mxu0 0.0
    %378 = vmatprep.subr.mxu0 0.0
    %379 = vmatpush2.msra.mxu0 0.0
    %380 = vmatprep.subr.mxu0 0.0
    %381 = vmatpush2.msra.mxu0 0.0
    %382 = vmatprep.subr.mxu0 0.0
    %383 = vmatpush2.msra.mxu0 0.0
    %384 = vmatprep.mubr.f32.mxu0 0.0
    %385 = vmatmul.mubr.f32.gmra.mxu0 %v314
    %v386 = vpop.f32.mrf.mxu0
    %v387 = vadd.f32 %v310, %v386
    %v388 = vpop.f32.mrf.mxu0
    %389 = vdwg.mxu0
    %v390 = vmax.f32 %v387, 0.0
    %vm391 = vcmask 64512
    %v393 = vsel %vm391, %v302, 0
    %395 = vmatprep.subr.mxu0 0.0
    %396 = vmatpush1.msra.mxu0 0.0
    %397 = vmatprep.subr.mxu0 0.0
    %398 = vmatpush1.msra.mxu0 0.0
    %399 = vmatprep.subr.mxu0 0.0
    %400 = vmatpush1.msra.mxu0 0.0
    %401 = vmatprep.subr.mxu0 0.0
    %402 = vmatpush1.msra.mxu0 0.0
    %403 = vmatprep.subr.mxu0 0.0
    %404 = vmatpush1.msra.mxu0 0.0
    %405 = vmatprep.subr.mxu0 0.0
    %406 = vmatpush1.msra.mxu0 0.0
    %407 = vmatprep.subr.mxu0 0.0
    %408 = vmatpush1.msra.mxu0 0.0
    %409 = vmatprep.subr.mxu0 0.0
    %410 = vmatpush1.msra.mxu0 0.0
    %411 = vmatprep.subr.mxu0 0.0
    %412 = vmatpush1.msra.mxu0 0.0
    %413 = vmatprep.subr.mxu0 0.0
    %414 = vmatpush1.msra.mxu0 0.0
    %415 = vmatprep.subr.mxu0 0.0
    %416 = vmatpush1.msra.mxu0 0.0
    %417 = vmatprep.subr.mxu0 0.0
    %418 = vmatpush1.msra.mxu0 0.0
    %419 = vmatprep.subr.mxu0 0.0
    %420 = vmatpush1.msra.mxu0 0.0
    %421 = vmatprep.subr.mxu0 0.0
    %422 = vmatpush1.msra.mxu0 0.0
    %423 = vmatprep.subr.mxu0 0.0
    %424 = vmatpush1.msra.mxu0 0.0
    %425 = vmatprep.subr.mxu0 0.0
    %426 = vmatpush1.msra.mxu0 %v390
    %427 = vmatprep.subr.mxu0 0.0
    %428 = vmatpush2.msra.mxu0 0.0
    %429 = vmatprep.subr.mxu0 0.0
    %430 = vmatpush2.msra.mxu0 0.0
    %431 = vmatprep.subr.mxu0 0.0
    %432 = vmatpush2.msra.mxu0 0.0
    %433 = vmatprep.subr.mxu0 0.0
    %434 = vmatpush2.msra.mxu0 0.0
    %435 = vmatprep.subr.mxu0 0.0
    %436 = vmatpush2.msra.mxu0 0.0
    %437 = vmatprep.subr.mxu0 0.0
    %438 = vmatpush2.msra.mxu0 0.0
    %439 = vmatprep.subr.mxu0 0.0
    %440 = vmatpush2.msra.mxu0 0.0
    %441 = vmatprep.subr.mxu0 0.0
    %442 = vmatpush2.msra.mxu0 0.0
    %443 = vmatprep.subr.mxu0 0.0
    %444 = vmatpush2.msra.mxu0 0.0
    %445 = vmatprep.subr.mxu0 0.0
    %446 = vmatpush2.msra.mxu0 0.0
    %447 = vmatprep.subr.mxu0 0.0
    %448 = vmatpush2.msra.mxu0 0.0
    %449 = vmatprep.subr.mxu0 0.0
    %450 = vmatpush2.msra.mxu0 0.0
    %451 = vmatprep.subr.mxu0 0.0
    %452 = vmatpush2.msra.mxu0 0.0
    %453 = vmatprep.subr.mxu0 0.0
    %454 = vmatpush2.msra.mxu0 0.0
    %455 = vmatprep.subr.mxu0 0.0
    %456 = vmatpush2.msra.mxu0 0.0
    %457 = vmatprep.subr.mxu0 0.0
    %458 = vmatpush2.msra.mxu0 0.0
    %459 = vmatprep.mubr.f32.mxu0 0.0
    %460 = vmatmul.mubr.f32.gmra.mxu0 %v393
    %v461 = vpop.f32.mrf.mxu0
    %v462 = vadd.f32 0.0, %v461
    %v463 = vpop.f32.mrf.mxu0
    %464 = vdwg.mxu0
    %v465 = vadd.f32 %v301, %v462
    %s466 = scalar_lea.vmem %s7, 16
    %v467 = vld [vmem:[%s466] sm:$0xff]
    %v468 = vld [vmem:[%s466 + $0x8] sm:$0x3]
    %s469 = scalar_lea.vmem %s9, 1
    %v470 = vld [vmem:[%s469] sm:$0x1]
    %v472 = vlaneseq
    %v473 = vshrl.u32 %v472, 7
    %v474 = vsub.s32 0, %v473
    %v475 = vrot.slane %v470, %v474
    %v478 = vsel %vm312, %v465, 0
    %v481 = vsel %vm316, %v468, 0
    %483 = vmatprep.subr.mxu0 0.0
    %484 = vmatpush1.msra.mxu0 0.0
    %485 = vmatprep.subr.mxu0 0.0
    %486 = vmatpush1.msra.mxu0 0.0
    %487 = vmatprep.subr.mxu0 0.0
    %488 = vmatpush1.msra.mxu0 0.0
    %489 = vmatprep.subr.mxu0 0.0
    %490 = vmatpush1.msra.mxu0 0.0
    %491 = vmatprep.subr.mxu0 0.0
    %492 = vmatpush1.msra.mxu0 0.0
    %493 = vmatprep.subr.mxu0 0.0
    %494 = vmatpush1.msra.mxu0 0.0
    %495 = vmatprep.subr.mxu0 0.0
    %496 = vmatpush1.msra.mxu0 0.0
    %497 = vmatprep.subr.mxu0 0.0
    %498 = vmatpush1.msra.mxu0 0.0
    %499 = vmatprep.subr.mxu0 0.0
    %500 = vmatpush1.msra.mxu0 0.0
    %501 = vmatprep.subr.mxu0 0.0
    %502 = vmatpush1.msra.mxu0 0.0
    %503 = vmatprep.subr.mxu0 0.0
    %504 = vmatpush1.msra.mxu0 0.0
    %505 = vmatprep.subr.mxu0 0.0
    %506 = vmatpush1.msra.mxu0 0.0
    %507 = vmatprep.subr.mxu0 0.0
    %508 = vmatpush1.msra.mxu0 0.0
    %509 = vmatprep.subr.mxu0 0.0
    %510 = vmatpush1.msra.mxu0 0.0
    %511 = vmatprep.subr.mxu0 0.0
    %512 = vmatpush1.msra.mxu0 %v481
    %513 = vmatprep.subr.mxu0 0.0
    %514 = vmatpush1.msra.mxu0 %v467
    %515 = vmatprep.subr.mxu0 0.0
    %516 = vmatpush2.msra.mxu0 0.0
    %517 = vmatprep.subr.mxu0 0.0
    %518 = vmatpush2.msra.mxu0 0.0
    %519 = vmatprep.subr.mxu0 0.0
    %520 = vmatpush2.msra.mxu0 0.0
    %521 = vmatprep.subr.mxu0 0.0
    %522 = vmatpush2.msra.mxu0 0.0
    %523 = vmatprep.subr.mxu0 0.0
    %524 = vmatpush2.msra.mxu0 0.0
    %525 = vmatprep.subr.mxu0 0.0
    %526 = vmatpush2.msra.mxu0 0.0
    %527 = vmatprep.subr.mxu0 0.0
    %528 = vmatpush2.msra.mxu0 0.0
    %529 = vmatprep.subr.mxu0 0.0
    %530 = vmatpush2.msra.mxu0 0.0
    %531 = vmatprep.subr.mxu0 0.0
    %532 = vmatpush2.msra.mxu0 0.0
    %533 = vmatprep.subr.mxu0 0.0
    %534 = vmatpush2.msra.mxu0 0.0
    %535 = vmatprep.subr.mxu0 0.0
    %536 = vmatpush2.msra.mxu0 0.0
    %537 = vmatprep.subr.mxu0 0.0
    %538 = vmatpush2.msra.mxu0 0.0
    %539 = vmatprep.subr.mxu0 0.0
    %540 = vmatpush2.msra.mxu0 0.0
    %541 = vmatprep.subr.mxu0 0.0
    %542 = vmatpush2.msra.mxu0 0.0
    %543 = vmatprep.subr.mxu0 0.0
    %544 = vmatpush2.msra.mxu0 0.0
    %545 = vmatprep.subr.mxu0 0.0
    %546 = vmatpush2.msra.mxu0 0.0
    %547 = vmatprep.mubr.f32.mxu0 0.0
    %548 = vmatmul.mubr.f32.gmra.mxu0 %v478
    %v549 = vpop.f32.mrf.mxu0
    %v550 = vadd.f32 %v475, %v549
    %v551 = vpop.f32.mrf.mxu0
    %552 = vdwg.mxu0
    %v553 = vmax.f32 %v550, 0.0
    %554 = vmatprep.subr.mxu0 0.0
    %555 = vmatpush1.msra.mxu0 0.0
    %556 = vmatprep.subr.mxu0 0.0
    %557 = vmatpush1.msra.mxu0 0.0
    %558 = vmatprep.subr.mxu0 0.0
    %559 = vmatpush1.msra.mxu0 0.0
    %560 = vmatprep.subr.mxu0 0.0
    %561 = vmatpush1.msra.mxu0 0.0
    %562 = vmatprep.subr.mxu0 0.0
    %563 = vmatpush1.msra.mxu0 0.0
    %564 = vmatprep.subr.mxu0 0.0
    %565 = vmatpush1.msra.mxu0 0.0
    %566 = vmatprep.subr.mxu0 0.0
    %567 = vmatpush1.msra.mxu0 0.0
    %568 = vmatprep.subr.mxu0 0.0
    %569 = vmatpush1.msra.mxu0 0.0
    %570 = vmatprep.subr.mxu0 0.0
    %571 = vmatpush1.msra.mxu0 0.0
    %572 = vmatprep.subr.mxu0 0.0
    %573 = vmatpush1.msra.mxu0 0.0
    %574 = vmatprep.subr.mxu0 0.0
    %575 = vmatpush1.msra.mxu0 0.0
    %576 = vmatprep.subr.mxu0 0.0
    %577 = vmatpush1.msra.mxu0 0.0
    %578 = vmatprep.subr.mxu0 0.0
    %579 = vmatpush1.msra.mxu0 0.0
    %580 = vmatprep.subr.mxu0 0.0
    %581 = vmatpush1.msra.mxu0 0.0
    %582 = vmatprep.subr.mxu0 0.0
    %583 = vmatpush1.msra.mxu0 0.0
    %584 = vmatprep.subr.mxu0 0.0
    %585 = vmatpush1.msra.mxu0 %v553
    %586 = vmatprep.subr.mxu0 0.0
    %587 = vmatpush2.msra.mxu0 0.0
    %588 = vmatprep.subr.mxu0 0.0
    %589 = vmatpush2.msra.mxu0 0.0
    %590 = vmatprep.subr.mxu0 0.0
    %591 = vmatpush2.msra.mxu0 0.0
    %592 = vmatprep.subr.mxu0 0.0
    %593 = vmatpush2.msra.mxu0 0.0
    %594 = vmatprep.subr.mxu0 0.0
    %595 = vmatpush2.msra.mxu0 0.0
    %596 = vmatprep.subr.mxu0 0.0
    %597 = vmatpush2.msra.mxu0 0.0
    %598 = vmatprep.subr.mxu0 0.0
    %599 = vmatpush2.msra.mxu0 0.0
    %600 = vmatprep.subr.mxu0 0.0
    %601 = vmatpush2.msra.mxu0 0.0
    %602 = vmatprep.subr.mxu0 0.0
    %603 = vmatpush2.msra.mxu0 0.0
    %604 = vmatprep.subr.mxu0 0.0
    %605 = vmatpush2.msra.mxu0 0.0
    %606 = vmatprep.subr.mxu0 0.0
    %607 = vmatpush2.msra.mxu0 0.0
    %608 = vmatprep.subr.mxu0 0.0
    %609 = vmatpush2.msra.mxu0 0.0
    %610 = vmatprep.subr.mxu0 0.0
    %611 = vmatpush2.msra.mxu0 0.0
    %612 = vmatprep.subr.mxu0 0.0
    %613 = vmatpush2.msra.mxu0 0.0
    %614 = vmatprep.subr.mxu0 0.0
    %615 = vmatpush2.msra.mxu0 0.0
    %616 = vmatprep.subr.mxu0 0.0
    %617 = vmatpush2.msra.mxu0 0.0
    %618 = vmatprep.mubr.f32.mxu0 0.0
    %619 = vmatmul.mubr.f32.gmra.mxu0 %v393
    %v620 = vpop.f32.mrf.mxu0
    %v621 = vadd.f32 0.0, %v620
    %v622 = vpop.f32.mrf.mxu0
    %623 = vdwg.mxu0
    %v624 = vadd.f32 %v465, %v621
    %v625 = vsel %vm312, %v624, 0.0
    %v626 = vrot.slane %v625, 4
    %v627 = vadd.f32 %v625, %v626
    %v628 = vrot.slane %v627, 2
    %v629 = vadd.f32 %v627, %v628
    %v630 = vrot.slane %v629, 1
    %v631 = vadd.f32 %v629, %v630
    %v632 = vrcp.pop 8.0
    %v633 = vmul.f32 %v631, %v632
    %v634 = vld [vmem:[%s5] sm:$0xff]
    %v635 = vld [vmem:[%s5 + $0x8] sm:$0xff]
    %v636 = vld [vmem:[%s27] sm:$0x3]
    %v637 = vld [vmem:[%s29] sm:$0x3]
    %v638 = vld [vmem:[%s11] sm:$0xff]
    %v639 = vld [vmem:[%s11 + $0x8] sm:$0xff]
    %v640 = vld [vmem:[%s11 + $0x10] sm:$0xff]
    %v641 = vld [vmem:[%s11 + $0x18] sm:$0xff]
    %v642 = vld [vmem:[%s13] sm:$0x1]
    %v643 = vld [vmem:[%s15] sm:$0xff]
    %v644 = vld [vmem:[%s15 + $0x8] sm:$0xff]
    %v645 = vld [vmem:[%s15 + $0x10] sm:$0xff]
    %v646 = vld [vmem:[%s15 + $0x18] sm:$0xff]
    %v647 = vld [vmem:[%s17] sm:$0x1]
    %v649 = vlaneseq
    %v650 = vshrl.u32 %v649, 7
    %v651 = vsub.s32 0, %v650
    %v652 = vrot.slane %v642, %v651
    %vm654 = vcmask 261120
    %v656 = vsel %vm654, %v634, 0
    %v659 = vsel %vm654, %v635, 0
    %661 = vmatprep.subr.mxu0 0.0
    %662 = vmatpush1.msra.mxu0 0.0
    %663 = vmatprep.subr.mxu0 0.0
    %664 = vmatpush1.msra.mxu0 0.0
    %665 = vmatprep.subr.mxu0 0.0
    %666 = vmatpush1.msra.mxu0 0.0
    %667 = vmatprep.subr.mxu0 0.0
    %668 = vmatpush1.msra.mxu0 0.0
    %669 = vmatprep.subr.mxu0 0.0
    %670 = vmatpush1.msra.mxu0 0.0
    %671 = vmatprep.subr.mxu0 0.0
    %672 = vmatpush1.msra.mxu0 0.0
    %673 = vmatprep.subr.mxu0 0.0
    %674 = vmatpush1.msra.mxu0 0.0
    %675 = vmatprep.subr.mxu0 0.0
    %676 = vmatpush1.msra.mxu0 0.0
    %677 = vmatprep.subr.mxu0 0.0
    %678 = vmatpush1.msra.mxu0 0.0
    %679 = vmatprep.subr.mxu0 0.0
    %680 = vmatpush1.msra.mxu0 0.0
    %681 = vmatprep.subr.mxu0 0.0
    %682 = vmatpush1.msra.mxu0 0.0
    %683 = vmatprep.subr.mxu0 0.0
    %684 = vmatpush1.msra.mxu0 0.0
    %685 = vmatprep.subr.mxu0 0.0
    %686 = vmatpush1.msra.mxu0 %v641
    %687 = vmatprep.subr.mxu0 0.0
    %688 = vmatpush1.msra.mxu0 %v640
    %689 = vmatprep.subr.mxu0 0.0
    %690 = vmatpush1.msra.mxu0 %v639
    %691 = vmatprep.subr.mxu0 0.0
    %692 = vmatpush1.msra.mxu0 %v638
    %693 = vmatprep.subr.mxu0 0.0
    %694 = vmatpush2.msra.mxu0 0.0
    %695 = vmatprep.subr.mxu0 0.0
    %696 = vmatpush2.msra.mxu0 0.0
    %697 = vmatprep.subr.mxu0 0.0
    %698 = vmatpush2.msra.mxu0 0.0
    %699 = vmatprep.subr.mxu0 0.0
    %700 = vmatpush2.msra.mxu0 0.0
    %701 = vmatprep.subr.mxu0 0.0
    %702 = vmatpush2.msra.mxu0 0.0
    %703 = vmatprep.subr.mxu0 0.0
    %704 = vmatpush2.msra.mxu0 0.0
    %705 = vmatprep.subr.mxu0 0.0
    %706 = vmatpush2.msra.mxu0 0.0
    %707 = vmatprep.subr.mxu0 0.0
    %708 = vmatpush2.msra.mxu0 0.0
    %709 = vmatprep.subr.mxu0 0.0
    %710 = vmatpush2.msra.mxu0 0.0
    %711 = vmatprep.subr.mxu0 0.0
    %712 = vmatpush2.msra.mxu0 0.0
    %713 = vmatprep.subr.mxu0 0.0
    %714 = vmatpush2.msra.mxu0 0.0
    %715 = vmatprep.subr.mxu0 0.0
    %716 = vmatpush2.msra.mxu0 0.0
    %717 = vmatprep.subr.mxu0 0.0
    %718 = vmatpush2.msra.mxu0 0.0
    %719 = vmatprep.subr.mxu0 0.0
    %720 = vmatpush2.msra.mxu0 0.0
    %721 = vmatprep.subr.mxu0 0.0
    %722 = vmatpush2.msra.mxu0 0.0
    %723 = vmatprep.subr.mxu0 0.0
    %724 = vmatpush2.msra.mxu0 0.0
    %725 = vmatprep.mubr.f32.mxu0 0.0
    %726 = vmatmul.mubr.f32.gmra.mxu0 %v656
    %v727 = vpop.f32.mrf.mxu0
    %v728 = vadd.f32 %v652, %v727
    %v729 = vpop.f32.mrf.mxu0
    %730 = vmatprep.mubr.f32.mxu0 0.0
    %731 = vmatmul.mubr.f32.gmra.mxu0 %v659
    %v732 = vpop.f32.mrf.mxu0
    %v733 = vadd.f32 %v652, %v732
    %v734 = vpop.f32.mrf.mxu0
    %735 = vdwg.mxu0
    %738 = vrot.lane.b32.xlu0 %v728, 96
    %v739 = vpop.permute.xlu0 %738
    %740 = vrot.lane.b32.xlu0 %v733, 96
    %v741 = vpop.permute.xlu0 %740
    %v742 = vsel %vm391, %v728, 0
    %v744 = vsel %vm391, %v733, 0
    %v746 = vsel %vm391, %v739, 0
    %v748 = vsel %vm391, %v741, 0
    %750 = vmatprep.subr.mxu0 0.0
    %751 = vmatpush1.xpose.msra.mxu0 0.0
    %752 = vmatprep.subr.mxu0 0.0
    %753 = vmatpush1.xpose.msra.mxu0 0.0
    %754 = vmatprep.subr.mxu0 0.0
    %755 = vmatpush1.xpose.msra.mxu0 0.0
    %756 = vmatprep.subr.mxu0 0.0
    %757 = vmatpush1.xpose.msra.mxu0 0.0
    %758 = vmatprep.subr.mxu0 0.0
    %759 = vmatpush1.xpose.msra.mxu0 0.0
    %760 = vmatprep.subr.mxu0 0.0
    %761 = vmatpush1.xpose.msra.mxu0 0.0
    %762 = vmatprep.subr.mxu0 0.0
    %763 = vmatpush1.xpose.msra.mxu0 0.0
    %764 = vmatprep.subr.mxu0 0.0
    %765 = vmatpush1.xpose.msra.mxu0 0.0
    %766 = vmatprep.subr.mxu0 0.0
    %767 = vmatpush1.xpose.msra.mxu0 0.0
    %768 = vmatprep.subr.mxu0 0.0
    %769 = vmatpush1.xpose.msra.mxu0 0.0
    %770 = vmatprep.subr.mxu0 0.0
    %771 = vmatpush1.xpose.msra.mxu0 0.0
    %772 = vmatprep.subr.mxu0 0.0
    %773 = vmatpush1.xpose.msra.mxu0 0.0
    %774 = vmatprep.subr.mxu0 0.0
    %775 = vmatpush1.xpose.msra.mxu0 0.0
    %776 = vmatprep.subr.mxu0 0.0
    %777 = vmatpush1.xpose.msra.mxu0 0.0
    %778 = vmatprep.subr.mxu0 0.0
    %779 = vmatpush1.xpose.msra.mxu0 %v748
    %780 = vmatprep.subr.mxu0 0.0
    %781 = vmatpush1.xpose.msra.mxu0 %v746
    %782 = vmatprep.subr.mxu0 0.0
    %783 = vmatpush2.xpose.msra.mxu0 0.0
    %784 = vmatprep.subr.mxu0 0.0
    %785 = vmatpush2.xpose.msra.mxu0 0.0
    %786 = vmatprep.subr.mxu0 0.0
    %787 = vmatpush2.xpose.msra.mxu0 0.0
    %788 = vmatprep.subr.mxu0 0.0
    %789 = vmatpush2.xpose.msra.mxu0 0.0
    %790 = vmatprep.subr.mxu0 0.0
    %791 = vmatpush2.xpose.msra.mxu0 0.0
    %792 = vmatprep.subr.mxu0 0.0
    %793 = vmatpush2.xpose.msra.mxu0 0.0
    %794 = vmatprep.subr.mxu0 0.0
    %795 = vmatpush2.xpose.msra.mxu0 0.0
    %796 = vmatprep.subr.mxu0 0.0
    %797 = vmatpush2.xpose.msra.mxu0 0.0
    %798 = vmatprep.subr.mxu0 0.0
    %799 = vmatpush2.xpose.msra.mxu0 0.0
    %800 = vmatprep.subr.mxu0 0.0
    %801 = vmatpush2.xpose.msra.mxu0 0.0
    %802 = vmatprep.subr.mxu0 0.0
    %803 = vmatpush2.xpose.msra.mxu0 0.0
    %804 = vmatprep.subr.mxu0 0.0
    %805 = vmatpush2.xpose.msra.mxu0 0.0
    %806 = vmatprep.subr.mxu0 0.0
    %807 = vmatpush2.xpose.msra.mxu0 0.0
    %808 = vmatprep.subr.mxu0 0.0
    %809 = vmatpush2.xpose.msra.mxu0 0.0
    %810 = vmatprep.subr.mxu0 0.0
    %811 = vmatpush2.xpose.msra.mxu0 0.0
    %812 = vmatprep.subr.mxu0 0.0
    %813 = vmatpush2.xpose.msra.mxu0 0.0
    %814 = vmatprep.mubr.f32.mxu0 0.0
    %815 = vmatmul.mubr.f32.gmra.mxu0 %v742
    %v816 = vpop.f32.mrf.mxu0
    %v817 = vadd.f32 0.0, %v816
    %v818 = vpop.f32.mrf.mxu0
    %819 = vmatprep.mubr.f32.mxu0 0.0
    %820 = vmatmul.mubr.f32.gmra.mxu0 %v744
    %v821 = vpop.f32.mrf.mxu0
    %v822 = vadd.f32 0.0, %v821
    %v823 = vpop.f32.mrf.mxu0
    %824 = vdwg.mxu0
    %vm825 = vcmask 130048
    %v826 = vsel %vm825, %v817, -inf
    %827 = vmax.xlane.f32.xlu0 %v826
    %v828 = vpop.xlane.xlu0 %827
    %v829 = vsel %vm825, %v822, -inf
    %830 = vmax.xlane.f32.xlu0 %v829
    %v831 = vpop.xlane.xlu0 %830
    %v832 = vsub.f32 %v817, %v828
    %v833 = vsub.f32 %v822, %v831
    %v834 = vmul.f32 %v832, 1.442695
    %v835 = vpow.pop %v834
    %v836 = vmul.f32 %v833, 1.442695
    %v837 = vpow.pop %v836
    %v838 = vsel %vm825, %v835, 0.0
    %839 = vadd.xlane.f32.xlu0 %v838
    %v840 = vpop.xlane.xlu0 %839
    %v841 = vsel %vm825, %v837, 0.0
    %842 = vadd.xlane.f32.xlu0 %v841
    %v843 = vpop.xlane.xlu0 %842
    %v844 = vrcp.pop %v840
    %v845 = vrcp.pop %v843
    %v846 = vmul.f32 %v835, %v844
    %v847 = vmul.f32 %v837, %v845
    %848 = vrot.lane.b32.xlu0 %v728, 64
    %v849 = vpop.permute.xlu0 %848
    %850 = vrot.lane.b32.xlu0 %v733, 64
    %v851 = vpop.permute.xlu0 %850
    %v855 = vsel %vm825, %v846, 0
    %v858 = vsel %vm825, %v847, 0
    %860 = vmatprep.subr.mxu0 0.0
    %861 = vmatpush1.msra.mxu0 0.0
    %862 = vmatprep.subr.mxu0 0.0
    %863 = vmatpush1.msra.mxu0 0.0
    %864 = vmatprep.subr.mxu0 0.0
    %865 = vmatpush1.msra.mxu0 0.0
    %866 = vmatprep.subr.mxu0 0.0
    %867 = vmatpush1.msra.mxu0 0.0
    %868 = vmatprep.subr.mxu0 0.0
    %869 = vmatpush1.msra.mxu0 0.0
    %870 = vmatprep.subr.mxu0 0.0
    %871 = vmatpush1.msra.mxu0 0.0
    %872 = vmatprep.subr.mxu0 0.0
    %873 = vmatpush1.msra.mxu0 0.0
    %874 = vmatprep.subr.mxu0 0.0
    %875 = vmatpush1.msra.mxu0 0.0
    %876 = vmatprep.subr.mxu0 0.0
    %877 = vmatpush1.msra.mxu0 0.0
    %878 = vmatprep.subr.mxu0 0.0
    %879 = vmatpush1.msra.mxu0 0.0
    %880 = vmatprep.subr.mxu0 0.0
    %881 = vmatpush1.msra.mxu0 0.0
    %882 = vmatprep.subr.mxu0 0.0
    %883 = vmatpush1.msra.mxu0 0.0
    %884 = vmatprep.subr.mxu0 0.0
    %885 = vmatpush1.msra.mxu0 0.0
    %886 = vmatprep.subr.mxu0 0.0
    %887 = vmatpush1.msra.mxu0 0.0
    %888 = vmatprep.subr.mxu0 0.0
    %889 = vmatpush1.msra.mxu0 %v851
    %890 = vmatprep.subr.mxu0 0.0
    %891 = vmatpush1.msra.mxu0 %v849
    %892 = vmatprep.subr.mxu0 0.0
    %893 = vmatpush2.msra.mxu0 0.0
    %894 = vmatprep.subr.mxu0 0.0
    %895 = vmatpush2.msra.mxu0 0.0
    %896 = vmatprep.subr.mxu0 0.0
    %897 = vmatpush2.msra.mxu0 0.0
    %898 = vmatprep.subr.mxu0 0.0
    %899 = vmatpush2.msra.mxu0 0.0
    %900 = vmatprep.subr.mxu0 0.0
    %901 = vmatpush2.msra.mxu0 0.0
    %902 = vmatprep.subr.mxu0 0.0
    %903 = vmatpush2.msra.mxu0 0.0
    %904 = vmatprep.subr.mxu0 0.0
    %905 = vmatpush2.msra.mxu0 0.0
    %906 = vmatprep.subr.mxu0 0.0
    %907 = vmatpush2.msra.mxu0 0.0
    %908 = vmatprep.subr.mxu0 0.0
    %909 = vmatpush2.msra.mxu0 0.0
    %910 = vmatprep.subr.mxu0 0.0
    %911 = vmatpush2.msra.mxu0 0.0
    %912 = vmatprep.subr.mxu0 0.0
    %913 = vmatpush2.msra.mxu0 0.0
    %914 = vmatprep.subr.mxu0 0.0
    %915 = vmatpush2.msra.mxu0 0.0
    %916 = vmatprep.subr.mxu0 0.0
    %917 = vmatpush2.msra.mxu0 0.0
    %918 = vmatprep.subr.mxu0 0.0
    %919 = vmatpush2.msra.mxu0 0.0
    %920 = vmatprep.subr.mxu0 0.0
    %921 = vmatpush2.msra.mxu0 0.0
    %922 = vmatprep.subr.mxu0 0.0
    %923 = vmatpush2.msra.mxu0 0.0
    %924 = vmatprep.mubr.f32.mxu0 0.0
    %925 = vmatmul.mubr.f32.gmra.mxu0 %v855
    %v926 = vpop.f32.mrf.mxu0
    %v927 = vadd.f32 0.0, %v926
    %v928 = vpop.f32.mrf.mxu0
    %929 = vmatprep.mubr.f32.mxu0 0.0
    %930 = vmatmul.mubr.f32.gmra.mxu0 %v858
    %v931 = vpop.f32.mrf.mxu0
    %v932 = vadd.f32 0.0, %v931
    %v933 = vpop.f32.mrf.mxu0
    %934 = vdwg.mxu0
    %935 = vrot.lane.b32.xlu0 %v728, 120
    %v936 = vpop.permute.xlu0 %935
    %937 = vrot.lane.b32.xlu0 %v733, 120
    %v938 = vpop.permute.xlu0 %937
    %939 = vrot.lane.b32.xlu0 %v728, 88
    %v940 = vpop.permute.xlu0 %939
    %941 = vrot.lane.b32.xlu0 %v733, 88
    %v942 = vpop.permute.xlu0 %941
    %v943 = vsel %vm391, %v936, 0
    %v945 = vsel %vm391, %v938, 0
    %v947 = vsel %vm391, %v940, 0
    %v949 = vsel %vm391, %v942, 0
    %951 = vmatprep.subr.mxu0 0.0
    %952 = vmatpush1.xpose.msra.mxu0 0.0
    %953 = vmatprep.subr.mxu0 0.0
    %954 = vmatpush1.xpose.msra.mxu0 0.0
    %955 = vmatprep.subr.mxu0 0.0
    %956 = vmatpush1.xpose.msra.mxu0 0.0
    %957 = vmatprep.subr.mxu0 0.0
    %958 = vmatpush1.xpose.msra.mxu0 0.0
    %959 = vmatprep.subr.mxu0 0.0
    %960 = vmatpush1.xpose.msra.mxu0 0.0
    %961 = vmatprep.subr.mxu0 0.0
    %962 = vmatpush1.xpose.msra.mxu0 0.0
    %963 = vmatprep.subr.mxu0 0.0
    %964 = vmatpush1.xpose.msra.mxu0 0.0
    %965 = vmatprep.subr.mxu0 0.0
    %966 = vmatpush1.xpose.msra.mxu0 0.0
    %967 = vmatprep.subr.mxu0 0.0
    %968 = vmatpush1.xpose.msra.mxu0 0.0
    %969 = vmatprep.subr.mxu0 0.0
    %970 = vmatpush1.xpose.msra.mxu0 0.0
    %971 = vmatprep.subr.mxu0 0.0
    %972 = vmatpush1.xpose.msra.mxu0 0.0
    %973 = vmatprep.subr.mxu0 0.0
    %974 = vmatpush1.xpose.msra.mxu0 0.0
    %975 = vmatprep.subr.mxu0 0.0
    %976 = vmatpush1.xpose.msra.mxu0 0.0
    %977 = vmatprep.subr.mxu0 0.0
    %978 = vmatpush1.xpose.msra.mxu0 0.0
    %979 = vmatprep.subr.mxu0 0.0
    %980 = vmatpush1.xpose.msra.mxu0 %v949
    %981 = vmatprep.subr.mxu0 0.0
    %982 = vmatpush1.xpose.msra.mxu0 %v947
    %983 = vmatprep.subr.mxu0 0.0
    %984 = vmatpush2.xpose.msra.mxu0 0.0
    %985 = vmatprep.subr.mxu0 0.0
    %986 = vmatpush2.xpose.msra.mxu0 0.0
    %987 = vmatprep.subr.mxu0 0.0
    %988 = vmatpush2.xpose.msra.mxu0 0.0
    %989 = vmatprep.subr.mxu0 0.0
    %990 = vmatpush2.xpose.msra.mxu0 0.0
    %991 = vmatprep.subr.mxu0 0.0
    %992 = vmatpush2.xpose.msra.mxu0 0.0
    %993 = vmatprep.subr.mxu0 0.0
    %994 = vmatpush2.xpose.msra.mxu0 0.0
    %995 = vmatprep.subr.mxu0 0.0
    %996 = vmatpush2.xpose.msra.mxu0 0.0
    %997 = vmatprep.subr.mxu0 0.0
    %998 = vmatpush2.xpose.msra.mxu0 0.0
    %999 = vmatprep.subr.mxu0 0.0
    %1000 = vmatpush2.xpose.msra.mxu0 0.0
    %1001 = vmatprep.subr.mxu0 0.0
    %1002 = vmatpush2.xpose.msra.mxu0 0.0
    %1003 = vmatprep.subr.mxu0 0.0
    %1004 = vmatpush2.xpose.msra.mxu0 0.0
    %1005 = vmatprep.subr.mxu0 0.0
    %1006 = vmatpush2.xpose.msra.mxu0 0.0
    %1007 = vmatprep.subr.mxu0 0.0
    %1008 = vmatpush2.xpose.msra.mxu0 0.0
    %1009 = vmatprep.subr.mxu0 0.0
    %1010 = vmatpush2.xpose.msra.mxu0 0.0
    %1011 = vmatprep.subr.mxu0 0.0
    %1012 = vmatpush2.xpose.msra.mxu0 0.0
    %1013 = vmatprep.subr.mxu0 0.0
    %1014 = vmatpush2.xpose.msra.mxu0 0.0
    %1015 = vmatprep.mubr.f32.mxu0 0.0
    %1016 = vmatmul.mubr.f32.gmra.mxu0 %v943
    %v1017 = vpop.f32.mrf.mxu0
    %v1018 = vadd.f32 0.0, %v1017
    %v1019 = vpop.f32.mrf.mxu0
    %1020 = vmatprep.mubr.f32.mxu0 0.0
    %1021 = vmatmul.mubr.f32.gmra.mxu0 %v945
    %v1022 = vpop.f32.mrf.mxu0
    %v1023 = vadd.f32 0.0, %v1022
    %v1024 = vpop.f32.mrf.mxu0
    %1025 = vdwg.mxu0
    %v1026 = vsel %vm825, %v1018, -inf
    %1027 = vmax.xlane.f32.xlu0 %v1026
    %v1028 = vpop.xlane.xlu0 %1027
    %v1029 = vsel %vm825, %v1023, -inf
    %1030 = vmax.xlane.f32.xlu0 %v1029
    %v1031 = vpop.xlane.xlu0 %1030
    %v1032 = vsub.f32 %v1018, %v1028
    %v1033 = vsub.f32 %v1023, %v1031
    %v1034 = vmul.f32 %v1032, 1.442695
    %v1035 = vpow.pop %v1034
    %v1036 = vmul.f32 %v1033, 1.442695
    %v1037 = vpow.pop %v1036
    %v1038 = vsel %vm825, %v1035, 0.0
    %1039 = vadd.xlane.f32.xlu0 %v1038
    %v1040 = vpop.xlane.xlu0 %1039
    %v1041 = vsel %vm825, %v1037, 0.0
    %1042 = vadd.xlane.f32.xlu0 %v1041
    %v1043 = vpop.xlane.xlu0 %1042
    %v1044 = vrcp.pop %v1040
    %v1045 = vrcp.pop %v1043
    %v1046 = vmul.f32 %v1035, %v1044
    %v1047 = vmul.f32 %v1037, %v1045
    %1048 = vrot.lane.b32.xlu0 %v728, 56
    %v1049 = vpop.permute.xlu0 %1048
    %1050 = vrot.lane.b32.xlu0 %v733, 56
    %v1051 = vpop.permute.xlu0 %1050
    %v1055 = vsel %vm825, %v1046, 0
    %v1058 = vsel %vm825, %v1047, 0
    %1060 = vmatprep.subr.mxu0 0.0
    %1061 = vmatpush1.msra.mxu0 0.0
    %1062 = vmatprep.subr.mxu0 0.0
    %1063 = vmatpush1.msra.mxu0 0.0
    %1064 = vmatprep.subr.mxu0 0.0
    %1065 = vmatpush1.msra.mxu0 0.0
    %1066 = vmatprep.subr.mxu0 0.0
    %1067 = vmatpush1.msra.mxu0 0.0
    %1068 = vmatprep.subr.mxu0 0.0
    %1069 = vmatpush1.msra.mxu0 0.0
    %1070 = vmatprep.subr.mxu0 0.0
    %1071 = vmatpush1.msra.mxu0 0.0
    %1072 = vmatprep.subr.mxu0 0.0
    %1073 = vmatpush1.msra.mxu0 0.0
    %1074 = vmatprep.subr.mxu0 0.0
    %1075 = vmatpush1.msra.mxu0 0.0
    %1076 = vmatprep.subr.mxu0 0.0
    %1077 = vmatpush1.msra.mxu0 0.0
    %1078 = vmatprep.subr.mxu0 0.0
    %1079 = vmatpush1.msra.mxu0 0.0
    %1080 = vmatprep.subr.mxu0 0.0
    %1081 = vmatpush1.msra.mxu0 0.0
    %1082 = vmatprep.subr.mxu0 0.0
    %1083 = vmatpush1.msra.mxu0 0.0
    %1084 = vmatprep.subr.mxu0 0.0
    %1085 = vmatpush1.msra.mxu0 0.0
    %1086 = vmatprep.subr.mxu0 0.0
    %1087 = vmatpush1.msra.mxu0 0.0
    %1088 = vmatprep.subr.mxu0 0.0
    %1089 = vmatpush1.msra.mxu0 %v1051
    %1090 = vmatprep.subr.mxu0 0.0
    %1091 = vmatpush1.msra.mxu0 %v1049
    %1092 = vmatprep.subr.mxu0 0.0
    %1093 = vmatpush2.msra.mxu0 0.0
    %1094 = vmatprep.subr.mxu0 0.0
    %1095 = vmatpush2.msra.mxu0 0.0
    %1096 = vmatprep.subr.mxu0 0.0
    %1097 = vmatpush2.msra.mxu0 0.0
    %1098 = vmatprep.subr.mxu0 0.0
    %1099 = vmatpush2.msra.mxu0 0.0
    %1100 = vmatprep.subr.mxu0 0.0
    %1101 = vmatpush2.msra.mxu0 0.0
    %1102 = vmatprep.subr.mxu0 0.0
    %1103 = vmatpush2.msra.mxu0 0.0
    %1104 = vmatprep.subr.mxu0 0.0
    %1105 = vmatpush2.msra.mxu0 0.0
    %1106 = vmatprep.subr.mxu0 0.0
    %1107 = vmatpush2.msra.mxu0 0.0
    %1108 = vmatprep.subr.mxu0 0.0
    %1109 = vmatpush2.msra.mxu0 0.0
    %1110 = vmatprep.subr.mxu0 0.0
    %1111 = vmatpush2.msra.mxu0 0.0
    %1112 = vmatprep.subr.mxu0 0.0
    %1113 = vmatpush2.msra.mxu0 0.0
    %1114 = vmatprep.subr.mxu0 0.0
    %1115 = vmatpush2.msra.mxu0 0.0
    %1116 = vmatprep.subr.mxu0 0.0
    %1117 = vmatpush2.msra.mxu0 0.0
    %1118 = vmatprep.subr.mxu0 0.0
    %1119 = vmatpush2.msra.mxu0 0.0
    %1120 = vmatprep.subr.mxu0 0.0
    %1121 = vmatpush2.msra.mxu0 0.0
    %1122 = vmatprep.subr.mxu0 0.0
    %1123 = vmatpush2.msra.mxu0 0.0
    %1124 = vmatprep.mubr.f32.mxu0 0.0
    %1125 = vmatmul.mubr.f32.gmra.mxu0 %v1055
    %v1126 = vpop.f32.mrf.mxu0
    %v1127 = vadd.f32 0.0, %v1126
    %v1128 = vpop.f32.mrf.mxu0
    %1129 = vmatprep.mubr.f32.mxu0 0.0
    %1130 = vmatmul.mubr.f32.gmra.mxu0 %v1058
    %v1131 = vpop.f32.mrf.mxu0
    %v1132 = vadd.f32 0.0, %v1131
    %v1133 = vpop.f32.mrf.mxu0
    %1134 = vdwg.mxu0
    %1135 = vrot.lane.b32.xlu0 %v728, 112
    %v1136 = vpop.permute.xlu0 %1135
    %1137 = vrot.lane.b32.xlu0 %v733, 112
    %v1138 = vpop.permute.xlu0 %1137
    %1139 = vrot.lane.b32.xlu0 %v728, 80
    %v1140 = vpop.permute.xlu0 %1139
    %1141 = vrot.lane.b32.xlu0 %v733, 80
    %v1142 = vpop.permute.xlu0 %1141
    %v1143 = vsel %vm391, %v1136, 0
    %v1145 = vsel %vm391, %v1138, 0
    %v1147 = vsel %vm391, %v1140, 0
    %v1149 = vsel %vm391, %v1142, 0
    %1151 = vmatprep.subr.mxu0 0.0
    %1152 = vmatpush1.xpose.msra.mxu0 0.0
    %1153 = vmatprep.subr.mxu0 0.0
    %1154 = vmatpush1.xpose.msra.mxu0 0.0
    %1155 = vmatprep.subr.mxu0 0.0
    %1156 = vmatpush1.xpose.msra.mxu0 0.0
    %1157 = vmatprep.subr.mxu0 0.0
    %1158 = vmatpush1.xpose.msra.mxu0 0.0
    %1159 = vmatprep.subr.mxu0 0.0
    %1160 = vmatpush1.xpose.msra.mxu0 0.0
    %1161 = vmatprep.subr.mxu0 0.0
    %1162 = vmatpush1.xpose.msra.mxu0 0.0
    %1163 = vmatprep.subr.mxu0 0.0
    %1164 = vmatpush1.xpose.msra.mxu0 0.0
    %1165 = vmatprep.subr.mxu0 0.0
    %1166 = vmatpush1.xpose.msra.mxu0 0.0
    %1167 = vmatprep.subr.mxu0 0.0
    %1168 = vmatpush1.xpose.msra.mxu0 0.0
    %1169 = vmatprep.subr.mxu0 0.0
    %1170 = vmatpush1.xpose.msra.mxu0 0.0
    %1171 = vmatprep.subr.mxu0 0.0
    %1172 = vmatpush1.xpose.msra.mxu0 0.0
    %1173 = vmatprep.subr.mxu0 0.0
    %1174 = vmatpush1.xpose.msra.mxu0 0.0
    %1175 = vmatprep.subr.mxu0 0.0
    %1176 = vmatpush1.xpose.msra.mxu0 0.0
    %1177 = vmatprep.subr.mxu0 0.0
    %1178 = vmatpush1.xpose.msra.mxu0 0.0
    %1179 = vmatprep.subr.mxu0 0.0
    %1180 = vmatpush1.xpose.msra.mxu0 %v1149
    %1181 = vmatprep.subr.mxu0 0.0
    %1182 = vmatpush1.xpose.msra.mxu0 %v1147
    %1183 = vmatprep.subr.mxu0 0.0
    %1184 = vmatpush2.xpose.msra.mxu0 0.0
    %1185 = vmatprep.subr.mxu0 0.0
    %1186 = vmatpush2.xpose.msra.mxu0 0.0
    %1187 = vmatprep.subr.mxu0 0.0
    %1188 = vmatpush2.xpose.msra.mxu0 0.0
    %1189 = vmatprep.subr.mxu0 0.0
    %1190 = vmatpush2.xpose.msra.mxu0 0.0
    %1191 = vmatprep.subr.mxu0 0.0
    %1192 = vmatpush2.xpose.msra.mxu0 0.0
    %1193 = vmatprep.subr.mxu0 0.0
    %1194 = vmatpush2.xpose.msra.mxu0 0.0
    %1195 = vmatprep.subr.mxu0 0.0
    %1196 = vmatpush2.xpose.msra.mxu0 0.0
    %1197 = vmatprep.subr.mxu0 0.0
    %1198 = vmatpush2.xpose.msra.mxu0 0.0
    %1199 = vmatprep.subr.mxu0 0.0
    %1200 = vmatpush2.xpose.msra.mxu0 0.0
    %1201 = vmatprep.subr.mxu0 0.0
    %1202 = vmatpush2.xpose.msra.mxu0 0.0
    %1203 = vmatprep.subr.mxu0 0.0
    %1204 = vmatpush2.xpose.msra.mxu0 0.0
    %1205 = vmatprep.subr.mxu0 0.0
    %1206 = vmatpush2.xpose.msra.mxu0 0.0
    %1207 = vmatprep.subr.mxu0 0.0
    %1208 = vmatpush2.xpose.msra.mxu0 0.0
    %1209 = vmatprep.subr.mxu0 0.0
    %1210 = vmatpush2.xpose.msra.mxu0 0.0
    %1211 = vmatprep.subr.mxu0 0.0
    %1212 = vmatpush2.xpose.msra.mxu0 0.0
    %1213 = vmatprep.subr.mxu0 0.0
    %1214 = vmatpush2.xpose.msra.mxu0 0.0
    %1215 = vmatprep.mubr.f32.mxu0 0.0
    %1216 = vmatmul.mubr.f32.gmra.mxu0 %v1143
    %v1217 = vpop.f32.mrf.mxu0
    %v1218 = vadd.f32 0.0, %v1217
    %v1219 = vpop.f32.mrf.mxu0
    %1220 = vmatprep.mubr.f32.mxu0 0.0
    %1221 = vmatmul.mubr.f32.gmra.mxu0 %v1145
    %v1222 = vpop.f32.mrf.mxu0
    %v1223 = vadd.f32 0.0, %v1222
    %v1224 = vpop.f32.mrf.mxu0
    %1225 = vdwg.mxu0
    %v1226 = vsel %vm825, %v1218, -inf
    %1227 = vmax.xlane.f32.xlu0 %v1226
    %v1228 = vpop.xlane.xlu0 %1227
    %v1229 = vsel %vm825, %v1223, -inf
    %1230 = vmax.xlane.f32.xlu0 %v1229
    %v1231 = vpop.xlane.xlu0 %1230
    %v1232 = vsub.f32 %v1218, %v1228
    %v1233 = vsub.f32 %v1223, %v1231
    %v1234 = vmul.f32 %v1232, 1.442695
    %v1235 = vpow.pop %v1234
    %v1236 = vmul.f32 %v1233, 1.442695
    %v1237 = vpow.pop %v1236
    %v1238 = vsel %vm825, %v1235, 0.0
    %1239 = vadd.xlane.f32.xlu0 %v1238
    %v1240 = vpop.xlane.xlu0 %1239
    %v1241 = vsel %vm825, %v1237, 0.0
    %1242 = vadd.xlane.f32.xlu0 %v1241
    %v1243 = vpop.xlane.xlu0 %1242
    %v1244 = vrcp.pop %v1240
    %v1245 = vrcp.pop %v1243
    %v1246 = vmul.f32 %v1235, %v1244
    %v1247 = vmul.f32 %v1237, %v1245
    %1248 = vrot.lane.b32.xlu0 %v728, 48
    %v1249 = vpop.permute.xlu0 %1248
    %1250 = vrot.lane.b32.xlu0 %v733, 48
    %v1251 = vpop.permute.xlu0 %1250
    %v1255 = vsel %vm825, %v1246, 0
    %v1258 = vsel %vm825, %v1247, 0
    %1260 = vmatprep.subr.mxu0 0.0
    %1261 = vmatpush1.msra.mxu0 0.0
    %1262 = vmatprep.subr.mxu0 0.0
    %1263 = vmatpush1.msra.mxu0 0.0
    %1264 = vmatprep.subr.mxu0 0.0
    %1265 = vmatpush1.msra.mxu0 0.0
    %1266 = vmatprep.subr.mxu0 0.0
    %1267 = vmatpush1.msra.mxu0 0.0
    %1268 = vmatprep.subr.mxu0 0.0
    %1269 = vmatpush1.msra.mxu0 0.0
    %1270 = vmatprep.subr.mxu0 0.0
    %1271 = vmatpush1.msra.mxu0 0.0
    %1272 = vmatprep.subr.mxu0 0.0
    %1273 = vmatpush1.msra.mxu0 0.0
    %1274 = vmatprep.subr.mxu0 0.0
    %1275 = vmatpush1.msra.mxu0 0.0
    %1276 = vmatprep.subr.mxu0 0.0
    %1277 = vmatpush1.msra.mxu0 0.0
    %1278 = vmatprep.subr.mxu0 0.0
    %1279 = vmatpush1.msra.mxu0 0.0
    %1280 = vmatprep.subr.mxu0 0.0
    %1281 = vmatpush1.msra.mxu0 0.0
    %1282 = vmatprep.subr.mxu0 0.0
    %1283 = vmatpush1.msra.mxu0 0.0
    %1284 = vmatprep.subr.mxu0 0.0
    %1285 = vmatpush1.msra.mxu0 0.0
    %1286 = vmatprep.subr.mxu0 0.0
    %1287 = vmatpush1.msra.mxu0 0.0
    %1288 = vmatprep.subr.mxu0 0.0
    %1289 = vmatpush1.msra.mxu0 %v1251
    %1290 = vmatprep.subr.mxu0 0.0
    %1291 = vmatpush1.msra.mxu0 %v1249
    %1292 = vmatprep.subr.mxu0 0.0
    %1293 = vmatpush2.msra.mxu0 0.0
    %1294 = vmatprep.subr.mxu0 0.0
    %1295 = vmatpush2.msra.mxu0 0.0
    %1296 = vmatprep.subr.mxu0 0.0
    %1297 = vmatpush2.msra.mxu0 0.0
    %1298 = vmatprep.subr.mxu0 0.0
    %1299 = vmatpush2.msra.mxu0 0.0
    %1300 = vmatprep.subr.mxu0 0.0
    %1301 = vmatpush2.msra.mxu0 0.0
    %1302 = vmatprep.subr.mxu0 0.0
    %1303 = vmatpush2.msra.mxu0 0.0
    %1304 = vmatprep.subr.mxu0 0.0
    %1305 = vmatpush2.msra.mxu0 0.0
    %1306 = vmatprep.subr.mxu0 0.0
    %1307 = vmatpush2.msra.mxu0 0.0
    %1308 = vmatprep.subr.mxu0 0.0
    %1309 = vmatpush2.msra.mxu0 0.0
    %1310 = vmatprep.subr.mxu0 0.0
    %1311 = vmatpush2.msra.mxu0 0.0
    %1312 = vmatprep.subr.mxu0 0.0
    %1313 = vmatpush2.msra.mxu0 0.0
    %1314 = vmatprep.subr.mxu0 0.0
    %1315 = vmatpush2.msra.mxu0 0.0
    %1316 = vmatprep.subr.mxu0 0.0
    %1317 = vmatpush2.msra.mxu0 0.0
    %1318 = vmatprep.subr.mxu0 0.0
    %1319 = vmatpush2.msra.mxu0 0.0
    %1320 = vmatprep.subr.mxu0 0.0
    %1321 = vmatpush2.msra.mxu0 0.0
    %1322 = vmatprep.subr.mxu0 0.0
    %1323 = vmatpush2.msra.mxu0 0.0
    %1324 = vmatprep.mubr.f32.mxu0 0.0
    %1325 = vmatmul.mubr.f32.gmra.mxu0 %v1255
    %v1326 = vpop.f32.mrf.mxu0
    %v1327 = vadd.f32 0.0, %v1326
    %v1328 = vpop.f32.mrf.mxu0
    %1329 = vmatprep.mubr.f32.mxu0 0.0
    %1330 = vmatmul.mubr.f32.gmra.mxu0 %v1258
    %v1331 = vpop.f32.mrf.mxu0
    %v1332 = vadd.f32 0.0, %v1331
    %v1333 = vpop.f32.mrf.mxu0
    %1334 = vdwg.mxu0
    %1335 = vrot.lane.b32.xlu0 %v728, 104
    %v1336 = vpop.permute.xlu0 %1335
    %1337 = vrot.lane.b32.xlu0 %v733, 104
    %v1338 = vpop.permute.xlu0 %1337
    %1339 = vrot.lane.b32.xlu0 %v728, 72
    %v1340 = vpop.permute.xlu0 %1339
    %1341 = vrot.lane.b32.xlu0 %v733, 72
    %v1342 = vpop.permute.xlu0 %1341
    %v1343 = vsel %vm391, %v1336, 0
    %v1345 = vsel %vm391, %v1338, 0
    %v1347 = vsel %vm391, %v1340, 0
    %v1349 = vsel %vm391, %v1342, 0
    %1351 = vmatprep.subr.mxu0 0.0
    %1352 = vmatpush1.xpose.msra.mxu0 0.0
    %1353 = vmatprep.subr.mxu0 0.0
    %1354 = vmatpush1.xpose.msra.mxu0 0.0
    %1355 = vmatprep.subr.mxu0 0.0
    %1356 = vmatpush1.xpose.msra.mxu0 0.0
    %1357 = vmatprep.subr.mxu0 0.0
    %1358 = vmatpush1.xpose.msra.mxu0 0.0
    %1359 = vmatprep.subr.mxu0 0.0
    %1360 = vmatpush1.xpose.msra.mxu0 0.0
    %1361 = vmatprep.subr.mxu0 0.0
    %1362 = vmatpush1.xpose.msra.mxu0 0.0
    %1363 = vmatprep.subr.mxu0 0.0
    %1364 = vmatpush1.xpose.msra.mxu0 0.0
    %1365 = vmatprep.subr.mxu0 0.0
    %1366 = vmatpush1.xpose.msra.mxu0 0.0
    %1367 = vmatprep.subr.mxu0 0.0
    %1368 = vmatpush1.xpose.msra.mxu0 0.0
    %1369 = vmatprep.subr.mxu0 0.0
    %1370 = vmatpush1.xpose.msra.mxu0 0.0
    %1371 = vmatprep.subr.mxu0 0.0
    %1372 = vmatpush1.xpose.msra.mxu0 0.0
    %1373 = vmatprep.subr.mxu0 0.0
    %1374 = vmatpush1.xpose.msra.mxu0 0.0
    %1375 = vmatprep.subr.mxu0 0.0
    %1376 = vmatpush1.xpose.msra.mxu0 0.0
    %1377 = vmatprep.subr.mxu0 0.0
    %1378 = vmatpush1.xpose.msra.mxu0 0.0
    %1379 = vmatprep.subr.mxu0 0.0
    %1380 = vmatpush1.xpose.msra.mxu0 %v1349
    %1381 = vmatprep.subr.mxu0 0.0
    %1382 = vmatpush1.xpose.msra.mxu0 %v1347
    %1383 = vmatprep.subr.mxu0 0.0
    %1384 = vmatpush2.xpose.msra.mxu0 0.0
    %1385 = vmatprep.subr.mxu0 0.0
    %1386 = vmatpush2.xpose.msra.mxu0 0.0
    %1387 = vmatprep.subr.mxu0 0.0
    %1388 = vmatpush2.xpose.msra.mxu0 0.0
    %1389 = vmatprep.subr.mxu0 0.0
    %1390 = vmatpush2.xpose.msra.mxu0 0.0
    %1391 = vmatprep.subr.mxu0 0.0
    %1392 = vmatpush2.xpose.msra.mxu0 0.0
    %1393 = vmatprep.subr.mxu0 0.0
    %1394 = vmatpush2.xpose.msra.mxu0 0.0
    %1395 = vmatprep.subr.mxu0 0.0
    %1396 = vmatpush2.xpose.msra.mxu0 0.0
    %1397 = vmatprep.subr.mxu0 0.0
    %1398 = vmatpush2.xpose.msra.mxu0 0.0
    %1399 = vmatprep.subr.mxu0 0.0
    %1400 = vmatpush2.xpose.msra.mxu0 0.0
    %1401 = vmatprep.subr.mxu0 0.0
    %1402 = vmatpush2.xpose.msra.mxu0 0.0
    %1403 = vmatprep.subr.mxu0 0.0
    %1404 = vmatpush2.xpose.msra.mxu0 0.0
    %1405 = vmatprep.subr.mxu0 0.0
    %1406 = vmatpush2.xpose.msra.mxu0 0.0
    %1407 = vmatprep.subr.mxu0 0.0
    %1408 = vmatpush2.xpose.msra.mxu0 0.0
    %1409 = vmatprep.subr.mxu0 0.0
    %1410 = vmatpush2.xpose.msra.mxu0 0.0
    %1411 = vmatprep.subr.mxu0 0.0
    %1412 = vmatpush2.xpose.msra.mxu0 0.0
    %1413 = vmatprep.subr.mxu0 0.0
    %1414 = vmatpush2.xpose.msra.mxu0 0.0
    %1415 = vmatprep.mubr.f32.mxu0 0.0
    %1416 = vmatmul.mubr.f32.gmra.mxu0 %v1343
    %v1417 = vpop.f32.mrf.mxu0
    %v1418 = vadd.f32 0.0, %v1417
    %v1419 = vpop.f32.mrf.mxu0
    %1420 = vmatprep.mubr.f32.mxu0 0.0
    %1421 = vmatmul.mubr.f32.gmra.mxu0 %v1345
    %v1422 = vpop.f32.mrf.mxu0
    %v1423 = vadd.f32 0.0, %v1422
    %v1424 = vpop.f32.mrf.mxu0
    %1425 = vdwg.mxu0
    %v1426 = vsel %vm825, %v1418, -inf
    %1427 = vmax.xlane.f32.xlu0 %v1426
    %v1428 = vpop.xlane.xlu0 %1427
    %v1429 = vsel %vm825, %v1423, -inf
    %1430 = vmax.xlane.f32.xlu0 %v1429
    %v1431 = vpop.xlane.xlu0 %1430
    %v1432 = vsub.f32 %v1418, %v1428
    %v1433 = vsub.f32 %v1423, %v1431
    %v1434 = vmul.f32 %v1432, 1.442695
    %v1435 = vpow.pop %v1434
    %v1436 = vmul.f32 %v1433, 1.442695
    %v1437 = vpow.pop %v1436
    %v1438 = vsel %vm825, %v1435, 0.0
    %1439 = vadd.xlane.f32.xlu0 %v1438
    %v1440 = vpop.xlane.xlu0 %1439
    %v1441 = vsel %vm825, %v1437, 0.0
    %1442 = vadd.xlane.f32.xlu0 %v1441
    %v1443 = vpop.xlane.xlu0 %1442
    %v1444 = vrcp.pop %v1440
    %v1445 = vrcp.pop %v1443
    %v1446 = vmul.f32 %v1435, %v1444
    %v1447 = vmul.f32 %v1437, %v1445
    %1448 = vrot.lane.b32.xlu0 %v728, 40
    %v1449 = vpop.permute.xlu0 %1448
    %1450 = vrot.lane.b32.xlu0 %v733, 40
    %v1451 = vpop.permute.xlu0 %1450
    %v1455 = vsel %vm825, %v1446, 0
    %v1458 = vsel %vm825, %v1447, 0
    %1460 = vmatprep.subr.mxu0 0.0
    %1461 = vmatpush1.msra.mxu0 0.0
    %1462 = vmatprep.subr.mxu0 0.0
    %1463 = vmatpush1.msra.mxu0 0.0
    %1464 = vmatprep.subr.mxu0 0.0
    %1465 = vmatpush1.msra.mxu0 0.0
    %1466 = vmatprep.subr.mxu0 0.0
    %1467 = vmatpush1.msra.mxu0 0.0
    %1468 = vmatprep.subr.mxu0 0.0
    %1469 = vmatpush1.msra.mxu0 0.0
    %1470 = vmatprep.subr.mxu0 0.0
    %1471 = vmatpush1.msra.mxu0 0.0
    %1472 = vmatprep.subr.mxu0 0.0
    %1473 = vmatpush1.msra.mxu0 0.0
    %1474 = vmatprep.subr.mxu0 0.0
    %1475 = vmatpush1.msra.mxu0 0.0
    %1476 = vmatprep.subr.mxu0 0.0
    %1477 = vmatpush1.msra.mxu0 0.0
    %1478 = vmatprep.subr.mxu0 0.0
    %1479 = vmatpush1.msra.mxu0 0.0
    %1480 = vmatprep.subr.mxu0 0.0
    %1481 = vmatpush1.msra.mxu0 0.0
    %1482 = vmatprep.subr.mxu0 0.0
    %1483 = vmatpush1.msra.mxu0 0.0
    %1484 = vmatprep.subr.mxu0 0.0
    %1485 = vmatpush1.msra.mxu0 0.0
    %1486 = vmatprep.subr.mxu0 0.0
    %1487 = vmatpush1.msra.mxu0 0.0
    %1488 = vmatprep.subr.mxu0 0.0
    %1489 = vmatpush1.msra.mxu0 %v1451
    %1490 = vmatprep.subr.mxu0 0.0
    %1491 = vmatpush1.msra.mxu0 %v1449
    %1492 = vmatprep.subr.mxu0 0.0
    %1493 = vmatpush2.msra.mxu0 0.0
    %1494 = vmatprep.subr.mxu0 0.0
    %1495 = vmatpush2.msra.mxu0 0.0
    %1496 = vmatprep.subr.mxu0 0.0
    %1497 = vmatpush2.msra.mxu0 0.0
    %1498 = vmatprep.subr.mxu0 0.0
    %1499 = vmatpush2.msra.mxu0 0.0
    %1500 = vmatprep.subr.mxu0 0.0
    %1501 = vmatpush2.msra.mxu0 0.0
    %1502 = vmatprep.subr.mxu0 0.0
    %1503 = vmatpush2.msra.mxu0 0.0
    %1504 = vmatprep.subr.mxu0 0.0
    %1505 = vmatpush2.msra.mxu0 0.0
    %1506 = vmatprep.subr.mxu0 0.0
    %1507 = vmatpush2.msra.mxu0 0.0
    %1508 = vmatprep.subr.mxu0 0.0
    %1509 = vmatpush2.msra.mxu0 0.0
    %1510 = vmatprep.subr.mxu0 0.0
    %1511 = vmatpush2.msra.mxu0 0.0
    %1512 = vmatprep.subr.mxu0 0.0
    %1513 = vmatpush2.msra.mxu0 0.0
    %1514 = vmatprep.subr.mxu0 0.0
    %1515 = vmatpush2.msra.mxu0 0.0
    %1516 = vmatprep.subr.mxu0 0.0
    %1517 = vmatpush2.msra.mxu0 0.0
    %1518 = vmatprep.subr.mxu0 0.0
    %1519 = vmatpush2.msra.mxu0 0.0
    %1520 = vmatprep.subr.mxu0 0.0
    %1521 = vmatpush2.msra.mxu0 0.0
    %1522 = vmatprep.subr.mxu0 0.0
    %1523 = vmatpush2.msra.mxu0 0.0
    %1524 = vmatprep.mubr.f32.mxu0 0.0
    %1525 = vmatmul.mubr.f32.gmra.mxu0 %v1455
    %v1526 = vpop.f32.mrf.mxu0
    %v1527 = vadd.f32 0.0, %v1526
    %v1528 = vpop.f32.mrf.mxu0
    %1529 = vmatprep.mubr.f32.mxu0 0.0
    %1530 = vmatmul.mubr.f32.gmra.mxu0 %v1458
    %v1531 = vpop.f32.mrf.mxu0
    %v1532 = vadd.f32 0.0, %v1531
    %v1533 = vpop.f32.mrf.mxu0
    %1534 = vdwg.mxu0
    %1537 = vrot.lane.b32.xlu0 %v1127, 8
    %v1538 = vpop.permute.xlu0 %1537
    %1539 = vrot.lane.b32.xlu0 %v1132, 8
    %v1540 = vpop.permute.xlu0 %1539
    %1545 = vrot.lane.b32.xlu0 %v1327, 16
    %v1546 = vpop.permute.xlu0 %1545
    %1547 = vrot.lane.b32.xlu0 %v1332, 16
    %v1548 = vpop.permute.xlu0 %1547
    %1553 = vrot.lane.b32.xlu0 %v1527, 24
    %v1554 = vpop.permute.xlu0 %1553
    %1555 = vrot.lane.b32.xlu0 %v1532, 24
    %v1556 = vpop.permute.xlu0 %1555
    %v1559 = vsel %vm391, %v927, %v1538
    %v1560 = vsel %vm391, %v932, %v1540
    %v1561 = vsel %vm825, %v1559, %v1546
    %v1562 = vsel %vm825, %v1560, %v1548
    %vm1563 = vcmask 195584
    %v1564 = vsel %vm1563, %v1561, %v1554
    %v1565 = vsel %vm1563, %v1562, %v1556
    %v1567 = vlaneseq
    %v1568 = vshrl.u32 %v1567, 7
    %v1569 = vsub.s32 0, %v1568
    %v1570 = vrot.slane %v647, %v1569
    %v1573 = vsel %vm654, %v1564, 0
    %v1576 = vsel %vm654, %v1565, 0
    %1578 = vmatprep.subr.mxu0 0.0
    %1579 = vmatpush1.msra.mxu0 0.0
    %1580 = vmatprep.subr.mxu0 0.0
    %1581 = vmatpush1.msra.mxu0 0.0
    %1582 = vmatprep.subr.mxu0 0.0
    %1583 = vmatpush1.msra.mxu0 0.0
    %1584 = vmatprep.subr.mxu0 0.0
    %1585 = vmatpush1.msra.mxu0 0.0
    %1586 = vmatprep.subr.mxu0 0.0
    %1587 = vmatpush1.msra.mxu0 0.0
    %1588 = vmatprep.subr.mxu0 0.0
    %1589 = vmatpush1.msra.mxu0 0.0
    %1590 = vmatprep.subr.mxu0 0.0
    %1591 = vmatpush1.msra.mxu0 0.0
    %1592 = vmatprep.subr.mxu0 0.0
    %1593 = vmatpush1.msra.mxu0 0.0
    %1594 = vmatprep.subr.mxu0 0.0
    %1595 = vmatpush1.msra.mxu0 0.0
    %1596 = vmatprep.subr.mxu0 0.0
    %1597 = vmatpush1.msra.mxu0 0.0
    %1598 = vmatprep.subr.mxu0 0.0
    %1599 = vmatpush1.msra.mxu0 0.0
    %1600 = vmatprep.subr.mxu0 0.0
    %1601 = vmatpush1.msra.mxu0 0.0
    %1602 = vmatprep.subr.mxu0 0.0
    %1603 = vmatpush1.msra.mxu0 %v646
    %1604 = vmatprep.subr.mxu0 0.0
    %1605 = vmatpush1.msra.mxu0 %v645
    %1606 = vmatprep.subr.mxu0 0.0
    %1607 = vmatpush1.msra.mxu0 %v644
    %1608 = vmatprep.subr.mxu0 0.0
    %1609 = vmatpush1.msra.mxu0 %v643
    %1610 = vmatprep.subr.mxu0 0.0
    %1611 = vmatpush2.msra.mxu0 0.0
    %1612 = vmatprep.subr.mxu0 0.0
    %1613 = vmatpush2.msra.mxu0 0.0
    %1614 = vmatprep.subr.mxu0 0.0
    %1615 = vmatpush2.msra.mxu0 0.0
    %1616 = vmatprep.subr.mxu0 0.0
    %1617 = vmatpush2.msra.mxu0 0.0
    %1618 = vmatprep.subr.mxu0 0.0
    %1619 = vmatpush2.msra.mxu0 0.0
    %1620 = vmatprep.subr.mxu0 0.0
    %1621 = vmatpush2.msra.mxu0 0.0
    %1622 = vmatprep.subr.mxu0 0.0
    %1623 = vmatpush2.msra.mxu0 0.0
    %1624 = vmatprep.subr.mxu0 0.0
    %1625 = vmatpush2.msra.mxu0 0.0
    %1626 = vmatprep.subr.mxu0 0.0
    %1627 = vmatpush2.msra.mxu0 0.0
    %1628 = vmatprep.subr.mxu0 0.0
    %1629 = vmatpush2.msra.mxu0 0.0
    %1630 = vmatprep.subr.mxu0 0.0
    %1631 = vmatpush2.msra.mxu0 0.0
    %1632 = vmatprep.subr.mxu0 0.0
    %1633 = vmatpush2.msra.mxu0 0.0
    %1634 = vmatprep.subr.mxu0 0.0
    %1635 = vmatpush2.msra.mxu0 0.0
    %1636 = vmatprep.subr.mxu0 0.0
    %1637 = vmatpush2.msra.mxu0 0.0
    %1638 = vmatprep.subr.mxu0 0.0
    %1639 = vmatpush2.msra.mxu0 0.0
    %1640 = vmatprep.subr.mxu0 0.0
    %1641 = vmatpush2.msra.mxu0 0.0
    %1642 = vmatprep.mubr.f32.mxu0 0.0
    %1643 = vmatmul.mubr.f32.gmra.mxu0 %v1573
    %v1644 = vpop.f32.mrf.mxu0
    %v1645 = vadd.f32 %v1570, %v1644
    %v1646 = vpop.f32.mrf.mxu0
    %1647 = vmatprep.mubr.f32.mxu0 0.0
    %1648 = vmatmul.mubr.f32.gmra.mxu0 %v1576
    %v1649 = vpop.f32.mrf.mxu0
    %v1650 = vadd.f32 %v1570, %v1649
    %v1651 = vpop.f32.mrf.mxu0
    %1652 = vdwg.mxu0
    %v1653 = vadd.f32 %v634, %v1645
    %v1654 = vadd.f32 %v635, %v1650
    %v1655 = vsel %vm654, %v1653, 0.0
    %1656 = vadd.xlane.f32.xlu0 %v1655
    %v1657 = vpop.xlane.xlu0 %1656
    %v1658 = vsel %vm654, %v1654, 0.0
    %1659 = vadd.xlane.f32.xlu0 %v1658
    %v1660 = vpop.xlane.xlu0 %1659
    %v1661 = vrcp.pop 32.0
    %v1662 = vmul.f32 %v1657, %v1661
    %v1663 = vmul.f32 %v1660, %v1661
    %v1664 = vsub.f32 %v1653, %v1662
    %v1665 = vsub.f32 %v1654, %v1663
    %v1666 = vmul.f32 %v1664, %v1664
    %v1667 = vmul.f32 %v1665, %v1665
    %v1668 = vsel %vm654, %v1666, 0.0
    %1669 = vadd.xlane.f32.xlu0 %v1668
    %v1670 = vpop.xlane.xlu0 %1669
    %v1671 = vsel %vm654, %v1667, 0.0
    %1672 = vadd.xlane.f32.xlu0 %v1671
    %v1673 = vpop.xlane.xlu0 %1672
    %v1674 = vrcp.pop 31.0
    %v1675 = vmul.f32 %v1670, %v1674
    %v1676 = vmul.f32 %v1673, %v1674
    %v1677 = vrsqrt.pop %v1675
    %v1678 = vmul.f32 %v1675, %v1677
    %vm1679 = vcmp.eq.f32.partialorder %v1675, inf
    %v1680 = vsel %vm1679, %v1675, %v1678
    %vm1681 = vcmp.eq.f32.partialorder %v1675, 0.0
    %v1682 = vand.u32 %v1675, 2147483648
    %v1683 = vsel %vm1681, %v1682, %v1680
    %v1684 = vrsqrt.pop %v1676
    %v1685 = vmul.f32 %v1676, %v1684
    %vm1686 = vcmp.eq.f32.partialorder %v1676, inf
    %v1687 = vsel %vm1686, %v1676, %v1685
    %vm1688 = vcmp.eq.f32.partialorder %v1676, 0.0
    %v1689 = vand.u32 %v1676, 2147483648
    %v1690 = vsel %vm1688, %v1689, %v1687
    %v1691 = vadd.f32 %v1683, 1e-06
    %v1692 = vadd.f32 %v1690, 1e-06
    %v1693 = vrcp.pop %v1691
    %v1694 = vrcp.pop %v1692
    %v1695 = vlaneseq
    %v1696 = vshrl.u32 %v1695, 7
    %v1697 = vsub.s32 0, %v1696
    %v1698 = vrot.slane %v636, %v1697
    %v1699 = vmul.f32 %v1698, %v1664
    %v1700 = vmul.f32 %v1698, %v1665
    %v1701 = vmul.f32 %v1699, %v1693
    %v1702 = vmul.f32 %v1700, %v1694
    %v1703 = vlaneseq
    %v1704 = vshrl.u32 %v1703, 7
    %v1705 = vsub.s32 0, %v1704
    %v1706 = vrot.slane %v637, %v1705
    %v1707 = vadd.f32 %v1701, %v1706
    %v1708 = vadd.f32 %v1702, %v1706
    %v1709 = vld [vmem:[%s19] sm:$0xff]
    %v1710 = vld [vmem:[%s19 + $0x8] sm:$0xff]
    %v1711 = vld [vmem:[%s19 + $0x10] sm:$0xff]
    %v1712 = vld [vmem:[%s19 + $0x18] sm:$0xff]
    %v1713 = vld [vmem:[%s21] sm:$0x1]
    %v1715 = vlaneseq
    %v1716 = vshrl.u32 %v1715, 7
    %v1717 = vsub.s32 0, %v1716
    %v1718 = vrot.slane %v1713, %v1717
    %v1721 = vsel %vm654, %v1707, 0
    %v1724 = vsel %vm654, %v1708, 0
    %1726 = vmatprep.subr.mxu0 0.0
    %1727 = vmatpush1.msra.mxu0 0.0
    %1728 = vmatprep.subr.mxu0 0.0
    %1729 = vmatpush1.msra.mxu0 0.0
    %1730 = vmatprep.subr.mxu0 0.0
    %1731 = vmatpush1.msra.mxu0 0.0
    %1732 = vmatprep.subr.mxu0 0.0
    %1733 = vmatpush1.msra.mxu0 0.0
    %1734 = vmatprep.subr.mxu0 0.0
    %1735 = vmatpush1.msra.mxu0 0.0
    %1736 = vmatprep.subr.mxu0 0.0
    %1737 = vmatpush1.msra.mxu0 0.0
    %1738 = vmatprep.subr.mxu0 0.0
    %1739 = vmatpush1.msra.mxu0 0.0
    %1740 = vmatprep.subr.mxu0 0.0
    %1741 = vmatpush1.msra.mxu0 0.0
    %1742 = vmatprep.subr.mxu0 0.0
    %1743 = vmatpush1.msra.mxu0 0.0
    %1744 = vmatprep.subr.mxu0 0.0
    %1745 = vmatpush1.msra.mxu0 0.0
    %1746 = vmatprep.subr.mxu0 0.0
    %1747 = vmatpush1.msra.mxu0 0.0
    %1748 = vmatprep.subr.mxu0 0.0
    %1749 = vmatpush1.msra.mxu0 0.0
    %1750 = vmatprep.subr.mxu0 0.0
    %1751 = vmatpush1.msra.mxu0 %v1712
    %1752 = vmatprep.subr.mxu0 0.0
    %1753 = vmatpush1.msra.mxu0 %v1711
    %1754 = vmatprep.subr.mxu0 0.0
    %1755 = vmatpush1.msra.mxu0 %v1710
    %1756 = vmatprep.subr.mxu0 0.0
    %1757 = vmatpush1.msra.mxu0 %v1709
    %1758 = vmatprep.subr.mxu0 0.0
    %1759 = vmatpush2.msra.mxu0 0.0
    %1760 = vmatprep.subr.mxu0 0.0
    %1761 = vmatpush2.msra.mxu0 0.0
    %1762 = vmatprep.subr.mxu0 0.0
    %1763 = vmatpush2.msra.mxu0 0.0
    %1764 = vmatprep.subr.mxu0 0.0
    %1765 = vmatpush2.msra.mxu0 0.0
    %1766 = vmatprep.subr.mxu0 0.0
    %1767 = vmatpush2.msra.mxu0 0.0
    %1768 = vmatprep.subr.mxu0 0.0
    %1769 = vmatpush2.msra.mxu0 0.0
    %1770 = vmatprep.subr.mxu0 0.0
    %1771 = vmatpush2.msra.mxu0 0.0
    %1772 = vmatprep.subr.mxu0 0.0
    %1773 = vmatpush2.msra.mxu0 0.0
    %1774 = vmatprep.subr.mxu0 0.0
    %1775 = vmatpush2.msra.mxu0 0.0
    %1776 = vmatprep.subr.mxu0 0.0
    %1777 = vmatpush2.msra.mxu0 0.0
    %1778 = vmatprep.subr.mxu0 0.0
    %1779 = vmatpush2.msra.mxu0 0.0
    %1780 = vmatprep.subr.mxu0 0.0
    %1781 = vmatpush2.msra.mxu0 0.0
    %1782 = vmatprep.subr.mxu0 0.0
    %1783 = vmatpush2.msra.mxu0 0.0
    %1784 = vmatprep.subr.mxu0 0.0
    %1785 = vmatpush2.msra.mxu0 0.0
    %1786 = vmatprep.subr.mxu0 0.0
    %1787 = vmatpush2.msra.mxu0 0.0
    %1788 = vmatprep.subr.mxu0 0.0
    %1789 = vmatpush2.msra.mxu0 0.0
    %1790 = vmatprep.mubr.f32.mxu0 0.0
    %1791 = vmatmul.mubr.f32.gmra.mxu0 %v1721
    %v1792 = vpop.f32.mrf.mxu0
    %v1793 = vadd.f32 %v1718, %v1792
    %v1794 = vpop.f32.mrf.mxu0
    %1795 = vmatprep.mubr.f32.mxu0 0.0
    %1796 = vmatmul.mubr.f32.gmra.mxu0 %v1724
    %v1797 = vpop.f32.mrf.mxu0
    %v1798 = vadd.f32 %v1718, %v1797
    %v1799 = vpop.f32.mrf.mxu0
    %1800 = vdwg.mxu0
    %v1801 = vmax.f32 %v1793, 0.0
    %v1802 = vmax.f32 %v1798, 0.0
    %v1803 = vld [vmem:[%s23] sm:$0xff]
    %v1804 = vld [vmem:[%s23 + $0x8] sm:$0xff]
    %v1805 = vld [vmem:[%s23 + $0x10] sm:$0xff]
    %v1806 = vld [vmem:[%s23 + $0x18] sm:$0xff]
    %v1807 = vld [vmem:[%s23 + $0x20] sm:$0xff]
    %v1808 = vld [vmem:[%s23 + $0x28] sm:$0xff]
    %v1809 = vld [vmem:[%s23 + $0x30] sm:$0xff]
    %v1810 = vld [vmem:[%s23 + $0x38] sm:$0xff]
    %v1811 = vld [vmem:[%s25] sm:$0x1]
    %v1813 = vlaneseq
    %v1814 = vshrl.u32 %v1813, 7
    %v1815 = vsub.s32 0, %v1814
    %v1816 = vrot.slane %v1811, %v1815
    %vm1818 = vcmask 523264
    %v1820 = vsel %vm1818, %v1801, 0
    %v1823 = vsel %vm1818, %v1802, 0
    %1825 = vmatprep.subr.mxu0 0.0
    %1826 = vmatpush1.msra.mxu0 0.0
    %1827 = vmatprep.subr.mxu0 0.0
    %1828 = vmatpush1.msra.mxu0 0.0
    %1829 = vmatprep.subr.mxu0 0.0
    %1830 = vmatpush1.msra.mxu0 0.0
    %1831 = vmatprep.subr.mxu0 0.0
    %1832 = vmatpush1.msra.mxu0 0.0
    %1833 = vmatprep.subr.mxu0 0.0
    %1834 = vmatpush1.msra.mxu0 0.0
    %1835 = vmatprep.subr.mxu0 0.0
    %1836 = vmatpush1.msra.mxu0 0.0
    %1837 = vmatprep.subr.mxu0 0.0
    %1838 = vmatpush1.msra.mxu0 0.0
    %1839 = vmatprep.subr.mxu0 0.0
    %1840 = vmatpush1.msra.mxu0 0.0
    %1841 = vmatprep.subr.mxu0 0.0
    %1842 = vmatpush1.msra.mxu0 %v1810
    %1843 = vmatprep.subr.mxu0 0.0
    %1844 = vmatpush1.msra.mxu0 %v1809
    %1845 = vmatprep.subr.mxu0 0.0
    %1846 = vmatpush1.msra.mxu0 %v1808
    %1847 = vmatprep.subr.mxu0 0.0
    %1848 = vmatpush1.msra.mxu0 %v1807
    %1849 = vmatprep.subr.mxu0 0.0
    %1850 = vmatpush1.msra.mxu0 %v1806
    %1851 = vmatprep.subr.mxu0 0.0
    %1852 = vmatpush1.msra.mxu0 %v1805
    %1853 = vmatprep.subr.mxu0 0.0
    %1854 = vmatpush1.msra.mxu0 %v1804
    %1855 = vmatprep.subr.mxu0 0.0
    %1856 = vmatpush1.msra.mxu0 %v1803
    %1857 = vmatprep.subr.mxu0 0.0
    %1858 = vmatpush2.msra.mxu0 0.0
    %1859 = vmatprep.subr.mxu0 0.0
    %1860 = vmatpush2.msra.mxu0 0.0
    %1861 = vmatprep.subr.mxu0 0.0
    %1862 = vmatpush2.msra.mxu0 0.0
    %1863 = vmatprep.subr.mxu0 0.0
    %1864 = vmatpush2.msra.mxu0 0.0
    %1865 = vmatprep.subr.mxu0 0.0
    %1866 = vmatpush2.msra.mxu0 0.0
    %1867 = vmatprep.subr.mxu0 0.0
    %1868 = vmatpush2.msra.mxu0 0.0
    %1869 = vmatprep.subr.mxu0 0.0
    %1870 = vmatpush2.msra.mxu0 0.0
    %1871 = vmatprep.subr.mxu0 0.0
    %1872 = vmatpush2.msra.mxu0 0.0
    %1873 = vmatprep.subr.mxu0 0.0
    %1874 = vmatpush2.msra.mxu0 0.0
    %1875 = vmatprep.subr.mxu0 0.0
    %1876 = vmatpush2.msra.mxu0 0.0
    %1877 = vmatprep.subr.mxu0 0.0
    %1878 = vmatpush2.msra.mxu0 0.0
    %1879 = vmatprep.subr.mxu0 0.0
    %1880 = vmatpush2.msra.mxu0 0.0
    %1881 = vmatprep.subr.mxu0 0.0
    %1882 = vmatpush2.msra.mxu0 0.0
    %1883 = vmatprep.subr.mxu0 0.0
    %1884 = vmatpush2.msra.mxu0 0.0
    %1885 = vmatprep.subr.mxu0 0.0
    %1886 = vmatpush2.msra.mxu0 0.0
    %1887 = vmatprep.subr.mxu0 0.0
    %1888 = vmatpush2.msra.mxu0 0.0
    %1889 = vmatprep.mubr.f32.mxu0 0.0
    %1890 = vmatmul.mubr.f32.gmra.mxu0 %v1820
    %v1891 = vpop.f32.mrf.mxu0
    %v1892 = vadd.f32 %v1816, %v1891
    %v1893 = vpop.f32.mrf.mxu0
    %1894 = vmatprep.mubr.f32.mxu0 0.0
    %1895 = vmatmul.mubr.f32.gmra.mxu0 %v1823
    %v1896 = vpop.f32.mrf.mxu0
    %v1897 = vadd.f32 %v1816, %v1896
    %v1898 = vpop.f32.mrf.mxu0
    %1899 = vdwg.mxu0
    %v1900 = vadd.f32 %v1707, %v1892
    %v1901 = vadd.f32 %v1708, %v1897
    %v1902 = vsel %vm654, %v1900, 0.0
    %1903 = vadd.xlane.f32.xlu0 %v1902
    %v1904 = vpop.xlane.xlu0 %1903
    %v1905 = vsel %vm654, %v1901, 0.0
    %1906 = vadd.xlane.f32.xlu0 %v1905
    %v1907 = vpop.xlane.xlu0 %1906
    %v1908 = vmul.f32 %v1904, %v1661
    %v1909 = vmul.f32 %v1907, %v1661
    %v1910 = vsub.f32 %v1900, %v1908
    %v1911 = vsub.f32 %v1901, %v1909
    %v1912 = vmul.f32 %v1910, %v1910
    %v1913 = vmul.f32 %v1911, %v1911
    %v1914 = vsel %vm654, %v1912, 0.0
    %1915 = vadd.xlane.f32.xlu0 %v1914
    %v1916 = vpop.xlane.xlu0 %1915
    %v1917 = vsel %vm654, %v1913, 0.0
    %1918 = vadd.xlane.f32.xlu0 %v1917
    %v1919 = vpop.xlane.xlu0 %1918
    %v1920 = vmul.f32 %v1916, %v1674
    %v1921 = vmul.f32 %v1919, %v1674
    %v1922 = vrsqrt.pop %v1920
    %v1923 = vmul.f32 %v1920, %v1922
    %vm1924 = vcmp.eq.f32.partialorder %v1920, inf
    %v1925 = vsel %vm1924, %v1920, %v1923
    %vm1926 = vcmp.eq.f32.partialorder %v1920, 0.0
    %v1927 = vand.u32 %v1920, 2147483648
    %v1928 = vsel %vm1926, %v1927, %v1925
    %v1929 = vrsqrt.pop %v1921
    %v1930 = vmul.f32 %v1921, %v1929
    %vm1931 = vcmp.eq.f32.partialorder %v1921, inf
    %v1932 = vsel %vm1931, %v1921, %v1930
    %vm1933 = vcmp.eq.f32.partialorder %v1921, 0.0
    %v1934 = vand.u32 %v1921, 2147483648
    %v1935 = vsel %vm1933, %v1934, %v1932
    %v1936 = vadd.f32 %v1928, 1e-06
    %v1937 = vadd.f32 %v1935, 1e-06
    %v1938 = vrcp.pop %v1936
    %v1939 = vrcp.pop %v1937
    %v1940 = vlaneseq
    %v1941 = vshrl.u32 %v1940, 7
    %v1942 = vsub.s32 1, %v1941
    %v1943 = vrot.slane %v636, %v1942
    %v1944 = vmul.f32 %v1943, %v1910
    %v1945 = vmul.f32 %v1943, %v1911
    %v1946 = vmul.f32 %v1944, %v1938
    %v1947 = vmul.f32 %v1945, %v1939
    %v1948 = vlaneseq
    %v1949 = vshrl.u32 %v1948, 7
    %v1950 = vsub.s32 1, %v1949
    %v1951 = vrot.slane %v637, %v1950
    %v1952 = vadd.f32 %v1946, %v1951
    %v1953 = vadd.f32 %v1947, %v1951
    %vm1956 = vcmask 1042432
    %v1957 = vrot.slane %v1952, 5
    %v1958 = vrot.slane %v1953, 5
    %v1959 = vsel %vm1956, %v1957, %v1958
    %v1963 = vsel %vm1956, 0.0, %v1957
    %v1964 = vsel %vm1956, %v1958, 0.0
    %vm1967 = vcmask 1046528
    %v1968 = vrot.slane 0.0, 1
    %v1969 = vrot.slane %v1963, 1
    %v1970 = vsel %vm1967, %v1968, %v1969
    %v1971 = vrot.slane %v1959, 1
    %v1972 = vsel %vm1967, %v1969, %v1971
    %1973 = vrot.lane.b32.xlu0 %v1970, 32
    %v1974 = vpop.permute.xlu0 %1973
    %1975 = vrot.lane.b32.xlu0 %v1972, 32
    %v1976 = vpop.permute.xlu0 %1975
    %vm1979 = vcmask 1045504
    %v1980 = vrot.slane 0.0, 2
    %v1981 = vrot.slane %v1963, 2
    %v1982 = vsel %vm1979, %v1980, %v1981
    %v1983 = vrot.slane %v1959, 2
    %v1984 = vsel %vm1979, %v1981, %v1983
    %1985 = vrot.lane.b32.xlu0 %v1982, 64
    %v1986 = vpop.permute.xlu0 %1985
    %1987 = vrot.lane.b32.xlu0 %v1984, 64
    %v1988 = vpop.permute.xlu0 %1987
    %vm1991 = vcmask 1044480
    %v1992 = vrot.slane 0.0, 3
    %v1993 = vrot.slane %v1963, 3
    %v1994 = vsel %vm1991, %v1992, %v1993
    %v1995 = vrot.slane %v1959, 3
    %v1996 = vsel %vm1991, %v1993, %v1995
    %1997 = vrot.lane.b32.xlu0 %v1994, 96
    %v1998 = vpop.permute.xlu0 %1997
    %1999 = vrot.lane.b32.xlu0 %v1996, 96
    %v2000 = vpop.permute.xlu0 %1999
    %vm2003 = vcmask 1043456
    %v2004 = vrot.slane 0.0, 4
    %v2005 = vrot.slane %v1963, 4
    %v2006 = vsel %vm2003, %v2004, %v2005
    %v2007 = vrot.slane %v1959, 4
    %v2008 = vsel %vm2003, %v2005, %v2007
    %v2011 = vrot.slane 0.0, 5
    %v2012 = vrot.slane %v1963, 5
    %v2013 = vsel %vm1956, %v2011, %v2012
    %v2014 = vrot.slane %v1959, 5
    %v2015 = vsel %vm1956, %v2012, %v2014
    %2016 = vrot.lane.b32.xlu0 %v2013, 32
    %v2017 = vpop.permute.xlu0 %2016
    %2018 = vrot.lane.b32.xlu0 %v2015, 32
    %v2019 = vpop.permute.xlu0 %2018
    %v2022 = vrot.slane 0.0, 6
    %v2023 = vrot.slane %v1963, 6
    %v2024 = vsel %vm316, %v2022, %v2023
    %v2025 = vrot.slane %v1959, 6
    %v2026 = vsel %vm316, %v2023, %v2025
    %2027 = vrot.lane.b32.xlu0 %v2024, 64
    %v2028 = vpop.permute.xlu0 %2027
    %2029 = vrot.lane.b32.xlu0 %v2026, 64
    %v2030 = vpop.permute.xlu0 %2029
    %vm2033 = vcmask 1040384
    %v2034 = vrot.slane 0.0, 7
    %v2035 = vrot.slane %v1963, 7
    %v2036 = vsel %vm2033, %v2034, %v2035
    %v2037 = vrot.slane %v1959, 7
    %v2038 = vsel %vm2033, %v2035, %v2037
    %2039 = vrot.lane.b32.xlu0 %v2036, 96
    %v2040 = vpop.permute.xlu0 %2039
    %2041 = vrot.lane.b32.xlu0 %v2038, 96
    %v2042 = vpop.permute.xlu0 %2041
    %v2046 = vrot.slane %v1964, 1
    %v2047 = vsel %vm1967, %v1971, %v2046
    %2048 = vrot.lane.b32.xlu0 %v2047, 32
    %v2049 = vpop.permute.xlu0 %2048
    %v2051 = vrot.slane %v1964, 2
    %v2052 = vsel %vm1979, %v1983, %v2051
    %2053 = vrot.lane.b32.xlu0 %v2052, 64
    %v2054 = vpop.permute.xlu0 %2053
    %v2056 = vrot.slane %v1964, 3
    %v2057 = vsel %vm1991, %v1995, %v2056
    %2058 = vrot.lane.b32.xlu0 %v2057, 96
    %v2059 = vpop.permute.xlu0 %2058
    %v2061 = vrot.slane %v1964, 4
    %v2062 = vsel %vm2003, %v2007, %v2061
    %v2064 = vrot.slane %v1964, 5
    %v2065 = vsel %vm1956, %v2014, %v2064
    %2066 = vrot.lane.b32.xlu0 %v2065, 32
    %v2067 = vpop.permute.xlu0 %2066
    %v2069 = vrot.slane %v1964, 6
    %v2070 = vsel %vm316, %v2025, %v2069
    %2071 = vrot.lane.b32.xlu0 %v2070, 64
    %v2072 = vpop.permute.xlu0 %2071
    %v2074 = vrot.slane %v1964, 7
    %v2075 = vsel %vm2033, %v2037, %v2074
    %2076 = vrot.lane.b32.xlu0 %v2075, 96
    %v2077 = vpop.permute.xlu0 %2076
    %v2079 = vsel %vm654, 0.0, %v1974
    %v2080 = vsel %vm654, %v1963, %v1976
    %v2081 = vsel %vm1818, %v2079, %v1986
    %v2082 = vsel %vm1818, %v2080, %v1988
    %vm2083 = vcmask 785408
    %v2084 = vsel %vm2083, %v2081, %v1998
    %v2085 = vsel %vm2083, %v2082, %v2000
    %v2086 = vsel %vm654, %v2006, %v2017
    %v2087 = vsel %vm654, %v2008, %v2019
    %v2088 = vsel %vm1818, %v2086, %v2028
    %v2089 = vsel %vm1818, %v2087, %v2030
    %v2090 = vsel %vm2083, %v2088, %v2040
    %v2091 = vsel %vm2083, %v2089, %v2042
    %v2092 = vsel %vm654, %v1959, %v2049
    %v2093 = vsel %vm1818, %v2092, %v2054
    %v2094 = vsel %vm2083, %v2093, %v2059
    %v2095 = vsel %vm654, %v2062, %v2067
    %v2096 = vsel %vm1818, %v2095, %v2072
    %v2097 = vsel %vm2083, %v2096, %v2077
    %v2098 = vsel %vm1967, %v2046, %v1968
    %2099 = vrot.lane.b32.xlu0 %v2098, 32
    %v2100 = vpop.permute.xlu0 %2099
    %v2102 = vsel %vm1979, %v2051, %v1980
    %2103 = vrot.lane.b32.xlu0 %v2102, 64
    %v2104 = vpop.permute.xlu0 %2103
    %v2106 = vsel %vm1991, %v2056, %v1992
    %2107 = vrot.lane.b32.xlu0 %v2106, 96
    %v2108 = vpop.permute.xlu0 %2107
    %v2110 = vsel %vm2003, %v2061, %v2004
    %v2112 = vsel %vm1956, %v2064, %v2011
    %2113 = vrot.lane.b32.xlu0 %v2112, 32
    %v2114 = vpop.permute.xlu0 %2113
    %v2116 = vsel %vm316, %v2069, %v2022
    %2117 = vrot.lane.b32.xlu0 %v2116, 64
    %v2118 = vpop.permute.xlu0 %2117
    %v2120 = vsel %vm654, %v1964, %v2100
    %v2121 = vsel %vm1818, %v2120, %v2104
    %v2122 = vsel %vm2083, %v2121, %v2108
    %v2123 = vsel %vm654, %v2110, %v2114
    %v2124 = vsel %vm1818, %v2123, %v2118
    %v2125 = vsel %vm2083, %v2096, 0.0
    %v2126 = vsel %vm2083, %v2124, 0.0
    %v2127 = vld [vmem:[%s31] sm:$0xff]
    %v2128 = vld [vmem:[%s31 + $0x8] sm:$0xff]
    %v2129 = vld [vmem:[%s31 + $0x10] sm:$0xff]
    %v2130 = vld [vmem:[%s31 + $0x18] sm:$0xff]
    %v2131 = vld [vmem:[%s31 + $0x20] sm:$0xff]
    %v2132 = vld [vmem:[%s31 + $0x28] sm:$0xff]
    %v2133 = vld [vmem:[%s31 + $0x30] sm:$0xff]
    %v2134 = vld [vmem:[%s31 + $0x38] sm:$0xff]
    %v2135 = vld [vmem:[%s31 + $0x40] sm:$0xff]
    %v2136 = vld [vmem:[%s31 + $0x48] sm:$0xff]
    %v2137 = vld [vmem:[%s31 + $0x50] sm:$0xff]
    %v2138 = vld [vmem:[%s31 + $0x58] sm:$0xff]
    %v2139 = vld [vmem:[%s31 + $0x60] sm:$0xff]
    %v2140 = vld [vmem:[%s31 + $0x68] sm:$0xff]
    %v2141 = vld [vmem:[%s31 + $0x70] sm:$0xff]
    %v2142 = vld [vmem:[%s31 + $0x78] sm:$0xff]
    %v2143 = vld [vmem:[%s31 + $0x80] sm:$0xff]
    %v2144 = vld [vmem:[%s31 + $0x88] sm:$0xff]
    %v2145 = vld [vmem:[%s31 + $0x90] sm:$0xff]
    %v2146 = vld [vmem:[%s31 + $0x98] sm:$0xff]
    %v2147 = vld [vmem:[%s31 + $0xa0] sm:$0xff]
    %v2148 = vld [vmem:[%s31 + $0xa8] sm:$0xff]
    %v2149 = vld [vmem:[%s31 + $0xb0] sm:$0xff]
    %v2150 = vld [vmem:[%s31 + $0xb8] sm:$0xff]
    %v2151 = vld [vmem:[%s31 + $0xc0] sm:$0xff]
    %v2152 = vld [vmem:[%s31 + $0xc8] sm:$0xff]
    %v2153 = vld [vmem:[%s31 + $0xd0] sm:$0xff]
    %v2154 = vld [vmem:[%s31 + $0xd8] sm:$0xff]
    %v2155 = vld [vmem:[%s31 + $0xe0] sm:$0xff]
    %v2156 = vld [vmem:[%s31 + $0xe8] sm:$0xff]
    %v2157 = vld [vmem:[%s31 + $0xf0] sm:$0xff]
    %v2158 = vld [vmem:[%s31 + $0xf8] sm:$0xff]
    %v2159 = vld [vmem:[%s31 + $0x100] sm:$0xff]
    %v2160 = vld [vmem:[%s31 + $0x108] sm:$0xff]
    %v2161 = vld [vmem:[%s31 + $0x110] sm:$0xff]
    %v2162 = vld [vmem:[%s31 + $0x118] sm:$0xff]
    %v2163 = vld [vmem:[%s31 + $0x120] sm:$0xff]
    %v2164 = vld [vmem:[%s31 + $0x128] sm:$0xff]
    %v2165 = vld [vmem:[%s31 + $0x130] sm:$0xff]
    %v2166 = vld [vmem:[%s31 + $0x138] sm:$0xff]
    %v2167 = vld [vmem:[%s31 + $0x140] sm:$0xff]
    %v2168 = vld [vmem:[%s31 + $0x148] sm:$0xff]
    %v2169 = vld [vmem:[%s31 + $0x150] sm:$0xff]
    %v2170 = vld [vmem:[%s31 + $0x158] sm:$0xff]
    %v2171 = vld [vmem:[%s31 + $0x160] sm:$0xff]
    %v2172 = vld [vmem:[%s31 + $0x168] sm:$0xff]
    %v2173 = vld [vmem:[%s31 + $0x170] sm:$0xff]
    %v2174 = vld [vmem:[%s31 + $0x178] sm:$0xff]
    %v2175 = vld [vmem:[%s31 + $0x180] sm:$0xff]
    %v2176 = vld [vmem:[%s31 + $0x188] sm:$0xff]
    %v2177 = vld [vmem:[%s31 + $0x190] sm:$0xff]
    %v2178 = vld [vmem:[%s31 + $0x198] sm:$0xff]
    %v2179 = vld [vmem:[%s31 + $0x1a0] sm:$0xff]
    %v2180 = vld [vmem:[%s31 + $0x1a8] sm:$0xff]
    %v2181 = vld [vmem:[%s31 + $0x1b0] sm:$0xff]
    %v2182 = vld [vmem:[%s31 + $0x1b8] sm:$0xff]
    %v2183 = vld [vmem:[%s31 + $0x1c0] sm:$0xff]
    %v2184 = vld [vmem:[%s31 + $0x1c8] sm:$0xff]
    %v2185 = vld [vmem:[%s31 + $0x1d0] sm:$0xff]
    %v2186 = vld [vmem:[%s31 + $0x1d8] sm:$0xff]
    %v2187 = vld [vmem:[%s31 + $0x1e0] sm:$0xff]
    %v2188 = vld [vmem:[%s31 + $0x1e8] sm:$0xff]
    %v2189 = vld [vmem:[%s31 + $0x1f0] sm:$0xff]
    %v2190 = vld [vmem:[%s31 + $0x1f8] sm:$0xff]
    %v2191 = vld [vmem:[%s31 + $0x200] sm:$0xff]
    %v2192 = vld [vmem:[%s31 + $0x208] sm:$0xff]
    %v2193 = vld [vmem:[%s31 + $0x210] sm:$0xff]
    %v2194 = vld [vmem:[%s31 + $0x218] sm:$0xff]
    %v2195 = vld [vmem:[%s31 + $0x220] sm:$0xff]
    %v2196 = vld [vmem:[%s31 + $0x228] sm:$0xff]
    %v2197 = vld [vmem:[%s31 + $0x230] sm:$0xff]
    %v2198 = vld [vmem:[%s31 + $0x238] sm:$0xff]
    %v2199 = vld [vmem:[%s31 + $0x240] sm:$0xff]
    %v2200 = vld [vmem:[%s31 + $0x248] sm:$0xff]
    %v2201 = vld [vmem:[%s31 + $0x250] sm:$0xff]
    %v2202 = vld [vmem:[%s31 + $0x258] sm:$0xff]
    %v2203 = vld [vmem:[%s31 + $0x260] sm:$0xff]
    %v2204 = vld [vmem:[%s31 + $0x268] sm:$0xff]
    %v2205 = vld [vmem:[%s31 + $0x270] sm:$0xff]
    %v2206 = vld [vmem:[%s31 + $0x278] sm:$0xff]
    %v2207 = vld [vmem:[%s31 + $0x280] sm:$0xff]
    %v2208 = vld [vmem:[%s31 + $0x288] sm:$0xff]
    %v2209 = vld [vmem:[%s31 + $0x290] sm:$0xff]
    %v2210 = vld [vmem:[%s31 + $0x298] sm:$0xff]
    %v2211 = vld [vmem:[%s31 + $0x2a0] sm:$0xff]
    %v2212 = vld [vmem:[%s31 + $0x2a8] sm:$0xff]
    %v2213 = vld [vmem:[%s31 + $0x2b0] sm:$0xff]
    %v2214 = vld [vmem:[%s31 + $0x2b8] sm:$0xff]
    %v2215 = vld [vmem:[%s31 + $0x2c0] sm:$0xff]
    %v2216 = vld [vmem:[%s31 + $0x2c8] sm:$0xff]
    %v2217 = vld [vmem:[%s31 + $0x2d0] sm:$0xff]
    %v2218 = vld [vmem:[%s31 + $0x2d8] sm:$0xff]
    %v2219 = vld [vmem:[%s31 + $0x2e0] sm:$0xff]
    %v2220 = vld [vmem:[%s31 + $0x2e8] sm:$0xff]
    %v2221 = vld [vmem:[%s31 + $0x2f0] sm:$0xff]
    %v2222 = vld [vmem:[%s31 + $0x2f8] sm:$0xff]
    %s2223 = sld [smem:[#allocation2]]
    %v2224 = vstv %s2223
    %2225 = vmatprep.subr.mxu0 0.0
    %2226 = vmatpush1.msra.mxu0 %v2142
    %2227 = vmatprep.subr.mxu0 0.0
    %2228 = vmatpush1.msra.mxu0 %v2141
    %2229 = vmatprep.subr.mxu0 0.0
    %2230 = vmatpush1.msra.mxu0 %v2140
    %2231 = vmatprep.subr.mxu0 0.0
    %2232 = vmatpush1.msra.mxu0 %v2139
    %2233 = vmatprep.subr.mxu0 0.0
    %2234 = vmatpush1.msra.mxu0 %v2138
    %2235 = vmatprep.subr.mxu0 0.0
    %2236 = vmatpush1.msra.mxu0 %v2137
    %2237 = vmatprep.subr.mxu0 0.0
    %2238 = vmatpush1.msra.mxu0 %v2136
    %2239 = vmatprep.subr.mxu0 0.0
    %2240 = vmatpush1.msra.mxu0 %v2135
    %2241 = vmatprep.subr.mxu0 0.0
    %2242 = vmatpush1.msra.mxu0 %v2134
    %2243 = vmatprep.subr.mxu0 0.0
    %2244 = vmatpush1.msra.mxu0 %v2133
    %2245 = vmatprep.subr.mxu0 0.0
    %2246 = vmatpush1.msra.mxu0 %v2132
    %2247 = vmatprep.subr.mxu0 0.0
    %2248 = vmatpush1.msra.mxu0 %v2131
    %2249 = vmatprep.subr.mxu0 0.0
    %2250 = vmatpush1.msra.mxu0 %v2130
    %2251 = vmatprep.subr.mxu0 0.0
    %2252 = vmatpush1.msra.mxu0 %v2129
    %2253 = vmatprep.subr.mxu0 0.0
    %2254 = vmatpush1.msra.mxu0 %v2128
    %2255 = vmatprep.subr.mxu0 0.0
    %2256 = vmatpush1.msra.mxu0 %v2127
    %2257 = vmatprep.subr.mxu0 0.0
    %2258 = vmatpush2.msra.mxu0 %v2158
    %2259 = vmatprep.subr.mxu0 0.0
    %2260 = vmatpush2.msra.mxu0 %v2157
    %2261 = vmatprep.subr.mxu0 0.0
    %2262 = vmatpush2.msra.mxu0 %v2156
    %2263 = vmatprep.subr.mxu0 0.0
    %2264 = vmatpush2.msra.mxu0 %v2155
    %2265 = vmatprep.subr.mxu0 0.0
    %2266 = vmatpush2.msra.mxu0 %v2154
    %2267 = vmatprep.subr.mxu0 0.0
    %2268 = vmatpush2.msra.mxu0 %v2153
    %2269 = vmatprep.subr.mxu0 0.0
    %2270 = vmatpush2.msra.mxu0 %v2152
    %2271 = vmatprep.subr.mxu0 0.0
    %2272 = vmatpush2.msra.mxu0 %v2151
    %2273 = vmatprep.subr.mxu0 0.0
    %2274 = vmatpush2.msra.mxu0 %v2150
    %2275 = vmatprep.subr.mxu0 0.0
    %2276 = vmatpush2.msra.mxu0 %v2149
    %2277 = vmatprep.subr.mxu0 0.0
    %2278 = vmatpush2.msra.mxu0 %v2148
    %2279 = vmatprep.subr.mxu0 0.0
    %2280 = vmatpush2.msra.mxu0 %v2147
    %2281 = vmatprep.subr.mxu0 0.0
    %2282 = vmatpush2.msra.mxu0 %v2146
    %2283 = vmatprep.subr.mxu0 0.0
    %2284 = vmatpush2.msra.mxu0 %v2145
    %2285 = vmatprep.subr.mxu0 0.0
    %2286 = vmatpush2.msra.mxu0 %v2144
    %2287 = vmatprep.subr.mxu0 0.0
    %2288 = vmatpush2.msra.mxu0 %v2143
    %2289 = vmatprep.mubr.f32.mxu0 %v2090
    %2290 = vmatmul.mubr.f32.gmra.mxu0 %v2084
    %v2291 = vpop.f32.mrf.mxu0
    %v2292 = vadd.f32 %v2224, %v2291
    %v2293 = vpop.f32.mrf.mxu0
    %2294 = vmatprep.mubr.f32.mxu0 %v2091
    %2295 = vmatmul.mubr.f32.gmra.mxu0 %v2085
    %v2296 = vpop.f32.mrf.mxu0
    %v2297 = vadd.f32 %v2224, %v2296
    %v2298 = vpop.f32.mrf.mxu0
    %2299 = vdwg.mxu0
    %2300 = vmatprep.subr.mxu0 0.0
    %2301 = vmatpush1.msra.mxu0 %v2174
    %2302 = vmatprep.subr.mxu0 0.0
    %2303 = vmatpush1.msra.mxu0 %v2173
    %2304 = vmatprep.subr.mxu0 0.0
    %2305 = vmatpush1.msra.mxu0 %v2172
    %2306 = vmatprep.subr.mxu0 0.0
    %2307 = vmatpush1.msra.mxu0 %v2171
    %2308 = vmatprep.subr.mxu0 0.0
    %2309 = vmatpush1.msra.mxu0 %v2170
    %2310 = vmatprep.subr.mxu0 0.0
    %2311 = vmatpush1.msra.mxu0 %v2169
    %2312 = vmatprep.subr.mxu0 0.0
    %2313 = vmatpush1.msra.mxu0 %v2168
    %2314 = vmatprep.subr.mxu0 0.0
    %2315 = vmatpush1.msra.mxu0 %v2167
    %2316 = vmatprep.subr.mxu0 0.0
    %2317 = vmatpush1.msra.mxu0 %v2166
    %2318 = vmatprep.subr.mxu0 0.0
    %2319 = vmatpush1.msra.mxu0 %v2165
    %2320 = vmatprep.subr.mxu0 0.0
    %2321 = vmatpush1.msra.mxu0 %v2164
    %2322 = vmatprep.subr.mxu0 0.0
    %2323 = vmatpush1.msra.mxu0 %v2163
    %2324 = vmatprep.subr.mxu0 0.0
    %2325 = vmatpush1.msra.mxu0 %v2162
    %2326 = vmatprep.subr.mxu0 0.0
    %2327 = vmatpush1.msra.mxu0 %v2161
    %2328 = vmatprep.subr.mxu0 0.0
    %2329 = vmatpush1.msra.mxu0 %v2160
    %2330 = vmatprep.subr.mxu0 0.0
    %2331 = vmatpush1.msra.mxu0 %v2159
    %2332 = vmatprep.subr.mxu0 0.0
    %2333 = vmatpush2.msra.mxu0 %v2190
    %2334 = vmatprep.subr.mxu0 0.0
    %2335 = vmatpush2.msra.mxu0 %v2189
    %2336 = vmatprep.subr.mxu0 0.0
    %2337 = vmatpush2.msra.mxu0 %v2188
    %2338 = vmatprep.subr.mxu0 0.0
    %2339 = vmatpush2.msra.mxu0 %v2187
    %2340 = vmatprep.subr.mxu0 0.0
    %2341 = vmatpush2.msra.mxu0 %v2186
    %2342 = vmatprep.subr.mxu0 0.0
    %2343 = vmatpush2.msra.mxu0 %v2185
    %2344 = vmatprep.subr.mxu0 0.0
    %2345 = vmatpush2.msra.mxu0 %v2184
    %2346 = vmatprep.subr.mxu0 0.0
    %2347 = vmatpush2.msra.mxu0 %v2183
    %2348 = vmatprep.subr.mxu0 0.0
    %2349 = vmatpush2.msra.mxu0 %v2182
    %2350 = vmatprep.subr.mxu0 0.0
    %2351 = vmatpush2.msra.mxu0 %v2181
    %2352 = vmatprep.subr.mxu0 0.0
    %2353 = vmatpush2.msra.mxu0 %v2180
    %2354 = vmatprep.subr.mxu0 0.0
    %2355 = vmatpush2.msra.mxu0 %v2179
    %2356 = vmatprep.subr.mxu0 0.0
    %2357 = vmatpush2.msra.mxu0 %v2178
    %2358 = vmatprep.subr.mxu0 0.0
    %2359 = vmatpush2.msra.mxu0 %v2177
    %2360 = vmatprep.subr.mxu0 0.0
    %2361 = vmatpush2.msra.mxu0 %v2176
    %2362 = vmatprep.subr.mxu0 0.0
    %2363 = vmatpush2.msra.mxu0 %v2175
    %2364 = vmatprep.mubr.f32.mxu0 %v2091
    %2365 = vmatmul.mubr.f32.gmra.mxu0 %v2085
    %v2366 = vpop.f32.mrf.mxu0
    %v2367 = vadd.f32 %v2292, %v2366
    %v2368 = vpop.f32.mrf.mxu0
    %2369 = vmatprep.mubr.f32.mxu0 %v2097
    %2370 = vmatmul.mubr.f32.gmra.mxu0 %v2094
    %v2371 = vpop.f32.mrf.mxu0
    %v2372 = vadd.f32 %v2297, %v2371
    %v2373 = vpop.f32.mrf.mxu0
    %2374 = vdwg.mxu0
    %2375 = vmatprep.subr.mxu0 0.0
    %2376 = vmatpush1.msra.mxu0 %v2206
    %2377 = vmatprep.subr.mxu0 0.0
    %2378 = vmatpush1.msra.mxu0 %v2205
    %2379 = vmatprep.subr.mxu0 0.0
    %2380 = vmatpush1.msra.mxu0 %v2204
    %2381 = vmatprep.subr.mxu0 0.0
    %2382 = vmatpush1.msra.mxu0 %v2203
    %2383 = vmatprep.subr.mxu0 0.0
    %2384 = vmatpush1.msra.mxu0 %v2202
    %2385 = vmatprep.subr.mxu0 0.0
    %2386 = vmatpush1.msra.mxu0 %v2201
    %2387 = vmatprep.subr.mxu0 0.0
    %2388 = vmatpush1.msra.mxu0 %v2200
    %2389 = vmatprep.subr.mxu0 0.0
    %2390 = vmatpush1.msra.mxu0 %v2199
    %2391 = vmatprep.subr.mxu0 0.0
    %2392 = vmatpush1.msra.mxu0 %v2198
    %2393 = vmatprep.subr.mxu0 0.0
    %2394 = vmatpush1.msra.mxu0 %v2197
    %2395 = vmatprep.subr.mxu0 0.0
    %2396 = vmatpush1.msra.mxu0 %v2196
    %2397 = vmatprep.subr.mxu0 0.0
    %2398 = vmatpush1.msra.mxu0 %v2195
    %2399 = vmatprep.subr.mxu0 0.0
    %2400 = vmatpush1.msra.mxu0 %v2194
    %2401 = vmatprep.subr.mxu0 0.0
    %2402 = vmatpush1.msra.mxu0 %v2193
    %2403 = vmatprep.subr.mxu0 0.0
    %2404 = vmatpush1.msra.mxu0 %v2192
    %2405 = vmatprep.subr.mxu0 0.0
    %2406 = vmatpush1.msra.mxu0 %v2191
    %2407 = vmatprep.subr.mxu0 0.0
    %2408 = vmatpush2.msra.mxu0 %v2222
    %2409 = vmatprep.subr.mxu0 0.0
    %2410 = vmatpush2.msra.mxu0 %v2221
    %2411 = vmatprep.subr.mxu0 0.0
    %2412 = vmatpush2.msra.mxu0 %v2220
    %2413 = vmatprep.subr.mxu0 0.0
    %2414 = vmatpush2.msra.mxu0 %v2219
    %2415 = vmatprep.subr.mxu0 0.0
    %2416 = vmatpush2.msra.mxu0 %v2218
    %2417 = vmatprep.subr.mxu0 0.0
    %2418 = vmatpush2.msra.mxu0 %v2217
    %2419 = vmatprep.subr.mxu0 0.0
    %2420 = vmatpush2.msra.mxu0 %v2216
    %2421 = vmatprep.subr.mxu0 0.0
    %2422 = vmatpush2.msra.mxu0 %v2215
    %2423 = vmatprep.subr.mxu0 0.0
    %2424 = vmatpush2.msra.mxu0 %v2214
    %2425 = vmatprep.subr.mxu0 0.0
    %2426 = vmatpush2.msra.mxu0 %v2213
    %2427 = vmatprep.subr.mxu0 0.0
    %2428 = vmatpush2.msra.mxu0 %v2212
    %2429 = vmatprep.subr.mxu0 0.0
    %2430 = vmatpush2.msra.mxu0 %v2211
    %2431 = vmatprep.subr.mxu0 0.0
    %2432 = vmatpush2.msra.mxu0 %v2210
    %2433 = vmatprep.subr.mxu0 0.0
    %2434 = vmatpush2.msra.mxu0 %v2209
    %2435 = vmatprep.subr.mxu0 0.0
    %2436 = vmatpush2.msra.mxu0 %v2208
    %2437 = vmatprep.subr.mxu0 0.0
    %2438 = vmatpush2.msra.mxu0 %v2207
    %2439 = vmatprep.mubr.f32.mxu0 %v2125
    %2440 = vmatmul.mubr.f32.gmra.mxu0 %v2094
    %v2441 = vpop.f32.mrf.mxu0
    %v2442 = vadd.f32 %v2367, %v2441
    %v2443 = vpop.f32.mrf.mxu0
    %2444 = vmatprep.mubr.f32.mxu0 %v2126
    %2445 = vmatmul.mubr.f32.gmra.mxu0 %v2122
    %v2446 = vpop.f32.mrf.mxu0
    %v2447 = vadd.f32 %v2372, %v2446
    %v2448 = vpop.f32.mrf.mxu0
    %2449 = vdwg.mxu0
    %v2450 = vmax.f32 %v2442, 0.0
    %v2451 = vmax.f32 %v2447, 0.0
    %v2454 = vrot.slane %v2450, 5
    %v2455 = vrot.slane %v2451, 5
    %v2456 = vsel %vm1956, %v2454, %v2455
    %v2460 = vsel %vm1956, 0.0, %v2454
    %v2461 = vsel %vm1956, %v2455, 0.0
    %v2463 = vrot.slane %v2460, 1
    %v2464 = vsel %vm1967, %v1968, %v2463
    %v2465 = vrot.slane %v2456, 1
    %v2466 = vsel %vm1967, %v2463, %v2465
    %2467 = vrot.lane.b32.xlu0 %v2464, 32
    %v2468 = vpop.permute.xlu0 %2467
    %2469 = vrot.lane.b32.xlu0 %v2466, 32
    %v2470 = vpop.permute.xlu0 %2469
    %v2473 = vrot.slane %v2460, 2
    %v2474 = vsel %vm1979, %v1980, %v2473
    %v2475 = vrot.slane %v2456, 2
    %v2476 = vsel %vm1979, %v2473, %v2475
    %2477 = vrot.lane.b32.xlu0 %v2474, 64
    %v2478 = vpop.permute.xlu0 %2477
    %2479 = vrot.lane.b32.xlu0 %v2476, 64
    %v2480 = vpop.permute.xlu0 %2479
    %v2483 = vrot.slane %v2460, 3
    %v2484 = vsel %vm1991, %v1992, %v2483
    %v2485 = vrot.slane %v2456, 3
    %v2486 = vsel %vm1991, %v2483, %v2485
    %2487 = vrot.lane.b32.xlu0 %v2484, 96
    %v2488 = vpop.permute.xlu0 %2487
    %2489 = vrot.lane.b32.xlu0 %v2486, 96
    %v2490 = vpop.permute.xlu0 %2489
    %v2493 = vrot.slane %v2460, 4
    %v2494 = vsel %vm2003, %v2004, %v2493
    %v2495 = vrot.slane %v2456, 4
    %v2496 = vsel %vm2003, %v2493, %v2495
    %v2499 = vrot.slane %v2460, 5
    %v2500 = vsel %vm1956, %v2011, %v2499
    %v2501 = vrot.slane %v2456, 5
    %v2502 = vsel %vm1956, %v2499, %v2501
    %2503 = vrot.lane.b32.xlu0 %v2500, 32
    %v2504 = vpop.permute.xlu0 %2503
    %2505 = vrot.lane.b32.xlu0 %v2502, 32
    %v2506 = vpop.permute.xlu0 %2505
    %v2509 = vrot.slane %v2460, 6
    %v2510 = vsel %vm316, %v2022, %v2509
    %v2511 = vrot.slane %v2456, 6
    %v2512 = vsel %vm316, %v2509, %v2511
    %2513 = vrot.lane.b32.xlu0 %v2510, 64
    %v2514 = vpop.permute.xlu0 %2513
    %2515 = vrot.lane.b32.xlu0 %v2512, 64
    %v2516 = vpop.permute.xlu0 %2515
    %v2519 = vrot.slane %v2460, 7
    %v2520 = vsel %vm2033, %v2034, %v2519
    %v2521 = vrot.slane %v2456, 7
    %v2522 = vsel %vm2033, %v2519, %v2521
    %2523 = vrot.lane.b32.xlu0 %v2520, 96
    %v2524 = vpop.permute.xlu0 %2523
    %2525 = vrot.lane.b32.xlu0 %v2522, 96
    %v2526 = vpop.permute.xlu0 %2525
    %v2530 = vrot.slane %v2461, 1
    %v2531 = vsel %vm1967, %v2465, %v2530
    %2532 = vrot.lane.b32.xlu0 %v2531, 32
    %v2533 = vpop.permute.xlu0 %2532
    %v2535 = vrot.slane %v2461, 2
    %v2536 = vsel %vm1979, %v2475, %v2535
    %2537 = vrot.lane.b32.xlu0 %v2536, 64
    %v2538 = vpop.permute.xlu0 %2537
    %v2540 = vrot.slane %v2461, 3
    %v2541 = vsel %vm1991, %v2485, %v2540
    %2542 = vrot.lane.b32.xlu0 %v2541, 96
    %v2543 = vpop.permute.xlu0 %2542
    %v2545 = vrot.slane %v2461, 4
    %v2546 = vsel %vm2003, %v2495, %v2545
    %v2548 = vrot.slane %v2461, 5
    %v2549 = vsel %vm1956, %v2501, %v2548
    %2550 = vrot.lane.b32.xlu0 %v2549, 32
    %v2551 = vpop.permute.xlu0 %2550
    %v2553 = vrot.slane %v2461, 6
    %v2554 = vsel %vm316, %v2511, %v2553
    %2555 = vrot.lane.b32.xlu0 %v2554, 64
    %v2556 = vpop.permute.xlu0 %2555
    %v2558 = vrot.slane %v2461, 7
    %v2559 = vsel %vm2033, %v2521, %v2558
    %2560 = vrot.lane.b32.xlu0 %v2559, 96
    %v2561 = vpop.permute.xlu0 %2560
    %v2563 = vsel %vm654, 0.0, %v2468
    %v2564 = vsel %vm654, %v2460, %v2470
    %v2565 = vsel %vm1818, %v2563, %v2478
    %v2566 = vsel %vm1818, %v2564, %v2480
    %v2567 = vsel %vm2083, %v2565, %v2488
    %v2568 = vsel %vm2083, %v2566, %v2490
    %v2569 = vsel %vm654, %v2494, %v2504
    %v2570 = vsel %vm654, %v2496, %v2506
    %v2571 = vsel %vm1818, %v2569, %v2514
    %v2572 = vsel %vm1818, %v2570, %v2516
    %v2573 = vsel %vm2083, %v2571, %v2524
    %v2574 = vsel %vm2083, %v2572, %v2526
    %v2575 = vsel %vm654, %v2456, %v2533
    %v2576 = vsel %vm1818, %v2575, %v2538
    %v2577 = vsel %vm2083, %v2576, %v2543
    %v2578 = vsel %vm654, %v2546, %v2551
    %v2579 = vsel %vm1818, %v2578, %v2556
    %v2580 = vsel %vm2083, %v2579, %v2561
    %v2581 = vsel %vm1967, %v2530, %v1968
    %2582 = vrot.lane.b32.xlu0 %v2581, 32
    %v2583 = vpop.permute.xlu0 %2582
    %v2585 = vsel %vm1979, %v2535, %v1980
    %2586 = vrot.lane.b32.xlu0 %v2585, 64
    %v2587 = vpop.permute.xlu0 %2586
    %v2589 = vsel %vm1991, %v2540, %v1992
    %2590 = vrot.lane.b32.xlu0 %v2589, 96
    %v2591 = vpop.permute.xlu0 %2590
    %v2593 = vsel %vm2003, %v2545, %v2004
    %v2595 = vsel %vm1956, %v2548, %v2011
    %2596 = vrot.lane.b32.xlu0 %v2595, 32
    %v2597 = vpop.permute.xlu0 %2596
    %v2599 = vsel %vm316, %v2553, %v2022
    %2600 = vrot.lane.b32.xlu0 %v2599, 64
    %v2601 = vpop.permute.xlu0 %2600
    %v2603 = vsel %vm654, %v2461, %v2583
    %v2604 = vsel %vm1818, %v2603, %v2587
    %v2605 = vsel %vm2083, %v2604, %v2591
    %v2606 = vsel %vm654, %v2593, %v2597
    %v2607 = vsel %vm1818, %v2606, %v2601
    %v2608 = vsel %vm2083, %v2579, 0.0
    %v2609 = vsel %vm2083, %v2607, 0.0
    %s2610 = scalar_lea.vmem %s31, 768
    %v2611 = vld [vmem:[%s2610] sm:$0xff]
    %v2612 = vld [vmem:[%s2610 + $0x8] sm:$0xff]
    %v2613 = vld [vmem:[%s2610 + $0x10] sm:$0xff]
    %v2614 = vld [vmem:[%s2610 + $0x18] sm:$0xff]
    %v2615 = vld [vmem:[%s2610 + $0x20] sm:$0xff]
    %v2616 = vld [vmem:[%s2610 + $0x28] sm:$0xff]
    %v2617 = vld [vmem:[%s2610 + $0x30] sm:$0xff]
    %v2618 = vld [vmem:[%s2610 + $0x38] sm:$0xff]
    %v2619 = vld [vmem:[%s2610 + $0x40] sm:$0xff]
    %v2620 = vld [vmem:[%s2610 + $0x48] sm:$0xff]
    %v2621 = vld [vmem:[%s2610 + $0x50] sm:$0xff]
    %v2622 = vld [vmem:[%s2610 + $0x58] sm:$0xff]
    %v2623 = vld [vmem:[%s2610 + $0x60] sm:$0xff]
    %v2624 = vld [vmem:[%s2610 + $0x68] sm:$0xff]
    %v2625 = vld [vmem:[%s2610 + $0x70] sm:$0xff]
    %v2626 = vld [vmem:[%s2610 + $0x78] sm:$0xff]
    %v2627 = vld [vmem:[%s2610 + $0x80] sm:$0xff]
    %v2628 = vld [vmem:[%s2610 + $0x88] sm:$0xff]
    %v2629 = vld [vmem:[%s2610 + $0x90] sm:$0xff]
    %v2630 = vld [vmem:[%s2610 + $0x98] sm:$0xff]
    %v2631 = vld [vmem:[%s2610 + $0xa0] sm:$0xff]
    %v2632 = vld [vmem:[%s2610 + $0xa8] sm:$0xff]
    %v2633 = vld [vmem:[%s2610 + $0xb0] sm:$0xff]
    %v2634 = vld [vmem:[%s2610 + $0xb8] sm:$0xff]
    %v2635 = vld [vmem:[%s2610 + $0xc0] sm:$0xff]
    %v2636 = vld [vmem:[%s2610 + $0xc8] sm:$0xff]
    %v2637 = vld [vmem:[%s2610 + $0xd0] sm:$0xff]
    %v2638 = vld [vmem:[%s2610 + $0xd8] sm:$0xff]
    %v2639 = vld [vmem:[%s2610 + $0xe0] sm:$0xff]
    %v2640 = vld [vmem:[%s2610 + $0xe8] sm:$0xff]
    %v2641 = vld [vmem:[%s2610 + $0xf0] sm:$0xff]
    %v2642 = vld [vmem:[%s2610 + $0xf8] sm:$0xff]
    %v2643 = vld [vmem:[%s2610 + $0x100] sm:$0xff]
    %v2644 = vld [vmem:[%s2610 + $0x108] sm:$0xff]
    %v2645 = vld [vmem:[%s2610 + $0x110] sm:$0xff]
    %v2646 = vld [vmem:[%s2610 + $0x118] sm:$0xff]
    %v2647 = vld [vmem:[%s2610 + $0x120] sm:$0xff]
    %v2648 = vld [vmem:[%s2610 + $0x128] sm:$0xff]
    %v2649 = vld [vmem:[%s2610 + $0x130] sm:$0xff]
    %v2650 = vld [vmem:[%s2610 + $0x138] sm:$0xff]
    %v2651 = vld [vmem:[%s2610 + $0x140] sm:$0xff]
    %v2652 = vld [vmem:[%s2610 + $0x148] sm:$0xff]
    %v2653 = vld [vmem:[%s2610 + $0x150] sm:$0xff]
    %v2654 = vld [vmem:[%s2610 + $0x158] sm:$0xff]
    %v2655 = vld [vmem:[%s2610 + $0x160] sm:$0xff]
    %v2656 = vld [vmem:[%s2610 + $0x168] sm:$0xff]
    %v2657 = vld [vmem:[%s2610 + $0x170] sm:$0xff]
    %v2658 = vld [vmem:[%s2610 + $0x178] sm:$0xff]
    %v2659 = vld [vmem:[%s2610 + $0x180] sm:$0xff]
    %v2660 = vld [vmem:[%s2610 + $0x188] sm:$0xff]
    %v2661 = vld [vmem:[%s2610 + $0x190] sm:$0xff]
    %v2662 = vld [vmem:[%s2610 + $0x198] sm:$0xff]
    %v2663 = vld [vmem:[%s2610 + $0x1a0] sm:$0xff]
    %v2664 = vld [vmem:[%s2610 + $0x1a8] sm:$0xff]
    %v2665 = vld [vmem:[%s2610 + $0x1b0] sm:$0xff]
    %v2666 = vld [vmem:[%s2610 + $0x1b8] sm:$0xff]
    %v2667 = vld [vmem:[%s2610 + $0x1c0] sm:$0xff]
    %v2668 = vld [vmem:[%s2610 + $0x1c8] sm:$0xff]
    %v2669 = vld [vmem:[%s2610 + $0x1d0] sm:$0xff]
    %v2670 = vld [vmem:[%s2610 + $0x1d8] sm:$0xff]
    %v2671 = vld [vmem:[%s2610 + $0x1e0] sm:$0xff]
    %v2672 = vld [vmem:[%s2610 + $0x1e8] sm:$0xff]
    %v2673 = vld [vmem:[%s2610 + $0x1f0] sm:$0xff]
    %v2674 = vld [vmem:[%s2610 + $0x1f8] sm:$0xff]
    %v2675 = vld [vmem:[%s2610 + $0x200] sm:$0xff]
    %v2676 = vld [vmem:[%s2610 + $0x208] sm:$0xff]
    %v2677 = vld [vmem:[%s2610 + $0x210] sm:$0xff]
    %v2678 = vld [vmem:[%s2610 + $0x218] sm:$0xff]
    %v2679 = vld [vmem:[%s2610 + $0x220] sm:$0xff]
    %v2680 = vld [vmem:[%s2610 + $0x228] sm:$0xff]
    %v2681 = vld [vmem:[%s2610 + $0x230] sm:$0xff]
    %v2682 = vld [vmem:[%s2610 + $0x238] sm:$0xff]
    %v2683 = vld [vmem:[%s2610 + $0x240] sm:$0xff]
    %v2684 = vld [vmem:[%s2610 + $0x248] sm:$0xff]
    %v2685 = vld [vmem:[%s2610 + $0x250] sm:$0xff]
    %v2686 = vld [vmem:[%s2610 + $0x258] sm:$0xff]
    %v2687 = vld [vmem:[%s2610 + $0x260] sm:$0xff]
    %v2688 = vld [vmem:[%s2610 + $0x268] sm:$0xff]
    %v2689 = vld [vmem:[%s2610 + $0x270] sm:$0xff]
    %v2690 = vld [vmem:[%s2610 + $0x278] sm:$0xff]
    %v2691 = vld [vmem:[%s2610 + $0x280] sm:$0xff]
    %v2692 = vld [vmem:[%s2610 + $0x288] sm:$0xff]
    %v2693 = vld [vmem:[%s2610 + $0x290] sm:$0xff]
    %v2694 = vld [vmem:[%s2610 + $0x298] sm:$0xff]
    %v2695 = vld [vmem:[%s2610 + $0x2a0] sm:$0xff]
    %v2696 = vld [vmem:[%s2610 + $0x2a8] sm:$0xff]
    %v2697 = vld [vmem:[%s2610 + $0x2b0] sm:$0xff]
    %v2698 = vld [vmem:[%s2610 + $0x2b8] sm:$0xff]
    %v2699 = vld [vmem:[%s2610 + $0x2c0] sm:$0xff]
    %v2700 = vld [vmem:[%s2610 + $0x2c8] sm:$0xff]
    %v2701 = vld [vmem:[%s2610 + $0x2d0] sm:$0xff]
    %v2702 = vld [vmem:[%s2610 + $0x2d8] sm:$0xff]
    %v2703 = vld [vmem:[%s2610 + $0x2e0] sm:$0xff]
    %v2704 = vld [vmem:[%s2610 + $0x2e8] sm:$0xff]
    %v2705 = vld [vmem:[%s2610 + $0x2f0] sm:$0xff]
    %v2706 = vld [vmem:[%s2610 + $0x2f8] sm:$0xff]
    %s2707 = sld [smem:[#allocation2 + $0x1]]
    %v2708 = vstv %s2707
    %2709 = vmatprep.subr.mxu0 0.0
    %2710 = vmatpush1.msra.mxu0 %v2626
    %2711 = vmatprep.subr.mxu0 0.0
    %2712 = vmatpush1.msra.mxu0 %v2625
    %2713 = vmatprep.subr.mxu0 0.0
    %2714 = vmatpush1.msra.mxu0 %v2624
    %2715 = vmatprep.subr.mxu0 0.0
    %2716 = vmatpush1.msra.mxu0 %v2623
    %2717 = vmatprep.subr.mxu0 0.0
    %2718 = vmatpush1.msra.mxu0 %v2622
    %2719 = vmatprep.subr.mxu0 0.0
    %2720 = vmatpush1.msra.mxu0 %v2621
    %2721 = vmatprep.subr.mxu0 0.0
    %2722 = vmatpush1.msra.mxu0 %v2620
    %2723 = vmatprep.subr.mxu0 0.0
    %2724 = vmatpush1.msra.mxu0 %v2619
    %2725 = vmatprep.subr.mxu0 0.0
    %2726 = vmatpush1.msra.mxu0 %v2618
    %2727 = vmatprep.subr.mxu0 0.0
    %2728 = vmatpush1.msra.mxu0 %v2617
    %2729 = vmatprep.subr.mxu0 0.0
    %2730 = vmatpush1.msra.mxu0 %v2616
    %2731 = vmatprep.subr.mxu0 0.0
    %2732 = vmatpush1.msra.mxu0 %v2615
    %2733 = vmatprep.subr.mxu0 0.0
    %2734 = vmatpush1.msra.mxu0 %v2614
    %2735 = vmatprep.subr.mxu0 0.0
    %2736 = vmatpush1.msra.mxu0 %v2613
    %2737 = vmatprep.subr.mxu0 0.0
    %2738 = vmatpush1.msra.mxu0 %v2612
    %2739 = vmatprep.subr.mxu0 0.0
    %2740 = vmatpush1.msra.mxu0 %v2611
    %2741 = vmatprep.subr.mxu0 0.0
    %2742 = vmatpush2.msra.mxu0 %v2642
    %2743 = vmatprep.subr.mxu0 0.0
    %2744 = vmatpush2.msra.mxu0 %v2641
    %2745 = vmatprep.subr.mxu0 0.0
    %2746 = vmatpush2.msra.mxu0 %v2640
    %2747 = vmatprep.subr.mxu0 0.0
    %2748 = vmatpush2.msra.mxu0 %v2639
    %2749 = vmatprep.subr.mxu0 0.0
    %2750 = vmatpush2.msra.mxu0 %v2638
    %2751 = vmatprep.subr.mxu0 0.0
    %2752 = vmatpush2.msra.mxu0 %v2637
    %2753 = vmatprep.subr.mxu0 0.0
    %2754 = vmatpush2.msra.mxu0 %v2636
    %2755 = vmatprep.subr.mxu0 0.0
    %2756 = vmatpush2.msra.mxu0 %v2635
    %2757 = vmatprep.subr.mxu0 0.0
    %2758 = vmatpush2.msra.mxu0 %v2634
    %2759 = vmatprep.subr.mxu0 0.0
    %2760 = vmatpush2.msra.mxu0 %v2633
    %2761 = vmatprep.subr.mxu0 0.0
    %2762 = vmatpush2.msra.mxu0 %v2632
    %2763 = vmatprep.subr.mxu0 0.0
    %2764 = vmatpush2.msra.mxu0 %v2631
    %2765 = vmatprep.subr.mxu0 0.0
    %2766 = vmatpush2.msra.mxu0 %v2630
    %2767 = vmatprep.subr.mxu0 0.0
    %2768 = vmatpush2.msra.mxu0 %v2629
    %2769 = vmatprep.subr.mxu0 0.0
    %2770 = vmatpush2.msra.mxu0 %v2628
    %2771 = vmatprep.subr.mxu0 0.0
    %2772 = vmatpush2.msra.mxu0 %v2627
    %2773 = vmatprep.mubr.f32.mxu0 %v2573
    %2774 = vmatmul.mubr.f32.gmra.mxu0 %v2567
    %v2775 = vpop.f32.mrf.mxu0
    %v2776 = vadd.f32 %v2708, %v2775
    %v2777 = vpop.f32.mrf.mxu0
    %2778 = vmatprep.mubr.f32.mxu0 %v2574
    %2779 = vmatmul.mubr.f32.gmra.mxu0 %v2568
    %v2780 = vpop.f32.mrf.mxu0
    %v2781 = vadd.f32 %v2708, %v2780
    %v2782 = vpop.f32.mrf.mxu0
    %2783 = vdwg.mxu0
    %2784 = vmatprep.subr.mxu0 0.0
    %2785 = vmatpush1.msra.mxu0 %v2658
    %2786 = vmatprep.subr.mxu0 0.0
    %2787 = vmatpush1.msra.mxu0 %v2657
    %2788 = vmatprep.subr.mxu0 0.0
    %2789 = vmatpush1.msra.mxu0 %v2656
    %2790 = vmatprep.subr.mxu0 0.0
    %2791 = vmatpush1.msra.mxu0 %v2655
    %2792 = vmatprep.subr.mxu0 0.0
    %2793 = vmatpush1.msra.mxu0 %v2654
    %2794 = vmatprep.subr.mxu0 0.0
    %2795 = vmatpush1.msra.mxu0 %v2653
    %2796 = vmatprep.subr.mxu0 0.0
    %2797 = vmatpush1.msra.mxu0 %v2652
    %2798 = vmatprep.subr.mxu0 0.0
    %2799 = vmatpush1.msra.mxu0 %v2651
    %2800 = vmatprep.subr.mxu0 0.0
    %2801 = vmatpush1.msra.mxu0 %v2650
    %2802 = vmatprep.subr.mxu0 0.0
    %2803 = vmatpush1.msra.mxu0 %v2649
    %2804 = vmatprep.subr.mxu0 0.0
    %2805 = vmatpush1.msra.mxu0 %v2648
    %2806 = vmatprep.subr.mxu0 0.0
    %2807 = vmatpush1.msra.mxu0 %v2647
    %2808 = vmatprep.subr.mxu0 0.0
    %2809 = vmatpush1.msra.mxu0 %v2646
    %2810 = vmatprep.subr.mxu0 0.0
    %2811 = vmatpush1.msra.mxu0 %v2645
    %2812 = vmatprep.subr.mxu0 0.0
    %2813 = vmatpush1.msra.mxu0 %v2644
    %2814 = vmatprep.subr.mxu0 0.0
    %2815 = vmatpush1.msra.mxu0 %v2643
    %2816 = vmatprep.subr.mxu0 0.0
    %2817 = vmatpush2.msra.mxu0 %v2674
    %2818 = vmatprep.subr.mxu0 0.0
    %2819 = vmatpush2.msra.mxu0 %v2673
    %2820 = vmatprep.subr.mxu0 0.0
    %2821 = vmatpush2.msra.mxu0 %v2672
    %2822 = vmatprep.subr.mxu0 0.0
    %2823 = vmatpush2.msra.mxu0 %v2671
    %2824 = vmatprep.subr.mxu0 0.0
    %2825 = vmatpush2.msra.mxu0 %v2670
    %2826 = vmatprep.subr.mxu0 0.0
    %2827 = vmatpush2.msra.mxu0 %v2669
    %2828 = vmatprep.subr.mxu0 0.0
    %2829 = vmatpush2.msra.mxu0 %v2668
    %2830 = vmatprep.subr.mxu0 0.0
    %2831 = vmatpush2.msra.mxu0 %v2667
    %2832 = vmatprep.subr.mxu0 0.0
    %2833 = vmatpush2.msra.mxu0 %v2666
    %2834 = vmatprep.subr.mxu0 0.0
    %2835 = vmatpush2.msra.mxu0 %v2665
    %2836 = vmatprep.subr.mxu0 0.0
    %2837 = vmatpush2.msra.mxu0 %v2664
    %2838 = vmatprep.subr.mxu0 0.0
    %2839 = vmatpush2.msra.mxu0 %v2663
    %2840 = vmatprep.subr.mxu0 0.0
    %2841 = vmatpush2.msra.mxu0 %v2662
    %2842 = vmatprep.subr.mxu0 0.0
    %2843 = vmatpush2.msra.mxu0 %v2661
    %2844 = vmatprep.subr.mxu0 0.0
    %2845 = vmatpush2.msra.mxu0 %v2660
    %2846 = vmatprep.subr.mxu0 0.0
    %2847 = vmatpush2.msra.mxu0 %v2659
    %2848 = vmatprep.mubr.f32.mxu0 %v2574
    %2849 = vmatmul.mubr.f32.gmra.mxu0 %v2568
    %v2850 = vpop.f32.mrf.mxu0
    %v2851 = vadd.f32 %v2776, %v2850
    %v2852 = vpop.f32.mrf.mxu0
    %2853 = vmatprep.mubr.f32.mxu0 %v2580
    %2854 = vmatmul.mubr.f32.gmra.mxu0 %v2577
    %v2855 = vpop.f32.mrf.mxu0
    %v2856 = vadd.f32 %v2781, %v2855
    %v2857 = vpop.f32.mrf.mxu0
    %2858 = vdwg.mxu0
    %2859 = vmatprep.subr.mxu0 0.0
    %2860 = vmatpush1.msra.mxu0 %v2690
    %2861 = vmatprep.subr.mxu0 0.0
    %2862 = vmatpush1.msra.mxu0 %v2689
    %2863 = vmatprep.subr.mxu0 0.0
    %2864 = vmatpush1.msra.mxu0 %v2688
    %2865 = vmatprep.subr.mxu0 0.0
    %2866 = vmatpush1.msra.mxu0 %v2687
    %2867 = vmatprep.subr.mxu0 0.0
    %2868 = vmatpush1.msra.mxu0 %v2686
    %2869 = vmatprep.subr.mxu0 0.0
    %2870 = vmatpush1.msra.mxu0 %v2685
    %2871 = vmatprep.subr.mxu0 0.0
    %2872 = vmatpush1.msra.mxu0 %v2684
    %2873 = vmatprep.subr.mxu0 0.0
    %2874 = vmatpush1.msra.mxu0 %v2683
    %2875 = vmatprep.subr.mxu0 0.0
    %2876 = vmatpush1.msra.mxu0 %v2682
    %2877 = vmatprep.subr.mxu0 0.0
    %2878 = vmatpush1.msra.mxu0 %v2681
    %2879 = vmatprep.subr.mxu0 0.0
    %2880 = vmatpush1.msra.mxu0 %v2680
    %2881 = vmatprep.subr.mxu0 0.0
    %2882 = vmatpush1.msra.mxu0 %v2679
    %2883 = vmatprep.subr.mxu0 0.0
    %2884 = vmatpush1.msra.mxu0 %v2678
    %2885 = vmatprep.subr.mxu0 0.0
    %2886 = vmatpush1.msra.mxu0 %v2677
    %2887 = vmatprep.subr.mxu0 0.0
    %2888 = vmatpush1.msra.mxu0 %v2676
    %2889 = vmatprep.subr.mxu0 0.0
    %2890 = vmatpush1.msra.mxu0 %v2675
    %2891 = vmatprep.subr.mxu0 0.0
    %2892 = vmatpush2.msra.mxu0 %v2706
    %2893 = vmatprep.subr.mxu0 0.0
    %2894 = vmatpush2.msra.mxu0 %v2705
    %2895 = vmatprep.subr.mxu0 0.0
    %2896 = vmatpush2.msra.mxu0 %v2704
    %2897 = vmatprep.subr.mxu0 0.0
    %2898 = vmatpush2.msra.mxu0 %v2703
    %2899 = vmatprep.subr.mxu0 0.0
    %2900 = vmatpush2.msra.mxu0 %v2702
    %2901 = vmatprep.subr.mxu0 0.0
    %2902 = vmatpush2.msra.mxu0 %v2701
    %2903 = vmatprep.subr.mxu0 0.0
    %2904 = vmatpush2.msra.mxu0 %v2700
    %2905 = vmatprep.subr.mxu0 0.0
    %2906 = vmatpush2.msra.mxu0 %v2699
    %2907 = vmatprep.subr.mxu0 0.0
    %2908 = vmatpush2.msra.mxu0 %v2698
    %2909 = vmatprep.subr.mxu0 0.0
    %2910 = vmatpush2.msra.mxu0 %v2697
    %2911 = vmatprep.subr.mxu0 0.0
    %2912 = vmatpush2.msra.mxu0 %v2696
    %2913 = vmatprep.subr.mxu0 0.0
    %2914 = vmatpush2.msra.mxu0 %v2695
    %2915 = vmatprep.subr.mxu0 0.0
    %2916 = vmatpush2.msra.mxu0 %v2694
    %2917 = vmatprep.subr.mxu0 0.0
    %2918 = vmatpush2.msra.mxu0 %v2693
    %2919 = vmatprep.subr.mxu0 0.0
    %2920 = vmatpush2.msra.mxu0 %v2692
    %2921 = vmatprep.subr.mxu0 0.0
    %2922 = vmatpush2.msra.mxu0 %v2691
    %2923 = vmatprep.mubr.f32.mxu0 %v2608
    %2924 = vmatmul.mubr.f32.gmra.mxu0 %v2577
    %v2925 = vpop.f32.mrf.mxu0
    %v2926 = vadd.f32 %v2851, %v2925
    %v2927 = vpop.f32.mrf.mxu0
    %2928 = vmatprep.mubr.f32.mxu0 %v2609
    %2929 = vmatmul.mubr.f32.gmra.mxu0 %v2605
    %v2930 = vpop.f32.mrf.mxu0
    %v2931 = vadd.f32 %v2856, %v2930
    %v2932 = vpop.f32.mrf.mxu0
    %2933 = vdwg.mxu0
    %v2934 = vmax.f32 %v2926, 0.0
    %v2935 = vmax.f32 %v2931, 0.0
    %v2938 = vrot.slane %v2934, 5
    %v2939 = vrot.slane %v2935, 5
    %v2940 = vsel %vm1956, %v2938, %v2939
    %v2944 = vsel %vm1956, 0.0, %v2938
    %v2945 = vsel %vm1956, %v2939, 0.0
    %v2947 = vrot.slane %v2944, 1
    %v2948 = vsel %vm1967, %v1968, %v2947
    %v2949 = vrot.slane %v2940, 1
    %v2950 = vsel %vm1967, %v2947, %v2949
    %2951 = vrot.lane.b32.xlu0 %v2948, 32
    %v2952 = vpop.permute.xlu0 %2951
    %2953 = vrot.lane.b32.xlu0 %v2950, 32
    %v2954 = vpop.permute.xlu0 %2953
    %v2957 = vrot.slane %v2944, 2
    %v2958 = vsel %vm1979, %v1980, %v2957
    %v2959 = vrot.slane %v2940, 2
    %v2960 = vsel %vm1979, %v2957, %v2959
    %2961 = vrot.lane.b32.xlu0 %v2958, 64
    %v2962 = vpop.permute.xlu0 %2961
    %2963 = vrot.lane.b32.xlu0 %v2960, 64
    %v2964 = vpop.permute.xlu0 %2963
    %v2967 = vrot.slane %v2944, 3
    %v2968 = vsel %vm1991, %v1992, %v2967
    %v2969 = vrot.slane %v2940, 3
    %v2970 = vsel %vm1991, %v2967, %v2969
    %2971 = vrot.lane.b32.xlu0 %v2968, 96
    %v2972 = vpop.permute.xlu0 %2971
    %2973 = vrot.lane.b32.xlu0 %v2970, 96
    %v2974 = vpop.permute.xlu0 %2973
    %v2977 = vrot.slane %v2944, 4
    %v2978 = vsel %vm2003, %v2004, %v2977
    %v2979 = vrot.slane %v2940, 4
    %v2980 = vsel %vm2003, %v2977, %v2979
    %v2983 = vrot.slane %v2944, 5
    %v2984 = vsel %vm1956, %v2011, %v2983
    %v2985 = vrot.slane %v2940, 5
    %v2986 = vsel %vm1956, %v2983, %v2985
    %2987 = vrot.lane.b32.xlu0 %v2984, 32
    %v2988 = vpop.permute.xlu0 %2987
    %2989 = vrot.lane.b32.xlu0 %v2986, 32
    %v2990 = vpop.permute.xlu0 %2989
    %v2993 = vrot.slane %v2944, 6
    %v2994 = vsel %vm316, %v2022, %v2993
    %v2995 = vrot.slane %v2940, 6
    %v2996 = vsel %vm316, %v2993, %v2995
    %2997 = vrot.lane.b32.xlu0 %v2994, 64
    %v2998 = vpop.permute.xlu0 %2997
    %2999 = vrot.lane.b32.xlu0 %v2996, 64
    %v3000 = vpop.permute.xlu0 %2999
    %v3003 = vrot.slane %v2944, 7
    %v3004 = vsel %vm2033, %v2034, %v3003
    %v3005 = vrot.slane %v2940, 7
    %v3006 = vsel %vm2033, %v3003, %v3005
    %3007 = vrot.lane.b32.xlu0 %v3004, 96
    %v3008 = vpop.permute.xlu0 %3007
    %3009 = vrot.lane.b32.xlu0 %v3006, 96
    %v3010 = vpop.permute.xlu0 %3009
    %v3014 = vrot.slane %v2945, 1
    %v3015 = vsel %vm1967, %v2949, %v3014
    %3016 = vrot.lane.b32.xlu0 %v3015, 32
    %v3017 = vpop.permute.xlu0 %3016
    %v3019 = vrot.slane %v2945, 2
    %v3020 = vsel %vm1979, %v2959, %v3019
    %3021 = vrot.lane.b32.xlu0 %v3020, 64
    %v3022 = vpop.permute.xlu0 %3021
    %v3024 = vrot.slane %v2945, 3
    %v3025 = vsel %vm1991, %v2969, %v3024
    %3026 = vrot.lane.b32.xlu0 %v3025, 96
    %v3027 = vpop.permute.xlu0 %3026
    %v3029 = vrot.slane %v2945, 4
    %v3030 = vsel %vm2003, %v2979, %v3029
    %v3032 = vrot.slane %v2945, 5
    %v3033 = vsel %vm1956, %v2985, %v3032
    %3034 = vrot.lane.b32.xlu0 %v3033, 32
    %v3035 = vpop.permute.xlu0 %3034
    %v3037 = vrot.slane %v2945, 6
    %v3038 = vsel %vm316, %v2995, %v3037
    %3039 = vrot.lane.b32.xlu0 %v3038, 64
    %v3040 = vpop.permute.xlu0 %3039
    %v3042 = vrot.slane %v2945, 7
    %v3043 = vsel %vm2033, %v3005, %v3042
    %3044 = vrot.lane.b32.xlu0 %v3043, 96
    %v3045 = vpop.permute.xlu0 %3044
    %v3047 = vsel %vm654, 0.0, %v2952
    %v3048 = vsel %vm654, %v2944, %v2954
    %v3049 = vsel %vm1818, %v3047, %v2962
    %v3050 = vsel %vm1818, %v3048, %v2964
    %v3051 = vsel %vm2083, %v3049, %v2972
    %v3052 = vsel %vm2083, %v3050, %v2974
    %v3053 = vsel %vm654, %v2978, %v2988
    %v3054 = vsel %vm654, %v2980, %v2990
    %v3055 = vsel %vm1818, %v3053, %v2998
    %v3056 = vsel %vm1818, %v3054, %v3000
    %v3057 = vsel %vm2083, %v3055, %v3008
    %v3058 = vsel %vm2083, %v3056, %v3010
    %v3059 = vsel %vm654, %v2940, %v3017
    %v3060 = vsel %vm1818, %v3059, %v3022
    %v3061 = vsel %vm2083, %v3060, %v3027
    %v3062 = vsel %vm654, %v3030, %v3035
    %v3063 = vsel %vm1818, %v3062, %v3040
    %v3064 = vsel %vm2083, %v3063, %v3045
    %v3065 = vsel %vm1967, %v3014, %v1968
    %3066 = vrot.lane.b32.xlu0 %v3065, 32
    %v3067 = vpop.permute.xlu0 %3066
    %v3069 = vsel %vm1979, %v3019, %v1980
    %3070 = vrot.lane.b32.xlu0 %v3069, 64
    %v3071 = vpop.permute.xlu0 %3070
    %v3073 = vsel %vm1991, %v3024, %v1992
    %3074 = vrot.lane.b32.xlu0 %v3073, 96
    %v3075 = vpop.permute.xlu0 %3074
    %v3077 = vsel %vm2003, %v3029, %v2004
    %v3079 = vsel %vm1956, %v3032, %v2011
    %3080 = vrot.lane.b32.xlu0 %v3079, 32
    %v3081 = vpop.permute.xlu0 %3080
    %v3083 = vsel %vm316, %v3037, %v2022
    %3084 = vrot.lane.b32.xlu0 %v3083, 64
    %v3085 = vpop.permute.xlu0 %3084
    %v3087 = vsel %vm654, %v2945, %v3067
    %v3088 = vsel %vm1818, %v3087, %v3071
    %v3089 = vsel %vm2083, %v3088, %v3075
    %v3090 = vsel %vm654, %v3077, %v3081
    %v3091 = vsel %vm1818, %v3090, %v3085
    %v3092 = vsel %vm2083, %v3063, 0.0
    %v3093 = vsel %vm2083, %v3091, 0.0
    %s3094 = scalar_lea.vmem %s31, 1536
    %v3095 = vld [vmem:[%s3094] sm:$0xff]
    %v3096 = vld [vmem:[%s3094 + $0x8] sm:$0xff]
    %v3097 = vld [vmem:[%s3094 + $0x10] sm:$0xff]
    %v3098 = vld [vmem:[%s3094 + $0x18] sm:$0xff]
    %v3099 = vld [vmem:[%s3094 + $0x20] sm:$0xff]
    %v3100 = vld [vmem:[%s3094 + $0x28] sm:$0xff]
    %v3101 = vld [vmem:[%s3094 + $0x30] sm:$0xff]
    %v3102 = vld [vmem:[%s3094 + $0x38] sm:$0xff]
    %v3103 = vld [vmem:[%s3094 + $0x40] sm:$0xff]
    %v3104 = vld [vmem:[%s3094 + $0x48] sm:$0xff]
    %v3105 = vld [vmem:[%s3094 + $0x50] sm:$0xff]
    %v3106 = vld [vmem:[%s3094 + $0x58] sm:$0xff]
    %v3107 = vld [vmem:[%s3094 + $0x60] sm:$0xff]
    %v3108 = vld [vmem:[%s3094 + $0x68] sm:$0xff]
    %v3109 = vld [vmem:[%s3094 + $0x70] sm:$0xff]
    %v3110 = vld [vmem:[%s3094 + $0x78] sm:$0xff]
    %v3111 = vld [vmem:[%s3094 + $0x80] sm:$0xff]
    %v3112 = vld [vmem:[%s3094 + $0x88] sm:$0xff]
    %v3113 = vld [vmem:[%s3094 + $0x90] sm:$0xff]
    %v3114 = vld [vmem:[%s3094 + $0x98] sm:$0xff]
    %v3115 = vld [vmem:[%s3094 + $0xa0] sm:$0xff]
    %v3116 = vld [vmem:[%s3094 + $0xa8] sm:$0xff]
    %v3117 = vld [vmem:[%s3094 + $0xb0] sm:$0xff]
    %v3118 = vld [vmem:[%s3094 + $0xb8] sm:$0xff]
    %v3119 = vld [vmem:[%s3094 + $0xc0] sm:$0xff]
    %v3120 = vld [vmem:[%s3094 + $0xc8] sm:$0xff]
    %v3121 = vld [vmem:[%s3094 + $0xd0] sm:$0xff]
    %v3122 = vld [vmem:[%s3094 + $0xd8] sm:$0xff]
    %v3123 = vld [vmem:[%s3094 + $0xe0] sm:$0xff]
    %v3124 = vld [vmem:[%s3094 + $0xe8] sm:$0xff]
    %v3125 = vld [vmem:[%s3094 + $0xf0] sm:$0xff]
    %v3126 = vld [vmem:[%s3094 + $0xf8] sm:$0xff]
    %v3127 = vld [vmem:[%s3094 + $0x100] sm:$0xff]
    %v3128 = vld [vmem:[%s3094 + $0x108] sm:$0xff]
    %v3129 = vld [vmem:[%s3094 + $0x110] sm:$0xff]
    %v3130 = vld [vmem:[%s3094 + $0x118] sm:$0xff]
    %v3131 = vld [vmem:[%s3094 + $0x120] sm:$0xff]
    %v3132 = vld [vmem:[%s3094 + $0x128] sm:$0xff]
    %v3133 = vld [vmem:[%s3094 + $0x130] sm:$0xff]
    %v3134 = vld [vmem:[%s3094 + $0x138] sm:$0xff]
    %v3135 = vld [vmem:[%s3094 + $0x140] sm:$0xff]
    %v3136 = vld [vmem:[%s3094 + $0x148] sm:$0xff]
    %v3137 = vld [vmem:[%s3094 + $0x150] sm:$0xff]
    %v3138 = vld [vmem:[%s3094 + $0x158] sm:$0xff]
    %v3139 = vld [vmem:[%s3094 + $0x160] sm:$0xff]
    %v3140 = vld [vmem:[%s3094 + $0x168] sm:$0xff]
    %v3141 = vld [vmem:[%s3094 + $0x170] sm:$0xff]
    %v3142 = vld [vmem:[%s3094 + $0x178] sm:$0xff]
    %v3143 = vld [vmem:[%s3094 + $0x180] sm:$0xff]
    %v3144 = vld [vmem:[%s3094 + $0x188] sm:$0xff]
    %v3145 = vld [vmem:[%s3094 + $0x190] sm:$0xff]
    %v3146 = vld [vmem:[%s3094 + $0x198] sm:$0xff]
    %v3147 = vld [vmem:[%s3094 + $0x1a0] sm:$0xff]
    %v3148 = vld [vmem:[%s3094 + $0x1a8] sm:$0xff]
    %v3149 = vld [vmem:[%s3094 + $0x1b0] sm:$0xff]
    %v3150 = vld [vmem:[%s3094 + $0x1b8] sm:$0xff]
    %v3151 = vld [vmem:[%s3094 + $0x1c0] sm:$0xff]
    %v3152 = vld [vmem:[%s3094 + $0x1c8] sm:$0xff]
    %v3153 = vld [vmem:[%s3094 + $0x1d0] sm:$0xff]
    %v3154 = vld [vmem:[%s3094 + $0x1d8] sm:$0xff]
    %v3155 = vld [vmem:[%s3094 + $0x1e0] sm:$0xff]
    %v3156 = vld [vmem:[%s3094 + $0x1e8] sm:$0xff]
    %v3157 = vld [vmem:[%s3094 + $0x1f0] sm:$0xff]
    %v3158 = vld [vmem:[%s3094 + $0x1f8] sm:$0xff]
    %v3159 = vld [vmem:[%s3094 + $0x200] sm:$0xff]
    %v3160 = vld [vmem:[%s3094 + $0x208] sm:$0xff]
    %v3161 = vld [vmem:[%s3094 + $0x210] sm:$0xff]
    %v3162 = vld [vmem:[%s3094 + $0x218] sm:$0xff]
    %v3163 = vld [vmem:[%s3094 + $0x220] sm:$0xff]
    %v3164 = vld [vmem:[%s3094 + $0x228] sm:$0xff]
    %v3165 = vld [vmem:[%s3094 + $0x230] sm:$0xff]
    %v3166 = vld [vmem:[%s3094 + $0x238] sm:$0xff]
    %v3167 = vld [vmem:[%s3094 + $0x240] sm:$0xff]
    %v3168 = vld [vmem:[%s3094 + $0x248] sm:$0xff]
    %v3169 = vld [vmem:[%s3094 + $0x250] sm:$0xff]
    %v3170 = vld [vmem:[%s3094 + $0x258] sm:$0xff]
    %v3171 = vld [vmem:[%s3094 + $0x260] sm:$0xff]
    %v3172 = vld [vmem:[%s3094 + $0x268] sm:$0xff]
    %v3173 = vld [vmem:[%s3094 + $0x270] sm:$0xff]
    %v3174 = vld [vmem:[%s3094 + $0x278] sm:$0xff]
    %v3175 = vld [vmem:[%s3094 + $0x280] sm:$0xff]
    %v3176 = vld [vmem:[%s3094 + $0x288] sm:$0xff]
    %v3177 = vld [vmem:[%s3094 + $0x290] sm:$0xff]
    %v3178 = vld [vmem:[%s3094 + $0x298] sm:$0xff]
    %v3179 = vld [vmem:[%s3094 + $0x2a0] sm:$0xff]
    %v3180 = vld [vmem:[%s3094 + $0x2a8] sm:$0xff]
    %v3181 = vld [vmem:[%s3094 + $0x2b0] sm:$0xff]
    %v3182 = vld [vmem:[%s3094 + $0x2b8] sm:$0xff]
    %v3183 = vld [vmem:[%s3094 + $0x2c0] sm:$0xff]
    %v3184 = vld [vmem:[%s3094 + $0x2c8] sm:$0xff]
    %v3185 = vld [vmem:[%s3094 + $0x2d0] sm:$0xff]
    %v3186 = vld [vmem:[%s3094 + $0x2d8] sm:$0xff]
    %v3187 = vld [vmem:[%s3094 + $0x2e0] sm:$0xff]
    %v3188 = vld [vmem:[%s3094 + $0x2e8] sm:$0xff]
    %v3189 = vld [vmem:[%s3094 + $0x2f0] sm:$0xff]
    %v3190 = vld [vmem:[%s3094 + $0x2f8] sm:$0xff]
    %s3191 = sld [smem:[#allocation2 + $0x2]]
    %v3192 = vstv %s3191
    %3193 = vmatprep.subr.mxu0 0.0
    %3194 = vmatpush1.msra.mxu0 %v3110
    %3195 = vmatprep.subr.mxu0 0.0
    %3196 = vmatpush1.msra.mxu0 %v3109
    %3197 = vmatprep.subr.mxu0 0.0
    %3198 = vmatpush1.msra.mxu0 %v3108
    %3199 = vmatprep.subr.mxu0 0.0
    %3200 = vmatpush1.msra.mxu0 %v3107
    %3201 = vmatprep.subr.mxu0 0.0
    %3202 = vmatpush1.msra.mxu0 %v3106
    %3203 = vmatprep.subr.mxu0 0.0
    %3204 = vmatpush1.msra.mxu0 %v3105
    %3205 = vmatprep.subr.mxu0 0.0
    %3206 = vmatpush1.msra.mxu0 %v3104
    %3207 = vmatprep.subr.mxu0 0.0
    %3208 = vmatpush1.msra.mxu0 %v3103
    %3209 = vmatprep.subr.mxu0 0.0
    %3210 = vmatpush1.msra.mxu0 %v3102
    %3211 = vmatprep.subr.mxu0 0.0
    %3212 = vmatpush1.msra.mxu0 %v3101
    %3213 = vmatprep.subr.mxu0 0.0
    %3214 = vmatpush1.msra.mxu0 %v3100
    %3215 = vmatprep.subr.mxu0 0.0
    %3216 = vmatpush1.msra.mxu0 %v3099
    %3217 = vmatprep.subr.mxu0 0.0
    %3218 = vmatpush1.msra.mxu0 %v3098
    %3219 = vmatprep.subr.mxu0 0.0
    %3220 = vmatpush1.msra.mxu0 %v3097
    %3221 = vmatprep.subr.mxu0 0.0
    %3222 = vmatpush1.msra.mxu0 %v3096
    %3223 = vmatprep.subr.mxu0 0.0
    %3224 = vmatpush1.msra.mxu0 %v3095
    %3225 = vmatprep.subr.mxu0 0.0
    %3226 = vmatpush2.msra.mxu0 %v3126
    %3227 = vmatprep.subr.mxu0 0.0
    %3228 = vmatpush2.msra.mxu0 %v3125
    %3229 = vmatprep.subr.mxu0 0.0
    %3230 = vmatpush2.msra.mxu0 %v3124
    %3231 = vmatprep.subr.mxu0 0.0
    %3232 = vmatpush2.msra.mxu0 %v3123
    %3233 = vmatprep.subr.mxu0 0.0
    %3234 = vmatpush2.msra.mxu0 %v3122
    %3235 = vmatprep.subr.mxu0 0.0
    %3236 = vmatpush2.msra.mxu0 %v3121
    %3237 = vmatprep.subr.mxu0 0.0
    %3238 = vmatpush2.msra.mxu0 %v3120
    %3239 = vmatprep.subr.mxu0 0.0
    %3240 = vmatpush2.msra.mxu0 %v3119
    %3241 = vmatprep.subr.mxu0 0.0
    %3242 = vmatpush2.msra.mxu0 %v3118
    %3243 = vmatprep.subr.mxu0 0.0
    %3244 = vmatpush2.msra.mxu0 %v3117
    %3245 = vmatprep.subr.mxu0 0.0
    %3246 = vmatpush2.msra.mxu0 %v3116
    %3247 = vmatprep.subr.mxu0 0.0
    %3248 = vmatpush2.msra.mxu0 %v3115
    %3249 = vmatprep.subr.mxu0 0.0
    %3250 = vmatpush2.msra.mxu0 %v3114
    %3251 = vmatprep.subr.mxu0 0.0
    %3252 = vmatpush2.msra.mxu0 %v3113
    %3253 = vmatprep.subr.mxu0 0.0
    %3254 = vmatpush2.msra.mxu0 %v3112
    %3255 = vmatprep.subr.mxu0 0.0
    %3256 = vmatpush2.msra.mxu0 %v3111
    %3257 = vmatprep.mubr.f32.mxu0 %v3057
    %3258 = vmatmul.mubr.f32.gmra.mxu0 %v3051
    %v3259 = vpop.f32.mrf.mxu0
    %v3260 = vadd.f32 %v3192, %v3259
    %v3261 = vpop.f32.mrf.mxu0
    %3262 = vmatprep.mubr.f32.mxu0 %v3058
    %3263 = vmatmul.mubr.f32.gmra.mxu0 %v3052
    %v3264 = vpop.f32.mrf.mxu0
    %v3265 = vadd.f32 %v3192, %v3264
    %v3266 = vpop.f32.mrf.mxu0
    %3267 = vdwg.mxu0
    %3268 = vmatprep.subr.mxu0 0.0
    %3269 = vmatpush1.msra.mxu0 %v3142
    %3270 = vmatprep.subr.mxu0 0.0
    %3271 = vmatpush1.msra.mxu0 %v3141
    %3272 = vmatprep.subr.mxu0 0.0
    %3273 = vmatpush1.msra.mxu0 %v3140
    %3274 = vmatprep.subr.mxu0 0.0
    %3275 = vmatpush1.msra.mxu0 %v3139
    %3276 = vmatprep.subr.mxu0 0.0
    %3277 = vmatpush1.msra.mxu0 %v3138
    %3278 = vmatprep.subr.mxu0 0.0
    %3279 = vmatpush1.msra.mxu0 %v3137
    %3280 = vmatprep.subr.mxu0 0.0
    %3281 = vmatpush1.msra.mxu0 %v3136
    %3282 = vmatprep.subr.mxu0 0.0
    %3283 = vmatpush1.msra.mxu0 %v3135
    %3284 = vmatprep.subr.mxu0 0.0
    %3285 = vmatpush1.msra.mxu0 %v3134
    %3286 = vmatprep.subr.mxu0 0.0
    %3287 = vmatpush1.msra.mxu0 %v3133
    %3288 = vmatprep.subr.mxu0 0.0
    %3289 = vmatpush1.msra.mxu0 %v3132
    %3290 = vmatprep.subr.mxu0 0.0
    %3291 = vmatpush1.msra.mxu0 %v3131
    %3292 = vmatprep.subr.mxu0 0.0
    %3293 = vmatpush1.msra.mxu0 %v3130
    %3294 = vmatprep.subr.mxu0 0.0
    %3295 = vmatpush1.msra.mxu0 %v3129
    %3296 = vmatprep.subr.mxu0 0.0
    %3297 = vmatpush1.msra.mxu0 %v3128
    %3298 = vmatprep.subr.mxu0 0.0
    %3299 = vmatpush1.msra.mxu0 %v3127
    %3300 = vmatprep.subr.mxu0 0.0
    %3301 = vmatpush2.msra.mxu0 %v3158
    %3302 = vmatprep.subr.mxu0 0.0
    %3303 = vmatpush2.msra.mxu0 %v3157
    %3304 = vmatprep.subr.mxu0 0.0
    %3305 = vmatpush2.msra.mxu0 %v3156
    %3306 = vmatprep.subr.mxu0 0.0
    %3307 = vmatpush2.msra.mxu0 %v3155
    %3308 = vmatprep.subr.mxu0 0.0
    %3309 = vmatpush2.msra.mxu0 %v3154
    %3310 = vmatprep.subr.mxu0 0.0
    %3311 = vmatpush2.msra.mxu0 %v3153
    %3312 = vmatprep.subr.mxu0 0.0
    %3313 = vmatpush2.msra.mxu0 %v3152
    %3314 = vmatprep.subr.mxu0 0.0
    %3315 = vmatpush2.msra.mxu0 %v3151
    %3316 = vmatprep.subr.mxu0 0.0
    %3317 = vmatpush2.msra.mxu0 %v3150
    %3318 = vmatprep.subr.mxu0 0.0
    %3319 = vmatpush2.msra.mxu0 %v3149
    %3320 = vmatprep.subr.mxu0 0.0
    %3321 = vmatpush2.msra.mxu0 %v3148
    %3322 = vmatprep.subr.mxu0 0.0
    %3323 = vmatpush2.msra.mxu0 %v3147
    %3324 = vmatprep.subr.mxu0 0.0
    %3325 = vmatpush2.msra.mxu0 %v3146
    %3326 = vmatprep.subr.mxu0 0.0
    %3327 = vmatpush2.msra.mxu0 %v3145
    %3328 = vmatprep.subr.mxu0 0.0
    %3329 = vmatpush2.msra.mxu0 %v3144
    %3330 = vmatprep.subr.mxu0 0.0
    %3331 = vmatpush2.msra.mxu0 %v3143
    %3332 = vmatprep.mubr.f32.mxu0 %v3058
    %3333 = vmatmul.mubr.f32.gmra.mxu0 %v3052
    %v3334 = vpop.f32.mrf.mxu0
    %v3335 = vadd.f32 %v3260, %v3334
    %v3336 = vpop.f32.mrf.mxu0
    %3337 = vmatprep.mubr.f32.mxu0 %v3064
    %3338 = vmatmul.mubr.f32.gmra.mxu0 %v3061
    %v3339 = vpop.f32.mrf.mxu0
    %v3340 = vadd.f32 %v3265, %v3339
    %v3341 = vpop.f32.mrf.mxu0
    %3342 = vdwg.mxu0
    %3343 = vmatprep.subr.mxu0 0.0
    %3344 = vmatpush1.msra.mxu0 %v3174
    %3345 = vmatprep.subr.mxu0 0.0
    %3346 = vmatpush1.msra.mxu0 %v3173
    %3347 = vmatprep.subr.mxu0 0.0
    %3348 = vmatpush1.msra.mxu0 %v3172
    %3349 = vmatprep.subr.mxu0 0.0
    %3350 = vmatpush1.msra.mxu0 %v3171
    %3351 = vmatprep.subr.mxu0 0.0
    %3352 = vmatpush1.msra.mxu0 %v3170
    %3353 = vmatprep.subr.mxu0 0.0
    %3354 = vmatpush1.msra.mxu0 %v3169
    %3355 = vmatprep.subr.mxu0 0.0
    %3356 = vmatpush1.msra.mxu0 %v3168
    %3357 = vmatprep.subr.mxu0 0.0
    %3358 = vmatpush1.msra.mxu0 %v3167
    %3359 = vmatprep.subr.mxu0 0.0
    %3360 = vmatpush1.msra.mxu0 %v3166
    %3361 = vmatprep.subr.mxu0 0.0
    %3362 = vmatpush1.msra.mxu0 %v3165
    %3363 = vmatprep.subr.mxu0 0.0
    %3364 = vmatpush1.msra.mxu0 %v3164
    %3365 = vmatprep.subr.mxu0 0.0
    %3366 = vmatpush1.msra.mxu0 %v3163
    %3367 = vmatprep.subr.mxu0 0.0
    %3368 = vmatpush1.msra.mxu0 %v3162
    %3369 = vmatprep.subr.mxu0 0.0
    %3370 = vmatpush1.msra.mxu0 %v3161
    %3371 = vmatprep.subr.mxu0 0.0
    %3372 = vmatpush1.msra.mxu0 %v3160
    %3373 = vmatprep.subr.mxu0 0.0
    %3374 = vmatpush1.msra.mxu0 %v3159
    %3375 = vmatprep.subr.mxu0 0.0
    %3376 = vmatpush2.msra.mxu0 %v3190
    %3377 = vmatprep.subr.mxu0 0.0
    %3378 = vmatpush2.msra.mxu0 %v3189
    %3379 = vmatprep.subr.mxu0 0.0
    %3380 = vmatpush2.msra.mxu0 %v3188
    %3381 = vmatprep.subr.mxu0 0.0
    %3382 = vmatpush2.msra.mxu0 %v3187
    %3383 = vmatprep.subr.mxu0 0.0
    %3384 = vmatpush2.msra.mxu0 %v3186
    %3385 = vmatprep.subr.mxu0 0.0
    %3386 = vmatpush2.msra.mxu0 %v3185
    %3387 = vmatprep.subr.mxu0 0.0
    %3388 = vmatpush2.msra.mxu0 %v3184
    %3389 = vmatprep.subr.mxu0 0.0
    %3390 = vmatpush2.msra.mxu0 %v3183
    %3391 = vmatprep.subr.mxu0 0.0
    %3392 = vmatpush2.msra.mxu0 %v3182
    %3393 = vmatprep.subr.mxu0 0.0
    %3394 = vmatpush2.msra.mxu0 %v3181
    %3395 = vmatprep.subr.mxu0 0.0
    %3396 = vmatpush2.msra.mxu0 %v3180
    %3397 = vmatprep.subr.mxu0 0.0
    %3398 = vmatpush2.msra.mxu0 %v3179
    %3399 = vmatprep.subr.mxu0 0.0
    %3400 = vmatpush2.msra.mxu0 %v3178
    %3401 = vmatprep.subr.mxu0 0.0
    %3402 = vmatpush2.msra.mxu0 %v3177
    %3403 = vmatprep.subr.mxu0 0.0
    %3404 = vmatpush2.msra.mxu0 %v3176
    %3405 = vmatprep.subr.mxu0 0.0
    %3406 = vmatpush2.msra.mxu0 %v3175
    %3407 = vmatprep.mubr.f32.mxu0 %v3092
    %3408 = vmatmul.mubr.f32.gmra.mxu0 %v3061
    %v3409 = vpop.f32.mrf.mxu0
    %v3410 = vadd.f32 %v3335, %v3409
    %v3411 = vpop.f32.mrf.mxu0
    %3412 = vmatprep.mubr.f32.mxu0 %v3093
    %3413 = vmatmul.mubr.f32.gmra.mxu0 %v3089
    %v3414 = vpop.f32.mrf.mxu0
    %v3415 = vadd.f32 %v3340, %v3414
    %v3416 = vpop.f32.mrf.mxu0
    %3417 = vdwg.mxu0
    %v3418 = vmax.f32 %v3410, 0.0
    %v3419 = vmax.f32 %v3415, 0.0
    %v3420 = vld [vmem:[%s67] sm:$0x7]
    %v3421 = vld [vmem:[%s69] sm:$0x7]
    %v3422 = vld [vmem:[%s35] sm:$0xff]
    %v3423 = vld [vmem:[%s35 + $0x8] sm:$0x3]
    %v3424 = vld [vmem:[%s37] sm:$0x1]
    %v3425 = vld [vmem:[%s39] sm:$0xff]
    %v3426 = vld [vmem:[%s39 + $0x8] sm:$0xff]
    %v3427 = vld [vmem:[%s39 + $0x10] sm:$0xff]
    %v3428 = vld [vmem:[%s39 + $0x18] sm:$0xff]
    %v3429 = vld [vmem:[%s41] sm:$0x1]
    %v3430 = vld [vmem:[%s43] sm:$0xff]
    %v3431 = vld [vmem:[%s43 + $0x8] sm:$0xff]
    %v3432 = vld [vmem:[%s43 + $0x10] sm:$0xff]
    %v3433 = vld [vmem:[%s43 + $0x18] sm:$0xff]
    %v3434 = vld [vmem:[%s45] sm:$0x1]
    %v3435 = vld [vmem:[%s47] sm:$0xff]
    %v3436 = vld [vmem:[%s47 + $0x8] sm:$0xff]
    %v3437 = vld [vmem:[%s47 + $0x10] sm:$0xff]
    %v3438 = vld [vmem:[%s47 + $0x18] sm:$0xff]
    %v3439 = vld [vmem:[%s49] sm:$0x1]
    %v3441 = vsel %vm312, %v633, 0
    %v3444 = vsel %vm316, %v3423, 0
    %3446 = vmatprep.subr.mxu0 0.0
    %3447 = vmatpush1.msra.mxu0 0.0
    %3448 = vmatprep.subr.mxu0 0.0
    %3449 = vmatpush1.msra.mxu0 0.0
    %3450 = vmatprep.subr.mxu0 0.0
    %3451 = vmatpush1.msra.mxu0 0.0
    %3452 = vmatprep.subr.mxu0 0.0
    %3453 = vmatpush1.msra.mxu0 0.0
    %3454 = vmatprep.subr.mxu0 0.0
    %3455 = vmatpush1.msra.mxu0 0.0
    %3456 = vmatprep.subr.mxu0 0.0
    %3457 = vmatpush1.msra.mxu0 0.0
    %3458 = vmatprep.subr.mxu0 0.0
    %3459 = vmatpush1.msra.mxu0 0.0
    %3460 = vmatprep.subr.mxu0 0.0
    %3461 = vmatpush1.msra.mxu0 0.0
    %3462 = vmatprep.subr.mxu0 0.0
    %3463 = vmatpush1.msra.mxu0 0.0
    %3464 = vmatprep.subr.mxu0 0.0
    %3465 = vmatpush1.msra.mxu0 0.0
    %3466 = vmatprep.subr.mxu0 0.0
    %3467 = vmatpush1.msra.mxu0 0.0
    %3468 = vmatprep.subr.mxu0 0.0
    %3469 = vmatpush1.msra.mxu0 0.0
    %3470 = vmatprep.subr.mxu0 0.0
    %3471 = vmatpush1.msra.mxu0 0.0
    %3472 = vmatprep.subr.mxu0 0.0
    %3473 = vmatpush1.msra.mxu0 0.0
    %3474 = vmatprep.subr.mxu0 0.0
    %3475 = vmatpush1.msra.mxu0 %v3444
    %3476 = vmatprep.subr.mxu0 0.0
    %3477 = vmatpush1.msra.mxu0 %v3422
    %3478 = vmatprep.subr.mxu0 0.0
    %3479 = vmatpush2.msra.mxu0 0.0
    %3480 = vmatprep.subr.mxu0 0.0
    %3481 = vmatpush2.msra.mxu0 0.0
    %3482 = vmatprep.subr.mxu0 0.0
    %3483 = vmatpush2.msra.mxu0 0.0
    %3484 = vmatprep.subr.mxu0 0.0
    %3485 = vmatpush2.msra.mxu0 0.0
    %3486 = vmatprep.subr.mxu0 0.0
    %3487 = vmatpush2.msra.mxu0 0.0
    %3488 = vmatprep.subr.mxu0 0.0
    %3489 = vmatpush2.msra.mxu0 0.0
    %3490 = vmatprep.subr.mxu0 0.0
    %3491 = vmatpush2.msra.mxu0 0.0
    %3492 = vmatprep.subr.mxu0 0.0
    %3493 = vmatpush2.msra.mxu0 0.0
    %3494 = vmatprep.subr.mxu0 0.0
    %3495 = vmatpush2.msra.mxu0 0.0
    %3496 = vmatprep.subr.mxu0 0.0
    %3497 = vmatpush2.msra.mxu0 0.0
    %3498 = vmatprep.subr.mxu0 0.0
    %3499 = vmatpush2.msra.mxu0 0.0
    %3500 = vmatprep.subr.mxu0 0.0
    %3501 = vmatpush2.msra.mxu0 0.0
    %3502 = vmatprep.subr.mxu0 0.0
    %3503 = vmatpush2.msra.mxu0 0.0
    %3504 = vmatprep.subr.mxu0 0.0
    %3505 = vmatpush2.msra.mxu0 0.0
    %3506 = vmatprep.subr.mxu0 0.0
    %3507 = vmatpush2.msra.mxu0 0.0
    %3508 = vmatprep.subr.mxu0 0.0
    %3509 = vmatpush2.msra.mxu0 0.0
    %3510 = vmatprep.mubr.f32.mxu0 0.0
    %3511 = vmatmul.mubr.f32.gmra.mxu0 %v3441
    %v3512 = vpop.f32.mrf.mxu0
    %v3513 = vadd.f32 %v3424, %v3512
    %v3514 = vpop.f32.mrf.mxu0
    %3515 = vdwg.mxu0
    %v3517 = vsel %vm654, %v3513, 0
    %3519 = vmatprep.subr.mxu0 0.0
    %3520 = vmatpush1.msra.mxu0 0.0
    %3521 = vmatprep.subr.mxu0 0.0
    %3522 = vmatpush1.msra.mxu0 0.0
    %3523 = vmatprep.subr.mxu0 0.0
    %3524 = vmatpush1.msra.mxu0 0.0
    %3525 = vmatprep.subr.mxu0 0.0
    %3526 = vmatpush1.msra.mxu0 0.0
    %3527 = vmatprep.subr.mxu0 0.0
    %3528 = vmatpush1.msra.mxu0 0.0
    %3529 = vmatprep.subr.mxu0 0.0
    %3530 = vmatpush1.msra.mxu0 0.0
    %3531 = vmatprep.subr.mxu0 0.0
    %3532 = vmatpush1.msra.mxu0 0.0
    %3533 = vmatprep.subr.mxu0 0.0
    %3534 = vmatpush1.msra.mxu0 0.0
    %3535 = vmatprep.subr.mxu0 0.0
    %3536 = vmatpush1.msra.mxu0 0.0
    %3537 = vmatprep.subr.mxu0 0.0
    %3538 = vmatpush1.msra.mxu0 0.0
    %3539 = vmatprep.subr.mxu0 0.0
    %3540 = vmatpush1.msra.mxu0 0.0
    %3541 = vmatprep.subr.mxu0 0.0
    %3542 = vmatpush1.msra.mxu0 0.0
    %3543 = vmatprep.subr.mxu0 0.0
    %3544 = vmatpush1.msra.mxu0 %v3428
    %3545 = vmatprep.subr.mxu0 0.0
    %3546 = vmatpush1.msra.mxu0 %v3427
    %3547 = vmatprep.subr.mxu0 0.0
    %3548 = vmatpush1.msra.mxu0 %v3426
    %3549 = vmatprep.subr.mxu0 0.0
    %3550 = vmatpush1.msra.mxu0 %v3425
    %3551 = vmatprep.subr.mxu0 0.0
    %3552 = vmatpush2.msra.mxu0 0.0
    %3553 = vmatprep.subr.mxu0 0.0
    %3554 = vmatpush2.msra.mxu0 0.0
    %3555 = vmatprep.subr.mxu0 0.0
    %3556 = vmatpush2.msra.mxu0 0.0
    %3557 = vmatprep.subr.mxu0 0.0
    %3558 = vmatpush2.msra.mxu0 0.0
    %3559 = vmatprep.subr.mxu0 0.0
    %3560 = vmatpush2.msra.mxu0 0.0
    %3561 = vmatprep.subr.mxu0 0.0
    %3562 = vmatpush2.msra.mxu0 0.0
    %3563 = vmatprep.subr.mxu0 0.0
    %3564 = vmatpush2.msra.mxu0 0.0
    %3565 = vmatprep.subr.mxu0 0.0
    %3566 = vmatpush2.msra.mxu0 0.0
    %3567 = vmatprep.subr.mxu0 0.0
    %3568 = vmatpush2.msra.mxu0 0.0
    %3569 = vmatprep.subr.mxu0 0.0
    %3570 = vmatpush2.msra.mxu0 0.0
    %3571 = vmatprep.subr.mxu0 0.0
    %3572 = vmatpush2.msra.mxu0 0.0
    %3573 = vmatprep.subr.mxu0 0.0
    %3574 = vmatpush2.msra.mxu0 0.0
    %3575 = vmatprep.subr.mxu0 0.0
    %3576 = vmatpush2.msra.mxu0 0.0
    %3577 = vmatprep.subr.mxu0 0.0
    %3578 = vmatpush2.msra.mxu0 0.0
    %3579 = vmatprep.subr.mxu0 0.0
    %3580 = vmatpush2.msra.mxu0 0.0
    %3581 = vmatprep.subr.mxu0 0.0
    %3582 = vmatpush2.msra.mxu0 0.0
    %3583 = vmatprep.mubr.f32.mxu0 0.0
    %3584 = vmatmul.mubr.f32.gmra.mxu0 %v3517
    %v3585 = vpop.f32.mrf.mxu0
    %v3586 = vadd.f32 %v3429, %v3585
    %v3587 = vpop.f32.mrf.mxu0
    %3588 = vdwg.mxu0
    %v3590 = vlaneseq
    %v3591 = vshrl.u32 %v3590, 7
    %v3592 = vsub.s32 0, %v3591
    %v3593 = vrot.slane %v3434, %v3592
    %v3596 = vsel %vm654, %v3418, 0
    %v3599 = vsel %vm654, %v3419, 0
    %3601 = vmatprep.subr.mxu0 0.0
    %3602 = vmatpush1.msra.mxu0 0.0
    %3603 = vmatprep.subr.mxu0 0.0
    %3604 = vmatpush1.msra.mxu0 0.0
    %3605 = vmatprep.subr.mxu0 0.0
    %3606 = vmatpush1.msra.mxu0 0.0
    %3607 = vmatprep.subr.mxu0 0.0
    %3608 = vmatpush1.msra.mxu0 0.0
    %3609 = vmatprep.subr.mxu0 0.0
    %3610 = vmatpush1.msra.mxu0 0.0
    %3611 = vmatprep.subr.mxu0 0.0
    %3612 = vmatpush1.msra.mxu0 0.0
    %3613 = vmatprep.subr.mxu0 0.0
    %3614 = vmatpush1.msra.mxu0 0.0
    %3615 = vmatprep.subr.mxu0 0.0
    %3616 = vmatpush1.msra.mxu0 0.0
    %3617 = vmatprep.subr.mxu0 0.0
    %3618 = vmatpush1.msra.mxu0 0.0
    %3619 = vmatprep.subr.mxu0 0.0
    %3620 = vmatpush1.msra.mxu0 0.0
    %3621 = vmatprep.subr.mxu0 0.0
    %3622 = vmatpush1.msra.mxu0 0.0
    %3623 = vmatprep.subr.mxu0 0.0
    %3624 = vmatpush1.msra.mxu0 0.0
    %3625 = vmatprep.subr.mxu0 0.0
    %3626 = vmatpush1.msra.mxu0 %v3433
    %3627 = vmatprep.subr.mxu0 0.0
    %3628 = vmatpush1.msra.mxu0 %v3432
    %3629 = vmatprep.subr.mxu0 0.0
    %3630 = vmatpush1.msra.mxu0 %v3431
    %3631 = vmatprep.subr.mxu0 0.0
    %3632 = vmatpush1.msra.mxu0 %v3430
    %3633 = vmatprep.subr.mxu0 0.0
    %3634 = vmatpush2.msra.mxu0 0.0
    %3635 = vmatprep.subr.mxu0 0.0
    %3636 = vmatpush2.msra.mxu0 0.0
    %3637 = vmatprep.subr.mxu0 0.0
    %3638 = vmatpush2.msra.mxu0 0.0
    %3639 = vmatprep.subr.mxu0 0.0
    %3640 = vmatpush2.msra.mxu0 0.0
    %3641 = vmatprep.subr.mxu0 0.0
    %3642 = vmatpush2.msra.mxu0 0.0
    %3643 = vmatprep.subr.mxu0 0.0
    %3644 = vmatpush2.msra.mxu0 0.0
    %3645 = vmatprep.subr.mxu0 0.0
    %3646 = vmatpush2.msra.mxu0 0.0
    %3647 = vmatprep.subr.mxu0 0.0
    %3648 = vmatpush2.msra.mxu0 0.0
    %3649 = vmatprep.subr.mxu0 0.0
    %3650 = vmatpush2.msra.mxu0 0.0
    %3651 = vmatprep.subr.mxu0 0.0
    %3652 = vmatpush2.msra.mxu0 0.0
    %3653 = vmatprep.subr.mxu0 0.0
    %3654 = vmatpush2.msra.mxu0 0.0
    %3655 = vmatprep.subr.mxu0 0.0
    %3656 = vmatpush2.msra.mxu0 0.0
    %3657 = vmatprep.subr.mxu0 0.0
    %3658 = vmatpush2.msra.mxu0 0.0
    %3659 = vmatprep.subr.mxu0 0.0
    %3660 = vmatpush2.msra.mxu0 0.0
    %3661 = vmatprep.subr.mxu0 0.0
    %3662 = vmatpush2.msra.mxu0 0.0
    %3663 = vmatprep.subr.mxu0 0.0
    %3664 = vmatpush2.msra.mxu0 0.0
    %3665 = vmatprep.mubr.f32.mxu0 0.0
    %3666 = vmatmul.mubr.f32.gmra.mxu0 %v3596
    %v3667 = vpop.f32.mrf.mxu0
    %v3668 = vadd.f32 %v3593, %v3667
    %v3669 = vpop.f32.mrf.mxu0
    %3670 = vmatprep.mubr.f32.mxu0 0.0
    %3671 = vmatmul.mubr.f32.gmra.mxu0 %v3599
    %v3672 = vpop.f32.mrf.mxu0
    %v3673 = vadd.f32 %v3593, %v3672
    %v3674 = vpop.f32.mrf.mxu0
    %3675 = vdwg.mxu0
    %v3676 = vlaneseq
    %v3677 = vshrl.u32 %v3676, 7
    %v3678 = vsub.s32 0, %v3677
    %v3679 = vrot.slane %v3586, %v3678
    %v3680 = vmul.f32 %v3668, %v3679
    %v3681 = vmul.f32 %v3673, %v3679
    %v3682 = vsel %vm391, %v3680, 0.0
    %3683 = vadd.xlane.f32.xlu0 %v3682
    %v3684 = vpop.xlane.xlu0 %3683
    %v3685 = vsel %vm391, %v3681, 0.0
    %3686 = vadd.xlane.f32.xlu0 %v3685
    %v3687 = vpop.xlane.xlu0 %3686
    %v3688 = vmax.f32 %v3684, %v3687
    %v3689 = vrot.slane %v3688, 4
    %v3690 = vmax.f32 %v3688, %v3689
    %v3691 = vrot.slane %v3690, 2
    %v3692 = vmax.f32 %v3690, %v3691
    %v3693 = vrot.slane %v3692, 1
    %v3694 = vmax.f32 %v3692, %v3693
    %v3695 = vsub.f32 %v3684, %v3694
    %v3696 = vsub.f32 %v3687, %v3694
    %v3697 = vmul.f32 %v3695, 1.442695
    %v3698 = vpow.pop %v3697
    %v3699 = vmul.f32 %v3696, 1.442695
    %v3700 = vpow.pop %v3699
    %v3701 = vadd.f32 %v3698, %v3700
    %v3702 = vrot.slane %v3701, 4
    %v3703 = vadd.f32 %v3701, %v3702
    %v3704 = vrot.slane %v3703, 2
    %v3705 = vadd.f32 %v3703, %v3704
    %v3706 = vrot.slane %v3705, 1
    %v3707 = vadd.f32 %v3705, %v3706
    %v3708 = vrcp.pop %v3707
    %v3709 = vmul.f32 %v3698, %v3708
    %v3710 = vmul.f32 %v3700, %v3708
    %v3711 = vmul.f32 %v3709, %v3668
    %v3712 = vmul.f32 %v3710, %v3673
    %3715 = vrot.lane.b32.xlu0 %v3680, 120
    %v3716 = vpop.permute.xlu0 %3715
    %3717 = vrot.lane.b32.xlu0 %v3681, 120
    %v3718 = vpop.permute.xlu0 %3717
    %v3721 = vsel %vm391, %v3716, 0.0
    %3722 = vadd.xlane.f32.xlu0 %v3721
    %v3723 = vpop.xlane.xlu0 %3722
    %v3724 = vsel %vm391, %v3718, 0.0
    %3725 = vadd.xlane.f32.xlu0 %v3724
    %v3726 = vpop.xlane.xlu0 %3725
    %v3727 = vmax.f32 %v3723, %v3726
    %v3728 = vrot.slane %v3727, 4
    %v3729 = vmax.f32 %v3727, %v3728
    %v3730 = vrot.slane %v3729, 2
    %v3731 = vmax.f32 %v3729, %v3730
    %v3732 = vrot.slane %v3731, 1
    %v3733 = vmax.f32 %v3731, %v3732
    %v3734 = vsub.f32 %v3723, %v3733
    %v3735 = vsub.f32 %v3726, %v3733
    %v3736 = vmul.f32 %v3734, 1.442695
    %v3737 = vpow.pop %v3736
    %v3738 = vmul.f32 %v3735, 1.442695
    %v3739 = vpow.pop %v3738
    %v3740 = vadd.f32 %v3737, %v3739
    %v3741 = vrot.slane %v3740, 4
    %v3742 = vadd.f32 %v3740, %v3741
    %v3743 = vrot.slane %v3742, 2
    %v3744 = vadd.f32 %v3742, %v3743
    %v3745 = vrot.slane %v3744, 1
    %v3746 = vadd.f32 %v3744, %v3745
    %v3747 = vrcp.pop %v3746
    %v3748 = vmul.f32 %v3737, %v3747
    %v3749 = vmul.f32 %v3739, %v3747
    %v3750 = vmul.f32 %v3748, %v3668
    %v3751 = vmul.f32 %v3749, %v3673
    %3752 = vrot.lane.b32.xlu0 %v3680, 112
    %v3753 = vpop.permute.xlu0 %3752
    %3754 = vrot.lane.b32.xlu0 %v3681, 112
    %v3755 = vpop.permute.xlu0 %3754
    %v3758 = vsel %vm391, %v3753, 0.0
    %3759 = vadd.xlane.f32.xlu0 %v3758
    %v3760 = vpop.xlane.xlu0 %3759
    %v3761 = vsel %vm391, %v3755, 0.0
    %3762 = vadd.xlane.f32.xlu0 %v3761
    %v3763 = vpop.xlane.xlu0 %3762
    %v3764 = vmax.f32 %v3760, %v3763
    %v3765 = vrot.slane %v3764, 4
    %v3766 = vmax.f32 %v3764, %v3765
    %v3767 = vrot.slane %v3766, 2
    %v3768 = vmax.f32 %v3766, %v3767
    %v3769 = vrot.slane %v3768, 1
    %v3770 = vmax.f32 %v3768, %v3769
    %v3771 = vsub.f32 %v3760, %v3770
    %v3772 = vsub.f32 %v3763, %v3770
    %v3773 = vmul.f32 %v3771, 1.442695
    %v3774 = vpow.pop %v3773
    %v3775 = vmul.f32 %v3772, 1.442695
    %v3776 = vpow.pop %v3775
    %v3777 = vadd.f32 %v3774, %v3776
    %v3778 = vrot.slane %v3777, 4
    %v3779 = vadd.f32 %v3777, %v3778
    %v3780 = vrot.slane %v3779, 2
    %v3781 = vadd.f32 %v3779, %v3780
    %v3782 = vrot.slane %v3781, 1
    %v3783 = vadd.f32 %v3781, %v3782
    %v3784 = vrcp.pop %v3783
    %v3785 = vmul.f32 %v3774, %v3784
    %v3786 = vmul.f32 %v3776, %v3784
    %v3787 = vmul.f32 %v3785, %v3668
    %v3788 = vmul.f32 %v3786, %v3673
    %3789 = vrot.lane.b32.xlu0 %v3680, 104
    %v3790 = vpop.permute.xlu0 %3789
    %3791 = vrot.lane.b32.xlu0 %v3681, 104
    %v3792 = vpop.permute.xlu0 %3791
    %v3795 = vsel %vm391, %v3790, 0.0
    %3796 = vadd.xlane.f32.xlu0 %v3795
    %v3797 = vpop.xlane.xlu0 %3796
    %v3798 = vsel %vm391, %v3792, 0.0
    %3799 = vadd.xlane.f32.xlu0 %v3798
    %v3800 = vpop.xlane.xlu0 %3799
    %v3801 = vmax.f32 %v3797, %v3800
    %v3802 = vrot.slane %v3801, 4
    %v3803 = vmax.f32 %v3801, %v3802
    %v3804 = vrot.slane %v3803, 2
    %v3805 = vmax.f32 %v3803, %v3804
    %v3806 = vrot.slane %v3805, 1
    %v3807 = vmax.f32 %v3805, %v3806
    %v3808 = vsub.f32 %v3797, %v3807
    %v3809 = vsub.f32 %v3800, %v3807
    %v3810 = vmul.f32 %v3808, 1.442695
    %v3811 = vpow.pop %v3810
    %v3812 = vmul.f32 %v3809, 1.442695
    %v3813 = vpow.pop %v3812
    %v3814 = vadd.f32 %v3811, %v3813
    %v3815 = vrot.slane %v3814, 4
    %v3816 = vadd.f32 %v3814, %v3815
    %v3817 = vrot.slane %v3816, 2
    %v3818 = vadd.f32 %v3816, %v3817
    %v3819 = vrot.slane %v3818, 1
    %v3820 = vadd.f32 %v3818, %v3819
    %v3821 = vrcp.pop %v3820
    %v3822 = vmul.f32 %v3811, %v3821
    %v3823 = vmul.f32 %v3813, %v3821
    %v3824 = vmul.f32 %v3822, %v3668
    %v3825 = vmul.f32 %v3823, %v3673
    %3828 = vrot.lane.b32.xlu0 %v3711, 96
    %v3829 = vpop.permute.xlu0 %3828
    %3830 = vrot.lane.b32.xlu0 %v3712, 96
    %v3831 = vpop.permute.xlu0 %3830
    %3836 = vrot.lane.b32.xlu0 %v3750, 96
    %v3837 = vpop.permute.xlu0 %3836
    %3838 = vrot.lane.b32.xlu0 %v3751, 96
    %v3839 = vpop.permute.xlu0 %3838
    %3844 = vrot.lane.b32.xlu0 %v3787, 96
    %v3845 = vpop.permute.xlu0 %3844
    %3846 = vrot.lane.b32.xlu0 %v3788, 96
    %v3847 = vpop.permute.xlu0 %3846
    %3852 = vrot.lane.b32.xlu0 %v3824, 96
    %v3853 = vpop.permute.xlu0 %3852
    %3854 = vrot.lane.b32.xlu0 %v3825, 96
    %v3855 = vpop.permute.xlu0 %3854
    %v3858 = vsel %vm391, %v3829, %v3837
    %v3859 = vsel %vm391, %v3831, %v3839
    %v3860 = vsel %vm825, %v3858, %v3845
    %v3861 = vsel %vm825, %v3859, %v3847
    %v3862 = vsel %vm1563, %v3860, %v3853
    %v3863 = vsel %vm1563, %v3861, %v3855
    %v3865 = vlaneseq
    %v3866 = vshrl.u32 %v3865, 7
    %v3867 = vsub.s32 0, %v3866
    %v3868 = vrot.slane %v3439, %v3867
    %v3871 = vsel %vm654, %v3862, 0
    %v3874 = vsel %vm654, %v3863, 0
    %3876 = vmatprep.subr.mxu0 0.0
    %3877 = vmatpush1.msra.mxu0 0.0
    %3878 = vmatprep.subr.mxu0 0.0
    %3879 = vmatpush1.msra.mxu0 0.0
    %3880 = vmatprep.subr.mxu0 0.0
    %3881 = vmatpush1.msra.mxu0 0.0
    %3882 = vmatprep.subr.mxu0 0.0
    %3883 = vmatpush1.msra.mxu0 0.0
    %3884 = vmatprep.subr.mxu0 0.0
    %3885 = vmatpush1.msra.mxu0 0.0
    %3886 = vmatprep.subr.mxu0 0.0
    %3887 = vmatpush1.msra.mxu0 0.0
    %3888 = vmatprep.subr.mxu0 0.0
    %3889 = vmatpush1.msra.mxu0 0.0
    %3890 = vmatprep.subr.mxu0 0.0
    %3891 = vmatpush1.msra.mxu0 0.0
    %3892 = vmatprep.subr.mxu0 0.0
    %3893 = vmatpush1.msra.mxu0 0.0
    %3894 = vmatprep.subr.mxu0 0.0
    %3895 = vmatpush1.msra.mxu0 0.0
    %3896 = vmatprep.subr.mxu0 0.0
    %3897 = vmatpush1.msra.mxu0 0.0
    %3898 = vmatprep.subr.mxu0 0.0
    %3899 = vmatpush1.msra.mxu0 0.0
    %3900 = vmatprep.subr.mxu0 0.0
    %3901 = vmatpush1.msra.mxu0 %v3438
    %3902 = vmatprep.subr.mxu0 0.0
    %3903 = vmatpush1.msra.mxu0 %v3437
    %3904 = vmatprep.subr.mxu0 0.0
    %3905 = vmatpush1.msra.mxu0 %v3436
    %3906 = vmatprep.subr.mxu0 0.0
    %3907 = vmatpush1.msra.mxu0 %v3435
    %3908 = vmatprep.subr.mxu0 0.0
    %3909 = vmatpush2.msra.mxu0 0.0
    %3910 = vmatprep.subr.mxu0 0.0
    %3911 = vmatpush2.msra.mxu0 0.0
    %3912 = vmatprep.subr.mxu0 0.0
    %3913 = vmatpush2.msra.mxu0 0.0
    %3914 = vmatprep.subr.mxu0 0.0
    %3915 = vmatpush2.msra.mxu0 0.0
    %3916 = vmatprep.subr.mxu0 0.0
    %3917 = vmatpush2.msra.mxu0 0.0
    %3918 = vmatprep.subr.mxu0 0.0
    %3919 = vmatpush2.msra.mxu0 0.0
    %3920 = vmatprep.subr.mxu0 0.0
    %3921 = vmatpush2.msra.mxu0 0.0
    %3922 = vmatprep.subr.mxu0 0.0
    %3923 = vmatpush2.msra.mxu0 0.0
    %3924 = vmatprep.subr.mxu0 0.0
    %3925 = vmatpush2.msra.mxu0 0.0
    %3926 = vmatprep.subr.mxu0 0.0
    %3927 = vmatpush2.msra.mxu0 0.0
    %3928 = vmatprep.subr.mxu0 0.0
    %3929 = vmatpush2.msra.mxu0 0.0
    %3930 = vmatprep.subr.mxu0 0.0
    %3931 = vmatpush2.msra.mxu0 0.0
    %3932 = vmatprep.subr.mxu0 0.0
    %3933 = vmatpush2.msra.mxu0 0.0
    %3934 = vmatprep.subr.mxu0 0.0
    %3935 = vmatpush2.msra.mxu0 0.0
    %3936 = vmatprep.subr.mxu0 0.0
    %3937 = vmatpush2.msra.mxu0 0.0
    %3938 = vmatprep.subr.mxu0 0.0
    %3939 = vmatpush2.msra.mxu0 0.0
    %3940 = vmatprep.mubr.f32.mxu0 0.0
    %3941 = vmatmul.mubr.f32.gmra.mxu0 %v3871
    %v3942 = vpop.f32.mrf.mxu0
    %v3943 = vadd.f32 %v3868, %v3942
    %v3944 = vpop.f32.mrf.mxu0
    %3945 = vmatprep.mubr.f32.mxu0 0.0
    %3946 = vmatmul.mubr.f32.gmra.mxu0 %v3874
    %v3947 = vpop.f32.mrf.mxu0
    %v3948 = vadd.f32 %v3868, %v3947
    %v3949 = vpop.f32.mrf.mxu0
    %3950 = vdwg.mxu0
    %v3951 = vadd.f32 %v3418, %v3943
    %v3952 = vadd.f32 %v3419, %v3948
    %v3953 = vsel %vm654, %v3951, 0.0
    %3954 = vadd.xlane.f32.xlu0 %v3953
    %v3955 = vpop.xlane.xlu0 %3954
    %v3956 = vsel %vm654, %v3952, 0.0
    %3957 = vadd.xlane.f32.xlu0 %v3956
    %v3958 = vpop.xlane.xlu0 %3957
    %v3959 = vmul.f32 %v3955, %v1661
    %v3960 = vmul.f32 %v3958, %v1661
    %v3961 = vsub.f32 %v3951, %v3959
    %v3962 = vsub.f32 %v3952, %v3960
    %v3963 = vmul.f32 %v3961, %v3961
    %v3964 = vmul.f32 %v3962, %v3962
    %v3965 = vsel %vm654, %v3963, 0.0
    %3966 = vadd.xlane.f32.xlu0 %v3965
    %v3967 = vpop.xlane.xlu0 %3966
    %v3968 = vsel %vm654, %v3964, 0.0
    %3969 = vadd.xlane.f32.xlu0 %v3968
    %v3970 = vpop.xlane.xlu0 %3969
    %v3971 = vmul.f32 %v3967, %v1674
    %v3972 = vmul.f32 %v3970, %v1674
    %v3973 = vrsqrt.pop %v3971
    %v3974 = vmul.f32 %v3971, %v3973
    %vm3975 = vcmp.eq.f32.partialorder %v3971, inf
    %v3976 = vsel %vm3975, %v3971, %v3974
    %vm3977 = vcmp.eq.f32.partialorder %v3971, 0.0
    %v3978 = vand.u32 %v3971, 2147483648
    %v3979 = vsel %vm3977, %v3978, %v3976
    %v3980 = vrsqrt.pop %v3972
    %v3981 = vmul.f32 %v3972, %v3980
    %vm3982 = vcmp.eq.f32.partialorder %v3972, inf
    %v3983 = vsel %vm3982, %v3972, %v3981
    %vm3984 = vcmp.eq.f32.partialorder %v3972, 0.0
    %v3985 = vand.u32 %v3972, 2147483648
    %v3986 = vsel %vm3984, %v3985, %v3983
    %v3987 = vadd.f32 %v3979, 1e-06
    %v3988 = vadd.f32 %v3986, 1e-06
    %v3989 = vrcp.pop %v3987
    %v3990 = vrcp.pop %v3988
    %v3991 = vlaneseq
    %v3992 = vshrl.u32 %v3991, 7
    %v3993 = vsub.s32 0, %v3992
    %v3994 = vrot.slane %v3420, %v3993
    %v3995 = vmul.f32 %v3994, %v3961
    %v3996 = vmul.f32 %v3994, %v3962
    %v3997 = vmul.f32 %v3995, %v3989
    %v3998 = vmul.f32 %v3996, %v3990
    %v3999 = vlaneseq
    %v4000 = vshrl.u32 %v3999, 7
    %v4001 = vsub.s32 0, %v4000
    %v4002 = vrot.slane %v3421, %v4001
    %v4003 = vadd.f32 %v3997, %v4002
    %v4004 = vadd.f32 %v3998, %v4002
    %v4005 = vld [vmem:[%s51] sm:$0xff]
    %v4006 = vld [vmem:[%s51 + $0x8] sm:$0xff]
    %v4007 = vld [vmem:[%s51 + $0x10] sm:$0xff]
    %v4008 = vld [vmem:[%s51 + $0x18] sm:$0xff]
    %v4009 = vld [vmem:[%s53] sm:$0x1]
    %v4010 = vld [vmem:[%s55] sm:$0xff]
    %v4011 = vld [vmem:[%s55 + $0x8] sm:$0xff]
    %v4012 = vld [vmem:[%s55 + $0x10] sm:$0xff]
    %v4013 = vld [vmem:[%s55 + $0x18] sm:$0xff]
    %v4014 = vld [vmem:[%s57] sm:$0x1]
    %v4016 = vlaneseq
    %v4017 = vshrl.u32 %v4016, 7
    %v4018 = vsub.s32 0, %v4017
    %v4019 = vrot.slane %v4009, %v4018
    %v4022 = vsel %vm654, %v4003, 0
    %v4025 = vsel %vm654, %v4004, 0
    %4027 = vmatprep.subr.mxu0 0.0
    %4028 = vmatpush1.msra.mxu0 0.0
    %4029 = vmatprep.subr.mxu0 0.0
    %4030 = vmatpush1.msra.mxu0 0.0
    %4031 = vmatprep.subr.mxu0 0.0
    %4032 = vmatpush1.msra.mxu0 0.0
    %4033 = vmatprep.subr.mxu0 0.0
    %4034 = vmatpush1.msra.mxu0 0.0
    %4035 = vmatprep.subr.mxu0 0.0
    %4036 = vmatpush1.msra.mxu0 0.0
    %4037 = vmatprep.subr.mxu0 0.0
    %4038 = vmatpush1.msra.mxu0 0.0
    %4039 = vmatprep.subr.mxu0 0.0
    %4040 = vmatpush1.msra.mxu0 0.0
    %4041 = vmatprep.subr.mxu0 0.0
    %4042 = vmatpush1.msra.mxu0 0.0
    %4043 = vmatprep.subr.mxu0 0.0
    %4044 = vmatpush1.msra.mxu0 0.0
    %4045 = vmatprep.subr.mxu0 0.0
    %4046 = vmatpush1.msra.mxu0 0.0
    %4047 = vmatprep.subr.mxu0 0.0
    %4048 = vmatpush1.msra.mxu0 0.0
    %4049 = vmatprep.subr.mxu0 0.0
    %4050 = vmatpush1.msra.mxu0 0.0
    %4051 = vmatprep.subr.mxu0 0.0
    %4052 = vmatpush1.msra.mxu0 %v4008
    %4053 = vmatprep.subr.mxu0 0.0
    %4054 = vmatpush1.msra.mxu0 %v4007
    %4055 = vmatprep.subr.mxu0 0.0
    %4056 = vmatpush1.msra.mxu0 %v4006
    %4057 = vmatprep.subr.mxu0 0.0
    %4058 = vmatpush1.msra.mxu0 %v4005
    %4059 = vmatprep.subr.mxu0 0.0
    %4060 = vmatpush2.msra.mxu0 0.0
    %4061 = vmatprep.subr.mxu0 0.0
    %4062 = vmatpush2.msra.mxu0 0.0
    %4063 = vmatprep.subr.mxu0 0.0
    %4064 = vmatpush2.msra.mxu0 0.0
    %4065 = vmatprep.subr.mxu0 0.0
    %4066 = vmatpush2.msra.mxu0 0.0
    %4067 = vmatprep.subr.mxu0 0.0
    %4068 = vmatpush2.msra.mxu0 0.0
    %4069 = vmatprep.subr.mxu0 0.0
    %4070 = vmatpush2.msra.mxu0 0.0
    %4071 = vmatprep.subr.mxu0 0.0
    %4072 = vmatpush2.msra.mxu0 0.0
    %4073 = vmatprep.subr.mxu0 0.0
    %4074 = vmatpush2.msra.mxu0 0.0
    %4075 = vmatprep.subr.mxu0 0.0
    %4076 = vmatpush2.msra.mxu0 0.0
    %4077 = vmatprep.subr.mxu0 0.0
    %4078 = vmatpush2.msra.mxu0 0.0
    %4079 = vmatprep.subr.mxu0 0.0
    %4080 = vmatpush2.msra.mxu0 0.0
    %4081 = vmatprep.subr.mxu0 0.0
    %4082 = vmatpush2.msra.mxu0 0.0
    %4083 = vmatprep.subr.mxu0 0.0
    %4084 = vmatpush2.msra.mxu0 0.0
    %4085 = vmatprep.subr.mxu0 0.0
    %4086 = vmatpush2.msra.mxu0 0.0
    %4087 = vmatprep.subr.mxu0 0.0
    %4088 = vmatpush2.msra.mxu0 0.0
    %4089 = vmatprep.subr.mxu0 0.0
    %4090 = vmatpush2.msra.mxu0 0.0
    %4091 = vmatprep.mubr.f32.mxu0 0.0
    %4092 = vmatmul.mubr.f32.gmra.mxu0 %v4022
    %v4093 = vpop.f32.mrf.mxu0
    %v4094 = vadd.f32 %v4019, %v4093
    %v4095 = vpop.f32.mrf.mxu0
    %4096 = vmatprep.mubr.f32.mxu0 0.0
    %4097 = vmatmul.mubr.f32.gmra.mxu0 %v4025
    %v4098 = vpop.f32.mrf.mxu0
    %v4099 = vadd.f32 %v4019, %v4098
    %v4100 = vpop.f32.mrf.mxu0
    %4101 = vdwg.mxu0
    %4104 = vrot.lane.b32.xlu0 %v4094, 96
    %v4105 = vpop.permute.xlu0 %4104
    %4106 = vrot.lane.b32.xlu0 %v4099, 96
    %v4107 = vpop.permute.xlu0 %4106
    %v4108 = vsel %vm391, %v4094, 0
    %v4110 = vsel %vm391, %v4099, 0
    %v4112 = vsel %vm391, %v4105, 0
    %v4114 = vsel %vm391, %v4107, 0
    %4116 = vmatprep.subr.mxu0 0.0
    %4117 = vmatpush1.xpose.msra.mxu0 0.0
    %4118 = vmatprep.subr.mxu0 0.0
    %4119 = vmatpush1.xpose.msra.mxu0 0.0
    %4120 = vmatprep.subr.mxu0 0.0
    %4121 = vmatpush1.xpose.msra.mxu0 0.0
    %4122 = vmatprep.subr.mxu0 0.0
    %4123 = vmatpush1.xpose.msra.mxu0 0.0
    %4124 = vmatprep.subr.mxu0 0.0
    %4125 = vmatpush1.xpose.msra.mxu0 0.0
    %4126 = vmatprep.subr.mxu0 0.0
    %4127 = vmatpush1.xpose.msra.mxu0 0.0
    %4128 = vmatprep.subr.mxu0 0.0
    %4129 = vmatpush1.xpose.msra.mxu0 0.0
    %4130 = vmatprep.subr.mxu0 0.0
    %4131 = vmatpush1.xpose.msra.mxu0 0.0
    %4132 = vmatprep.subr.mxu0 0.0
    %4133 = vmatpush1.xpose.msra.mxu0 0.0
    %4134 = vmatprep.subr.mxu0 0.0
    %4135 = vmatpush1.xpose.msra.mxu0 0.0
    %4136 = vmatprep.subr.mxu0 0.0
    %4137 = vmatpush1.xpose.msra.mxu0 0.0
    %4138 = vmatprep.subr.mxu0 0.0
    %4139 = vmatpush1.xpose.msra.mxu0 0.0
    %4140 = vmatprep.subr.mxu0 0.0
    %4141 = vmatpush1.xpose.msra.mxu0 0.0
    %4142 = vmatprep.subr.mxu0 0.0
    %4143 = vmatpush1.xpose.msra.mxu0 0.0
    %4144 = vmatprep.subr.mxu0 0.0
    %4145 = vmatpush1.xpose.msra.mxu0 %v4114
    %4146 = vmatprep.subr.mxu0 0.0
    %4147 = vmatpush1.xpose.msra.mxu0 %v4112
    %4148 = vmatprep.subr.mxu0 0.0
    %4149 = vmatpush2.xpose.msra.mxu0 0.0
    %4150 = vmatprep.subr.mxu0 0.0
    %4151 = vmatpush2.xpose.msra.mxu0 0.0
    %4152 = vmatprep.subr.mxu0 0.0
    %4153 = vmatpush2.xpose.msra.mxu0 0.0
    %4154 = vmatprep.subr.mxu0 0.0
    %4155 = vmatpush2.xpose.msra.mxu0 0.0
    %4156 = vmatprep.subr.mxu0 0.0
    %4157 = vmatpush2.xpose.msra.mxu0 0.0
    %4158 = vmatprep.subr.mxu0 0.0
    %4159 = vmatpush2.xpose.msra.mxu0 0.0
    %4160 = vmatprep.subr.mxu0 0.0
    %4161 = vmatpush2.xpose.msra.mxu0 0.0
    %4162 = vmatprep.subr.mxu0 0.0
    %4163 = vmatpush2.xpose.msra.mxu0 0.0
    %4164 = vmatprep.subr.mxu0 0.0
    %4165 = vmatpush2.xpose.msra.mxu0 0.0
    %4166 = vmatprep.subr.mxu0 0.0
    %4167 = vmatpush2.xpose.msra.mxu0 0.0
    %4168 = vmatprep.subr.mxu0 0.0
    %4169 = vmatpush2.xpose.msra.mxu0 0.0
    %4170 = vmatprep.subr.mxu0 0.0
    %4171 = vmatpush2.xpose.msra.mxu0 0.0
    %4172 = vmatprep.subr.mxu0 0.0
    %4173 = vmatpush2.xpose.msra.mxu0 0.0
    %4174 = vmatprep.subr.mxu0 0.0
    %4175 = vmatpush2.xpose.msra.mxu0 0.0
    %4176 = vmatprep.subr.mxu0 0.0
    %4177 = vmatpush2.xpose.msra.mxu0 0.0
    %4178 = vmatprep.subr.mxu0 0.0
    %4179 = vmatpush2.xpose.msra.mxu0 0.0
    %4180 = vmatprep.mubr.f32.mxu0 0.0
    %4181 = vmatmul.mubr.f32.gmra.mxu0 %v4108
    %v4182 = vpop.f32.mrf.mxu0
    %v4183 = vadd.f32 0.0, %v4182
    %v4184 = vpop.f32.mrf.mxu0
    %4185 = vmatprep.mubr.f32.mxu0 0.0
    %4186 = vmatmul.mubr.f32.gmra.mxu0 %v4110
    %v4187 = vpop.f32.mrf.mxu0
    %v4188 = vadd.f32 0.0, %v4187
    %v4189 = vpop.f32.mrf.mxu0
    %4190 = vdwg.mxu0
    %v4191 = vsel %vm825, %v4183, -inf
    %4192 = vmax.xlane.f32.xlu0 %v4191
    %v4193 = vpop.xlane.xlu0 %4192
    %v4194 = vsel %vm825, %v4188, -inf
    %4195 = vmax.xlane.f32.xlu0 %v4194
    %v4196 = vpop.xlane.xlu0 %4195
    %v4197 = vsub.f32 %v4183, %v4193
    %v4198 = vsub.f32 %v4188, %v4196
    %v4199 = vmul.f32 %v4197, 1.442695
    %v4200 = vpow.pop %v4199
    %v4201 = vmul.f32 %v4198, 1.442695
    %v4202 = vpow.pop %v4201
    %v4203 = vsel %vm825, %v4200, 0.0
    %4204 = vadd.xlane.f32.xlu0 %v4203
    %v4205 = vpop.xlane.xlu0 %4204
    %v4206 = vsel %vm825, %v4202, 0.0
    %4207 = vadd.xlane.f32.xlu0 %v4206
    %v4208 = vpop.xlane.xlu0 %4207
    %v4209 = vrcp.pop %v4205
    %v4210 = vrcp.pop %v4208
    %v4211 = vmul.f32 %v4200, %v4209
    %v4212 = vmul.f32 %v4202, %v4210
    %4213 = vrot.lane.b32.xlu0 %v4094, 64
    %v4214 = vpop.permute.xlu0 %4213
    %4215 = vrot.lane.b32.xlu0 %v4099, 64
    %v4216 = vpop.permute.xlu0 %4215
    %v4220 = vsel %vm825, %v4211, 0
    %v4223 = vsel %vm825, %v4212, 0
    %4225 = vmatprep.subr.mxu0 0.0
    %4226 = vmatpush1.msra.mxu0 0.0
    %4227 = vmatprep.subr.mxu0 0.0
    %4228 = vmatpush1.msra.mxu0 0.0
    %4229 = vmatprep.subr.mxu0 0.0
    %4230 = vmatpush1.msra.mxu0 0.0
    %4231 = vmatprep.subr.mxu0 0.0
    %4232 = vmatpush1.msra.mxu0 0.0
    %4233 = vmatprep.subr.mxu0 0.0
    %4234 = vmatpush1.msra.mxu0 0.0
    %4235 = vmatprep.subr.mxu0 0.0
    %4236 = vmatpush1.msra.mxu0 0.0
    %4237 = vmatprep.subr.mxu0 0.0
    %4238 = vmatpush1.msra.mxu0 0.0
    %4239 = vmatprep.subr.mxu0 0.0
    %4240 = vmatpush1.msra.mxu0 0.0
    %4241 = vmatprep.subr.mxu0 0.0
    %4242 = vmatpush1.msra.mxu0 0.0
    %4243 = vmatprep.subr.mxu0 0.0
    %4244 = vmatpush1.msra.mxu0 0.0
    %4245 = vmatprep.subr.mxu0 0.0
    %4246 = vmatpush1.msra.mxu0 0.0
    %4247 = vmatprep.subr.mxu0 0.0
    %4248 = vmatpush1.msra.mxu0 0.0
    %4249 = vmatprep.subr.mxu0 0.0
    %4250 = vmatpush1.msra.mxu0 0.0
    %4251 = vmatprep.subr.mxu0 0.0
    %4252 = vmatpush1.msra.mxu0 0.0
    %4253 = vmatprep.subr.mxu0 0.0
    %4254 = vmatpush1.msra.mxu0 %v4216
    %4255 = vmatprep.subr.mxu0 0.0
    %4256 = vmatpush1.msra.mxu0 %v4214
    %4257 = vmatprep.subr.mxu0 0.0
    %4258 = vmatpush2.msra.mxu0 0.0
    %4259 = vmatprep.subr.mxu0 0.0
    %4260 = vmatpush2.msra.mxu0 0.0
    %4261 = vmatprep.subr.mxu0 0.0
    %4262 = vmatpush2.msra.mxu0 0.0
    %4263 = vmatprep.subr.mxu0 0.0
    %4264 = vmatpush2.msra.mxu0 0.0
    %4265 = vmatprep.subr.mxu0 0.0
    %4266 = vmatpush2.msra.mxu0 0.0
    %4267 = vmatprep.subr.mxu0 0.0
    %4268 = vmatpush2.msra.mxu0 0.0
    %4269 = vmatprep.subr.mxu0 0.0
    %4270 = vmatpush2.msra.mxu0 0.0
    %4271 = vmatprep.subr.mxu0 0.0
    %4272 = vmatpush2.msra.mxu0 0.0
    %4273 = vmatprep.subr.mxu0 0.0
    %4274 = vmatpush2.msra.mxu0 0.0
    %4275 = vmatprep.subr.mxu0 0.0
    %4276 = vmatpush2.msra.mxu0 0.0
    %4277 = vmatprep.subr.mxu0 0.0
    %4278 = vmatpush2.msra.mxu0 0.0
    %4279 = vmatprep.subr.mxu0 0.0
    %4280 = vmatpush2.msra.mxu0 0.0
    %4281 = vmatprep.subr.mxu0 0.0
    %4282 = vmatpush2.msra.mxu0 0.0
    %4283 = vmatprep.subr.mxu0 0.0
    %4284 = vmatpush2.msra.mxu0 0.0
    %4285 = vmatprep.subr.mxu0 0.0
    %4286 = vmatpush2.msra.mxu0 0.0
    %4287 = vmatprep.subr.mxu0 0.0
    %4288 = vmatpush2.msra.mxu0 0.0
    %4289 = vmatprep.mubr.f32.mxu0 0.0
    %4290 = vmatmul.mubr.f32.gmra.mxu0 %v4220
    %v4291 = vpop.f32.mrf.mxu0
    %v4292 = vadd.f32 0.0, %v4291
    %v4293 = vpop.f32.mrf.mxu0
    %4294 = vmatprep.mubr.f32.mxu0 0.0
    %4295 = vmatmul.mubr.f32.gmra.mxu0 %v4223
    %v4296 = vpop.f32.mrf.mxu0
    %v4297 = vadd.f32 0.0, %v4296
    %v4298 = vpop.f32.mrf.mxu0
    %4299 = vdwg.mxu0
    %4300 = vrot.lane.b32.xlu0 %v4094, 120
    %v4301 = vpop.permute.xlu0 %4300
    %4302 = vrot.lane.b32.xlu0 %v4099, 120
    %v4303 = vpop.permute.xlu0 %4302
    %4304 = vrot.lane.b32.xlu0 %v4094, 88
    %v4305 = vpop.permute.xlu0 %4304
    %4306 = vrot.lane.b32.xlu0 %v4099, 88
    %v4307 = vpop.permute.xlu0 %4306
    %v4308 = vsel %vm391, %v4301, 0
    %v4310 = vsel %vm391, %v4303, 0
    %v4312 = vsel %vm391, %v4305, 0
    %v4314 = vsel %vm391, %v4307, 0
    %4316 = vmatprep.subr.mxu0 0.0
    %4317 = vmatpush1.xpose.msra.mxu0 0.0
    %4318 = vmatprep.subr.mxu0 0.0
    %4319 = vmatpush1.xpose.msra.mxu0 0.0
    %4320 = vmatprep.subr.mxu0 0.0
    %4321 = vmatpush1.xpose.msra.mxu0 0.0
    %4322 = vmatprep.subr.mxu0 0.0
    %4323 = vmatpush1.xpose.msra.mxu0 0.0
    %4324 = vmatprep.subr.mxu0 0.0
    %4325 = vmatpush1.xpose.msra.mxu0 0.0
    %4326 = vmatprep.subr.mxu0 0.0
    %4327 = vmatpush1.xpose.msra.mxu0 0.0
    %4328 = vmatprep.subr.mxu0 0.0
    %4329 = vmatpush1.xpose.msra.mxu0 0.0
    %4330 = vmatprep.subr.mxu0 0.0
    %4331 = vmatpush1.xpose.msra.mxu0 0.0
    %4332 = vmatprep.subr.mxu0 0.0
    %4333 = vmatpush1.xpose.msra.mxu0 0.0
    %4334 = vmatprep.subr.mxu0 0.0
    %4335 = vmatpush1.xpose.msra.mxu0 0.0
    %4336 = vmatprep.subr.mxu0 0.0
    %4337 = vmatpush1.xpose.msra.mxu0 0.0
    %4338 = vmatprep.subr.mxu0 0.0
    %4339 = vmatpush1.xpose.msra.mxu0 0.0
    %4340 = vmatprep.subr.mxu0 0.0
    %4341 = vmatpush1.xpose.msra.mxu0 0.0
    %4342 = vmatprep.subr.mxu0 0.0
    %4343 = vmatpush1.xpose.msra.mxu0 0.0
    %4344 = vmatprep.subr.mxu0 0.0
    %4345 = vmatpush1.xpose.msra.mxu0 %v4314
    %4346 = vmatprep.subr.mxu0 0.0
    %4347 = vmatpush1.xpose.msra.mxu0 %v4312
    %4348 = vmatprep.subr.mxu0 0.0
    %4349 = vmatpush2.xpose.msra.mxu0 0.0
    %4350 = vmatprep.subr.mxu0 0.0
    %4351 = vmatpush2.xpose.msra.mxu0 0.0
    %4352 = vmatprep.subr.mxu0 0.0
    %4353 = vmatpush2.xpose.msra.mxu0 0.0
    %4354 = vmatprep.subr.mxu0 0.0
    %4355 = vmatpush2.xpose.msra.mxu0 0.0
    %4356 = vmatprep.subr.mxu0 0.0
    %4357 = vmatpush2.xpose.msra.mxu0 0.0
    %4358 = vmatprep.subr.mxu0 0.0
    %4359 = vmatpush2.xpose.msra.mxu0 0.0
    %4360 = vmatprep.subr.mxu0 0.0
    %4361 = vmatpush2.xpose.msra.mxu0 0.0
    %4362 = vmatprep.subr.mxu0 0.0
    %4363 = vmatpush2.xpose.msra.mxu0 0.0
    %4364 = vmatprep.subr.mxu0 0.0
    %4365 = vmatpush2.xpose.msra.mxu0 0.0
    %4366 = vmatprep.subr.mxu0 0.0
    %4367 = vmatpush2.xpose.msra.mxu0 0.0
    %4368 = vmatprep.subr.mxu0 0.0
    %4369 = vmatpush2.xpose.msra.mxu0 0.0
    %4370 = vmatprep.subr.mxu0 0.0
    %4371 = vmatpush2.xpose.msra.mxu0 0.0
    %4372 = vmatprep.subr.mxu0 0.0
    %4373 = vmatpush2.xpose.msra.mxu0 0.0
    %4374 = vmatprep.subr.mxu0 0.0
    %4375 = vmatpush2.xpose.msra.mxu0 0.0
    %4376 = vmatprep.subr.mxu0 0.0
    %4377 = vmatpush2.xpose.msra.mxu0 0.0
    %4378 = vmatprep.subr.mxu0 0.0
    %4379 = vmatpush2.xpose.msra.mxu0 0.0
    %4380 = vmatprep.mubr.f32.mxu0 0.0
    %4381 = vmatmul.mubr.f32.gmra.mxu0 %v4308
    %v4382 = vpop.f32.mrf.mxu0
    %v4383 = vadd.f32 0.0, %v4382
    %v4384 = vpop.f32.mrf.mxu0
    %4385 = vmatprep.mubr.f32.mxu0 0.0
    %4386 = vmatmul.mubr.f32.gmra.mxu0 %v4310
    %v4387 = vpop.f32.mrf.mxu0
    %v4388 = vadd.f32 0.0, %v4387
    %v4389 = vpop.f32.mrf.mxu0
    %4390 = vdwg.mxu0
    %v4391 = vsel %vm825, %v4383, -inf
    %4392 = vmax.xlane.f32.xlu0 %v4391
    %v4393 = vpop.xlane.xlu0 %4392
    %v4394 = vsel %vm825, %v4388, -inf
    %4395 = vmax.xlane.f32.xlu0 %v4394
    %v4396 = vpop.xlane.xlu0 %4395
    %v4397 = vsub.f32 %v4383, %v4393
    %v4398 = vsub.f32 %v4388, %v4396
    %v4399 = vmul.f32 %v4397, 1.442695
    %v4400 = vpow.pop %v4399
    %v4401 = vmul.f32 %v4398, 1.442695
    %v4402 = vpow.pop %v4401
    %v4403 = vsel %vm825, %v4400, 0.0
    %4404 = vadd.xlane.f32.xlu0 %v4403
    %v4405 = vpop.xlane.xlu0 %4404
    %v4406 = vsel %vm825, %v4402, 0.0
    %4407 = vadd.xlane.f32.xlu0 %v4406
    %v4408 = vpop.xlane.xlu0 %4407
    %v4409 = vrcp.pop %v4405
    %v4410 = vrcp.pop %v4408
    %v4411 = vmul.f32 %v4400, %v4409
    %v4412 = vmul.f32 %v4402, %v4410
    %4413 = vrot.lane.b32.xlu0 %v4094, 56
    %v4414 = vpop.permute.xlu0 %4413
    %4415 = vrot.lane.b32.xlu0 %v4099, 56
    %v4416 = vpop.permute.xlu0 %4415
    %v4420 = vsel %vm825, %v4411, 0
    %v4423 = vsel %vm825, %v4412, 0
    %4425 = vmatprep.subr.mxu0 0.0
    %4426 = vmatpush1.msra.mxu0 0.0
    %4427 = vmatprep.subr.mxu0 0.0
    %4428 = vmatpush1.msra.mxu0 0.0
    %4429 = vmatprep.subr.mxu0 0.0
    %4430 = vmatpush1.msra.mxu0 0.0
    %4431 = vmatprep.subr.mxu0 0.0
    %4432 = vmatpush1.msra.mxu0 0.0
    %4433 = vmatprep.subr.mxu0 0.0
    %4434 = vmatpush1.msra.mxu0 0.0
    %4435 = vmatprep.subr.mxu0 0.0
    %4436 = vmatpush1.msra.mxu0 0.0
    %4437 = vmatprep.subr.mxu0 0.0
    %4438 = vmatpush1.msra.mxu0 0.0
    %4439 = vmatprep.subr.mxu0 0.0
    %4440 = vmatpush1.msra.mxu0 0.0
    %4441 = vmatprep.subr.mxu0 0.0
    %4442 = vmatpush1.msra.mxu0 0.0
    %4443 = vmatprep.subr.mxu0 0.0
    %4444 = vmatpush1.msra.mxu0 0.0
    %4445 = vmatprep.subr.mxu0 0.0
    %4446 = vmatpush1.msra.mxu0 0.0
    %4447 = vmatprep.subr.mxu0 0.0
    %4448 = vmatpush1.msra.mxu0 0.0
    %4449 = vmatprep.subr.mxu0 0.0
    %4450 = vmatpush1.msra.mxu0 0.0
    %4451 = vmatprep.subr.mxu0 0.0
    %4452 = vmatpush1.msra.mxu0 0.0
    %4453 = vmatprep.subr.mxu0 0.0
    %4454 = vmatpush1.msra.mxu0 %v4416
    %4455 = vmatprep.subr.mxu0 0.0
    %4456 = vmatpush1.msra.mxu0 %v4414
    %4457 = vmatprep.subr.mxu0 0.0
    %4458 = vmatpush2.msra.mxu0 0.0
    %4459 = vmatprep.subr.mxu0 0.0
    %4460 = vmatpush2.msra.mxu0 0.0
    %4461 = vmatprep.subr.mxu0 0.0
    %4462 = vmatpush2.msra.mxu0 0.0
    %4463 = vmatprep.subr.mxu0 0.0
    %4464 = vmatpush2.msra.mxu0 0.0
    %4465 = vmatprep.subr.mxu0 0.0
    %4466 = vmatpush2.msra.mxu0 0.0
    %4467 = vmatprep.subr.mxu0 0.0
    %4468 = vmatpush2.msra.mxu0 0.0
    %4469 = vmatprep.subr.mxu0 0.0
    %4470 = vmatpush2.msra.mxu0 0.0
    %4471 = vmatprep.subr.mxu0 0.0
    %4472 = vmatpush2.msra.mxu0 0.0
    %4473 = vmatprep.subr.mxu0 0.0
    %4474 = vmatpush2.msra.mxu0 0.0
    %4475 = vmatprep.subr.mxu0 0.0
    %4476 = vmatpush2.msra.mxu0 0.0
    %4477 = vmatprep.subr.mxu0 0.0
    %4478 = vmatpush2.msra.mxu0 0.0
    %4479 = vmatprep.subr.mxu0 0.0
    %4480 = vmatpush2.msra.mxu0 0.0
    %4481 = vmatprep.subr.mxu0 0.0
    %4482 = vmatpush2.msra.mxu0 0.0
    %4483 = vmatprep.subr.mxu0 0.0
    %4484 = vmatpush2.msra.mxu0 0.0
    %4485 = vmatprep.subr.mxu0 0.0
    %4486 = vmatpush2.msra.mxu0 0.0
    %4487 = vmatprep.subr.mxu0 0.0
    %4488 = vmatpush2.msra.mxu0 0.0
    %4489 = vmatprep.mubr.f32.mxu0 0.0
    %4490 = vmatmul.mubr.f32.gmra.mxu0 %v4420
    %v4491 = vpop.f32.mrf.mxu0
    %v4492 = vadd.f32 0.0, %v4491
    %v4493 = vpop.f32.mrf.mxu0
    %4494 = vmatprep.mubr.f32.mxu0 0.0
    %4495 = vmatmul.mubr.f32.gmra.mxu0 %v4423
    %v4496 = vpop.f32.mrf.mxu0
    %v4497 = vadd.f32 0.0, %v4496
    %v4498 = vpop.f32.mrf.mxu0
    %4499 = vdwg.mxu0
    %4500 = vrot.lane.b32.xlu0 %v4094, 112
    %v4501 = vpop.permute.xlu0 %4500
    %4502 = vrot.lane.b32.xlu0 %v4099, 112
    %v4503 = vpop.permute.xlu0 %4502
    %4504 = vrot.lane.b32.xlu0 %v4094, 80
    %v4505 = vpop.permute.xlu0 %4504
    %4506 = vrot.lane.b32.xlu0 %v4099, 80
    %v4507 = vpop.permute.xlu0 %4506
    %v4508 = vsel %vm391, %v4501, 0
    %v4510 = vsel %vm391, %v4503, 0
    %v4512 = vsel %vm391, %v4505, 0
    %v4514 = vsel %vm391, %v4507, 0
    %4516 = vmatprep.subr.mxu0 0.0
    %4517 = vmatpush1.xpose.msra.mxu0 0.0
    %4518 = vmatprep.subr.mxu0 0.0
    %4519 = vmatpush1.xpose.msra.mxu0 0.0
    %4520 = vmatprep.subr.mxu0 0.0
    %4521 = vmatpush1.xpose.msra.mxu0 0.0
    %4522 = vmatprep.subr.mxu0 0.0
    %4523 = vmatpush1.xpose.msra.mxu0 0.0
    %4524 = vmatprep.subr.mxu0 0.0
    %4525 = vmatpush1.xpose.msra.mxu0 0.0
    %4526 = vmatprep.subr.mxu0 0.0
    %4527 = vmatpush1.xpose.msra.mxu0 0.0
    %4528 = vmatprep.subr.mxu0 0.0
    %4529 = vmatpush1.xpose.msra.mxu0 0.0
    %4530 = vmatprep.subr.mxu0 0.0
    %4531 = vmatpush1.xpose.msra.mxu0 0.0
    %4532 = vmatprep.subr.mxu0 0.0
    %4533 = vmatpush1.xpose.msra.mxu0 0.0
    %4534 = vmatprep.subr.mxu0 0.0
    %4535 = vmatpush1.xpose.msra.mxu0 0.0
    %4536 = vmatprep.subr.mxu0 0.0
    %4537 = vmatpush1.xpose.msra.mxu0 0.0
    %4538 = vmatprep.subr.mxu0 0.0
    %4539 = vmatpush1.xpose.msra.mxu0 0.0
    %4540 = vmatprep.subr.mxu0 0.0
    %4541 = vmatpush1.xpose.msra.mxu0 0.0
    %4542 = vmatprep.subr.mxu0 0.0
    %4543 = vmatpush1.xpose.msra.mxu0 0.0
    %4544 = vmatprep.subr.mxu0 0.0
    %4545 = vmatpush1.xpose.msra.mxu0 %v4514
    %4546 = vmatprep.subr.mxu0 0.0
    %4547 = vmatpush1.xpose.msra.mxu0 %v4512
    %4548 = vmatprep.subr.mxu0 0.0
    %4549 = vmatpush2.xpose.msra.mxu0 0.0
    %4550 = vmatprep.subr.mxu0 0.0
    %4551 = vmatpush2.xpose.msra.mxu0 0.0
    %4552 = vmatprep.subr.mxu0 0.0
    %4553 = vmatpush2.xpose.msra.mxu0 0.0
    %4554 = vmatprep.subr.mxu0 0.0
    %4555 = vmatpush2.xpose.msra.mxu0 0.0
    %4556 = vmatprep.subr.mxu0 0.0
    %4557 = vmatpush2.xpose.msra.mxu0 0.0
    %4558 = vmatprep.subr.mxu0 0.0
    %4559 = vmatpush2.xpose.msra.mxu0 0.0
    %4560 = vmatprep.subr.mxu0 0.0
    %4561 = vmatpush2.xpose.msra.mxu0 0.0
    %4562 = vmatprep.subr.mxu0 0.0
    %4563 = vmatpush2.xpose.msra.mxu0 0.0
    %4564 = vmatprep.subr.mxu0 0.0
    %4565 = vmatpush2.xpose.msra.mxu0 0.0
    %4566 = vmatprep.subr.mxu0 0.0
    %4567 = vmatpush2.xpose.msra.mxu0 0.0
    %4568 = vmatprep.subr.mxu0 0.0
    %4569 = vmatpush2.xpose.msra.mxu0 0.0
    %4570 = vmatprep.subr.mxu0 0.0
    %4571 = vmatpush2.xpose.msra.mxu0 0.0
    %4572 = vmatprep.subr.mxu0 0.0
    %4573 = vmatpush2.xpose.msra.mxu0 0.0
    %4574 = vmatprep.subr.mxu0 0.0
    %4575 = vmatpush2.xpose.msra.mxu0 0.0
    %4576 = vmatprep.subr.mxu0 0.0
    %4577 = vmatpush2.xpose.msra.mxu0 0.0
    %4578 = vmatprep.subr.mxu0 0.0
    %4579 = vmatpush2.xpose.msra.mxu0 0.0
    %4580 = vmatprep.mubr.f32.mxu0 0.0
    %4581 = vmatmul.mubr.f32.gmra.mxu0 %v4508
    %v4582 = vpop.f32.mrf.mxu0
    %v4583 = vadd.f32 0.0, %v4582
    %v4584 = vpop.f32.mrf.mxu0
    %4585 = vmatprep.mubr.f32.mxu0 0.0
    %4586 = vmatmul.mubr.f32.gmra.mxu0 %v4510
    %v4587 = vpop.f32.mrf.mxu0
    %v4588 = vadd.f32 0.0, %v4587
    %v4589 = vpop.f32.mrf.mxu0
    %4590 = vdwg.mxu0
    %v4591 = vsel %vm825, %v4583, -inf
    %4592 = vmax.xlane.f32.xlu0 %v4591
    %v4593 = vpop.xlane.xlu0 %4592
    %v4594 = vsel %vm825, %v4588, -inf
    %4595 = vmax.xlane.f32.xlu0 %v4594
    %v4596 = vpop.xlane.xlu0 %4595
    %v4597 = vsub.f32 %v4583, %v4593
    %v4598 = vsub.f32 %v4588, %v4596
    %v4599 = vmul.f32 %v4597, 1.442695
    %v4600 = vpow.pop %v4599
    %v4601 = vmul.f32 %v4598, 1.442695
    %v4602 = vpow.pop %v4601
    %v4603 = vsel %vm825, %v4600, 0.0
    %4604 = vadd.xlane.f32.xlu0 %v4603
    %v4605 = vpop.xlane.xlu0 %4604
    %v4606 = vsel %vm825, %v4602, 0.0
    %4607 = vadd.xlane.f32.xlu0 %v4606
    %v4608 = vpop.xlane.xlu0 %4607
    %v4609 = vrcp.pop %v4605
    %v4610 = vrcp.pop %v4608
    %v4611 = vmul.f32 %v4600, %v4609
    %v4612 = vmul.f32 %v4602, %v4610
    %4613 = vrot.lane.b32.xlu0 %v4094, 48
    %v4614 = vpop.permute.xlu0 %4613
    %4615 = vrot.lane.b32.xlu0 %v4099, 48
    %v4616 = vpop.permute.xlu0 %4615
    %v4620 = vsel %vm825, %v4611, 0
    %v4623 = vsel %vm825, %v4612, 0
    %4625 = vmatprep.subr.mxu0 0.0
    %4626 = vmatpush1.msra.mxu0 0.0
    %4627 = vmatprep.subr.mxu0 0.0
    %4628 = vmatpush1.msra.mxu0 0.0
    %4629 = vmatprep.subr.mxu0 0.0
    %4630 = vmatpush1.msra.mxu0 0.0
    %4631 = vmatprep.subr.mxu0 0.0
    %4632 = vmatpush1.msra.mxu0 0.0
    %4633 = vmatprep.subr.mxu0 0.0
    %4634 = vmatpush1.msra.mxu0 0.0
    %4635 = vmatprep.subr.mxu0 0.0
    %4636 = vmatpush1.msra.mxu0 0.0
    %4637 = vmatprep.subr.mxu0 0.0
    %4638 = vmatpush1.msra.mxu0 0.0
    %4639 = vmatprep.subr.mxu0 0.0
    %4640 = vmatpush1.msra.mxu0 0.0
    %4641 = vmatprep.subr.mxu0 0.0
    %4642 = vmatpush1.msra.mxu0 0.0
    %4643 = vmatprep.subr.mxu0 0.0
    %4644 = vmatpush1.msra.mxu0 0.0
    %4645 = vmatprep.subr.mxu0 0.0
    %4646 = vmatpush1.msra.mxu0 0.0
    %4647 = vmatprep.subr.mxu0 0.0
    %4648 = vmatpush1.msra.mxu0 0.0
    %4649 = vmatprep.subr.mxu0 0.0
    %4650 = vmatpush1.msra.mxu0 0.0
    %4651 = vmatprep.subr.mxu0 0.0
    %4652 = vmatpush1.msra.mxu0 0.0
    %4653 = vmatprep.subr.mxu0 0.0
    %4654 = vmatpush1.msra.mxu0 %v4616
    %4655 = vmatprep.subr.mxu0 0.0
    %4656 = vmatpush1.msra.mxu0 %v4614
    %4657 = vmatprep.subr.mxu0 0.0
    %4658 = vmatpush2.msra.mxu0 0.0
    %4659 = vmatprep.subr.mxu0 0.0
    %4660 = vmatpush2.msra.mxu0 0.0
    %4661 = vmatprep.subr.mxu0 0.0
    %4662 = vmatpush2.msra.mxu0 0.0
    %4663 = vmatprep.subr.mxu0 0.0
    %4664 = vmatpush2.msra.mxu0 0.0
    %4665 = vmatprep.subr.mxu0 0.0
    %4666 = vmatpush2.msra.mxu0 0.0
    %4667 = vmatprep.subr.mxu0 0.0
    %4668 = vmatpush2.msra.mxu0 0.0
    %4669 = vmatprep.subr.mxu0 0.0
    %4670 = vmatpush2.msra.mxu0 0.0
    %4671 = vmatprep.subr.mxu0 0.0
    %4672 = vmatpush2.msra.mxu0 0.0
    %4673 = vmatprep.subr.mxu0 0.0
    %4674 = vmatpush2.msra.mxu0 0.0
    %4675 = vmatprep.subr.mxu0 0.0
    %4676 = vmatpush2.msra.mxu0 0.0
    %4677 = vmatprep.subr.mxu0 0.0
    %4678 = vmatpush2.msra.mxu0 0.0
    %4679 = vmatprep.subr.mxu0 0.0
    %4680 = vmatpush2.msra.mxu0 0.0
    %4681 = vmatprep.subr.mxu0 0.0
    %4682 = vmatpush2.msra.mxu0 0.0
    %4683 = vmatprep.subr.mxu0 0.0
    %4684 = vmatpush2.msra.mxu0 0.0
    %4685 = vmatprep.subr.mxu0 0.0
    %4686 = vmatpush2.msra.mxu0 0.0
    %4687 = vmatprep.subr.mxu0 0.0
    %4688 = vmatpush2.msra.mxu0 0.0
    %4689 = vmatprep.mubr.f32.mxu0 0.0
    %4690 = vmatmul.mubr.f32.gmra.mxu0 %v4620
    %v4691 = vpop.f32.mrf.mxu0
    %v4692 = vadd.f32 0.0, %v4691
    %v4693 = vpop.f32.mrf.mxu0
    %4694 = vmatprep.mubr.f32.mxu0 0.0
    %4695 = vmatmul.mubr.f32.gmra.mxu0 %v4623
    %v4696 = vpop.f32.mrf.mxu0
    %v4697 = vadd.f32 0.0, %v4696
    %v4698 = vpop.f32.mrf.mxu0
    %4699 = vdwg.mxu0
    %4700 = vrot.lane.b32.xlu0 %v4094, 104
    %v4701 = vpop.permute.xlu0 %4700
    %4702 = vrot.lane.b32.xlu0 %v4099, 104
    %v4703 = vpop.permute.xlu0 %4702
    %4704 = vrot.lane.b32.xlu0 %v4094, 72
    %v4705 = vpop.permute.xlu0 %4704
    %4706 = vrot.lane.b32.xlu0 %v4099, 72
    %v4707 = vpop.permute.xlu0 %4706
    %v4708 = vsel %vm391, %v4701, 0
    %v4710 = vsel %vm391, %v4703, 0
    %v4712 = vsel %vm391, %v4705, 0
    %v4714 = vsel %vm391, %v4707, 0
    %4716 = vmatprep.subr.mxu0 0.0
    %4717 = vmatpush1.xpose.msra.mxu0 0.0
    %4718 = vmatprep.subr.mxu0 0.0
    %4719 = vmatpush1.xpose.msra.mxu0 0.0
    %4720 = vmatprep.subr.mxu0 0.0
    %4721 = vmatpush1.xpose.msra.mxu0 0.0
    %4722 = vmatprep.subr.mxu0 0.0
    %4723 = vmatpush1.xpose.msra.mxu0 0.0
    %4724 = vmatprep.subr.mxu0 0.0
    %4725 = vmatpush1.xpose.msra.mxu0 0.0
    %4726 = vmatprep.subr.mxu0 0.0
    %4727 = vmatpush1.xpose.msra.mxu0 0.0
    %4728 = vmatprep.subr.mxu0 0.0
    %4729 = vmatpush1.xpose.msra.mxu0 0.0
    %4730 = vmatprep.subr.mxu0 0.0
    %4731 = vmatpush1.xpose.msra.mxu0 0.0
    %4732 = vmatprep.subr.mxu0 0.0
    %4733 = vmatpush1.xpose.msra.mxu0 0.0
    %4734 = vmatprep.subr.mxu0 0.0
    %4735 = vmatpush1.xpose.msra.mxu0 0.0
    %4736 = vmatprep.subr.mxu0 0.0
    %4737 = vmatpush1.xpose.msra.mxu0 0.0
    %4738 = vmatprep.subr.mxu0 0.0
    %4739 = vmatpush1.xpose.msra.mxu0 0.0
    %4740 = vmatprep.subr.mxu0 0.0
    %4741 = vmatpush1.xpose.msra.mxu0 0.0
    %4742 = vmatprep.subr.mxu0 0.0
    %4743 = vmatpush1.xpose.msra.mxu0 0.0
    %4744 = vmatprep.subr.mxu0 0.0
    %4745 = vmatpush1.xpose.msra.mxu0 %v4714
    %4746 = vmatprep.subr.mxu0 0.0
    %4747 = vmatpush1.xpose.msra.mxu0 %v4712
    %4748 = vmatprep.subr.mxu0 0.0
    %4749 = vmatpush2.xpose.msra.mxu0 0.0
    %4750 = vmatprep.subr.mxu0 0.0
    %4751 = vmatpush2.xpose.msra.mxu0 0.0
    %4752 = vmatprep.subr.mxu0 0.0
    %4753 = vmatpush2.xpose.msra.mxu0 0.0
    %4754 = vmatprep.subr.mxu0 0.0
    %4755 = vmatpush2.xpose.msra.mxu0 0.0
    %4756 = vmatprep.subr.mxu0 0.0
    %4757 = vmatpush2.xpose.msra.mxu0 0.0
    %4758 = vmatprep.subr.mxu0 0.0
    %4759 = vmatpush2.xpose.msra.mxu0 0.0
    %4760 = vmatprep.subr.mxu0 0.0
    %4761 = vmatpush2.xpose.msra.mxu0 0.0
    %4762 = vmatprep.subr.mxu0 0.0
    %4763 = vmatpush2.xpose.msra.mxu0 0.0
    %4764 = vmatprep.subr.mxu0 0.0
    %4765 = vmatpush2.xpose.msra.mxu0 0.0
    %4766 = vmatprep.subr.mxu0 0.0
    %4767 = vmatpush2.xpose.msra.mxu0 0.0
    %4768 = vmatprep.subr.mxu0 0.0
    %4769 = vmatpush2.xpose.msra.mxu0 0.0
    %4770 = vmatprep.subr.mxu0 0.0
    %4771 = vmatpush2.xpose.msra.mxu0 0.0
    %4772 = vmatprep.subr.mxu0 0.0
    %4773 = vmatpush2.xpose.msra.mxu0 0.0
    %4774 = vmatprep.subr.mxu0 0.0
    %4775 = vmatpush2.xpose.msra.mxu0 0.0
    %4776 = vmatprep.subr.mxu0 0.0
    %4777 = vmatpush2.xpose.msra.mxu0 0.0
    %4778 = vmatprep.subr.mxu0 0.0
    %4779 = vmatpush2.xpose.msra.mxu0 0.0
    %4780 = vmatprep.mubr.f32.mxu0 0.0
    %4781 = vmatmul.mubr.f32.gmra.mxu0 %v4708
    %v4782 = vpop.f32.mrf.mxu0
    %v4783 = vadd.f32 0.0, %v4782
    %v4784 = vpop.f32.mrf.mxu0
    %4785 = vmatprep.mubr.f32.mxu0 0.0
    %4786 = vmatmul.mubr.f32.gmra.mxu0 %v4710
    %v4787 = vpop.f32.mrf.mxu0
    %v4788 = vadd.f32 0.0, %v4787
    %v4789 = vpop.f32.mrf.mxu0
    %4790 = vdwg.mxu0
    %v4791 = vsel %vm825, %v4783, -inf
    %4792 = vmax.xlane.f32.xlu0 %v4791
    %v4793 = vpop.xlane.xlu0 %4792
    %v4794 = vsel %vm825, %v4788, -inf
    %4795 = vmax.xlane.f32.xlu0 %v4794
    %v4796 = vpop.xlane.xlu0 %4795
    %v4797 = vsub.f32 %v4783, %v4793
    %v4798 = vsub.f32 %v4788, %v4796
    %v4799 = vmul.f32 %v4797, 1.442695
    %v4800 = vpow.pop %v4799
    %v4801 = vmul.f32 %v4798, 1.442695
    %v4802 = vpow.pop %v4801
    %v4803 = vsel %vm825, %v4800, 0.0
    %4804 = vadd.xlane.f32.xlu0 %v4803
    %v4805 = vpop.xlane.xlu0 %4804
    %v4806 = vsel %vm825, %v4802, 0.0
    %4807 = vadd.xlane.f32.xlu0 %v4806
    %v4808 = vpop.xlane.xlu0 %4807
    %v4809 = vrcp.pop %v4805
    %v4810 = vrcp.pop %v4808
    %v4811 = vmul.f32 %v4800, %v4809
    %v4812 = vmul.f32 %v4802, %v4810
    %4813 = vrot.lane.b32.xlu0 %v4094, 40
    %v4814 = vpop.permute.xlu0 %4813
    %4815 = vrot.lane.b32.xlu0 %v4099, 40
    %v4816 = vpop.permute.xlu0 %4815
    %v4820 = vsel %vm825, %v4811, 0
    %v4823 = vsel %vm825, %v4812, 0
    %4825 = vmatprep.subr.mxu0 0.0
    %4826 = vmatpush1.msra.mxu0 0.0
    %4827 = vmatprep.subr.mxu0 0.0
    %4828 = vmatpush1.msra.mxu0 0.0
    %4829 = vmatprep.subr.mxu0 0.0
    %4830 = vmatpush1.msra.mxu0 0.0
    %4831 = vmatprep.subr.mxu0 0.0
    %4832 = vmatpush1.msra.mxu0 0.0
    %4833 = vmatprep.subr.mxu0 0.0
    %4834 = vmatpush1.msra.mxu0 0.0
    %4835 = vmatprep.subr.mxu0 0.0
    %4836 = vmatpush1.msra.mxu0 0.0
    %4837 = vmatprep.subr.mxu0 0.0
    %4838 = vmatpush1.msra.mxu0 0.0
    %4839 = vmatprep.subr.mxu0 0.0
    %4840 = vmatpush1.msra.mxu0 0.0
    %4841 = vmatprep.subr.mxu0 0.0
    %4842 = vmatpush1.msra.mxu0 0.0
    %4843 = vmatprep.subr.mxu0 0.0
    %4844 = vmatpush1.msra.mxu0 0.0
    %4845 = vmatprep.subr.mxu0 0.0
    %4846 = vmatpush1.msra.mxu0 0.0
    %4847 = vmatprep.subr.mxu0 0.0
    %4848 = vmatpush1.msra.mxu0 0.0
    %4849 = vmatprep.subr.mxu0 0.0
    %4850 = vmatpush1.msra.mxu0 0.0
    %4851 = vmatprep.subr.mxu0 0.0
    %4852 = vmatpush1.msra.mxu0 0.0
    %4853 = vmatprep.subr.mxu0 0.0
    %4854 = vmatpush1.msra.mxu0 %v4816
    %4855 = vmatprep.subr.mxu0 0.0
    %4856 = vmatpush1.msra.mxu0 %v4814
    %4857 = vmatprep.subr.mxu0 0.0
    %4858 = vmatpush2.msra.mxu0 0.0
    %4859 = vmatprep.subr.mxu0 0.0
    %4860 = vmatpush2.msra.mxu0 0.0
    %4861 = vmatprep.subr.mxu0 0.0
    %4862 = vmatpush2.msra.mxu0 0.0
    %4863 = vmatprep.subr.mxu0 0.0
    %4864 = vmatpush2.msra.mxu0 0.0
    %4865 = vmatprep.subr.mxu0 0.0
    %4866 = vmatpush2.msra.mxu0 0.0
    %4867 = vmatprep.subr.mxu0 0.0
    %4868 = vmatpush2.msra.mxu0 0.0
    %4869 = vmatprep.subr.mxu0 0.0
    %4870 = vmatpush2.msra.mxu0 0.0
    %4871 = vmatprep.subr.mxu0 0.0
    %4872 = vmatpush2.msra.mxu0 0.0
    %4873 = vmatprep.subr.mxu0 0.0
    %4874 = vmatpush2.msra.mxu0 0.0
    %4875 = vmatprep.subr.mxu0 0.0
    %4876 = vmatpush2.msra.mxu0 0.0
    %4877 = vmatprep.subr.mxu0 0.0
    %4878 = vmatpush2.msra.mxu0 0.0
    %4879 = vmatprep.subr.mxu0 0.0
    %4880 = vmatpush2.msra.mxu0 0.0
    %4881 = vmatprep.subr.mxu0 0.0
    %4882 = vmatpush2.msra.mxu0 0.0
    %4883 = vmatprep.subr.mxu0 0.0
    %4884 = vmatpush2.msra.mxu0 0.0
    %4885 = vmatprep.subr.mxu0 0.0
    %4886 = vmatpush2.msra.mxu0 0.0
    %4887 = vmatprep.subr.mxu0 0.0
    %4888 = vmatpush2.msra.mxu0 0.0
    %4889 = vmatprep.mubr.f32.mxu0 0.0
    %4890 = vmatmul.mubr.f32.gmra.mxu0 %v4820
    %v4891 = vpop.f32.mrf.mxu0
    %v4892 = vadd.f32 0.0, %v4891
    %v4893 = vpop.f32.mrf.mxu0
    %4894 = vmatprep.mubr.f32.mxu0 0.0
    %4895 = vmatmul.mubr.f32.gmra.mxu0 %v4823
    %v4896 = vpop.f32.mrf.mxu0
    %v4897 = vadd.f32 0.0, %v4896
    %v4898 = vpop.f32.mrf.mxu0
    %4899 = vdwg.mxu0
    %4902 = vrot.lane.b32.xlu0 %v4492, 8
    %v4903 = vpop.permute.xlu0 %4902
    %4904 = vrot.lane.b32.xlu0 %v4497, 8
    %v4905 = vpop.permute.xlu0 %4904
    %4910 = vrot.lane.b32.xlu0 %v4692, 16
    %v4911 = vpop.permute.xlu0 %4910
    %4912 = vrot.lane.b32.xlu0 %v4697, 16
    %v4913 = vpop.permute.xlu0 %4912
    %4918 = vrot.lane.b32.xlu0 %v4892, 24
    %v4919 = vpop.permute.xlu0 %4918
    %4920 = vrot.lane.b32.xlu0 %v4897, 24
    %v4921 = vpop.permute.xlu0 %4920
    %v4924 = vsel %vm391, %v4292, %v4903
    %v4925 = vsel %vm391, %v4297, %v4905
    %v4926 = vsel %vm825, %v4924, %v4911
    %v4927 = vsel %vm825, %v4925, %v4913
    %v4928 = vsel %vm1563, %v4926, %v4919
    %v4929 = vsel %vm1563, %v4927, %v4921
    %v4931 = vlaneseq
    %v4932 = vshrl.u32 %v4931, 7
    %v4933 = vsub.s32 0, %v4932
    %v4934 = vrot.slane %v4014, %v4933
    %v4937 = vsel %vm654, %v4928, 0
    %v4940 = vsel %vm654, %v4929, 0
    %4942 = vmatprep.subr.mxu0 0.0
    %4943 = vmatpush1.msra.mxu0 0.0
    %4944 = vmatprep.subr.mxu0 0.0
    %4945 = vmatpush1.msra.mxu0 0.0
    %4946 = vmatprep.subr.mxu0 0.0
    %4947 = vmatpush1.msra.mxu0 0.0
    %4948 = vmatprep.subr.mxu0 0.0
    %4949 = vmatpush1.msra.mxu0 0.0
    %4950 = vmatprep.subr.mxu0 0.0
    %4951 = vmatpush1.msra.mxu0 0.0
    %4952 = vmatprep.subr.mxu0 0.0
    %4953 = vmatpush1.msra.mxu0 0.0
    %4954 = vmatprep.subr.mxu0 0.0
    %4955 = vmatpush1.msra.mxu0 0.0
    %4956 = vmatprep.subr.mxu0 0.0
    %4957 = vmatpush1.msra.mxu0 0.0
    %4958 = vmatprep.subr.mxu0 0.0
    %4959 = vmatpush1.msra.mxu0 0.0
    %4960 = vmatprep.subr.mxu0 0.0
    %4961 = vmatpush1.msra.mxu0 0.0
    %4962 = vmatprep.subr.mxu0 0.0
    %4963 = vmatpush1.msra.mxu0 0.0
    %4964 = vmatprep.subr.mxu0 0.0
    %4965 = vmatpush1.msra.mxu0 0.0
    %4966 = vmatprep.subr.mxu0 0.0
    %4967 = vmatpush1.msra.mxu0 %v4013
    %4968 = vmatprep.subr.mxu0 0.0
    %4969 = vmatpush1.msra.mxu0 %v4012
    %4970 = vmatprep.subr.mxu0 0.0
    %4971 = vmatpush1.msra.mxu0 %v4011
    %4972 = vmatprep.subr.mxu0 0.0
    %4973 = vmatpush1.msra.mxu0 %v4010
    %4974 = vmatprep.subr.mxu0 0.0
    %4975 = vmatpush2.msra.mxu0 0.0
    %4976 = vmatprep.subr.mxu0 0.0
    %4977 = vmatpush2.msra.mxu0 0.0
    %4978 = vmatprep.subr.mxu0 0.0
    %4979 = vmatpush2.msra.mxu0 0.0
    %4980 = vmatprep.subr.mxu0 0.0
    %4981 = vmatpush2.msra.mxu0 0.0
    %4982 = vmatprep.subr.mxu0 0.0
    %4983 = vmatpush2.msra.mxu0 0.0
    %4984 = vmatprep.subr.mxu0 0.0
    %4985 = vmatpush2.msra.mxu0 0.0
    %4986 = vmatprep.subr.mxu0 0.0
    %4987 = vmatpush2.msra.mxu0 0.0
    %4988 = vmatprep.subr.mxu0 0.0
    %4989 = vmatpush2.msra.mxu0 0.0
    %4990 = vmatprep.subr.mxu0 0.0
    %4991 = vmatpush2.msra.mxu0 0.0
    %4992 = vmatprep.subr.mxu0 0.0
    %4993 = vmatpush2.msra.mxu0 0.0
    %4994 = vmatprep.subr.mxu0 0.0
    %4995 = vmatpush2.msra.mxu0 0.0
    %4996 = vmatprep.subr.mxu0 0.0
    %4997 = vmatpush2.msra.mxu0 0.0
    %4998 = vmatprep.subr.mxu0 0.0
    %4999 = vmatpush2.msra.mxu0 0.0
    %5000 = vmatprep.subr.mxu0 0.0
    %5001 = vmatpush2.msra.mxu0 0.0
    %5002 = vmatprep.subr.mxu0 0.0
    %5003 = vmatpush2.msra.mxu0 0.0
    %5004 = vmatprep.subr.mxu0 0.0
    %5005 = vmatpush2.msra.mxu0 0.0
    %5006 = vmatprep.mubr.f32.mxu0 0.0
    %5007 = vmatmul.mubr.f32.gmra.mxu0 %v4937
    %v5008 = vpop.f32.mrf.mxu0
    %v5009 = vadd.f32 %v4934, %v5008
    %v5010 = vpop.f32.mrf.mxu0
    %5011 = vmatprep.mubr.f32.mxu0 0.0
    %5012 = vmatmul.mubr.f32.gmra.mxu0 %v4940
    %v5013 = vpop.f32.mrf.mxu0
    %v5014 = vadd.f32 %v4934, %v5013
    %v5015 = vpop.f32.mrf.mxu0
    %5016 = vdwg.mxu0
    %v5017 = vadd.f32 %v4003, %v5009
    %v5018 = vadd.f32 %v4004, %v5014
    %v5019 = vsel %vm654, %v5017, 0.0
    %5020 = vadd.xlane.f32.xlu0 %v5019
    %v5021 = vpop.xlane.xlu0 %5020
    %v5022 = vsel %vm654, %v5018, 0.0
    %5023 = vadd.xlane.f32.xlu0 %v5022
    %v5024 = vpop.xlane.xlu0 %5023
    %v5025 = vmul.f32 %v5021, %v1661
    %v5026 = vmul.f32 %v5024, %v1661
    %v5027 = vsub.f32 %v5017, %v5025
    %v5028 = vsub.f32 %v5018, %v5026
    %v5029 = vmul.f32 %v5027, %v5027
    %v5030 = vmul.f32 %v5028, %v5028
    %v5031 = vsel %vm654, %v5029, 0.0
    %5032 = vadd.xlane.f32.xlu0 %v5031
    %v5033 = vpop.xlane.xlu0 %5032
    %v5034 = vsel %vm654, %v5030, 0.0
    %5035 = vadd.xlane.f32.xlu0 %v5034
    %v5036 = vpop.xlane.xlu0 %5035
    %v5037 = vmul.f32 %v5033, %v1674
    %v5038 = vmul.f32 %v5036, %v1674
    %v5039 = vrsqrt.pop %v5037
    %v5040 = vmul.f32 %v5037, %v5039
    %vm5041 = vcmp.eq.f32.partialorder %v5037, inf
    %v5042 = vsel %vm5041, %v5037, %v5040
    %vm5043 = vcmp.eq.f32.partialorder %v5037, 0.0
    %v5044 = vand.u32 %v5037, 2147483648
    %v5045 = vsel %vm5043, %v5044, %v5042
    %v5046 = vrsqrt.pop %v5038
    %v5047 = vmul.f32 %v5038, %v5046
    %vm5048 = vcmp.eq.f32.partialorder %v5038, inf
    %v5049 = vsel %vm5048, %v5038, %v5047
    %vm5050 = vcmp.eq.f32.partialorder %v5038, 0.0
    %v5051 = vand.u32 %v5038, 2147483648
    %v5052 = vsel %vm5050, %v5051, %v5049
    %v5053 = vadd.f32 %v5045, 1e-06
    %v5054 = vadd.f32 %v5052, 1e-06
    %v5055 = vrcp.pop %v5053
    %v5056 = vrcp.pop %v5054
    %v5057 = vlaneseq
    %v5058 = vshrl.u32 %v5057, 7
    %v5059 = vsub.s32 1, %v5058
    %v5060 = vrot.slane %v3420, %v5059
    %v5061 = vmul.f32 %v5060, %v5027
    %v5062 = vmul.f32 %v5060, %v5028
    %v5063 = vmul.f32 %v5061, %v5055
    %v5064 = vmul.f32 %v5062, %v5056
    %v5065 = vlaneseq
    %v5066 = vshrl.u32 %v5065, 7
    %v5067 = vsub.s32 1, %v5066
    %v5068 = vrot.slane %v3421, %v5067
    %v5069 = vadd.f32 %v5063, %v5068
    %v5070 = vadd.f32 %v5064, %v5068
    %v5071 = vld [vmem:[%s59] sm:$0xff]
    %v5072 = vld [vmem:[%s59 + $0x8] sm:$0xff]
    %v5073 = vld [vmem:[%s59 + $0x10] sm:$0xff]
    %v5074 = vld [vmem:[%s59 + $0x18] sm:$0xff]
    %v5075 = vld [vmem:[%s61] sm:$0x1]
    %v5077 = vlaneseq
    %v5078 = vshrl.u32 %v5077, 7
    %v5079 = vsub.s32 0, %v5078
    %v5080 = vrot.slane %v5075, %v5079
    %v5083 = vsel %vm654, %v5069, 0
    %v5086 = vsel %vm654, %v5070, 0
    %5088 = vmatprep.subr.mxu0 0.0
    %5089 = vmatpush1.msra.mxu0 0.0
    %5090 = vmatprep.subr.mxu0 0.0
    %5091 = vmatpush1.msra.mxu0 0.0
    %5092 = vmatprep.subr.mxu0 0.0
    %5093 = vmatpush1.msra.mxu0 0.0
    %5094 = vmatprep.subr.mxu0 0.0
    %5095 = vmatpush1.msra.mxu0 0.0
    %5096 = vmatprep.subr.mxu0 0.0
    %5097 = vmatpush1.msra.mxu0 0.0
    %5098 = vmatprep.subr.mxu0 0.0
    %5099 = vmatpush1.msra.mxu0 0.0
    %5100 = vmatprep.subr.mxu0 0.0
    %5101 = vmatpush1.msra.mxu0 0.0
    %5102 = vmatprep.subr.mxu0 0.0
    %5103 = vmatpush1.msra.mxu0 0.0
    %5104 = vmatprep.subr.mxu0 0.0
    %5105 = vmatpush1.msra.mxu0 0.0
    %5106 = vmatprep.subr.mxu0 0.0
    %5107 = vmatpush1.msra.mxu0 0.0
    %5108 = vmatprep.subr.mxu0 0.0
    %5109 = vmatpush1.msra.mxu0 0.0
    %5110 = vmatprep.subr.mxu0 0.0
    %5111 = vmatpush1.msra.mxu0 0.0
    %5112 = vmatprep.subr.mxu0 0.0
    %5113 = vmatpush1.msra.mxu0 %v5074
    %5114 = vmatprep.subr.mxu0 0.0
    %5115 = vmatpush1.msra.mxu0 %v5073
    %5116 = vmatprep.subr.mxu0 0.0
    %5117 = vmatpush1.msra.mxu0 %v5072
    %5118 = vmatprep.subr.mxu0 0.0
    %5119 = vmatpush1.msra.mxu0 %v5071
    %5120 = vmatprep.subr.mxu0 0.0
    %5121 = vmatpush2.msra.mxu0 0.0
    %5122 = vmatprep.subr.mxu0 0.0
    %5123 = vmatpush2.msra.mxu0 0.0
    %5124 = vmatprep.subr.mxu0 0.0
    %5125 = vmatpush2.msra.mxu0 0.0
    %5126 = vmatprep.subr.mxu0 0.0
    %5127 = vmatpush2.msra.mxu0 0.0
    %5128 = vmatprep.subr.mxu0 0.0
    %5129 = vmatpush2.msra.mxu0 0.0
    %5130 = vmatprep.subr.mxu0 0.0
    %5131 = vmatpush2.msra.mxu0 0.0
    %5132 = vmatprep.subr.mxu0 0.0
    %5133 = vmatpush2.msra.mxu0 0.0
    %5134 = vmatprep.subr.mxu0 0.0
    %5135 = vmatpush2.msra.mxu0 0.0
    %5136 = vmatprep.subr.mxu0 0.0
    %5137 = vmatpush2.msra.mxu0 0.0
    %5138 = vmatprep.subr.mxu0 0.0
    %5139 = vmatpush2.msra.mxu0 0.0
    %5140 = vmatprep.subr.mxu0 0.0
    %5141 = vmatpush2.msra.mxu0 0.0
    %5142 = vmatprep.subr.mxu0 0.0
    %5143 = vmatpush2.msra.mxu0 0.0
    %5144 = vmatprep.subr.mxu0 0.0
    %5145 = vmatpush2.msra.mxu0 0.0
    %5146 = vmatprep.subr.mxu0 0.0
    %5147 = vmatpush2.msra.mxu0 0.0
    %5148 = vmatprep.subr.mxu0 0.0
    %5149 = vmatpush2.msra.mxu0 0.0
    %5150 = vmatprep.subr.mxu0 0.0
    %5151 = vmatpush2.msra.mxu0 0.0
    %5152 = vmatprep.mubr.f32.mxu0 0.0
    %5153 = vmatmul.mubr.f32.gmra.mxu0 %v5083
    %v5154 = vpop.f32.mrf.mxu0
    %v5155 = vadd.f32 %v5080, %v5154
    %v5156 = vpop.f32.mrf.mxu0
    %5157 = vmatprep.mubr.f32.mxu0 0.0
    %5158 = vmatmul.mubr.f32.gmra.mxu0 %v5086
    %v5159 = vpop.f32.mrf.mxu0
    %v5160 = vadd.f32 %v5080, %v5159
    %v5161 = vpop.f32.mrf.mxu0
    %5162 = vdwg.mxu0
    %v5163 = vmax.f32 %v5155, 0.0
    %v5164 = vmax.f32 %v5160, 0.0
    %v5165 = vld [vmem:[%s63] sm:$0xff]
    %v5166 = vld [vmem:[%s63 + $0x8] sm:$0xff]
    %v5167 = vld [vmem:[%s63 + $0x10] sm:$0xff]
    %v5168 = vld [vmem:[%s63 + $0x18] sm:$0xff]
    %v5169 = vld [vmem:[%s63 + $0x20] sm:$0xff]
    %v5170 = vld [vmem:[%s63 + $0x28] sm:$0xff]
    %v5171 = vld [vmem:[%s63 + $0x30] sm:$0xff]
    %v5172 = vld [vmem:[%s63 + $0x38] sm:$0xff]
    %v5173 = vld [vmem:[#allocation6] sm:$0x1]
    %v5175 = vlaneseq
    %v5176 = vshrl.u32 %v5175, 7
    %v5177 = vsub.s32 0, %v5176
    %v5178 = vrot.slane %v5173, %v5177
    %v5181 = vsel %vm1818, %v5163, 0
    %v5184 = vsel %vm1818, %v5164, 0
    %5186 = vmatprep.subr.mxu0 0.0
    %5187 = vmatpush1.msra.mxu0 0.0
    %5188 = vmatprep.subr.mxu0 0.0
    %5189 = vmatpush1.msra.mxu0 0.0
    %5190 = vmatprep.subr.mxu0 0.0
    %5191 = vmatpush1.msra.mxu0 0.0
    %5192 = vmatprep.subr.mxu0 0.0
    %5193 = vmatpush1.msra.mxu0 0.0
    %5194 = vmatprep.subr.mxu0 0.0
    %5195 = vmatpush1.msra.mxu0 0.0
    %5196 = vmatprep.subr.mxu0 0.0
    %5197 = vmatpush1.msra.mxu0 0.0
    %5198 = vmatprep.subr.mxu0 0.0
    %5199 = vmatpush1.msra.mxu0 0.0
    %5200 = vmatprep.subr.mxu0 0.0
    %5201 = vmatpush1.msra.mxu0 0.0
    %5202 = vmatprep.subr.mxu0 0.0
    %5203 = vmatpush1.msra.mxu0 %v5172
    %5204 = vmatprep.subr.mxu0 0.0
    %5205 = vmatpush1.msra.mxu0 %v5171
    %5206 = vmatprep.subr.mxu0 0.0
    %5207 = vmatpush1.msra.mxu0 %v5170
    %5208 = vmatprep.subr.mxu0 0.0
    %5209 = vmatpush1.msra.mxu0 %v5169
    %5210 = vmatprep.subr.mxu0 0.0
    %5211 = vmatpush1.msra.mxu0 %v5168
    %5212 = vmatprep.subr.mxu0 0.0
    %5213 = vmatpush1.msra.mxu0 %v5167
    %5214 = vmatprep.subr.mxu0 0.0
    %5215 = vmatpush1.msra.mxu0 %v5166
    %5216 = vmatprep.subr.mxu0 0.0
    %5217 = vmatpush1.msra.mxu0 %v5165
    %5218 = vmatprep.subr.mxu0 0.0
    %5219 = vmatpush2.msra.mxu0 0.0
    %5220 = vmatprep.subr.mxu0 0.0
    %5221 = vmatpush2.msra.mxu0 0.0
    %5222 = vmatprep.subr.mxu0 0.0
    %5223 = vmatpush2.msra.mxu0 0.0
    %5224 = vmatprep.subr.mxu0 0.0
    %5225 = vmatpush2.msra.mxu0 0.0
    %5226 = vmatprep.subr.mxu0 0.0
    %5227 = vmatpush2.msra.mxu0 0.0
    %5228 = vmatprep.subr.mxu0 0.0
    %5229 = vmatpush2.msra.mxu0 0.0
    %5230 = vmatprep.subr.mxu0 0.0
    %5231 = vmatpush2.msra.mxu0 0.0
    %5232 = vmatprep.subr.mxu0 0.0
    %5233 = vmatpush2.msra.mxu0 0.0
    %5234 = vmatprep.subr.mxu0 0.0
    %5235 = vmatpush2.msra.mxu0 0.0
    %5236 = vmatprep.subr.mxu0 0.0
    %5237 = vmatpush2.msra.mxu0 0.0
    %5238 = vmatprep.subr.mxu0 0.0
    %5239 = vmatpush2.msra.mxu0 0.0
    %5240 = vmatprep.subr.mxu0 0.0
    %5241 = vmatpush2.msra.mxu0 0.0
    %5242 = vmatprep.subr.mxu0 0.0
    %5243 = vmatpush2.msra.mxu0 0.0
    %5244 = vmatprep.subr.mxu0 0.0
    %5245 = vmatpush2.msra.mxu0 0.0
    %5246 = vmatprep.subr.mxu0 0.0
    %5247 = vmatpush2.msra.mxu0 0.0
    %5248 = vmatprep.subr.mxu0 0.0
    %5249 = vmatpush2.msra.mxu0 0.0
    %5250 = vmatprep.mubr.f32.mxu0 0.0
    %5251 = vmatmul.mubr.f32.gmra.mxu0 %v5181
    %v5252 = vpop.f32.mrf.mxu0
    %v5253 = vadd.f32 %v5178, %v5252
    %v5254 = vpop.f32.mrf.mxu0
    %5255 = vmatprep.mubr.f32.mxu0 0.0
    %5256 = vmatmul.mubr.f32.gmra.mxu0 %v5184
    %v5257 = vpop.f32.mrf.mxu0
    %v5258 = vadd.f32 %v5178, %v5257
    %v5259 = vpop.f32.mrf.mxu0
    %5260 = vdwg.mxu0
    %v5261 = vadd.f32 %v5069, %v5253
    %v5262 = vadd.f32 %v5070, %v5258
    %v5263 = vsel %vm654, %v5261, 0.0
    %5264 = vadd.xlane.f32.xlu0 %v5263
    %v5265 = vpop.xlane.xlu0 %5264
    %v5266 = vsel %vm654, %v5262, 0.0
    %5267 = vadd.xlane.f32.xlu0 %v5266
    %v5268 = vpop.xlane.xlu0 %5267
    %v5269 = vmul.f32 %v5265, %v1661
    %v5270 = vmul.f32 %v5268, %v1661
    %v5271 = vsub.f32 %v5261, %v5269
    %v5272 = vsub.f32 %v5262, %v5270
    %v5273 = vmul.f32 %v5271, %v5271
    %v5274 = vmul.f32 %v5272, %v5272
    %v5275 = vsel %vm654, %v5273, 0.0
    %5276 = vadd.xlane.f32.xlu0 %v5275
    %v5277 = vpop.xlane.xlu0 %5276
    %v5278 = vsel %vm654, %v5274, 0.0
    %5279 = vadd.xlane.f32.xlu0 %v5278
    %v5280 = vpop.xlane.xlu0 %5279
    %v5281 = vmul.f32 %v5277, %v1674
    %v5282 = vmul.f32 %v5280, %v1674
    %v5283 = vrsqrt.pop %v5281
    %v5284 = vmul.f32 %v5281, %v5283
    %vm5285 = vcmp.eq.f32.partialorder %v5281, inf
    %v5286 = vsel %vm5285, %v5281, %v5284
    %vm5287 = vcmp.eq.f32.partialorder %v5281, 0.0
    %v5288 = vand.u32 %v5281, 2147483648
    %v5289 = vsel %vm5287, %v5288, %v5286
    %v5290 = vrsqrt.pop %v5282
    %v5291 = vmul.f32 %v5282, %v5290
    %vm5292 = vcmp.eq.f32.partialorder %v5282, inf
    %v5293 = vsel %vm5292, %v5282, %v5291
    %vm5294 = vcmp.eq.f32.partialorder %v5282, 0.0
    %v5295 = vand.u32 %v5282, 2147483648
    %v5296 = vsel %vm5294, %v5295, %v5293
    %v5297 = vadd.f32 %v5289, 1e-06
    %v5298 = vadd.f32 %v5296, 1e-06
    %v5299 = vrcp.pop %v5297
    %v5300 = vrcp.pop %v5298
    %v5301 = vlaneseq
    %v5302 = vshrl.u32 %v5301, 7
    %v5303 = vsub.s32 2, %v5302
    %v5304 = vrot.slane %v3420, %v5303
    %v5305 = vmul.f32 %v5304, %v5271
    %v5306 = vmul.f32 %v5304, %v5272
    %v5307 = vmul.f32 %v5305, %v5299
    %v5308 = vmul.f32 %v5306, %v5300
    %v5309 = vlaneseq
    %v5310 = vshrl.u32 %v5309, 7
    %v5311 = vsub.s32 2, %v5310
    %v5312 = vrot.slane %v3421, %v5311
    %v5313 = vadd.f32 %v5307, %v5312
    %v5314 = vadd.f32 %v5308, %v5312
    %v5315 = vld [vmem:[%s71] sm:$0xff]
    %v5316 = vld [vmem:[%s71 + $0x8] sm:$0x3]
    %v5317 = vld [vmem:[#allocation7] sm:$0x1]
    %v5318 = vld [vmem:[%s75] sm:$0xff]
    %v5319 = vld [vmem:[%s75 + $0x8] sm:$0xff]
    %v5320 = vld [vmem:[%s75 + $0x10] sm:$0xff]
    %v5321 = vld [vmem:[%s75 + $0x18] sm:$0xff]
    %v5322 = vld [vmem:[#allocation9] sm:$0x1]
    %v5323 = vld [vmem:[%s79] sm:$0xff]
    %v5324 = vld [vmem:[%s79 + $0x8] sm:$0xff]
    %v5325 = vld [vmem:[%s79 + $0x10] sm:$0xff]
    %v5326 = vld [vmem:[%s79 + $0x18] sm:$0xff]
    %v5327 = vld [vmem:[#allocation10] sm:$0x1]
    %v5328 = vld [vmem:[%s83] sm:$0xff]
    %v5329 = vld [vmem:[%s83 + $0x8] sm:$0xff]
    %v5330 = vld [vmem:[%s83 + $0x10] sm:$0xff]
    %v5331 = vld [vmem:[%s83 + $0x18] sm:$0xff]
    %v5332 = vld [vmem:[#allocation12] sm:$0x1]
    %v5334 = vsel %vm316, %v5316, 0
    %5336 = vmatprep.subr.mxu0 0.0
    %5337 = vmatpush1.msra.mxu0 0.0
    %5338 = vmatprep.subr.mxu0 0.0
    %5339 = vmatpush1.msra.mxu0 0.0
    %5340 = vmatprep.subr.mxu0 0.0
    %5341 = vmatpush1.msra.mxu0 0.0
    %5342 = vmatprep.subr.mxu0 0.0
    %5343 = vmatpush1.msra.mxu0 0.0
    %5344 = vmatprep.subr.mxu0 0.0
    %5345 = vmatpush1.msra.mxu0 0.0
    %5346 = vmatprep.subr.mxu0 0.0
    %5347 = vmatpush1.msra.mxu0 0.0
    %5348 = vmatprep.subr.mxu0 0.0
    %5349 = vmatpush1.msra.mxu0 0.0
    %5350 = vmatprep.subr.mxu0 0.0
    %5351 = vmatpush1.msra.mxu0 0.0
    %5352 = vmatprep.subr.mxu0 0.0
    %5353 = vmatpush1.msra.mxu0 0.0
    %5354 = vmatprep.subr.mxu0 0.0
    %5355 = vmatpush1.msra.mxu0 0.0
    %5356 = vmatprep.subr.mxu0 0.0
    %5357 = vmatpush1.msra.mxu0 0.0
    %5358 = vmatprep.subr.mxu0 0.0
    %5359 = vmatpush1.msra.mxu0 0.0
    %5360 = vmatprep.subr.mxu0 0.0
    %5361 = vmatpush1.msra.mxu0 0.0
    %5362 = vmatprep.subr.mxu0 0.0
    %5363 = vmatpush1.msra.mxu0 0.0
    %5364 = vmatprep.subr.mxu0 0.0
    %5365 = vmatpush1.msra.mxu0 %v5334
    %5366 = vmatprep.subr.mxu0 0.0
    %5367 = vmatpush1.msra.mxu0 %v5315
    %5368 = vmatprep.subr.mxu0 0.0
    %5369 = vmatpush2.msra.mxu0 0.0
    %5370 = vmatprep.subr.mxu0 0.0
    %5371 = vmatpush2.msra.mxu0 0.0
    %5372 = vmatprep.subr.mxu0 0.0
    %5373 = vmatpush2.msra.mxu0 0.0
    %5374 = vmatprep.subr.mxu0 0.0
    %5375 = vmatpush2.msra.mxu0 0.0
    %5376 = vmatprep.subr.mxu0 0.0
    %5377 = vmatpush2.msra.mxu0 0.0
    %5378 = vmatprep.subr.mxu0 0.0
    %5379 = vmatpush2.msra.mxu0 0.0
    %5380 = vmatprep.subr.mxu0 0.0
    %5381 = vmatpush2.msra.mxu0 0.0
    %5382 = vmatprep.subr.mxu0 0.0
    %5383 = vmatpush2.msra.mxu0 0.0
    %5384 = vmatprep.subr.mxu0 0.0
    %5385 = vmatpush2.msra.mxu0 0.0
    %5386 = vmatprep.subr.mxu0 0.0
    %5387 = vmatpush2.msra.mxu0 0.0
    %5388 = vmatprep.subr.mxu0 0.0
    %5389 = vmatpush2.msra.mxu0 0.0
    %5390 = vmatprep.subr.mxu0 0.0
    %5391 = vmatpush2.msra.mxu0 0.0
    %5392 = vmatprep.subr.mxu0 0.0
    %5393 = vmatpush2.msra.mxu0 0.0
    %5394 = vmatprep.subr.mxu0 0.0
    %5395 = vmatpush2.msra.mxu0 0.0
    %5396 = vmatprep.subr.mxu0 0.0
    %5397 = vmatpush2.msra.mxu0 0.0
    %5398 = vmatprep.subr.mxu0 0.0
    %5399 = vmatpush2.msra.mxu0 0.0
    %5400 = vmatprep.mubr.f32.mxu0 0.0
    %5401 = vmatmul.mubr.f32.gmra.mxu0 %v3441
    %v5402 = vpop.f32.mrf.mxu0
    %v5403 = vadd.f32 %v5317, %v5402
    %v5404 = vpop.f32.mrf.mxu0
    %5405 = vdwg.mxu0
    %v5407 = vsel %vm654, %v5403, 0
    %5409 = vmatprep.subr.mxu0 0.0
    %5410 = vmatpush1.msra.mxu0 0.0
    %5411 = vmatprep.subr.mxu0 0.0
    %5412 = vmatpush1.msra.mxu0 0.0
    %5413 = vmatprep.subr.mxu0 0.0
    %5414 = vmatpush1.msra.mxu0 0.0
    %5415 = vmatprep.subr.mxu0 0.0
    %5416 = vmatpush1.msra.mxu0 0.0
    %5417 = vmatprep.subr.mxu0 0.0
    %5418 = vmatpush1.msra.mxu0 0.0
    %5419 = vmatprep.subr.mxu0 0.0
    %5420 = vmatpush1.msra.mxu0 0.0
    %5421 = vmatprep.subr.mxu0 0.0
    %5422 = vmatpush1.msra.mxu0 0.0
    %5423 = vmatprep.subr.mxu0 0.0
    %5424 = vmatpush1.msra.mxu0 0.0
    %5425 = vmatprep.subr.mxu0 0.0
    %5426 = vmatpush1.msra.mxu0 0.0
    %5427 = vmatprep.subr.mxu0 0.0
    %5428 = vmatpush1.msra.mxu0 0.0
    %5429 = vmatprep.subr.mxu0 0.0
    %5430 = vmatpush1.msra.mxu0 0.0
    %5431 = vmatprep.subr.mxu0 0.0
    %5432 = vmatpush1.msra.mxu0 0.0
    %5433 = vmatprep.subr.mxu0 0.0
    %5434 = vmatpush1.msra.mxu0 %v5321
    %5435 = vmatprep.subr.mxu0 0.0
    %5436 = vmatpush1.msra.mxu0 %v5320
    %5437 = vmatprep.subr.mxu0 0.0
    %5438 = vmatpush1.msra.mxu0 %v5319
    %5439 = vmatprep.subr.mxu0 0.0
    %5440 = vmatpush1.msra.mxu0 %v5318
    %5441 = vmatprep.subr.mxu0 0.0
    %5442 = vmatpush2.msra.mxu0 0.0
    %5443 = vmatprep.subr.mxu0 0.0
    %5444 = vmatpush2.msra.mxu0 0.0
    %5445 = vmatprep.subr.mxu0 0.0
    %5446 = vmatpush2.msra.mxu0 0.0
    %5447 = vmatprep.subr.mxu0 0.0
    %5448 = vmatpush2.msra.mxu0 0.0
    %5449 = vmatprep.subr.mxu0 0.0
    %5450 = vmatpush2.msra.mxu0 0.0
    %5451 = vmatprep.subr.mxu0 0.0
    %5452 = vmatpush2.msra.mxu0 0.0
    %5453 = vmatprep.subr.mxu0 0.0
    %5454 = vmatpush2.msra.mxu0 0.0
    %5455 = vmatprep.subr.mxu0 0.0
    %5456 = vmatpush2.msra.mxu0 0.0
    %5457 = vmatprep.subr.mxu0 0.0
    %5458 = vmatpush2.msra.mxu0 0.0
    %5459 = vmatprep.subr.mxu0 0.0
    %5460 = vmatpush2.msra.mxu0 0.0
    %5461 = vmatprep.subr.mxu0 0.0
    %5462 = vmatpush2.msra.mxu0 0.0
    %5463 = vmatprep.subr.mxu0 0.0
    %5464 = vmatpush2.msra.mxu0 0.0
    %5465 = vmatprep.subr.mxu0 0.0
    %5466 = vmatpush2.msra.mxu0 0.0
    %5467 = vmatprep.subr.mxu0 0.0
    %5468 = vmatpush2.msra.mxu0 0.0
    %5469 = vmatprep.subr.mxu0 0.0
    %5470 = vmatpush2.msra.mxu0 0.0
    %5471 = vmatprep.subr.mxu0 0.0
    %5472 = vmatpush2.msra.mxu0 0.0
    %5473 = vmatprep.mubr.f32.mxu0 0.0
    %5474 = vmatmul.mubr.f32.gmra.mxu0 %v5407
    %v5475 = vpop.f32.mrf.mxu0
    %v5476 = vadd.f32 %v5322, %v5475
    %v5477 = vpop.f32.mrf.mxu0
    %5478 = vdwg.mxu0
    %v5480 = vlaneseq
    %v5481 = vshrl.u32 %v5480, 7
    %v5482 = vsub.s32 0, %v5481
    %v5483 = vrot.slane %v5327, %v5482
    %v5486 = vsel %vm654, %v5313, 0
    %v5489 = vsel %vm654, %v5314, 0
    %5491 = vmatprep.subr.mxu0 0.0
    %5492 = vmatpush1.msra.mxu0 0.0
    %5493 = vmatprep.subr.mxu0 0.0
    %5494 = vmatpush1.msra.mxu0 0.0
    %5495 = vmatprep.subr.mxu0 0.0
    %5496 = vmatpush1.msra.mxu0 0.0
    %5497 = vmatprep.subr.mxu0 0.0
    %5498 = vmatpush1.msra.mxu0 0.0
    %5499 = vmatprep.subr.mxu0 0.0
    %5500 = vmatpush1.msra.mxu0 0.0
    %5501 = vmatprep.subr.mxu0 0.0
    %5502 = vmatpush1.msra.mxu0 0.0
    %5503 = vmatprep.subr.mxu0 0.0
    %5504 = vmatpush1.msra.mxu0 0.0
    %5505 = vmatprep.subr.mxu0 0.0
    %5506 = vmatpush1.msra.mxu0 0.0
    %5507 = vmatprep.subr.mxu0 0.0
    %5508 = vmatpush1.msra.mxu0 0.0
    %5509 = vmatprep.subr.mxu0 0.0
    %5510 = vmatpush1.msra.mxu0 0.0
    %5511 = vmatprep.subr.mxu0 0.0
    %5512 = vmatpush1.msra.mxu0 0.0
    %5513 = vmatprep.subr.mxu0 0.0
    %5514 = vmatpush1.msra.mxu0 0.0
    %5515 = vmatprep.subr.mxu0 0.0
    %5516 = vmatpush1.msra.mxu0 %v5326
    %5517 = vmatprep.subr.mxu0 0.0
    %5518 = vmatpush1.msra.mxu0 %v5325
    %5519 = vmatprep.subr.mxu0 0.0
    %5520 = vmatpush1.msra.mxu0 %v5324
    %5521 = vmatprep.subr.mxu0 0.0
    %5522 = vmatpush1.msra.mxu0 %v5323
    %5523 = vmatprep.subr.mxu0 0.0
    %5524 = vmatpush2.msra.mxu0 0.0
    %5525 = vmatprep.subr.mxu0 0.0
    %5526 = vmatpush2.msra.mxu0 0.0
    %5527 = vmatprep.subr.mxu0 0.0
    %5528 = vmatpush2.msra.mxu0 0.0
    %5529 = vmatprep.subr.mxu0 0.0
    %5530 = vmatpush2.msra.mxu0 0.0
    %5531 = vmatprep.subr.mxu0 0.0
    %5532 = vmatpush2.msra.mxu0 0.0
    %5533 = vmatprep.subr.mxu0 0.0
    %5534 = vmatpush2.msra.mxu0 0.0
    %5535 = vmatprep.subr.mxu0 0.0
    %5536 = vmatpush2.msra.mxu0 0.0
    %5537 = vmatprep.subr.mxu0 0.0
    %5538 = vmatpush2.msra.mxu0 0.0
    %5539 = vmatprep.subr.mxu0 0.0
    %5540 = vmatpush2.msra.mxu0 0.0
    %5541 = vmatprep.subr.mxu0 0.0
    %5542 = vmatpush2.msra.mxu0 0.0
    %5543 = vmatprep.subr.mxu0 0.0
    %5544 = vmatpush2.msra.mxu0 0.0
    %5545 = vmatprep.subr.mxu0 0.0
    %5546 = vmatpush2.msra.mxu0 0.0
    %5547 = vmatprep.subr.mxu0 0.0
    %5548 = vmatpush2.msra.mxu0 0.0
    %5549 = vmatprep.subr.mxu0 0.0
    %5550 = vmatpush2.msra.mxu0 0.0
    %5551 = vmatprep.subr.mxu0 0.0
    %5552 = vmatpush2.msra.mxu0 0.0
    %5553 = vmatprep.subr.mxu0 0.0
    %5554 = vmatpush2.msra.mxu0 0.0
    %5555 = vmatprep.mubr.f32.mxu0 0.0
    %5556 = vmatmul.mubr.f32.gmra.mxu0 %v5486
    %v5557 = vpop.f32.mrf.mxu0
    %v5558 = vadd.f32 %v5483, %v5557
    %v5559 = vpop.f32.mrf.mxu0
    %5560 = vmatprep.mubr.f32.mxu0 0.0
    %5561 = vmatmul.mubr.f32.gmra.mxu0 %v5489
    %v5562 = vpop.f32.mrf.mxu0
    %v5563 = vadd.f32 %v5483, %v5562
    %v5564 = vpop.f32.mrf.mxu0
    %5565 = vdwg.mxu0
    %v5567 = vsel %vm391, %v5476, 0
    %v5570 = vsel %vm391, %v5558, 0
    %v5573 = vsel %vm391, %v5563, 0
    %5575 = vmatprep.subr.mxu0 0.0
    %5576 = vmatpush1.xpose.msra.mxu0 0.0
    %5577 = vmatprep.subr.mxu0 0.0
    %5578 = vmatpush1.xpose.msra.mxu0 0.0
    %5579 = vmatprep.subr.mxu0 0.0
    %5580 = vmatpush1.xpose.msra.mxu0 0.0
    %5581 = vmatprep.subr.mxu0 0.0
    %5582 = vmatpush1.xpose.msra.mxu0 0.0
    %5583 = vmatprep.subr.mxu0 0.0
    %5584 = vmatpush1.xpose.msra.mxu0 0.0
    %5585 = vmatprep.subr.mxu0 0.0
    %5586 = vmatpush1.xpose.msra.mxu0 0.0
    %5587 = vmatprep.subr.mxu0 0.0
    %5588 = vmatpush1.xpose.msra.mxu0 0.0
    %5589 = vmatprep.subr.mxu0 0.0
    %5590 = vmatpush1.xpose.msra.mxu0 0.0
    %5591 = vmatprep.subr.mxu0 0.0
    %5592 = vmatpush1.xpose.msra.mxu0 0.0
    %5593 = vmatprep.subr.mxu0 0.0
    %5594 = vmatpush1.xpose.msra.mxu0 0.0
    %5595 = vmatprep.subr.mxu0 0.0
    %5596 = vmatpush1.xpose.msra.mxu0 0.0
    %5597 = vmatprep.subr.mxu0 0.0
    %5598 = vmatpush1.xpose.msra.mxu0 0.0
    %5599 = vmatprep.subr.mxu0 0.0
    %5600 = vmatpush1.xpose.msra.mxu0 0.0
    %5601 = vmatprep.subr.mxu0 0.0
    %5602 = vmatpush1.xpose.msra.mxu0 0.0
    %5603 = vmatprep.subr.mxu0 0.0
    %5604 = vmatpush1.xpose.msra.mxu0 %v5573
    %5605 = vmatprep.subr.mxu0 0.0
    %5606 = vmatpush1.xpose.msra.mxu0 %v5570
    %5607 = vmatprep.subr.mxu0 0.0
    %5608 = vmatpush2.xpose.msra.mxu0 0.0
    %5609 = vmatprep.subr.mxu0 0.0
    %5610 = vmatpush2.xpose.msra.mxu0 0.0
    %5611 = vmatprep.subr.mxu0 0.0
    %5612 = vmatpush2.xpose.msra.mxu0 0.0
    %5613 = vmatprep.subr.mxu0 0.0
    %5614 = vmatpush2.xpose.msra.mxu0 0.0
    %5615 = vmatprep.subr.mxu0 0.0
    %5616 = vmatpush2.xpose.msra.mxu0 0.0
    %5617 = vmatprep.subr.mxu0 0.0
    %5618 = vmatpush2.xpose.msra.mxu0 0.0
    %5619 = vmatprep.subr.mxu0 0.0
    %5620 = vmatpush2.xpose.msra.mxu0 0.0
    %5621 = vmatprep.subr.mxu0 0.0
    %5622 = vmatpush2.xpose.msra.mxu0 0.0
    %5623 = vmatprep.subr.mxu0 0.0
    %5624 = vmatpush2.xpose.msra.mxu0 0.0
    %5625 = vmatprep.subr.mxu0 0.0
    %5626 = vmatpush2.xpose.msra.mxu0 0.0
    %5627 = vmatprep.subr.mxu0 0.0
    %5628 = vmatpush2.xpose.msra.mxu0 0.0
    %5629 = vmatprep.subr.mxu0 0.0
    %5630 = vmatpush2.xpose.msra.mxu0 0.0
    %5631 = vmatprep.subr.mxu0 0.0
    %5632 = vmatpush2.xpose.msra.mxu0 0.0
    %5633 = vmatprep.subr.mxu0 0.0
    %5634 = vmatpush2.xpose.msra.mxu0 0.0
    %5635 = vmatprep.subr.mxu0 0.0
    %5636 = vmatpush2.xpose.msra.mxu0 0.0
    %5637 = vmatprep.subr.mxu0 0.0
    %5638 = vmatpush2.xpose.msra.mxu0 0.0
    %5639 = vmatprep.mubr.f32.mxu0 0.0
    %5640 = vmatmul.mubr.f32.gmra.mxu0 %v5567
    %v5641 = vpop.f32.mrf.mxu0
    %v5642 = vadd.f32 0.0, %v5641
    %v5643 = vpop.f32.mrf.mxu0
    %5644 = vdwg.mxu0
    %vm5645 = vcmask 122880
    %v5646 = vsel %vm5645, %v5642, -inf
    %5647 = vmax.xlane.f32.xlu0 %v5646
    %v5648 = vpop.xlane.xlu0 %5647
    %v5649 = vsub.f32 %v5642, %v5648
    %v5650 = vmul.f32 %v5649, 1.442695
    %v5651 = vpow.pop %v5650
    %v5652 = vsel %vm5645, %v5651, 0.0
    %5653 = vadd.xlane.f32.xlu0 %v5652
    %v5654 = vpop.xlane.xlu0 %5653
    %v5655 = vrcp.pop %v5654
    %v5656 = vmul.f32 %v5651, %v5655
    %5657 = vrot.lane.b32.xlu0 %v5558, 96
    %v5658 = vpop.permute.xlu0 %5657
    %5659 = vrot.lane.b32.xlu0 %v5563, 96
    %v5660 = vpop.permute.xlu0 %5659
    %v5664 = vsel %vm825, %v5656, 0
    %5666 = vmatprep.subr.mxu0 0.0
    %5667 = vmatpush1.msra.mxu0 0.0
    %5668 = vmatprep.subr.mxu0 0.0
    %5669 = vmatpush1.msra.mxu0 0.0
    %5670 = vmatprep.subr.mxu0 0.0
    %5671 = vmatpush1.msra.mxu0 0.0
    %5672 = vmatprep.subr.mxu0 0.0
    %5673 = vmatpush1.msra.mxu0 0.0
    %5674 = vmatprep.subr.mxu0 0.0
    %5675 = vmatpush1.msra.mxu0 0.0
    %5676 = vmatprep.subr.mxu0 0.0
    %5677 = vmatpush1.msra.mxu0 0.0
    %5678 = vmatprep.subr.mxu0 0.0
    %5679 = vmatpush1.msra.mxu0 0.0
    %5680 = vmatprep.subr.mxu0 0.0
    %5681 = vmatpush1.msra.mxu0 0.0
    %5682 = vmatprep.subr.mxu0 0.0
    %5683 = vmatpush1.msra.mxu0 0.0
    %5684 = vmatprep.subr.mxu0 0.0
    %5685 = vmatpush1.msra.mxu0 0.0
    %5686 = vmatprep.subr.mxu0 0.0
    %5687 = vmatpush1.msra.mxu0 0.0
    %5688 = vmatprep.subr.mxu0 0.0
    %5689 = vmatpush1.msra.mxu0 0.0
    %5690 = vmatprep.subr.mxu0 0.0
    %5691 = vmatpush1.msra.mxu0 0.0
    %5692 = vmatprep.subr.mxu0 0.0
    %5693 = vmatpush1.msra.mxu0 0.0
    %5694 = vmatprep.subr.mxu0 0.0
    %5695 = vmatpush1.msra.mxu0 %v5660
    %5696 = vmatprep.subr.mxu0 0.0
    %5697 = vmatpush1.msra.mxu0 %v5658
    %5698 = vmatprep.subr.mxu0 0.0
    %5699 = vmatpush2.msra.mxu0 0.0
    %5700 = vmatprep.subr.mxu0 0.0
    %5701 = vmatpush2.msra.mxu0 0.0
    %5702 = vmatprep.subr.mxu0 0.0
    %5703 = vmatpush2.msra.mxu0 0.0
    %5704 = vmatprep.subr.mxu0 0.0
    %5705 = vmatpush2.msra.mxu0 0.0
    %5706 = vmatprep.subr.mxu0 0.0
    %5707 = vmatpush2.msra.mxu0 0.0
    %5708 = vmatprep.subr.mxu0 0.0
    %5709 = vmatpush2.msra.mxu0 0.0
    %5710 = vmatprep.subr.mxu0 0.0
    %5711 = vmatpush2.msra.mxu0 0.0
    %5712 = vmatprep.subr.mxu0 0.0
    %5713 = vmatpush2.msra.mxu0 0.0
    %5714 = vmatprep.subr.mxu0 0.0
    %5715 = vmatpush2.msra.mxu0 0.0
    %5716 = vmatprep.subr.mxu0 0.0
    %5717 = vmatpush2.msra.mxu0 0.0
    %5718 = vmatprep.subr.mxu0 0.0
    %5719 = vmatpush2.msra.mxu0 0.0
    %5720 = vmatprep.subr.mxu0 0.0
    %5721 = vmatpush2.msra.mxu0 0.0
    %5722 = vmatprep.subr.mxu0 0.0
    %5723 = vmatpush2.msra.mxu0 0.0
    %5724 = vmatprep.subr.mxu0 0.0
    %5725 = vmatpush2.msra.mxu0 0.0
    %5726 = vmatprep.subr.mxu0 0.0
    %5727 = vmatpush2.msra.mxu0 0.0
    %5728 = vmatprep.subr.mxu0 0.0
    %5729 = vmatpush2.msra.mxu0 0.0
    %5730 = vmatprep.mubr.f32.mxu0 0.0
    %5731 = vmatmul.mubr.f32.gmra.mxu0 %v5664
    %v5732 = vpop.f32.mrf.mxu0
    %v5733 = vadd.f32 0.0, %v5732
    %v5734 = vpop.f32.mrf.mxu0
    %5735 = vdwg.mxu0
    %5736 = vrot.lane.b32.xlu0 %v5476, 120
    %v5737 = vpop.permute.xlu0 %5736
    %5738 = vrot.lane.b32.xlu0 %v5558, 120
    %v5739 = vpop.permute.xlu0 %5738
    %5740 = vrot.lane.b32.xlu0 %v5563, 120
    %v5741 = vpop.permute.xlu0 %5740
    %v5742 = vsel %vm391, %v5737, 0
    %v5744 = vsel %vm391, %v5739, 0
    %v5746 = vsel %vm391, %v5741, 0
    %5748 = vmatprep.subr.mxu0 0.0
    %5749 = vmatpush1.xpose.msra.mxu0 0.0
    %5750 = vmatprep.subr.mxu0 0.0
    %5751 = vmatpush1.xpose.msra.mxu0 0.0
    %5752 = vmatprep.subr.mxu0 0.0
    %5753 = vmatpush1.xpose.msra.mxu0 0.0
    %5754 = vmatprep.subr.mxu0 0.0
    %5755 = vmatpush1.xpose.msra.mxu0 0.0
    %5756 = vmatprep.subr.mxu0 0.0
    %5757 = vmatpush1.xpose.msra.mxu0 0.0
    %5758 = vmatprep.subr.mxu0 0.0
    %5759 = vmatpush1.xpose.msra.mxu0 0.0
    %5760 = vmatprep.subr.mxu0 0.0
    %5761 = vmatpush1.xpose.msra.mxu0 0.0
    %5762 = vmatprep.subr.mxu0 0.0
    %5763 = vmatpush1.xpose.msra.mxu0 0.0
    %5764 = vmatprep.subr.mxu0 0.0
    %5765 = vmatpush1.xpose.msra.mxu0 0.0
    %5766 = vmatprep.subr.mxu0 0.0
    %5767 = vmatpush1.xpose.msra.mxu0 0.0
    %5768 = vmatprep.subr.mxu0 0.0
    %5769 = vmatpush1.xpose.msra.mxu0 0.0
    %5770 = vmatprep.subr.mxu0 0.0
    %5771 = vmatpush1.xpose.msra.mxu0 0.0
    %5772 = vmatprep.subr.mxu0 0.0
    %5773 = vmatpush1.xpose.msra.mxu0 0.0
    %5774 = vmatprep.subr.mxu0 0.0
    %5775 = vmatpush1.xpose.msra.mxu0 0.0
    %5776 = vmatprep.subr.mxu0 0.0
    %5777 = vmatpush1.xpose.msra.mxu0 %v5746
    %5778 = vmatprep.subr.mxu0 0.0
    %5779 = vmatpush1.xpose.msra.mxu0 %v5744
    %5780 = vmatprep.subr.mxu0 0.0
    %5781 = vmatpush2.xpose.msra.mxu0 0.0
    %5782 = vmatprep.subr.mxu0 0.0
    %5783 = vmatpush2.xpose.msra.mxu0 0.0
    %5784 = vmatprep.subr.mxu0 0.0
    %5785 = vmatpush2.xpose.msra.mxu0 0.0
    %5786 = vmatprep.subr.mxu0 0.0
    %5787 = vmatpush2.xpose.msra.mxu0 0.0
    %5788 = vmatprep.subr.mxu0 0.0
    %5789 = vmatpush2.xpose.msra.mxu0 0.0
    %5790 = vmatprep.subr.mxu0 0.0
    %5791 = vmatpush2.xpose.msra.mxu0 0.0
    %5792 = vmatprep.subr.mxu0 0.0
    %5793 = vmatpush2.xpose.msra.mxu0 0.0
    %5794 = vmatprep.subr.mxu0 0.0
    %5795 = vmatpush2.xpose.msra.mxu0 0.0
    %5796 = vmatprep.subr.mxu0 0.0
    %5797 = vmatpush2.xpose.msra.mxu0 0.0
    %5798 = vmatprep.subr.mxu0 0.0
    %5799 = vmatpush2.xpose.msra.mxu0 0.0
    %5800 = vmatprep.subr.mxu0 0.0
    %5801 = vmatpush2.xpose.msra.mxu0 0.0
    %5802 = vmatprep.subr.mxu0 0.0
    %5803 = vmatpush2.xpose.msra.mxu0 0.0
    %5804 = vmatprep.subr.mxu0 0.0
    %5805 = vmatpush2.xpose.msra.mxu0 0.0
    %5806 = vmatprep.subr.mxu0 0.0
    %5807 = vmatpush2.xpose.msra.mxu0 0.0
    %5808 = vmatprep.subr.mxu0 0.0
    %5809 = vmatpush2.xpose.msra.mxu0 0.0
    %5810 = vmatprep.subr.mxu0 0.0
    %5811 = vmatpush2.xpose.msra.mxu0 0.0
    %5812 = vmatprep.mubr.f32.mxu0 0.0
    %5813 = vmatmul.mubr.f32.gmra.mxu0 %v5742
    %v5814 = vpop.f32.mrf.mxu0
    %v5815 = vadd.f32 0.0, %v5814
    %v5816 = vpop.f32.mrf.mxu0
    %5817 = vdwg.mxu0
    %v5818 = vsel %vm5645, %v5815, -inf
    %5819 = vmax.xlane.f32.xlu0 %v5818
    %v5820 = vpop.xlane.xlu0 %5819
    %v5821 = vsub.f32 %v5815, %v5820
    %v5822 = vmul.f32 %v5821, 1.442695
    %v5823 = vpow.pop %v5822
    %v5824 = vsel %vm5645, %v5823, 0.0
    %5825 = vadd.xlane.f32.xlu0 %v5824
    %v5826 = vpop.xlane.xlu0 %5825
    %v5827 = vrcp.pop %v5826
    %v5828 = vmul.f32 %v5823, %v5827
    %5829 = vrot.lane.b32.xlu0 %v5558, 88
    %v5830 = vpop.permute.xlu0 %5829
    %5831 = vrot.lane.b32.xlu0 %v5563, 88
    %v5832 = vpop.permute.xlu0 %5831
    %v5836 = vsel %vm825, %v5828, 0
    %5838 = vmatprep.subr.mxu0 0.0
    %5839 = vmatpush1.msra.mxu0 0.0
    %5840 = vmatprep.subr.mxu0 0.0
    %5841 = vmatpush1.msra.mxu0 0.0
    %5842 = vmatprep.subr.mxu0 0.0
    %5843 = vmatpush1.msra.mxu0 0.0
    %5844 = vmatprep.subr.mxu0 0.0
    %5845 = vmatpush1.msra.mxu0 0.0
    %5846 = vmatprep.subr.mxu0 0.0
    %5847 = vmatpush1.msra.mxu0 0.0
    %5848 = vmatprep.subr.mxu0 0.0
    %5849 = vmatpush1.msra.mxu0 0.0
    %5850 = vmatprep.subr.mxu0 0.0
    %5851 = vmatpush1.msra.mxu0 0.0
    %5852 = vmatprep.subr.mxu0 0.0
    %5853 = vmatpush1.msra.mxu0 0.0
    %5854 = vmatprep.subr.mxu0 0.0
    %5855 = vmatpush1.msra.mxu0 0.0
    %5856 = vmatprep.subr.mxu0 0.0
    %5857 = vmatpush1.msra.mxu0 0.0
    %5858 = vmatprep.subr.mxu0 0.0
    %5859 = vmatpush1.msra.mxu0 0.0
    %5860 = vmatprep.subr.mxu0 0.0
    %5861 = vmatpush1.msra.mxu0 0.0
    %5862 = vmatprep.subr.mxu0 0.0
    %5863 = vmatpush1.msra.mxu0 0.0
    %5864 = vmatprep.subr.mxu0 0.0
    %5865 = vmatpush1.msra.mxu0 0.0
    %5866 = vmatprep.subr.mxu0 0.0
    %5867 = vmatpush1.msra.mxu0 %v5832
    %5868 = vmatprep.subr.mxu0 0.0
    %5869 = vmatpush1.msra.mxu0 %v5830
    %5870 = vmatprep.subr.mxu0 0.0
    %5871 = vmatpush2.msra.mxu0 0.0
    %5872 = vmatprep.subr.mxu0 0.0
    %5873 = vmatpush2.msra.mxu0 0.0
    %5874 = vmatprep.subr.mxu0 0.0
    %5875 = vmatpush2.msra.mxu0 0.0
    %5876 = vmatprep.subr.mxu0 0.0
    %5877 = vmatpush2.msra.mxu0 0.0
    %5878 = vmatprep.subr.mxu0 0.0
    %5879 = vmatpush2.msra.mxu0 0.0
    %5880 = vmatprep.subr.mxu0 0.0
    %5881 = vmatpush2.msra.mxu0 0.0
    %5882 = vmatprep.subr.mxu0 0.0
    %5883 = vmatpush2.msra.mxu0 0.0
    %5884 = vmatprep.subr.mxu0 0.0
    %5885 = vmatpush2.msra.mxu0 0.0
    %5886 = vmatprep.subr.mxu0 0.0
    %5887 = vmatpush2.msra.mxu0 0.0
    %5888 = vmatprep.subr.mxu0 0.0
    %5889 = vmatpush2.msra.mxu0 0.0
    %5890 = vmatprep.subr.mxu0 0.0
    %5891 = vmatpush2.msra.mxu0 0.0
    %5892 = vmatprep.subr.mxu0 0.0
    %5893 = vmatpush2.msra.mxu0 0.0
    %5894 = vmatprep.subr.mxu0 0.0
    %5895 = vmatpush2.msra.mxu0 0.0
    %5896 = vmatprep.subr.mxu0 0.0
    %5897 = vmatpush2.msra.mxu0 0.0
    %5898 = vmatprep.subr.mxu0 0.0
    %5899 = vmatpush2.msra.mxu0 0.0
    %5900 = vmatprep.subr.mxu0 0.0
    %5901 = vmatpush2.msra.mxu0 0.0
    %5902 = vmatprep.mubr.f32.mxu0 0.0
    %5903 = vmatmul.mubr.f32.gmra.mxu0 %v5836
    %v5904 = vpop.f32.mrf.mxu0
    %v5905 = vadd.f32 0.0, %v5904
    %v5906 = vpop.f32.mrf.mxu0
    %5907 = vdwg.mxu0
    %5908 = vrot.lane.b32.xlu0 %v5476, 112
    %v5909 = vpop.permute.xlu0 %5908
    %5910 = vrot.lane.b32.xlu0 %v5558, 112
    %v5911 = vpop.permute.xlu0 %5910
    %5912 = vrot.lane.b32.xlu0 %v5563, 112
    %v5913 = vpop.permute.xlu0 %5912
    %v5914 = vsel %vm391, %v5909, 0
    %v5916 = vsel %vm391, %v5911, 0
    %v5918 = vsel %vm391, %v5913, 0
    %5920 = vmatprep.subr.mxu0 0.0
    %5921 = vmatpush1.xpose.msra.mxu0 0.0
    %5922 = vmatprep.subr.mxu0 0.0
    %5923 = vmatpush1.xpose.msra.mxu0 0.0
    %5924 = vmatprep.subr.mxu0 0.0
    %5925 = vmatpush1.xpose.msra.mxu0 0.0
    %5926 = vmatprep.subr.mxu0 0.0
    %5927 = vmatpush1.xpose.msra.mxu0 0.0
    %5928 = vmatprep.subr.mxu0 0.0
    %5929 = vmatpush1.xpose.msra.mxu0 0.0
    %5930 = vmatprep.subr.mxu0 0.0
    %5931 = vmatpush1.xpose.msra.mxu0 0.0
    %5932 = vmatprep.subr.mxu0 0.0
    %5933 = vmatpush1.xpose.msra.mxu0 0.0
    %5934 = vmatprep.subr.mxu0 0.0
    %5935 = vmatpush1.xpose.msra.mxu0 0.0
    %5936 = vmatprep.subr.mxu0 0.0
    %5937 = vmatpush1.xpose.msra.mxu0 0.0
    %5938 = vmatprep.subr.mxu0 0.0
    %5939 = vmatpush1.xpose.msra.mxu0 0.0
    %5940 = vmatprep.subr.mxu0 0.0
    %5941 = vmatpush1.xpose.msra.mxu0 0.0
    %5942 = vmatprep.subr.mxu0 0.0
    %5943 = vmatpush1.xpose.msra.mxu0 0.0
    %5944 = vmatprep.subr.mxu0 0.0
    %5945 = vmatpush1.xpose.msra.mxu0 0.0
    %5946 = vmatprep.subr.mxu0 0.0
    %5947 = vmatpush1.xpose.msra.mxu0 0.0
    %5948 = vmatprep.subr.mxu0 0.0
    %5949 = vmatpush1.xpose.msra.mxu0 %v5918
    %5950 = vmatprep.subr.mxu0 0.0
    %5951 = vmatpush1.xpose.msra.mxu0 %v5916
    %5952 = vmatprep.subr.mxu0 0.0
    %5953 = vmatpush2.xpose.msra.mxu0 0.0
    %5954 = vmatprep.subr.mxu0 0.0
    %5955 = vmatpush2.xpose.msra.mxu0 0.0
    %5956 = vmatprep.subr.mxu0 0.0
    %5957 = vmatpush2.xpose.msra.mxu0 0.0
    %5958 = vmatprep.subr.mxu0 0.0
    %5959 = vmatpush2.xpose.msra.mxu0 0.0
    %5960 = vmatprep.subr.mxu0 0.0
    %5961 = vmatpush2.xpose.msra.mxu0 0.0
    %5962 = vmatprep.subr.mxu0 0.0
    %5963 = vmatpush2.xpose.msra.mxu0 0.0
    %5964 = vmatprep.subr.mxu0 0.0
    %5965 = vmatpush2.xpose.msra.mxu0 0.0
    %5966 = vmatprep.subr.mxu0 0.0
    %5967 = vmatpush2.xpose.msra.mxu0 0.0
    %5968 = vmatprep.subr.mxu0 0.0
    %5969 = vmatpush2.xpose.msra.mxu0 0.0
    %5970 = vmatprep.subr.mxu0 0.0
    %5971 = vmatpush2.xpose.msra.mxu0 0.0
    %5972 = vmatprep.subr.mxu0 0.0
    %5973 = vmatpush2.xpose.msra.mxu0 0.0
    %5974 = vmatprep.subr.mxu0 0.0
    %5975 = vmatpush2.xpose.msra.mxu0 0.0
    %5976 = vmatprep.subr.mxu0 0.0
    %5977 = vmatpush2.xpose.msra.mxu0 0.0
    %5978 = vmatprep.subr.mxu0 0.0
    %5979 = vmatpush2.xpose.msra.mxu0 0.0
    %5980 = vmatprep.subr.mxu0 0.0
    %5981 = vmatpush2.xpose.msra.mxu0 0.0
    %5982 = vmatprep.subr.mxu0 0.0
    %5983 = vmatpush2.xpose.msra.mxu0 0.0
    %5984 = vmatprep.mubr.f32.mxu0 0.0
    %5985 = vmatmul.mubr.f32.gmra.mxu0 %v5914
    %v5986 = vpop.f32.mrf.mxu0
    %v5987 = vadd.f32 0.0, %v5986
    %v5988 = vpop.f32.mrf.mxu0
    %5989 = vdwg.mxu0
    %v5990 = vsel %vm5645, %v5987, -inf
    %5991 = vmax.xlane.f32.xlu0 %v5990
    %v5992 = vpop.xlane.xlu0 %5991
    %v5993 = vsub.f32 %v5987, %v5992
    %v5994 = vmul.f32 %v5993, 1.442695
    %v5995 = vpow.pop %v5994
    %v5996 = vsel %vm5645, %v5995, 0.0
    %5997 = vadd.xlane.f32.xlu0 %v5996
    %v5998 = vpop.xlane.xlu0 %5997
    %v5999 = vrcp.pop %v5998
    %v6000 = vmul.f32 %v5995, %v5999
    %6001 = vrot.lane.b32.xlu0 %v5558, 80
    %v6002 = vpop.permute.xlu0 %6001
    %6003 = vrot.lane.b32.xlu0 %v5563, 80
    %v6004 = vpop.permute.xlu0 %6003
    %v6008 = vsel %vm825, %v6000, 0
    %6010 = vmatprep.subr.mxu0 0.0
    %6011 = vmatpush1.msra.mxu0 0.0
    %6012 = vmatprep.subr.mxu0 0.0
    %6013 = vmatpush1.msra.mxu0 0.0
    %6014 = vmatprep.subr.mxu0 0.0
    %6015 = vmatpush1.msra.mxu0 0.0
    %6016 = vmatprep.subr.mxu0 0.0
    %6017 = vmatpush1.msra.mxu0 0.0
    %6018 = vmatprep.subr.mxu0 0.0
    %6019 = vmatpush1.msra.mxu0 0.0
    %6020 = vmatprep.subr.mxu0 0.0
    %6021 = vmatpush1.msra.mxu0 0.0
    %6022 = vmatprep.subr.mxu0 0.0
    %6023 = vmatpush1.msra.mxu0 0.0
    %6024 = vmatprep.subr.mxu0 0.0
    %6025 = vmatpush1.msra.mxu0 0.0
    %6026 = vmatprep.subr.mxu0 0.0
    %6027 = vmatpush1.msra.mxu0 0.0
    %6028 = vmatprep.subr.mxu0 0.0
    %6029 = vmatpush1.msra.mxu0 0.0
    %6030 = vmatprep.subr.mxu0 0.0
    %6031 = vmatpush1.msra.mxu0 0.0
    %6032 = vmatprep.subr.mxu0 0.0
    %6033 = vmatpush1.msra.mxu0 0.0
    %6034 = vmatprep.subr.mxu0 0.0
    %6035 = vmatpush1.msra.mxu0 0.0
    %6036 = vmatprep.subr.mxu0 0.0
    %6037 = vmatpush1.msra.mxu0 0.0
    %6038 = vmatprep.subr.mxu0 0.0
    %6039 = vmatpush1.msra.mxu0 %v6004
    %6040 = vmatprep.subr.mxu0 0.0
    %6041 = vmatpush1.msra.mxu0 %v6002
    %6042 = vmatprep.subr.mxu0 0.0
    %6043 = vmatpush2.msra.mxu0 0.0
    %6044 = vmatprep.subr.mxu0 0.0
    %6045 = vmatpush2.msra.mxu0 0.0
    %6046 = vmatprep.subr.mxu0 0.0
    %6047 = vmatpush2.msra.mxu0 0.0
    %6048 = vmatprep.subr.mxu0 0.0
    %6049 = vmatpush2.msra.mxu0 0.0
    %6050 = vmatprep.subr.mxu0 0.0
    %6051 = vmatpush2.msra.mxu0 0.0
    %6052 = vmatprep.subr.mxu0 0.0
    %6053 = vmatpush2.msra.mxu0 0.0
    %6054 = vmatprep.subr.mxu0 0.0
    %6055 = vmatpush2.msra.mxu0 0.0
    %6056 = vmatprep.subr.mxu0 0.0
    %6057 = vmatpush2.msra.mxu0 0.0
    %6058 = vmatprep.subr.mxu0 0.0
    %6059 = vmatpush2.msra.mxu0 0.0
    %6060 = vmatprep.subr.mxu0 0.0
    %6061 = vmatpush2.msra.mxu0 0.0
    %6062 = vmatprep.subr.mxu0 0.0
    %6063 = vmatpush2.msra.mxu0 0.0
    %6064 = vmatprep.subr.mxu0 0.0
    %6065 = vmatpush2.msra.mxu0 0.0
    %6066 = vmatprep.subr.mxu0 0.0
    %6067 = vmatpush2.msra.mxu0 0.0
    %6068 = vmatprep.subr.mxu0 0.0
    %6069 = vmatpush2.msra.mxu0 0.0
    %6070 = vmatprep.subr.mxu0 0.0
    %6071 = vmatpush2.msra.mxu0 0.0
    %6072 = vmatprep.subr.mxu0 0.0
    %6073 = vmatpush2.msra.mxu0 0.0
    %6074 = vmatprep.mubr.f32.mxu0 0.0
    %6075 = vmatmul.mubr.f32.gmra.mxu0 %v6008
    %v6076 = vpop.f32.mrf.mxu0
    %v6077 = vadd.f32 0.0, %v6076
    %v6078 = vpop.f32.mrf.mxu0
    %6079 = vdwg.mxu0
    %6080 = vrot.lane.b32.xlu0 %v5476, 104
    %v6081 = vpop.permute.xlu0 %6080
    %6082 = vrot.lane.b32.xlu0 %v5558, 104
    %v6083 = vpop.permute.xlu0 %6082
    %6084 = vrot.lane.b32.xlu0 %v5563, 104
    %v6085 = vpop.permute.xlu0 %6084
    %v6086 = vsel %vm391, %v6081, 0
    %v6088 = vsel %vm391, %v6083, 0
    %v6090 = vsel %vm391, %v6085, 0
    %6092 = vmatprep.subr.mxu0 0.0
    %6093 = vmatpush1.xpose.msra.mxu0 0.0
    %6094 = vmatprep.subr.mxu0 0.0
    %6095 = vmatpush1.xpose.msra.mxu0 0.0
    %6096 = vmatprep.subr.mxu0 0.0
    %6097 = vmatpush1.xpose.msra.mxu0 0.0
    %6098 = vmatprep.subr.mxu0 0.0
    %6099 = vmatpush1.xpose.msra.mxu0 0.0
    %6100 = vmatprep.subr.mxu0 0.0
    %6101 = vmatpush1.xpose.msra.mxu0 0.0
    %6102 = vmatprep.subr.mxu0 0.0
    %6103 = vmatpush1.xpose.msra.mxu0 0.0
    %6104 = vmatprep.subr.mxu0 0.0
    %6105 = vmatpush1.xpose.msra.mxu0 0.0
    %6106 = vmatprep.subr.mxu0 0.0
    %6107 = vmatpush1.xpose.msra.mxu0 0.0
    %6108 = vmatprep.subr.mxu0 0.0
    %6109 = vmatpush1.xpose.msra.mxu0 0.0
    %6110 = vmatprep.subr.mxu0 0.0
    %6111 = vmatpush1.xpose.msra.mxu0 0.0
    %6112 = vmatprep.subr.mxu0 0.0
    %6113 = vmatpush1.xpose.msra.mxu0 0.0
    %6114 = vmatprep.subr.mxu0 0.0
    %6115 = vmatpush1.xpose.msra.mxu0 0.0
    %6116 = vmatprep.subr.mxu0 0.0
    %6117 = vmatpush1.xpose.msra.mxu0 0.0
    %6118 = vmatprep.subr.mxu0 0.0
    %6119 = vmatpush1.xpose.msra.mxu0 0.0
    %6120 = vmatprep.subr.mxu0 0.0
    %6121 = vmatpush1.xpose.msra.mxu0 %v6090
    %6122 = vmatprep.subr.mxu0 0.0
    %6123 = vmatpush1.xpose.msra.mxu0 %v6088
    %6124 = vmatprep.subr.mxu0 0.0
    %6125 = vmatpush2.xpose.msra.mxu0 0.0
    %6126 = vmatprep.subr.mxu0 0.0
    %6127 = vmatpush2.xpose.msra.mxu0 0.0
    %6128 = vmatprep.subr.mxu0 0.0
    %6129 = vmatpush2.xpose.msra.mxu0 0.0
    %6130 = vmatprep.subr.mxu0 0.0
    %6131 = vmatpush2.xpose.msra.mxu0 0.0
    %6132 = vmatprep.subr.mxu0 0.0
    %6133 = vmatpush2.xpose.msra.mxu0 0.0
    %6134 = vmatprep.subr.mxu0 0.0
    %6135 = vmatpush2.xpose.msra.mxu0 0.0
    %6136 = vmatprep.subr.mxu0 0.0
    %6137 = vmatpush2.xpose.msra.mxu0 0.0
    %6138 = vmatprep.subr.mxu0 0.0
    %6139 = vmatpush2.xpose.msra.mxu0 0.0
    %6140 = vmatprep.subr.mxu0 0.0
    %6141 = vmatpush2.xpose.msra.mxu0 0.0
    %6142 = vmatprep.subr.mxu0 0.0
    %6143 = vmatpush2.xpose.msra.mxu0 0.0
    %6144 = vmatprep.subr.mxu0 0.0
    %6145 = vmatpush2.xpose.msra.mxu0 0.0
    %6146 = vmatprep.subr.mxu0 0.0
    %6147 = vmatpush2.xpose.msra.mxu0 0.0
    %6148 = vmatprep.subr.mxu0 0.0
    %6149 = vmatpush2.xpose.msra.mxu0 0.0
    %6150 = vmatprep.subr.mxu0 0.0
    %6151 = vmatpush2.xpose.msra.mxu0 0.0
    %6152 = vmatprep.subr.mxu0 0.0
    %6153 = vmatpush2.xpose.msra.mxu0 0.0
    %6154 = vmatprep.subr.mxu0 0.0
    %6155 = vmatpush2.xpose.msra.mxu0 0.0
    %6156 = vmatprep.mubr.f32.mxu0 0.0
    %6157 = vmatmul.mubr.f32.gmra.mxu0 %v6086
    %v6158 = vpop.f32.mrf.mxu0
    %v6159 = vadd.f32 0.0, %v6158
    %v6160 = vpop.f32.mrf.mxu0
    %6161 = vdwg.mxu0
    %v6162 = vsel %vm5645, %v6159, -inf
    %6163 = vmax.xlane.f32.xlu0 %v6162
    %v6164 = vpop.xlane.xlu0 %6163
    %v6165 = vsub.f32 %v6159, %v6164
    %v6166 = vmul.f32 %v6165, 1.442695
    %v6167 = vpow.pop %v6166
    %v6168 = vsel %vm5645, %v6167, 0.0
    %6169 = vadd.xlane.f32.xlu0 %v6168
    %v6170 = vpop.xlane.xlu0 %6169
    %v6171 = vrcp.pop %v6170
    %v6172 = vmul.f32 %v6167, %v6171
    %6173 = vrot.lane.b32.xlu0 %v5558, 72
    %v6174 = vpop.permute.xlu0 %6173
    %6175 = vrot.lane.b32.xlu0 %v5563, 72
    %v6176 = vpop.permute.xlu0 %6175
    %v6180 = vsel %vm825, %v6172, 0
    %6182 = vmatprep.subr.mxu0 0.0
    %6183 = vmatpush1.msra.mxu0 0.0
    %6184 = vmatprep.subr.mxu0 0.0
    %6185 = vmatpush1.msra.mxu0 0.0
    %6186 = vmatprep.subr.mxu0 0.0
    %6187 = vmatpush1.msra.mxu0 0.0
    %6188 = vmatprep.subr.mxu0 0.0
    %6189 = vmatpush1.msra.mxu0 0.0
    %6190 = vmatprep.subr.mxu0 0.0
    %6191 = vmatpush1.msra.mxu0 0.0
    %6192 = vmatprep.subr.mxu0 0.0
    %6193 = vmatpush1.msra.mxu0 0.0
    %6194 = vmatprep.subr.mxu0 0.0
    %6195 = vmatpush1.msra.mxu0 0.0
    %6196 = vmatprep.subr.mxu0 0.0
    %6197 = vmatpush1.msra.mxu0 0.0
    %6198 = vmatprep.subr.mxu0 0.0
    %6199 = vmatpush1.msra.mxu0 0.0
    %6200 = vmatprep.subr.mxu0 0.0
    %6201 = vmatpush1.msra.mxu0 0.0
    %6202 = vmatprep.subr.mxu0 0.0
    %6203 = vmatpush1.msra.mxu0 0.0
    %6204 = vmatprep.subr.mxu0 0.0
    %6205 = vmatpush1.msra.mxu0 0.0
    %6206 = vmatprep.subr.mxu0 0.0
    %6207 = vmatpush1.msra.mxu0 0.0
    %6208 = vmatprep.subr.mxu0 0.0
    %6209 = vmatpush1.msra.mxu0 0.0
    %6210 = vmatprep.subr.mxu0 0.0
    %6211 = vmatpush1.msra.mxu0 %v6176
    %6212 = vmatprep.subr.mxu0 0.0
    %6213 = vmatpush1.msra.mxu0 %v6174
    %6214 = vmatprep.subr.mxu0 0.0
    %6215 = vmatpush2.msra.mxu0 0.0
    %6216 = vmatprep.subr.mxu0 0.0
    %6217 = vmatpush2.msra.mxu0 0.0
    %6218 = vmatprep.subr.mxu0 0.0
    %6219 = vmatpush2.msra.mxu0 0.0
    %6220 = vmatprep.subr.mxu0 0.0
    %6221 = vmatpush2.msra.mxu0 0.0
    %6222 = vmatprep.subr.mxu0 0.0
    %6223 = vmatpush2.msra.mxu0 0.0
    %6224 = vmatprep.subr.mxu0 0.0
    %6225 = vmatpush2.msra.mxu0 0.0
    %6226 = vmatprep.subr.mxu0 0.0
    %6227 = vmatpush2.msra.mxu0 0.0
    %6228 = vmatprep.subr.mxu0 0.0
    %6229 = vmatpush2.msra.mxu0 0.0
    %6230 = vmatprep.subr.mxu0 0.0
    %6231 = vmatpush2.msra.mxu0 0.0
    %6232 = vmatprep.subr.mxu0 0.0
    %6233 = vmatpush2.msra.mxu0 0.0
    %6234 = vmatprep.subr.mxu0 0.0
    %6235 = vmatpush2.msra.mxu0 0.0
    %6236 = vmatprep.subr.mxu0 0.0
    %6237 = vmatpush2.msra.mxu0 0.0
    %6238 = vmatprep.subr.mxu0 0.0
    %6239 = vmatpush2.msra.mxu0 0.0
    %6240 = vmatprep.subr.mxu0 0.0
    %6241 = vmatpush2.msra.mxu0 0.0
    %6242 = vmatprep.subr.mxu0 0.0
    %6243 = vmatpush2.msra.mxu0 0.0
    %6244 = vmatprep.subr.mxu0 0.0
    %6245 = vmatpush2.msra.mxu0 0.0
    %6246 = vmatprep.mubr.f32.mxu0 0.0
    %6247 = vmatmul.mubr.f32.gmra.mxu0 %v6180
    %v6248 = vpop.f32.mrf.mxu0
    %v6249 = vadd.f32 0.0, %v6248
    %v6250 = vpop.f32.mrf.mxu0
    %6251 = vdwg.mxu0
    %6253 = vrot.lane.b32.xlu0 %v5905, 8
    %v6254 = vpop.permute.xlu0 %6253
    %6257 = vrot.lane.b32.xlu0 %v6077, 16
    %v6258 = vpop.permute.xlu0 %6257
    %6261 = vrot.lane.b32.xlu0 %v6249, 24
    %v6262 = vpop.permute.xlu0 %6261
    %v6264 = vsel %vm391, %v5733, %v6254
    %v6265 = vsel %vm825, %v6264, %v6258
    %v6266 = vsel %vm1563, %v6265, %v6262
    %v6268 = vsel %vm654, %v6266, 0
    %6270 = vmatprep.subr.mxu0 0.0
    %6271 = vmatpush1.msra.mxu0 0.0
    %6272 = vmatprep.subr.mxu0 0.0
    %6273 = vmatpush1.msra.mxu0 0.0
    %6274 = vmatprep.subr.mxu0 0.0
    %6275 = vmatpush1.msra.mxu0 0.0
    %6276 = vmatprep.subr.mxu0 0.0
    %6277 = vmatpush1.msra.mxu0 0.0
    %6278 = vmatprep.subr.mxu0 0.0
    %6279 = vmatpush1.msra.mxu0 0.0
    %6280 = vmatprep.subr.mxu0 0.0
    %6281 = vmatpush1.msra.mxu0 0.0
    %6282 = vmatprep.subr.mxu0 0.0
    %6283 = vmatpush1.msra.mxu0 0.0
    %6284 = vmatprep.subr.mxu0 0.0
    %6285 = vmatpush1.msra.mxu0 0.0
    %6286 = vmatprep.subr.mxu0 0.0
    %6287 = vmatpush1.msra.mxu0 0.0
    %6288 = vmatprep.subr.mxu0 0.0
    %6289 = vmatpush1.msra.mxu0 0.0
    %6290 = vmatprep.subr.mxu0 0.0
    %6291 = vmatpush1.msra.mxu0 0.0
    %6292 = vmatprep.subr.mxu0 0.0
    %6293 = vmatpush1.msra.mxu0 0.0
    %6294 = vmatprep.subr.mxu0 0.0
    %6295 = vmatpush1.msra.mxu0 %v5331
    %6296 = vmatprep.subr.mxu0 0.0
    %6297 = vmatpush1.msra.mxu0 %v5330
    %6298 = vmatprep.subr.mxu0 0.0
    %6299 = vmatpush1.msra.mxu0 %v5329
    %6300 = vmatprep.subr.mxu0 0.0
    %6301 = vmatpush1.msra.mxu0 %v5328
    %6302 = vmatprep.subr.mxu0 0.0
    %6303 = vmatpush2.msra.mxu0 0.0
    %6304 = vmatprep.subr.mxu0 0.0
    %6305 = vmatpush2.msra.mxu0 0.0
    %6306 = vmatprep.subr.mxu0 0.0
    %6307 = vmatpush2.msra.mxu0 0.0
    %6308 = vmatprep.subr.mxu0 0.0
    %6309 = vmatpush2.msra.mxu0 0.0
    %6310 = vmatprep.subr.mxu0 0.0
    %6311 = vmatpush2.msra.mxu0 0.0
    %6312 = vmatprep.subr.mxu0 0.0
    %6313 = vmatpush2.msra.mxu0 0.0
    %6314 = vmatprep.subr.mxu0 0.0
    %6315 = vmatpush2.msra.mxu0 0.0
    %6316 = vmatprep.subr.mxu0 0.0
    %6317 = vmatpush2.msra.mxu0 0.0
    %6318 = vmatprep.subr.mxu0 0.0
    %6319 = vmatpush2.msra.mxu0 0.0
    %6320 = vmatprep.subr.mxu0 0.0
    %6321 = vmatpush2.msra.mxu0 0.0
    %6322 = vmatprep.subr.mxu0 0.0
    %6323 = vmatpush2.msra.mxu0 0.0
    %6324 = vmatprep.subr.mxu0 0.0
    %6325 = vmatpush2.msra.mxu0 0.0
    %6326 = vmatprep.subr.mxu0 0.0
    %6327 = vmatpush2.msra.mxu0 0.0
    %6328 = vmatprep.subr.mxu0 0.0
    %6329 = vmatpush2.msra.mxu0 0.0
    %6330 = vmatprep.subr.mxu0 0.0
    %6331 = vmatpush2.msra.mxu0 0.0
    %6332 = vmatprep.subr.mxu0 0.0
    %6333 = vmatpush2.msra.mxu0 0.0
    %6334 = vmatprep.mubr.f32.mxu0 0.0
    %6335 = vmatmul.mubr.f32.gmra.mxu0 %v6268
    %v6336 = vpop.f32.mrf.mxu0
    %v6337 = vadd.f32 %v5332, %v6336
    %v6338 = vpop.f32.mrf.mxu0
    %6339 = vdwg.mxu0
    %v6340 = vld [vmem:[#allocation13] sm:$0x1]
    %v6341 = vld [vmem:[#allocation15] sm:$0x1]
    %vm6342 = vcmask 253952
    %v6343 = vsel %vm6342, %v6337, 0.0
    %6344 = vadd.xlane.f32.xlu0 %v6343
    %v6345 = vpop.xlane.xlu0 %6344
    %v6346 = vmul.f32 %v6345, %v1661
    %v6347 = vsub.f32 %v6337, %v6346
    %v6348 = vmul.f32 %v6347, %v6347
    %v6349 = vsel %vm6342, %v6348, 0.0
    %6350 = vadd.xlane.f32.xlu0 %v6349
    %v6351 = vpop.xlane.xlu0 %6350
    %v6352 = vmul.f32 %v6351, %v1674
    %v6353 = vrsqrt.pop %v6352
    %v6354 = vmul.f32 %v6352, %v6353
    %vm6355 = vcmp.eq.f32.partialorder %v6352, inf
    %v6356 = vsel %vm6355, %v6352, %v6354
    %vm6357 = vcmp.eq.f32.partialorder %v6352, 0.0
    %v6358 = vand.u32 %v6352, 2147483648
    %v6359 = vsel %vm6357, %v6358, %v6356
    %v6360 = vadd.f32 %v6359, 1e-06
    %v6361 = vrcp.pop %v6360
    %v6362 = vmul.f32 %v6340, %v6347
    %v6363 = vmul.f32 %v6362, %v6361
    %v6364 = vadd.f32 %v6363, %v6341
    %v6365 = vld [vmem:[%s91] sm:$0xff]
    %v6366 = vld [vmem:[%s91 + $0x8] sm:$0xff]
    %v6367 = vld [vmem:[%s91 + $0x10] sm:$0xff]
    %v6368 = vld [vmem:[%s91 + $0x18] sm:$0xff]
    %v6369 = vld [vmem:[%s91 + $0x20] sm:$0xff]
    %v6370 = vld [vmem:[%s91 + $0x28] sm:$0x3]
    %v6376 = vrot.slane %v6366, 2
    %v6377 = vrot.slane %v6367, 2
    %v6378 = vsel %vm1979, %v6376, %v6377
    %v6379 = vrot.slane %v6368, 2
    %v6380 = vsel %vm1979, %v6377, %v6379
    %v6381 = vrot.slane %v6369, 2
    %v6382 = vsel %vm1979, %v6379, %v6381
    %v6383 = vrot.slane %v6370, 2
    %v6384 = vsel %vm1979, %v6381, %v6383
    %v6390 = vsel %vm654, %v6364, 0
    %6392 = vmatprep.subr.mxu0 0.0
    %6393 = vmatpush1.msra.mxu0 0.0
    %6394 = vmatprep.subr.mxu0 0.0
    %6395 = vmatpush1.msra.mxu0 0.0
    %6396 = vmatprep.subr.mxu0 0.0
    %6397 = vmatpush1.msra.mxu0 0.0
    %6398 = vmatprep.subr.mxu0 0.0
    %6399 = vmatpush1.msra.mxu0 0.0
    %6400 = vmatprep.subr.mxu0 0.0
    %6401 = vmatpush1.msra.mxu0 0.0
    %6402 = vmatprep.subr.mxu0 0.0
    %6403 = vmatpush1.msra.mxu0 0.0
    %6404 = vmatprep.subr.mxu0 0.0
    %6405 = vmatpush1.msra.mxu0 0.0
    %6406 = vmatprep.subr.mxu0 0.0
    %6407 = vmatpush1.msra.mxu0 0.0
    %6408 = vmatprep.subr.mxu0 0.0
    %6409 = vmatpush1.msra.mxu0 0.0
    %6410 = vmatprep.subr.mxu0 0.0
    %6411 = vmatpush1.msra.mxu0 0.0
    %6412 = vmatprep.subr.mxu0 0.0
    %6413 = vmatpush1.msra.mxu0 0.0
    %6414 = vmatprep.subr.mxu0 0.0
    %6415 = vmatpush1.msra.mxu0 0.0
    %6416 = vmatprep.subr.mxu0 0.0
    %6417 = vmatpush1.msra.mxu0 %v6384
    %6418 = vmatprep.subr.mxu0 0.0
    %6419 = vmatpush1.msra.mxu0 %v6382
    %6420 = vmatprep.subr.mxu0 0.0
    %6421 = vmatpush1.msra.mxu0 %v6380
    %6422 = vmatprep.subr.mxu0 0.0
    %6423 = vmatpush1.msra.mxu0 %v6378
    %6424 = vmatprep.subr.mxu0 0.0
    %6425 = vmatpush2.msra.mxu0 0.0
    %6426 = vmatprep.subr.mxu0 0.0
    %6427 = vmatpush2.msra.mxu0 0.0
    %6428 = vmatprep.subr.mxu0 0.0
    %6429 = vmatpush2.msra.mxu0 0.0
    %6430 = vmatprep.subr.mxu0 0.0
    %6431 = vmatpush2.msra.mxu0 0.0
    %6432 = vmatprep.subr.mxu0 0.0
    %6433 = vmatpush2.msra.mxu0 0.0
    %6434 = vmatprep.subr.mxu0 0.0
    %6435 = vmatpush2.msra.mxu0 0.0
    %6436 = vmatprep.subr.mxu0 0.0
    %6437 = vmatpush2.msra.mxu0 0.0
    %6438 = vmatprep.subr.mxu0 0.0
    %6439 = vmatpush2.msra.mxu0 0.0
    %6440 = vmatprep.subr.mxu0 0.0
    %6441 = vmatpush2.msra.mxu0 0.0
    %6442 = vmatprep.subr.mxu0 0.0
    %6443 = vmatpush2.msra.mxu0 0.0
    %6444 = vmatprep.subr.mxu0 0.0
    %6445 = vmatpush2.msra.mxu0 0.0
    %6446 = vmatprep.subr.mxu0 0.0
    %6447 = vmatpush2.msra.mxu0 0.0
    %6448 = vmatprep.subr.mxu0 0.0
    %6449 = vmatpush2.msra.mxu0 0.0
    %6450 = vmatprep.subr.mxu0 0.0
    %6451 = vmatpush2.msra.mxu0 0.0
    %6452 = vmatprep.subr.mxu0 0.0
    %6453 = vmatpush2.msra.mxu0 0.0
    %6454 = vmatprep.subr.mxu0 0.0
    %6455 = vmatpush2.msra.mxu0 0.0
    %6456 = vmatprep.mubr.f32.mxu0 0.0
    %6457 = vmatmul.mubr.f32.gmra.mxu0 %v6390
    %v6458 = vpop.f32.mrf.mxu0
    %v6459 = vadd.f32 0.0, %v6458
    %v6460 = vpop.f32.mrf.mxu0
    %6461 = vdwg.mxu0
    %v6462 = vsel %vm316, %v6366, 0
    %6464 = vmatprep.subr.mxu0 0.0
    %6465 = vmatpush1.msra.mxu0 0.0
    %6466 = vmatprep.subr.mxu0 0.0
    %6467 = vmatpush1.msra.mxu0 0.0
    %6468 = vmatprep.subr.mxu0 0.0
    %6469 = vmatpush1.msra.mxu0 0.0
    %6470 = vmatprep.subr.mxu0 0.0
    %6471 = vmatpush1.msra.mxu0 0.0
    %6472 = vmatprep.subr.mxu0 0.0
    %6473 = vmatpush1.msra.mxu0 0.0
    %6474 = vmatprep.subr.mxu0 0.0
    %6475 = vmatpush1.msra.mxu0 0.0
    %6476 = vmatprep.subr.mxu0 0.0
    %6477 = vmatpush1.msra.mxu0 0.0
    %6478 = vmatprep.subr.mxu0 0.0
    %6479 = vmatpush1.msra.mxu0 0.0
    %6480 = vmatprep.subr.mxu0 0.0
    %6481 = vmatpush1.msra.mxu0 0.0
    %6482 = vmatprep.subr.mxu0 0.0
    %6483 = vmatpush1.msra.mxu0 0.0
    %6484 = vmatprep.subr.mxu0 0.0
    %6485 = vmatpush1.msra.mxu0 0.0
    %6486 = vmatprep.subr.mxu0 0.0
    %6487 = vmatpush1.msra.mxu0 0.0
    %6488 = vmatprep.subr.mxu0 0.0
    %6489 = vmatpush1.msra.mxu0 0.0
    %6490 = vmatprep.subr.mxu0 0.0
    %6491 = vmatpush1.msra.mxu0 0.0
    %6492 = vmatprep.subr.mxu0 0.0
    %6493 = vmatpush1.msra.mxu0 %v6462
    %6494 = vmatprep.subr.mxu0 0.0
    %6495 = vmatpush1.msra.mxu0 %v6365
    %6496 = vmatprep.subr.mxu0 0.0
    %6497 = vmatpush2.msra.mxu0 0.0
    %6498 = vmatprep.subr.mxu0 0.0
    %6499 = vmatpush2.msra.mxu0 0.0
    %6500 = vmatprep.subr.mxu0 0.0
    %6501 = vmatpush2.msra.mxu0 0.0
    %6502 = vmatprep.subr.mxu0 0.0
    %6503 = vmatpush2.msra.mxu0 0.0
    %6504 = vmatprep.subr.mxu0 0.0
    %6505 = vmatpush2.msra.mxu0 0.0
    %6506 = vmatprep.subr.mxu0 0.0
    %6507 = vmatpush2.msra.mxu0 0.0
    %6508 = vmatprep.subr.mxu0 0.0
    %6509 = vmatpush2.msra.mxu0 0.0
    %6510 = vmatprep.subr.mxu0 0.0
    %6511 = vmatpush2.msra.mxu0 0.0
    %6512 = vmatprep.subr.mxu0 0.0
    %6513 = vmatpush2.msra.mxu0 0.0
    %6514 = vmatprep.subr.mxu0 0.0
    %6515 = vmatpush2.msra.mxu0 0.0
    %6516 = vmatprep.subr.mxu0 0.0
    %6517 = vmatpush2.msra.mxu0 0.0
    %6518 = vmatprep.subr.mxu0 0.0
    %6519 = vmatpush2.msra.mxu0 0.0
    %6520 = vmatprep.subr.mxu0 0.0
    %6521 = vmatpush2.msra.mxu0 0.0
    %6522 = vmatprep.subr.mxu0 0.0
    %6523 = vmatpush2.msra.mxu0 0.0
    %6524 = vmatprep.subr.mxu0 0.0
    %6525 = vmatpush2.msra.mxu0 0.0
    %6526 = vmatprep.subr.mxu0 0.0
    %6527 = vmatpush2.msra.mxu0 0.0
    %6528 = vmatprep.mubr.f32.mxu0 0.0
    %6529 = vmatmul.mubr.f32.gmra.mxu0 %v3441
    %v6530 = vpop.f32.mrf.mxu0
    %v6531 = vadd.f32 %v6459, %v6530
    %v6532 = vpop.f32.mrf.mxu0
    %6533 = vdwg.mxu0
    %v6534 = vld [vmem:[#allocation16] sm:$0x1]
    %v6535 = vadd.f32 %v6531, %v6534
    %vm6536 = vcmask 8192
    %6537 = vst.msk [vmem:[#allocation18] sm:$0x1] %vm6536, %v6535
    // Predicated region
    $region226: #{cpi_forward.1} parent=1 // pred_check
      _
    $region227: #{cpi_forward.1} parent=1 // pred_check_branch
      %6539 = sbr.rel (0) target = $region229
    $region228: #{cpi_forward.1} parent=1 // pred_region
      %s6541 = ssub.s32 16, 16
      %6542 = vsyncadd [#allocation4], %s6541
      %s6544 = sshll.u32 [#allocation18], 4
      %s6545 = int_to_ptr.vmem [resolvable:$true] %s6544
      %6547 = dma.vmem_to_hbm [thread:$0]  %s6545, 16, %s95, [#allocation4]
    $region229: #{cpi_forward.1} parent=1 // pred_fallthru
      _
    // Predicated region
    $region230: #{cpi_forward.1} parent=1 // pred_check
      _
    $region231: #{cpi_forward.1} parent=1 // pred_check_branch
      %6549 = sbr.rel (0) target = $region233
    $region232: #{cpi_forward.1} parent=1 // pred_region
      %6550 = dma.done [#allocation4], 16
    $region233: #{cpi_forward.1} parent=1 // pred_fallthru
      _
    %6551 = vsyncpa [#allocation3], 1
    %6552 = vsyncpa [#allocation8], 1
    %6553 = vsyncpa [#allocation11], 1
    %6554 = vsyncpa [#allocation14], 1
    %6555 = vsyncpa [#allocation17], 1
    %6556 = vsyncpa [#allocation4], 1
    %6557 = vsyncpa [#allocation5], 1

</llo_original>
